<compile_context>
chip_gen: v7x
topology: tpu7x:2x2x1
jax: 0.10.0
libtpu: 0.0.40
codegen_flags: <defaults>
</compile_context>

<pallas_src>
import jax
import jax.numpy as jnp
from jax.experimental import pallas as pl
from jax.experimental.pallas import tpu as pltpu

CIN = 256 + 3          # 259 input feature channels
H1, H2, H3 = 512, 512, 1024


# --------------------------- kernel 0: softmax -------------------------------
def softmax_kernel(conf_ref, w_ref):
    c = conf_ref[...]                                     # (B, N) f32
    m = jnp.max(c, axis=1, keepdims=True)
    e = jnp.exp(c - m)
    s = jnp.sum(e, axis=1, keepdims=True)
    w_ref[...] = e / s                                    # exact: weights sum to 1


# ------------------- kernel 1: share-MLP + weighted pooling ------------------
def share_pool_kernel(x_ref, wsm_ref,
                      w1_ref, b1_ref, w2_ref, b2_ref, w3_ref, b3_ref,
                      pooled_ref):
    # x_ref     : (1, CIN, TN) f32  -- original (B, C, N) layout, C on sublanes
    # wsm_ref   : (1, 1, TN)   f32  -- softmax weights of this batch's chunk
    # w*_ref    : (Cout, Cin) bf16 (PyTorch orientation); b*_ref: (Cout, 1) f32
    # pooled_ref: (1, 1, H3)   f32  -- same block across the chunk axis (accum)
    @pl.when(pl.program_id(1) == 0)
    def _():
        pooled_ref[...] = jnp.zeros_like(pooled_ref)

    xb = x_ref[0].astype(jnp.bfloat16)                    # (CIN, TN)
    h = jnp.dot(w1_ref[...], xb,
                preferred_element_type=jnp.float32) + b1_ref[...]
    h = jnp.maximum(h, 0.0)
    h = jnp.dot(w2_ref[...], h.astype(jnp.bfloat16),
                preferred_element_type=jnp.float32) + b2_ref[...]
    h = jnp.maximum(h, 0.0)
    h = jnp.dot(w3_ref[...], h.astype(jnp.bfloat16),
                preferred_element_type=jnp.float32) + b3_ref[...]
    h = jnp.maximum(h, 0.0)                               # (H3, TN) f32

    # confidence-weighted pooling: pooled[h] += sum_n w[n] * h3[h, n]
    w = wsm_ref[0].astype(jnp.bfloat16)                   # (1, TN) -- explicit bf16
    partial = jax.lax.dot_general(
        w, h.astype(jnp.bfloat16),
        dimension_numbers=(((1,), (1,)), ((), ())),       # contract the point axis
        preferred_element_type=jnp.float32)               # (1, H3) f32
    pooled_ref[0] += partial


# ------------------------- kernel 2: regressor heads -------------------------
def heads_kernel(pooled_ref,
                 wr1_ref, br1_ref, wr2_ref, br2_ref, wr3_ref, br3_ref,
                 wt1_ref, bt1_ref, wt2_ref, bt2_ref, wt3_ref, bt3_ref,
                 rot_ref, trans_ref):
    p = pooled_ref[...].astype(jnp.bfloat16)              # (B, H3)

    def head(w1, b1, w2, b2, w3, b3):
        g = jnp.dot(p, w1[...], preferred_element_type=jnp.float32) + b1[...]
        g = jnp.maximum(g, 0.0)
        g = jnp.dot(g.astype(jnp.bfloat16), w2[...],
                    preferred_element_type=jnp.float32) + b2[...]
        g = jnp.maximum(g, 0.0)
        return jnp.dot(g.astype(jnp.bfloat16), w3[...],
                       preferred_element_type=jnp.float32) + b3[...]

    rot_ref[...] = head(wr1_ref, br1_ref, wr2_ref, br2_ref, wr3_ref, br3_ref)
    trans_ref[...] = head(wt1_ref, bt1_ref, wt2_ref, bt2_ref, wt3_ref, bt3_ref)


# ------------------------------ wrapper -------------------------------------
def _wt(w):   # (Cout, Cin) -> (Cin, Cout) bf16 (heads operate row-major on pooled)
    return jnp.transpose(w).astype(jnp.bfloat16)


def _row(b):  # (Cout,) -> (1, Cout) f32
    return b.reshape(1, -1).astype(jnp.float32)


def _col(b):  # (Cout,) -> (Cout, 1) f32 (per-sublane bias in channels-major layout)
    return b.reshape(-1, 1).astype(jnp.float32)


def refiner_pallas(x, conf, params):
    """x: (B, CIN, N) f32, conf: (B, N) f32 -> (rot9 (B, 9), trans (B, 3))."""
    B, C, N = x.shape
    assert C == CIN and N <= 1024   # matches the [:, :, :1024] slice regime

    # per-batch softmax over the point axis (tiny single-block kernel)
    wsm = pl.pallas_call(
        softmax_kernel,
        out_shape=jax.ShapeDtypeStruct((B, N), jnp.float32),
    )(conf)

    # point tiling: one lane-dense chunk per batch element (N <= 1024),
    # padded points carry zero softmax weight -> no effect on the pooled sum.
    NP = ((N + 127) // 128) * 128
    TN = NP
    nchunk = NP // TN
    if NP != N:
        xp = jnp.pad(x, ((0, 0), (0, 0), (0, NP - N)))
        wp = jnp.pad(wsm, ((0, 0), (0, NP - N)))
    else:
        xp, wp = x, wsm
    wp3 = wp.reshape(B, 1, NP)

    (w1, b1), (w2, b2), (w3, b3) = params["share"]
    share_flat = [w1.astype(jnp.bfloat16), _col(b1),
                  w2.astype(jnp.bfloat16), _col(b2),
                  w3.astype(jnp.bfloat16), _col(b3)]

    def const_spec(p):
        return pl.BlockSpec(p.shape, lambda b, c: (0, 0))

    pooled3 = pl.pallas_call(
        share_pool_kernel,
        out_shape=jax.ShapeDtypeStruct((B, 1, H3), jnp.float32),
        grid=(B, nchunk),
        in_specs=[pl.BlockSpec((1, C, TN), lambda b, c: (b, 0, c)),
                  pl.BlockSpec((1, 1, TN), lambda b, c: (b, 0, c))]
                 + [const_spec(p) for p in share_flat],
        out_specs=pl.BlockSpec((1, 1, H3), lambda b, c: (b, 0, 0)),
        compiler_params=pltpu.CompilerParams(
            dimension_semantics=("parallel", "arbitrary"),
            vmem_limit_bytes=48 * 1024 * 1024,
        ),
    )(xp, wp3, *share_flat)
    pooled = pooled3.reshape(B, H3)

    (wr1, br1), (wr2, br2), (wr3, br3) = params["rot"]
    (wt1, bt1), (wt2, bt2), (wt3, bt3) = params["trans"]
    heads_flat = [_wt(wr1), _row(br1), _wt(wr2), _row(br2), _wt(wr3), _row(br3),
                  _wt(wt1), _row(bt1), _wt(wt2), _row(bt2), _wt(wt3), _row(bt3)]

    rot9, trans = pl.pallas_call(
        heads_kernel,
        out_shape=(jax.ShapeDtypeStruct((B, 9), jnp.float32),
                   jax.ShapeDtypeStruct((B, 3), jnp.float32)),
    )(pooled, *heads_flat)
    return rot9, trans


# --------------------- ortho9d -> rotation matrix (glue) --------------------
# TODO(synk): torch.svd projection onto SO(3) has no Pallas equivalent; done in plain JAX.
def ortho9d_to_matrix(ortho9d):
    def normalize(v):
        n = jnp.sqrt(jnp.sum(v * v, axis=1, keepdims=True))
        return v / jnp.maximum(n, 1e-8)

    x = normalize(ortho9d[:, 0:3])
    y = normalize(ortho9d[:, 3:6])
    z = normalize(ortho9d[:, 6:9])
    m = jnp.stack([x, y, z], axis=2)                      # columns -> (B, 3, 3)
    U, _, Vh = jnp.linalg.svd(m)
    det = jnp.linalg.det(jnp.matmul(U, Vh))
    ones = jnp.ones_like(det)
    sigma = jax.vmap(jnp.diag)(jnp.stack([ones, ones, det], axis=1))
    return U @ sigma @ Vh


# ----------------------------- pure-JAX reference ---------------------------
def ref_forward(x, conf, params):
    def conv1(w, b, v):
        return jnp.einsum("oc,bcn->bon", w, v) + b[None, :, None]

    (w1, b1), (w2, b2), (w3, b3) = params["share"]
    h = jax.nn.relu(conv1(w1, b1, x))
    h = jax.nn.relu(conv1(w2, b2, h))
    h = jax.nn.relu(conv1(w3, b3, h))
    cs = jax.nn.softmax(conf[:, None, :], axis=2)[:, :, :1024]
    pooled = jnp.sum(h * cs, axis=2, keepdims=True)

    def head(p, v):
        (a1, c1), (a2, c2), (a3, c3) = p
        v = jax.nn.relu(conv1(a1, c1, v))
        v = jax.nn.relu(conv1(a2, c2, v))
        v = conv1(a3, c3, v)
        return v[:, :, 0]

    return head(params["rot"], pooled), head(params["trans"], pooled)


# ------------------------------ param init ----------------------------------
def init_conv(key, cin, cout):
    kw, kb = jax.random.split(key)
    bound = 1.0 / float(jnp.sqrt(cin))
    w = jax.random.uniform(kw, (cout, cin), jnp.float32, -bound, bound)
    b = jax.random.uniform(kb, (cout,), jnp.float32, -bound, bound)
    return w, b


def init_mlp(key, dims):
    keys = jax.random.split(key, len(dims) - 1)
    return [init_conv(k, dims[i], dims[i + 1]) for i, k in enumerate(keys)]


if __name__ == "__main__":
    key = jax.random.PRNGKey(0)
    k_x, k_c, k_s, k_r, k_t = jax.random.split(key, 5)

    B, N = 2, 128
    x = jax.random.normal(k_x, (B, CIN, N), jnp.float32)
    conf = jax.random.normal(k_c, (B, N), jnp.float32)

    params = {
        "share": init_mlp(k_s, [CIN, 512, 512, 1024]),
        "rot": init_mlp(k_r, [1024, 512, 128, 9]),
        "trans": init_mlp(k_t, [1024, 512, 128, 3]),
    }

    fwd = jax.jit(refiner_pallas)
    rot9, trans_pred = fwd(x, conf, params)
    rot9 = jax.block_until_ready(rot9)
    trans_pred = jax.block_until_ready(trans_pred)

    # correctness check against the pure-JAX (f32) reference.
    # matmul operands are bf16 (f32 accumulation), so use a bf16-appropriate tol.
    rot9_gold, trans_gold = ref_forward(x, conf, params)
    assert jnp.allclose(rot9, rot9_gold, rtol=2e-2, atol=2e-2), "rot9 mismatch"
    assert jnp.allclose(trans_pred, trans_gold, rtol=2e-2, atol=2e-2), "trans mismatch"

    rot_pred = jax.block_until_ready(ortho9d_to_matrix(rot9))
    prediction = {"trans_pred": trans_pred, "rot_pred": rot_pred}
    assert prediction["rot_pred"].shape == (B, 3, 3)
    assert prediction["trans_pred"].shape == (B, 3)

    print("KERNEL_OK")
</pallas_src>

<mosaic_0001>
module attributes {stable_mosaic.version = 11 : i64} {
  func.func @share_pool_kernel(%arg0: i32, %arg1: i32, %arg2: memref<1x259x128xf32, #tpu.memory_space<vmem>>, %arg3: memref<1x1x128xf32, #tpu.memory_space<vmem>>, %arg4: memref<512x259xbf16, #tpu.memory_space<vmem>>, %arg5: memref<512x1xf32, #tpu.memory_space<vmem>>, %arg6: memref<512x512xbf16, #tpu.memory_space<vmem>>, %arg7: memref<512x1xf32, #tpu.memory_space<vmem>>, %arg8: memref<1024x512xbf16, #tpu.memory_space<vmem>>, %arg9: memref<1024x1xf32, #tpu.memory_space<vmem>>, %arg10: memref<1x1x1024xf32, #tpu.memory_space<vmem>>) attributes {dimension_semantics = [#tpu.dimension_semantics<parallel>, #tpu.dimension_semantics<arbitrary>], iteration_bounds = array<i64: 2, 1>, scalar_prefetch = 0 : i64, scratch_operands = 0 : i64, tpu.core_type = #tpu.core_type<tc>, window_params = [{transform_indices = @transform_0, window_bounds = array<i64: 1, 259, 128>}, {transform_indices = @transform_1, window_bounds = array<i64: 1, 1, 128>}, {pipeline_mode = #tpu.pipeline_mode<synchronous>, transform_indices = @transform_2, window_bounds = array<i64: 512, 259>}, {pipeline_mode = #tpu.pipeline_mode<synchronous>, transform_indices = @transform_3, window_bounds = array<i64: 512, 1>}, {pipeline_mode = #tpu.pipeline_mode<synchronous>, transform_indices = @transform_4, window_bounds = array<i64: 512, 512>}, {pipeline_mode = #tpu.pipeline_mode<synchronous>, transform_indices = @transform_5, window_bounds = array<i64: 512, 1>}, {pipeline_mode = #tpu.pipeline_mode<synchronous>, transform_indices = @transform_6, window_bounds = array<i64: 1024, 512>}, {pipeline_mode = #tpu.pipeline_mode<synchronous>, transform_indices = @transform_7, window_bounds = array<i64: 1024, 1>}, {transform_indices = @transform_8, window_bounds = array<i64: 1, 1, 1024>}]} {
    %c0_i32 = arith.constant 0 : i32
    %0 = arith.cmpi eq, %arg1, %c0_i32 : i32
    %1 = arith.extui %0 : i1 to i32
    %c0_i32_0 = arith.constant 0 : i32
    %2 = arith.cmpi ne, %1, %c0_i32_0 : i32
    scf.if %2 {
      %cst_30 = arith.constant 0.000000e+00 : f32
      %40 = vector.broadcast %cst_30 : f32 to vector<1x1x1024xf32>
      %c0_31 = arith.constant 0 : index
      %c0_32 = arith.constant 0 : index
      %c0_33 = arith.constant 0 : index
      %41 = vector.load %arg10[%c0_31, %c0_32, %c0_33] : memref<1x1x1024xf32, #tpu.memory_space<vmem>>, vector<1x1x1024xf32>
      tpu.vector_store %arg10[%c0_31, %c0_32, %c0_33], %40 {strides = array<i32>} : memref<1x1x1024xf32, #tpu.memory_space<vmem>>, vector<1x1x1024xf32>,
    } else {
    }
    %c0 = arith.constant 0 : index
    %c0_1 = arith.constant 0 : index
    %c0_2 = arith.constant 0 : index
    %3 = vector.load %arg2[%c0, %c0_1, %c0_2] : memref<1x259x128xf32, #tpu.memory_space<vmem>>, vector<1x259x128xf32>
    %4 = vector.shape_cast %3 : vector<1x259x128xf32> to vector<259x128xf32>
    %5 = arith.truncf %4 : vector<259x128xf32> to vector<259x128xbf16>
    %c0_3 = arith.constant 0 : index
    %c0_4 = arith.constant 0 : index
    %6 = vector.load %arg4[%c0_3, %c0_4] : memref<512x259xbf16, #tpu.memory_space<vmem>>, vector<512x259xbf16>
    %cst = arith.constant dense<0.000000e+00> : vector<512x128xf32>
    %7 = tpu.matmul %6, %5, %cst {dimension_numbers = #tpu.dot_dimension_numbers<[1], [0], [0], [1], [0, 0, 1, 1], [], []>} : vector<512x259xbf16>, vector<259x128xbf16>, vector<512x128xf32> -> vector<512x128xf32>
    %c0_5 = arith.constant 0 : index
    %c0_6 = arith.constant 0 : index
    %8 = vector.load %arg5[%c0_5, %c0_6] : memref<512x1xf32, #tpu.memory_space<vmem>>, vector<512x1xf32>
    %9 = vector.broadcast %8 : vector<512x1xf32> to vector<512x128xf32>
    %10 = arith.addf %7, %9 : vector<512x128xf32>
    %cst_7 = arith.constant 0.000000e+00 : f32
    %11 = vector.broadcast %cst_7 : f32 to vector<512x128xf32>
    %12 = arith.maximumf %10, %11 : vector<512x128xf32>
    %c0_8 = arith.constant 0 : index
    %c0_9 = arith.constant 0 : index
    %13 = vector.load %arg6[%c0_8, %c0_9] : memref<512x512xbf16, #tpu.memory_space<vmem>>, vector<512x512xbf16>
    %14 = arith.truncf %12 : vector<512x128xf32> to vector<512x128xbf16>
    %cst_10 = arith.constant dense<0.000000e+00> : vector<512x128xf32>
    %15 = tpu.matmul %13, %14, %cst_10 {dimension_numbers = #tpu.dot_dimension_numbers<[1], [0], [0], [1], [0, 0, 1, 1], [], []>} : vector<512x512xbf16>, vector<512x128xbf16>, vector<512x128xf32> -> vector<512x128xf32>
    %c0_11 = arith.constant 0 : index
    %c0_12 = arith.constant 0 : index
    %16 = vector.load %arg7[%c0_11, %c0_12] : memref<512x1xf32, #tpu.memory_space<vmem>>, vector<512x1xf32>
    %17 = vector.broadcast %16 : vector<512x1xf32> to vector<512x128xf32>
    %18 = arith.addf %15, %17 : vector<512x128xf32>
    %cst_13 = arith.constant 0.000000e+00 : f32
    %19 = vector.broadcast %cst_13 : f32 to vector<512x128xf32>
    %20 = arith.maximumf %18, %19 : vector<512x128xf32>
    %c0_14 = arith.constant 0 : index
    %c0_15 = arith.constant 0 : index
    %21 = vector.load %arg8[%c0_14, %c0_15] : memref<1024x512xbf16, #tpu.memory_space<vmem>>, vector<1024x512xbf16>
    %22 = arith.truncf %20 : vector<512x128xf32> to vector<512x128xbf16>
    %cst_16 = arith.constant dense<0.000000e+00> : vector<1024x128xf32>
    %23 = tpu.matmul %21, %22, %cst_16 {dimension_numbers = #tpu.dot_dimension_numbers<[1], [0], [0], [1], [0, 0, 1, 1], [], []>} : vector<1024x512xbf16>, vector<512x128xbf16>, vector<1024x128xf32> -> vector<1024x128xf32>
    %c0_17 = arith.constant 0 : index
    %c0_18 = arith.constant 0 : index
    %24 = vector.load %arg9[%c0_17, %c0_18] : memref<1024x1xf32, #tpu.memory_space<vmem>>, vector<1024x1xf32>
    %25 = vector.broadcast %24 : vector<1024x1xf32> to vector<1024x128xf32>
    %26 = arith.addf %23, %25 : vector<1024x128xf32>
    %cst_19 = arith.constant 0.000000e+00 : f32
    %27 = vector.broadcast %cst_19 : f32 to vector<1024x128xf32>
    %28 = arith.maximumf %26, %27 : vector<1024x128xf32>
    %c0_20 = arith.constant 0 : index
    %c0_21 = arith.constant 0 : index
    %c0_22 = arith.constant 0 : index
    %29 = vector.load %arg3[%c0_20, %c0_21, %c0_22] : memref<1x1x128xf32, #tpu.memory_space<vmem>>, vector<1x1x128xf32>
    %30 = vector.shape_cast %29 : vector<1x1x128xf32> to vector<1x128xf32>
    %31 = arith.truncf %30 : vector<1x128xf32> to vector<1x128xbf16>
    %32 = arith.truncf %28 : vector<1024x128xf32> to vector<1024x128xbf16>
    %cst_23 = arith.constant dense<0.000000e+00> : vector<1x1024xf32>
    %33 = tpu.matmul %31, %32, %cst_23 {dimension_numbers = #tpu.dot_dimension_numbers<[1], [1], [0], [0], [0, 0, 1, 0], [], []>} : vector<1x128xbf16>, vector<1024x128xbf16>, vector<1x1024xf32> -> vector<1x1024xf32>
    %c0_24 = arith.constant 0 : index
    %c0_25 = arith.constant 0 : index
    %c0_26 = arith.constant 0 : index
    %34 = vector.load %arg10[%c0_24, %c0_25, %c0_26] : memref<1x1x1024xf32, #tpu.memory_space<vmem>>, vector<1x1x1024xf32>
    %35 = vector.shape_cast %34 : vector<1x1x1024xf32> to vector<1x1024xf32>
    %36 = arith.addf %35, %33 : vector<1x1024xf32>
    %c0_27 = arith.constant 0 : index
    %c0_28 = arith.constant 0 : index
    %c0_29 = arith.constant 0 : index
    %37 = vector.load %arg10[%c0_27, %c0_28, %c0_29] : memref<1x1x1024xf32, #tpu.memory_space<vmem>>, vector<1x1x1024xf32>
    %38 = vector.shape_cast %37 : vector<1x1x1024xf32> to vector<1x1024xf32>
    %39 = vector.shape_cast %36 : vector<1x1024xf32> to vector<1x1x1024xf32>
    tpu.vector_store %arg10[%c0_27, %c0_28, %c0_29], %39 {strides = array<i32>} : memref<1x1x1024xf32, #tpu.memory_space<vmem>>, vector<1x1x1024xf32>,
    return
  }
  func.func @transform_0(%arg0: i32, %arg1: i32) -> (i32, i32, i32) {
    %c0_i32 = arith.constant 0 : i32
    %c0_i32_0 = arith.constant 0 : i32
    return %arg0, %c0_i32, %arg1 : i32, i32, i32
  }
  func.func @transform_1(%arg0: i32, %arg1: i32) -> (i32, i32, i32) {
    %c0_i32 = arith.constant 0 : i32
    %c0_i32_0 = arith.constant 0 : i32
    return %arg0, %c0_i32, %arg1 : i32, i32, i32
  }
  func.func @transform_2(%arg0: i32, %arg1: i32) -> (i32, i32) {
    %c0_i32 = arith.constant 0 : i32
    %c0_i32_0 = arith.constant 0 : i32
    %c0_i32_1 = arith.constant 0 : i32
    return %c0_i32, %c0_i32_0 : i32, i32
  }
  func.func @transform_3(%arg0: i32, %arg1: i32) -> (i32, i32) {
    %c0_i32 = arith.constant 0 : i32
    %c0_i32_0 = arith.constant 0 : i32
    %c0_i32_1 = arith.constant 0 : i32
    return %c0_i32, %c0_i32_0 : i32, i32
  }
  func.func @transform_4(%arg0: i32, %arg1: i32) -> (i32, i32) {
    %c0_i32 = arith.constant 0 : i32
    %c0_i32_0 = arith.constant 0 : i32
    %c0_i32_1 = arith.constant 0 : i32
    return %c0_i32, %c0_i32_0 : i32, i32
  }
  func.func @transform_5(%arg0: i32, %arg1: i32) -> (i32, i32) {
    %c0_i32 = arith.constant 0 : i32
    %c0_i32_0 = arith.constant 0 : i32
    %c0_i32_1 = arith.constant 0 : i32
    return %c0_i32, %c0_i32_0 : i32, i32
  }
  func.func @transform_6(%arg0: i32, %arg1: i32) -> (i32, i32) {
    %c0_i32 = arith.constant 0 : i32
    %c0_i32_0 = arith.constant 0 : i32
    %c0_i32_1 = arith.constant 0 : i32
    return %c0_i32, %c0_i32_0 : i32, i32
  }
  func.func @transform_7(%arg0: i32, %arg1: i32) -> (i32, i32) {
    %c0_i32 = arith.constant 0 : i32
    %c0_i32_0 = arith.constant 0 : i32
    %c0_i32_1 = arith.constant 0 : i32
    return %c0_i32, %c0_i32_0 : i32, i32
  }
  func.func @transform_8(%arg0: i32, %arg1: i32) -> (i32, i32, i32) {
    %c0_i32 = arith.constant 0 : i32
    %c0_i32_0 = arith.constant 0 : i32
    %c0_i32_1 = arith.constant 0 : i32
    return %arg0, %c0_i32, %c0_i32_0 : i32, i32, i32
  }
}

module attributes {stable_mosaic.version = 11 : i64} {
  func.func @softmax_kernel(%arg0: memref<2x128xf32, #tpu.memory_space<vmem>>, %arg1: memref<2x128xf32, #tpu.memory_space<vmem>>) attributes {dimension_semantics = [], scalar_prefetch = 0 : i64, scratch_operands = 0 : i64, tpu.core_type = #tpu.core_type<tc>} {
    %c0 = arith.constant 0 : index
    %c0_0 = arith.constant 0 : index
    %0 = vector.load %arg0[%c0, %c0_0] : memref<2x128xf32, #tpu.memory_space<vmem>>, vector<2x128xf32>
    %cst = arith.constant dense<0xFF800000> : vector<2xf32>
    %1 = vector.multi_reduction <maximumf>, %0, %cst [1] : vector<2x128xf32> to vector<2xf32>
    %2 = vector.shape_cast %1 : vector<2xf32> to vector<2x1xf32>
    %3 = vector.broadcast %2 : vector<2x1xf32> to vector<2x128xf32>
    %4 = arith.subf %0, %3 : vector<2x128xf32>
    %5 = math.exp %4 : vector<2x128xf32>
    %cst_1 = arith.constant dense<0.000000e+00> : vector<2xf32>
    %6 = vector.multi_reduction <add>, %5, %cst_1 [1] : vector<2x128xf32> to vector<2xf32>
    %7 = vector.shape_cast %6 : vector<2xf32> to vector<2x1xf32>
    %8 = vector.broadcast %7 : vector<2x1xf32> to vector<2x128xf32>
    %9 = arith.divf %5, %8 : vector<2x128xf32>
    %c0_2 = arith.constant 0 : index
    %c0_3 = arith.constant 0 : index
    %10 = vector.load %arg1[%c0_2, %c0_3] : memref<2x128xf32, #tpu.memory_space<vmem>>, vector<2x128xf32>
    tpu.vector_store %arg1[%c0_2, %c0_3], %9 {strides = array<i32>} : memref<2x128xf32, #tpu.memory_space<vmem>>, vector<2x128xf32>,
    return
  }
}

module attributes {stable_mosaic.version = 11 : i64} {
  func.func @heads_kernel(%arg0: memref<2x1024xf32, #tpu.memory_space<vmem>>, %arg1: memref<1024x512xbf16, #tpu.memory_space<vmem>>, %arg2: memref<1x512xf32, #tpu.memory_space<vmem>>, %arg3: memref<512x128xbf16, #tpu.memory_space<vmem>>, %arg4: memref<1x128xf32, #tpu.memory_space<vmem>>, %arg5: memref<128x9xbf16, #tpu.memory_space<vmem>>, %arg6: memref<1x9xf32, #tpu.memory_space<vmem>>, %arg7: memref<1024x512xbf16, #tpu.memory_space<vmem>>, %arg8: memref<1x512xf32, #tpu.memory_space<vmem>>, %arg9: memref<512x128xbf16, #tpu.memory_space<vmem>>, %arg10: memref<1x128xf32, #tpu.memory_space<vmem>>, %arg11: memref<128x3xbf16, #tpu.memory_space<vmem>>, %arg12: memref<1x3xf32, #tpu.memory_space<vmem>>, %arg13: memref<2x9xf32, #tpu.memory_space<vmem>>, %arg14: memref<2x3xf32, #tpu.memory_space<vmem>>) attributes {dimension_semantics = [], scalar_prefetch = 0 : i64, scratch_operands = 0 : i64, tpu.core_type = #tpu.core_type<tc>} {
    %c0 = arith.constant 0 : index
    %c0_0 = arith.constant 0 : index
    %0 = vector.load %arg0[%c0, %c0_0] : memref<2x1024xf32, #tpu.memory_space<vmem>>, vector<2x1024xf32>
    %1 = arith.truncf %0 : vector<2x1024xf32> to vector<2x1024xbf16>
    %c0_1 = arith.constant 0 : index
    %c0_2 = arith.constant 0 : index
    %2 = vector.load %arg1[%c0_1, %c0_2] : memref<1024x512xbf16, #tpu.memory_space<vmem>>, vector<1024x512xbf16>
    %cst = arith.constant dense<0.000000e+00> : vector<2x512xf32>
    %3 = tpu.matmul %1, %2, %cst {dimension_numbers = #tpu.dot_dimension_numbers<[1], [0], [0], [1], [0, 0, 1, 1], [], []>} : vector<2x1024xbf16>, vector<1024x512xbf16>, vector<2x512xf32> -> vector<2x512xf32>
    %c0_3 = arith.constant 0 : index
    %c0_4 = arith.constant 0 : index
    %4 = vector.load %arg2[%c0_3, %c0_4] : memref<1x512xf32, #tpu.memory_space<vmem>>, vector<1x512xf32>
    %5 = vector.broadcast %4 : vector<1x512xf32> to vector<2x512xf32>
    %6 = arith.addf %3, %5 : vector<2x512xf32>
    %cst_5 = arith.constant 0.000000e+00 : f32
    %7 = vector.broadcast %cst_5 : f32 to vector<2x512xf32>
    %8 = arith.maximumf %6, %7 : vector<2x512xf32>
    %9 = arith.truncf %8 : vector<2x512xf32> to vector<2x512xbf16>
    %c0_6 = arith.constant 0 : index
    %c0_7 = arith.constant 0 : index
    %10 = vector.load %arg3[%c0_6, %c0_7] : memref<512x128xbf16, #tpu.memory_space<vmem>>, vector<512x128xbf16>
    %cst_8 = arith.constant dense<0.000000e+00> : vector<2x128xf32>
    %11 = tpu.matmul %9, %10, %cst_8 {dimension_numbers = #tpu.dot_dimension_numbers<[1], [0], [0], [1], [0, 0, 1, 1], [], []>} : vector<2x512xbf16>, vector<512x128xbf16>, vector<2x128xf32> -> vector<2x128xf32>
    %c0_9 = arith.constant 0 : index
    %c0_10 = arith.constant 0 : index
    %12 = vector.load %arg4[%c0_9, %c0_10] : memref<1x128xf32, #tpu.memory_space<vmem>>, vector<1x128xf32>
    %13 = vector.broadcast %12 : vector<1x128xf32> to vector<2x128xf32>
    %14 = arith.addf %11, %13 : vector<2x128xf32>
    %cst_11 = arith.constant 0.000000e+00 : f32
    %15 = vector.broadcast %cst_11 : f32 to vector<2x128xf32>
    %16 = arith.maximumf %14, %15 : vector<2x128xf32>
    %17 = arith.truncf %16 : vector<2x128xf32> to vector<2x128xbf16>
    %c0_12 = arith.constant 0 : index
    %c0_13 = arith.constant 0 : index
    %18 = vector.load %arg5[%c0_12, %c0_13] : memref<128x9xbf16, #tpu.memory_space<vmem>>, vector<128x9xbf16>
    %cst_14 = arith.constant dense<0.000000e+00> : vector<2x9xf32>
    %19 = tpu.matmul %17, %18, %cst_14 {dimension_numbers = #tpu.dot_dimension_numbers<[1], [0], [0], [1], [0, 0, 1, 1], [], []>} : vector<2x128xbf16>, vector<128x9xbf16>, vector<2x9xf32> -> vector<2x9xf32>
    %c0_15 = arith.constant 0 : index
    %c0_16 = arith.constant 0 : index
    %20 = vector.load %arg6[%c0_15, %c0_16] : memref<1x9xf32, #tpu.memory_space<vmem>>, vector<1x9xf32>
    %21 = vector.broadcast %20 : vector<1x9xf32> to vector<2x9xf32>
    %22 = arith.addf %19, %21 : vector<2x9xf32>
    %c0_17 = arith.constant 0 : index
    %c0_18 = arith.constant 0 : index
    %23 = vector.load %arg13[%c0_17, %c0_18] : memref<2x9xf32, #tpu.memory_space<vmem>>, vector<2x9xf32>
    tpu.vector_store %arg13[%c0_17, %c0_18], %22 {strides = array<i32>} : memref<2x9xf32, #tpu.memory_space<vmem>>, vector<2x9xf32>,
    %c0_19 = arith.constant 0 : index
    %c0_20 = arith.constant 0 : index
    %24 = vector.load %arg7[%c0_19, %c0_20] : memref<1024x512xbf16, #tpu.memory_space<vmem>>, vector<1024x512xbf16>
    %cst_21 = arith.constant dense<0.000000e+00> : vector<2x512xf32>
    %25 = tpu.matmul %1, %24, %cst_21 {dimension_numbers = #tpu.dot_dimension_numbers<[1], [0], [0], [1], [0, 0, 1, 1], [], []>} : vector<2x1024xbf16>, vector<1024x512xbf16>, vector<2x512xf32> -> vector<2x512xf32>
    %c0_22 = arith.constant 0 : index
    %c0_23 = arith.constant 0 : index
    %26 = vector.load %arg8[%c0_22, %c0_23] : memref<1x512xf32, #tpu.memory_space<vmem>>, vector<1x512xf32>
    %27 = vector.broadcast %26 : vector<1x512xf32> to vector<2x512xf32>
    %28 = arith.addf %25, %27 : vector<2x512xf32>
    %cst_24 = arith.constant 0.000000e+00 : f32
    %29 = vector.broadcast %cst_24 : f32 to vector<2x512xf32>
    %30 = arith.maximumf %28, %29 : vector<2x512xf32>
    %31 = arith.truncf %30 : vector<2x512xf32> to vector<2x512xbf16>
    %c0_25 = arith.constant 0 : index
    %c0_26 = arith.constant 0 : index
    %32 = vector.load %arg9[%c0_25, %c0_26] : memref<512x128xbf16, #tpu.memory_space<vmem>>, vector<512x128xbf16>
    %cst_27 = arith.constant dense<0.000000e+00> : vector<2x128xf32>
    %33 = tpu.matmul %31, %32, %cst_27 {dimension_numbers = #tpu.dot_dimension_numbers<[1], [0], [0], [1], [0, 0, 1, 1], [], []>} : vector<2x512xbf16>, vector<512x128xbf16>, vector<2x128xf32> -> vector<2x128xf32>
    %c0_28 = arith.constant 0 : index
    %c0_29 = arith.constant 0 : index
    %34 = vector.load %arg10[%c0_28, %c0_29] : memref<1x128xf32, #tpu.memory_space<vmem>>, vector<1x128xf32>
    %35 = vector.broadcast %34 : vector<1x128xf32> to vector<2x128xf32>
    %36 = arith.addf %33, %35 : vector<2x128xf32>
    %cst_30 = arith.constant 0.000000e+00 : f32
    %37 = vector.broadcast %cst_30 : f32 to vector<2x128xf32>
    %38 = arith.maximumf %36, %37 : vector<2x128xf32>
    %39 = arith.truncf %38 : vector<2x128xf32> to vector<2x128xbf16>
    %c0_31 = arith.constant 0 : index
    %c0_32 = arith.constant 0 : index
    %40 = vector.load %arg11[%c0_31, %c0_32] : memref<128x3xbf16, #tpu.memory_space<vmem>>, vector<128x3xbf16>
    %cst_33 = arith.constant dense<0.000000e+00> : vector<2x3xf32>
    %41 = tpu.matmul %39, %40, %cst_33 {dimension_numbers = #tpu.dot_dimension_numbers<[1], [0], [0], [1], [0, 0, 1, 1], [], []>} : vector<2x128xbf16>, vector<128x3xbf16>, vector<2x3xf32> -> vector<2x3xf32>
    %c0_34 = arith.constant 0 : index
    %c0_35 = arith.constant 0 : index
    %42 = vector.load %arg12[%c0_34, %c0_35] : memref<1x3xf32, #tpu.memory_space<vmem>>, vector<1x3xf32>
    %43 = vector.broadcast %42 : vector<1x3xf32> to vector<2x3xf32>
    %44 = arith.addf %41, %43 : vector<2x3xf32>
    %c0_36 = arith.constant 0 : index
    %c0_37 = arith.constant 0 : index
    %45 = vector.load %arg14[%c0_36, %c0_37] : memref<2x3xf32, #tpu.memory_space<vmem>>, vector<2x3xf32>
    tpu.vector_store %arg14[%c0_36, %c0_37], %44 {strides = array<i32>} : memref<2x3xf32, #tpu.memory_space<vmem>>, vector<2x3xf32>,
    return
  }
}

</mosaic_0001>

<llo_original>
// kernel: refiner_pallas.3
$region0: #{refiner_pallas.3}
  #allocation0 [shape = 'u32[]', space=smem, size = 0x4, offset = 0x4, fixed_abs, tag = 'smem constant byte address 0x4 - core index']
  #allocation1 [shape = 'u32[144,128]{1,0:T(1,128)}', space=vmem, size = 0x12000, scoped, tag = 'internal scratch']
  %s0 = inlined_call_operand.vmem [shape: f32[2,128], index: 0, kind: input, shape index: {}]
  %s1 = inlined_call_operand.vmem [shape: f32[2,128], index: 1, kind: output, shape index: {}]
  %s2 = sld [smem:[#allocation0]]
  $region14: #{refiner_pallas.3} parent=0
    _
  %s4 = ssub.s32 1, %s2
  %s5 = scalar_select 0, %s4, %s2
  // Predicated region
  $region2: #{refiner_pallas.3} parent=0 // pred_check
    _
  $region3: #{refiner_pallas.3} parent=0 // pred_check_branch
    %7 = sbr.rel (0) target = $region5
  $region4: #{refiner_pallas.3} parent=0 // pred_region
    _
  $region5: #{refiner_pallas.3} parent=0 // pred_fallthru
    _
  %v8 = vld [vmem:[%s0] sm:$0x3]
  %vm9 = vcmask 1041408
  %v10 = vsel %vm9, %v8, -inf
  %11 = vmax.xlane.f32.xlu0 %v10
  %v12 = vpop.xlane.xlu0 %11
  %v13 = vsub.f32 %v8, %v12
  %v14 = vmul.f32 %v13, 1.442695
  %v15 = vpow.pop %v14
  %v16 = vsel %vm9, %v15, 0.0
  %17 = vadd.xlane.f32.xlu0 %v16
  %v18 = vpop.xlane.xlu0 %17
  %v19 = vrcp.pop %v18
  %v20 = vmul.f32 %v15, %v19
  %21 = vst [vmem:[%s1] sm:$0x3] %v20
  // Predicated region
  $region6: #{refiner_pallas.3} parent=0 // pred_check
    _
  $region7: #{refiner_pallas.3} parent=0 // pred_check_branch
    %23 = sbr.rel (0) target = $region9
  $region8: #{refiner_pallas.3} parent=0 // pred_region
    _
  $region9: #{refiner_pallas.3} parent=0 // pred_fallthru
    _
  // Predicated region
  $region10: #{refiner_pallas.3} parent=0 // pred_check
    _
  $region11: #{refiner_pallas.3} parent=0 // pred_check_branch
    %25 = sbr.rel (0) target = $region13
  $region12: #{refiner_pallas.3} parent=0 // pred_region
    _
  $region13: #{refiner_pallas.3} parent=0 // pred_fallthru
    _

// kernel: refiner_pallas.4
$region0: #{refiner_pallas.4}
  #allocation0 [shape = 'u32[]', space=smem, size = 0x4, offset = 0x4, fixed_abs, tag = 'smem constant byte address 0x4 - core index']
  #allocation1 [shape = 'u32[144,128]{1,0:T(1,128)}', space=vmem, size = 0x12000, scoped, tag = 'internal scratch']
  %s0 = inlined_call_operand.vmem [shape: f32[2,259,128], index: 0, kind: input, shape index: {}]
  %s1 = inlined_call_operand.vmem [shape: f32[2,1,128], index: 1, kind: input, shape index: {}]
  %s2 = inlined_call_operand.vmem [shape: bf16[512,259], index: 2, kind: input, shape index: {}]
  %s3 = inlined_call_operand.vmem [shape: f32[512,1], index: 3, kind: input, shape index: {}]
  %s4 = inlined_call_operand.vmem [shape: bf16[512,512], index: 4, kind: input, shape index: {}]
  %s5 = inlined_call_operand.vmem [shape: f32[512,1], index: 5, kind: input, shape index: {}]
  %s6 = inlined_call_operand.vmem [shape: bf16[1024,512], index: 6, kind: input, shape index: {}]
  %s7 = inlined_call_operand.vmem [shape: f32[1024,1], index: 7, kind: input, shape index: {}]
  %s8 = inlined_call_operand.vmem [shape: f32[2,1,1024], index: 8, kind: output, shape index: {}]
  %s9 = sld [smem:[#allocation0]]
  $region69: #{refiner_pallas.4} parent=0
    _
  %s11 = ssub.s32 1, %s9
  %s12 = scalar_select 0, %s11, %s9
  loop: start=0, step=1, limit=4
  $region2: #{refiner_pallas.4} parent=0 // loop_pre_header
    _
  $region3: #{refiner_pallas.4} parent=0 // loop_header
    %s14 = sphi 0, %s18
    %p15 = scmp.ge.s32.totalorder %s14, 4
    %s21 = sphi 0, %s33
    %s22 = sphi 0, %s29
    %s23 = sphi 0, %s21
    %s24 = sphi 0, %s22
    %s25 = sphi 0, %s23
    %s26 = sphi 0, %s24
    %s38 = sphi 0, %s40
    %s41 = sphi 0, %s38
    %s42 = sphi 0, %s41
    %s58 = sphi 0, %s42
    %s66 = sphi 0, %s68
    %s69 = sphi 0, %s66
    %s70 = sphi 0, %s69
    %s86 = sphi 0, %s70
    %s90 = sphi 0, %s90
    %s92 = sphi 0, %s90
    %s93 = sphi 0, %s92
    %s107 = sphi 0, %s93
    %s111 = sphi 0, %s111
    %s113 = sphi 0, %s111
    %s114 = sphi 0, %s113
    %s128 = sphi 0, %s114
    %s132 = sphi 0, %s132
    %s134 = sphi 0, %s132
    %s135 = sphi 0, %s134
    %s149 = sphi 0, %s135
    %s153 = sphi 0, %s153
    %s155 = sphi 0, %s153
    %s156 = sphi 0, %s155
    %s170 = sphi 0, %s156
    %s174 = sphi 0, %s174
    %s176 = sphi 0, %s174
    %s177 = sphi 0, %s176
    %s191 = sphi 0, %s177
    %s195 = sphi 0, %s195
    %s197 = sphi 0, %s195
    %s198 = sphi 0, %s197
    %s212 = sphi 0, %s198
    %s218 = sphi 0, %s220
    %s221 = sphi 0, %s218
    %s222 = sphi 0, %s221
    %s238 = sphi 0, %s222
  $region4: #{refiner_pallas.4} parent=0 // loop_header_branch
    %17 = sbr.rel (%p15) target = $region8
  $region5: #{refiner_pallas.4} parent=0 // loop_body
    %s19 = ssub.s32 %s14, 1
    %s20 = ssub.s32 %s14, 2
    %s27 = sadd.s32 1, %s22
    %p28 = scmp.ge.s32.totalorder %s27, 1
    %s29 = scalar_select %p28, 0, %s27
    %s30 = sadd.s32 1, %s21
    %s31 = scalar_select %p28, %s30, %s21
    %p32 = scmp.ge.s32.totalorder %s31, 2
    %s33 = scalar_select %p32, 0, %s31
    %s34 = ssub.s32 %s21, %s33
    %s35 = ssub.s32 %s22, %s29
    %s36 = sor.u32 %s34, %s35
    %p37 = scmp.eq.s32.totalorder %s36, 0
    %s39 = sadd.s32 %s38, 1
    %s40 = scalar_select %p37, %s38, %s39
    %p43 = pneg %p37
    %p44 = scmp.eq.s32.totalorder %s14, 1
    %p45 = por %p43, %p44
    %p46 = scmp.ne.s32.totalorder %s38, %s41
    %p47 = scmp.eq.s32.totalorder %s14, 0
    %p48 = por %p46, %p47
    %p49 = scmp.ne.s32.totalorder %s38, %s41
    %p50 = scmp.eq.s32.totalorder %s19, 1
    %p51 = por %p49, %p50
    %p52 = scmp.ne.s32.totalorder %s41, %s42
    %p53 = scmp.eq.s32.totalorder %s19, 0
    %p54 = por %p52, %p53
    %p55 = scmp.ne.s32.totalorder %s41, %s42
    %p56 = scmp.eq.s32.totalorder %s20, 1
    %p57 = por %p55, %p56
    %p59 = scmp.ne.s32.totalorder %s42, %s58
    %p60 = scmp.eq.s32.totalorder %s20, 0
    %p61 = por %p59, %p60
    %s62 = ssub.s32 %s21, %s33
    %s63 = ssub.s32 %s22, %s29
    %s64 = sor.u32 %s62, %s63
    %p65 = scmp.eq.s32.totalorder %s64, 0
    %s67 = sadd.s32 %s66, 1
    %s68 = scalar_select %p65, %s66, %s67
    %p71 = pneg %p65
    %p72 = scmp.eq.s32.totalorder %s14, 1
    %p73 = por %p71, %p72
    %p74 = scmp.ne.s32.totalorder %s66, %s69
    %p75 = scmp.eq.s32.totalorder %s14, 0
    %p76 = por %p74, %p75
    %p77 = scmp.ne.s32.totalorder %s66, %s69
    %p78 = scmp.eq.s32.totalorder %s19, 1
    %p79 = por %p77, %p78
    %p80 = scmp.ne.s32.totalorder %s69, %s70
    %p81 = scmp.eq.s32.totalorder %s19, 0
    %p82 = por %p80, %p81
    %p83 = scmp.ne.s32.totalorder %s69, %s70
    %p84 = scmp.eq.s32.totalorder %s20, 1
    %p85 = por %p83, %p84
    %p87 = scmp.ne.s32.totalorder %s70, %s86
    %p88 = scmp.eq.s32.totalorder %s20, 0
    %p89 = por %p87, %p88
    %s91 = sadd.s32 %s90, 1
    %p94 = scmp.eq.s32.totalorder %s14, 1
    %p95 = scmp.ne.s32.totalorder %s90, %s92
    %p96 = scmp.eq.s32.totalorder %s14, 0
    %p97 = por %p95, %p96
    %p98 = scmp.ne.s32.totalorder %s90, %s92
    %p99 = scmp.eq.s32.totalorder %s19, 1
    %p100 = por %p98, %p99
    %p101 = scmp.ne.s32.totalorder %s92, %s93
    %p102 = scmp.eq.s32.totalorder %s19, 0
    %p103 = por %p101, %p102
    %p104 = scmp.ne.s32.totalorder %s92, %s93
    %p105 = scmp.eq.s32.totalorder %s20, 1
    %p106 = por %p104, %p105
    %p108 = scmp.ne.s32.totalorder %s93, %s107
    %p109 = scmp.eq.s32.totalorder %s20, 0
    %p110 = por %p108, %p109
    %s112 = sadd.s32 %s111, 1
    %p115 = scmp.eq.s32.totalorder %s14, 1
    %p116 = scmp.ne.s32.totalorder %s111, %s113
    %p117 = scmp.eq.s32.totalorder %s14, 0
    %p118 = por %p116, %p117
    %p119 = scmp.ne.s32.totalorder %s111, %s113
    %p120 = scmp.eq.s32.totalorder %s19, 1
    %p121 = por %p119, %p120
    %p122 = scmp.ne.s32.totalorder %s113, %s114
    %p123 = scmp.eq.s32.totalorder %s19, 0
    %p124 = por %p122, %p123
    %p125 = scmp.ne.s32.totalorder %s113, %s114
    %p126 = scmp.eq.s32.totalorder %s20, 1
    %p127 = por %p125, %p126
    %p129 = scmp.ne.s32.totalorder %s114, %s128
    %p130 = scmp.eq.s32.totalorder %s20, 0
    %p131 = por %p129, %p130
    %s133 = sadd.s32 %s132, 1
    %p136 = scmp.eq.s32.totalorder %s14, 1
    %p137 = scmp.ne.s32.totalorder %s132, %s134
    %p138 = scmp.eq.s32.totalorder %s14, 0
    %p139 = por %p137, %p138
    %p140 = scmp.ne.s32.totalorder %s132, %s134
    %p141 = scmp.eq.s32.totalorder %s19, 1
    %p142 = por %p140, %p141
    %p143 = scmp.ne.s32.totalorder %s134, %s135
    %p144 = scmp.eq.s32.totalorder %s19, 0
    %p145 = por %p143, %p144
    %p146 = scmp.ne.s32.totalorder %s134, %s135
    %p147 = scmp.eq.s32.totalorder %s20, 1
    %p148 = por %p146, %p147
    %p150 = scmp.ne.s32.totalorder %s135, %s149
    %p151 = scmp.eq.s32.totalorder %s20, 0
    %p152 = por %p150, %p151
    %s154 = sadd.s32 %s153, 1
    %p157 = scmp.eq.s32.totalorder %s14, 1
    %p158 = scmp.ne.s32.totalorder %s153, %s155
    %p159 = scmp.eq.s32.totalorder %s14, 0
    %p160 = por %p158, %p159
    %p161 = scmp.ne.s32.totalorder %s153, %s155
    %p162 = scmp.eq.s32.totalorder %s19, 1
    %p163 = por %p161, %p162
    %p164 = scmp.ne.s32.totalorder %s155, %s156
    %p165 = scmp.eq.s32.totalorder %s19, 0
    %p166 = por %p164, %p165
    %p167 = scmp.ne.s32.totalorder %s155, %s156
    %p168 = scmp.eq.s32.totalorder %s20, 1
    %p169 = por %p167, %p168
    %p171 = scmp.ne.s32.totalorder %s156, %s170
    %p172 = scmp.eq.s32.totalorder %s20, 0
    %p173 = por %p171, %p172
    %s175 = sadd.s32 %s174, 1
    %p178 = scmp.eq.s32.totalorder %s14, 1
    %p179 = scmp.ne.s32.totalorder %s174, %s176
    %p180 = scmp.eq.s32.totalorder %s14, 0
    %p181 = por %p179, %p180
    %p182 = scmp.ne.s32.totalorder %s174, %s176
    %p183 = scmp.eq.s32.totalorder %s19, 1
    %p184 = por %p182, %p183
    %p185 = scmp.ne.s32.totalorder %s176, %s177
    %p186 = scmp.eq.s32.totalorder %s19, 0
    %p187 = por %p185, %p186
    %p188 = scmp.ne.s32.totalorder %s176, %s177
    %p189 = scmp.eq.s32.totalorder %s20, 1
    %p190 = por %p188, %p189
    %p192 = scmp.ne.s32.totalorder %s177, %s191
    %p193 = scmp.eq.s32.totalorder %s20, 0
    %p194 = por %p192, %p193
    %s196 = sadd.s32 %s195, 1
    %p199 = scmp.eq.s32.totalorder %s14, 1
    %p200 = scmp.ne.s32.totalorder %s195, %s197
    %p201 = scmp.eq.s32.totalorder %s14, 0
    %p202 = por %p200, %p201
    %p203 = scmp.ne.s32.totalorder %s195, %s197
    %p204 = scmp.eq.s32.totalorder %s19, 1
    %p205 = por %p203, %p204
    %p206 = scmp.ne.s32.totalorder %s197, %s198
    %p207 = scmp.eq.s32.totalorder %s19, 0
    %p208 = por %p206, %p207
    %p209 = scmp.ne.s32.totalorder %s197, %s198
    %p210 = scmp.eq.s32.totalorder %s20, 1
    %p211 = por %p209, %p210
    %p213 = scmp.ne.s32.totalorder %s198, %s212
    %p214 = scmp.eq.s32.totalorder %s20, 0
    %p215 = por %p213, %p214
    %s216 = ssub.s32 %s21, %s33
    %p217 = scmp.eq.s32.totalorder %s216, 0
    %s219 = sadd.s32 %s218, 1
    %s220 = scalar_select %p217, %s218, %s219
    %p223 = pneg %p217
    %p224 = scmp.eq.s32.totalorder %s14, 1
    %p225 = por %p223, %p224
    %p226 = scmp.ne.s32.totalorder %s218, %s221
    %p227 = scmp.eq.s32.totalorder %s14, 0
    %p228 = por %p226, %p227
    %p229 = scmp.ne.s32.totalorder %s218, %s221
    %p230 = scmp.eq.s32.totalorder %s19, 1
    %p231 = por %p229, %p230
    %p232 = scmp.ne.s32.totalorder %s221, %s222
    %p233 = scmp.eq.s32.totalorder %s19, 0
    %p234 = por %p232, %p233
    %p235 = scmp.ne.s32.totalorder %s221, %s222
    %p236 = scmp.eq.s32.totalorder %s20, 1
    %p237 = por %p235, %p236
    %p239 = scmp.ne.s32.totalorder %s222, %s238
    %p240 = scmp.eq.s32.totalorder %s20, 0
    %p241 = por %p239, %p240
    %p242 = scmp.le.s32.totalorder 1, %s14
    %p243 = scmp.lt.s32.totalorder %s14, 3
    %p244 = pnand %p242, %p243
    %p245 = pneg %p244
    // Predicated region
    $region9: #{refiner_pallas.4} parent=5 // pred_check
      _
    $region10: #{refiner_pallas.4} parent=5 // pred_check_branch
      %247 = sbr.rel (%p244) target = $region12
    $region11: #{refiner_pallas.4} parent=5 // pred_region
      %s248 = ssub.s32 %s14, 1
      // Predicated region
      $region13: #{refiner_pallas.4} parent=11 // pred_check
        %p249 = pneg %p103
      $region14: #{refiner_pallas.4} parent=11 // pred_check_branch
        %251 = sbr.rel (%p249) target = $region16
      $region15: #{refiner_pallas.4} parent=11 // pred_region
        _
      $region16: #{refiner_pallas.4} parent=11 // pred_fallthru
        _
      // Predicated region
      $region17: #{refiner_pallas.4} parent=11 // pred_check
        %p252 = pneg %p124
      $region18: #{refiner_pallas.4} parent=11 // pred_check_branch
        %254 = sbr.rel (%p252) target = $region20
      $region19: #{refiner_pallas.4} parent=11 // pred_region
        _
      $region20: #{refiner_pallas.4} parent=11 // pred_fallthru
        _
      // Predicated region
      $region21: #{refiner_pallas.4} parent=11 // pred_check
        %p255 = pneg %p145
      $region22: #{refiner_pallas.4} parent=11 // pred_check_branch
        %257 = sbr.rel (%p255) target = $region24
      $region23: #{refiner_pallas.4} parent=11 // pred_region
        _
      $region24: #{refiner_pallas.4} parent=11 // pred_fallthru
        _
      // Predicated region
      $region25: #{refiner_pallas.4} parent=11 // pred_check
        %p258 = pneg %p166
      $region26: #{refiner_pallas.4} parent=11 // pred_check_branch
        %260 = sbr.rel (%p258) target = $region28
      $region27: #{refiner_pallas.4} parent=11 // pred_region
        _
      $region28: #{refiner_pallas.4} parent=11 // pred_fallthru
        _
      // Predicated region
      $region29: #{refiner_pallas.4} parent=11 // pred_check
        %p261 = pneg %p187
      $region30: #{refiner_pallas.4} parent=11 // pred_check_branch
        %263 = sbr.rel (%p261) target = $region32
      $region31: #{refiner_pallas.4} parent=11 // pred_region
        _
      $region32: #{refiner_pallas.4} parent=11 // pred_fallthru
        _
      // Predicated region
      $region33: #{refiner_pallas.4} parent=11 // pred_check
        %p264 = pneg %p208
      $region34: #{refiner_pallas.4} parent=11 // pred_check_branch
        %266 = sbr.rel (%p264) target = $region36
      $region35: #{refiner_pallas.4} parent=11 // pred_region
        _
      $region36: #{refiner_pallas.4} parent=11 // pred_fallthru
        _
    $region12: #{refiner_pallas.4} parent=5 // pred_fallthru
      _
    %p267 = scmp.lt.s32.totalorder %s14, 2
    // Predicated region
    $region37: #{refiner_pallas.4} parent=5 // pred_check
      %p268 = pneg %p267
    $region38: #{refiner_pallas.4} parent=5 // pred_check_branch
      %270 = sbr.rel (%p268) target = $region40
    $region39: #{refiner_pallas.4} parent=5 // pred_region
      // Predicated region
      $region41: #{refiner_pallas.4} parent=39 // pred_check
        %p271 = pneg %p48
      $region42: #{refiner_pallas.4} parent=39 // pred_check_branch
        %273 = sbr.rel (%p271) target = $region44
      $region43: #{refiner_pallas.4} parent=39 // pred_region
        %p274 = scmp.lt.s32.totalorder %s21, 1
        %s275 = scalar_select %p274, %s21, 1
        %p276 = scmp.lt.s32.totalorder %s22, 0
        %s277 = scalar_select %p276, %s22, 0
        %s278 = smul.addr %s275, 33
        %s279 = sadd.s32 %s277, %s278
        %s280 = smul.addr %s279, 8
        %s281 = scalar_lea.vmem %s0, %s280
      $region44: #{refiner_pallas.4} parent=39 // pred_fallthru
        _
      // Predicated region
      $region45: #{refiner_pallas.4} parent=39 // pred_check
        %p282 = pneg %p76
      $region46: #{refiner_pallas.4} parent=39 // pred_check_branch
        %284 = sbr.rel (%p282) target = $region48
      $region47: #{refiner_pallas.4} parent=39 // pred_region
        %p285 = scmp.lt.s32.totalorder %s21, 1
        %s286 = scalar_select %p285, %s21, 1
        %p287 = scmp.lt.s32.totalorder %s22, 0
        %s288 = scalar_select %p287, %s22, 0
        %s289 = sadd.s32 %s288, %s286
        %s290 = scalar_lea.vmem %s1, %s289
      $region48: #{refiner_pallas.4} parent=39 // pred_fallthru
        _
    $region40: #{refiner_pallas.4} parent=5 // pred_fallthru
      _
    %p291 = scmp.le.s32.totalorder 1, %s14
    %p292 = scmp.lt.s32.totalorder %s14, 3
    %p293 = pnand %p291, %p292
    %p294 = pneg %p293
    // Predicated region
    $region49: #{refiner_pallas.4} parent=5 // pred_check
      _
    $region50: #{refiner_pallas.4} parent=5 // pred_check_branch
      %296 = sbr.rel (%p293) target = $region52
    $region51: #{refiner_pallas.4} parent=5 // pred_region
      %s297 = ssub.s32 %s14, 1
      %p298 = scmp.lt.s32.totalorder %s23, 1
      %s299 = scalar_select %p298, %s23, 1
      %p300 = scmp.lt.s32.totalorder %s24, 0
      %s301 = scalar_select %p300, %s24, 0
      %s302 = smul.addr %s299, 33
      %s303 = sadd.s32 %s301, %s302
      %s304 = smul.addr %s303, 8
      %s305 = scalar_lea.vmem %s0, %s304
      %p306 = pneg %p54
      %p307 = pneg %p51
      %p308 = scmp.lt.s32.totalorder %s23, 1
      %s309 = scalar_select %p308, %s23, 1
      %p310 = scmp.lt.s32.totalorder %s24, 0
      %s311 = scalar_select %p310, %s24, 0
      %s312 = sadd.s32 %s311, %s309
      %s313 = scalar_lea.vmem %s1, %s312
      %p314 = pneg %p82
      %p315 = pneg %p79
      %p316 = pneg %p103
      %p317 = pneg %p100
      %p318 = pneg %p124
      %p319 = pneg %p121
      %p320 = pneg %p145
      %p321 = pneg %p142
      %p322 = pneg %p166
      %p323 = pneg %p163
      %p324 = pneg %p187
      %p325 = pneg %p184
      %p326 = pneg %p208
      %p327 = pneg %p205
      %p328 = pneg %p234
      %p329 = pneg %p231
      %p330 = scmp.lt.s32.totalorder %s23, 1
      %s331 = scalar_select %p330, %s23, 1
      %s332 = smul.addr %s331, 8
      %s333 = scalar_lea.vmem %s8, %s332
      %p334 = scmp.lt.s32.totalorder %s23, 1
      %s335 = scalar_select %p334, %s23, 1
      %p336 = scmp.lt.s32.totalorder %s24, 0
      %s337 = scalar_select %p336, %s24, 0
      %s338 = smul.addr %s335, 33
      %s339 = sadd.s32 %s337, %s338
      %s340 = smul.addr %s339, 8
      %s341 = scalar_lea.vmem %s0, %s340
      %p342 = scmp.lt.s32.totalorder %s23, 1
      %s343 = scalar_select %p342, %s23, 1
      %p344 = scmp.lt.s32.totalorder %s24, 0
      %s345 = scalar_select %p344, %s24, 0
      %s346 = sadd.s32 %s345, %s343
      %s347 = scalar_lea.vmem %s1, %s346
      %p348 = scmp.lt.s32.totalorder %s23, 1
      %s349 = scalar_select %p348, %s23, 1
      %s350 = smul.addr %s349, 8
      %s351 = scalar_lea.vmem %s8, %s350
      %p353 = scmp.eq.s32.totalorder %s24, 0
      // Predicated region
      $region53: #{refiner_pallas.4} parent=51 // pred_check
        %p354 = pneg %p353
      $region54: #{refiner_pallas.4} parent=51 // pred_check_branch
        %356 = sbr.rel (%p354) target = $region56
      $region55: #{refiner_pallas.4} parent=51 // pred_region
        %357 = vst [vmem:[%s351] sm:$0xff] 0.0
      $region56: #{refiner_pallas.4} parent=51 // pred_fallthru
        _
      %v358 = vld [vmem:[%s341] sm:$0xff]
      %v359 = vld [vmem:[%s341 + $0x8] sm:$0xff]
      %v360 = vld [vmem:[%s341 + $0x10] sm:$0xff]
      %v361 = vld [vmem:[%s341 + $0x18] sm:$0xff]
      %v362 = vld [vmem:[%s341 + $0x20] sm:$0xff]
      %v363 = vld [vmem:[%s341 + $0x28] sm:$0xff]
      %v364 = vld [vmem:[%s341 + $0x30] sm:$0xff]
      %v365 = vld [vmem:[%s341 + $0x38] sm:$0xff]
      %v366 = vld [vmem:[%s341 + $0x40] sm:$0xff]
      %v367 = vld [vmem:[%s341 + $0x48] sm:$0xff]
      %v368 = vld [vmem:[%s341 + $0x50] sm:$0xff]
      %v369 = vld [vmem:[%s341 + $0x58] sm:$0xff]
      %v370 = vld [vmem:[%s341 + $0x60] sm:$0xff]
      %v371 = vld [vmem:[%s341 + $0x68] sm:$0xff]
      %v372 = vld [vmem:[%s341 + $0x70] sm:$0xff]
      %v373 = vld [vmem:[%s341 + $0x78] sm:$0xff]
      %v374 = vld [vmem:[%s341 + $0x80] sm:$0xff]
      %v375 = vld [vmem:[%s341 + $0x88] sm:$0xff]
      %v376 = vld [vmem:[%s341 + $0x90] sm:$0xff]
      %v377 = vld [vmem:[%s341 + $0x98] sm:$0xff]
      %v378 = vld [vmem:[%s341 + $0xa0] sm:$0xff]
      %v379 = vld [vmem:[%s341 + $0xa8] sm:$0xff]
      %v380 = vld [vmem:[%s341 + $0xb0] sm:$0xff]
      %v381 = vld [vmem:[%s341 + $0xb8] sm:$0xff]
      %v382 = vld [vmem:[%s341 + $0xc0] sm:$0xff]
      %v383 = vld [vmem:[%s341 + $0xc8] sm:$0xff]
      %v384 = vld [vmem:[%s341 + $0xd0] sm:$0xff]
      %v385 = vld [vmem:[%s341 + $0xd8] sm:$0xff]
      %v386 = vld [vmem:[%s341 + $0xe0] sm:$0xff]
      %v387 = vld [vmem:[%s341 + $0xe8] sm:$0xff]
      %v388 = vld [vmem:[%s341 + $0xf0] sm:$0xff]
      %v389 = vld [vmem:[%s341 + $0xf8] sm:$0xff]
      %v390 = vld [vmem:[%s341 + $0x100] sm:$0x7]
      %v391 = vpack.c.bf16 %v359, %v358
      %v392 = vpack.c.bf16 %v361, %v360
      %v393 = vpack.c.bf16 %v363, %v362
      %v394 = vpack.c.bf16 %v365, %v364
      %v395 = vpack.c.bf16 %v367, %v366
      %v396 = vpack.c.bf16 %v369, %v368
      %v397 = vpack.c.bf16 %v371, %v370
      %v398 = vpack.c.bf16 %v373, %v372
      %v399 = vpack.c.bf16 %v375, %v374
      %v400 = vpack.c.bf16 %v377, %v376
      %v401 = vpack.c.bf16 %v379, %v378
      %v402 = vpack.c.bf16 %v381, %v380
      %v403 = vpack.c.bf16 %v383, %v382
      %v404 = vpack.c.bf16 %v385, %v384
      %v405 = vpack.c.bf16 %v387, %v386
      %v406 = vpack.c.bf16 %v389, %v388
      %v407 = vpack.c.bf16 %v390, %v390
      %v408 = vld [vmem:[%s2] sm:$0xff]
      %v409 = vld [vmem:[%s2 + $0x8] sm:$0xf]
      %v410 = vld [vmem:[%s2 + $0xc] sm:$0xff]
      %v411 = vld [vmem:[%s2 + $0x14] sm:$0xf]
      %v412 = vld [vmem:[%s2 + $0x18] sm:$0xff]
      %v413 = vld [vmem:[%s2 + $0x20] sm:$0xf]
      %v414 = vld [vmem:[%s2 + $0x24] sm:$0xff]
      %v415 = vld [vmem:[%s2 + $0x2c] sm:$0xf]
      %v416 = vld [vmem:[%s2 + $0x30] sm:$0xff]
      %v417 = vld [vmem:[%s2 + $0x38] sm:$0xf]
      %v418 = vld [vmem:[%s2 + $0x3c] sm:$0xff]
      %v419 = vld [vmem:[%s2 + $0x44] sm:$0xf]
      %v420 = vld [vmem:[%s2 + $0x48] sm:$0xff]
      %v421 = vld [vmem:[%s2 + $0x50] sm:$0xf]
      %v422 = vld [vmem:[%s2 + $0x54] sm:$0xff]
      %v423 = vld [vmem:[%s2 + $0x5c] sm:$0xf]
      %v424 = vld [vmem:[%s2 + $0x60] sm:$0xff]
      %v425 = vld [vmem:[%s2 + $0x68] sm:$0xf]
      %v426 = vld [vmem:[%s2 + $0x6c] sm:$0xff]
      %v427 = vld [vmem:[%s2 + $0x74] sm:$0xf]
      %v428 = vld [vmem:[%s2 + $0x78] sm:$0xff]
      %v429 = vld [vmem:[%s2 + $0x80] sm:$0xf]
      %v430 = vld [vmem:[%s2 + $0x84] sm:$0xff]
      %v431 = vld [vmem:[%s2 + $0x8c] sm:$0xf]
      %v432 = vld [vmem:[%s2 + $0x90] sm:$0xff]
      %v433 = vld [vmem:[%s2 + $0x98] sm:$0xf]
      %v434 = vld [vmem:[%s2 + $0x9c] sm:$0xff]
      %v435 = vld [vmem:[%s2 + $0xa4] sm:$0xf]
      %v436 = vld [vmem:[%s2 + $0xa8] sm:$0xff]
      %v437 = vld [vmem:[%s2 + $0xb0] sm:$0xf]
      %v438 = vld [vmem:[%s2 + $0xb4] sm:$0xff]
      %v439 = vld [vmem:[%s2 + $0xbc] sm:$0xf]
      %v440 = vld [vmem:[%s2 + $0xc0] sm:$0xff]
      %v441 = vld [vmem:[%s2 + $0xc8] sm:$0xf]
      %v442 = vld [vmem:[%s2 + $0xcc] sm:$0xff]
      %v443 = vld [vmem:[%s2 + $0xd4] sm:$0xf]
      %v444 = vld [vmem:[%s2 + $0xd8] sm:$0xff]
      %v445 = vld [vmem:[%s2 + $0xe0] sm:$0xf]
      %v446 = vld [vmem:[%s2 + $0xe4] sm:$0xff]
      %v447 = vld [vmem:[%s2 + $0xec] sm:$0xf]
      %v448 = vld [vmem:[%s2 + $0xf0] sm:$0xff]
      %v449 = vld [vmem:[%s2 + $0xf8] sm:$0xf]
      %v450 = vld [vmem:[%s2 + $0xfc] sm:$0xff]
      %v451 = vld [vmem:[%s2 + $0x104] sm:$0xf]
      %v452 = vld [vmem:[%s2 + $0x108] sm:$0xff]
      %v453 = vld [vmem:[%s2 + $0x110] sm:$0xf]
      %v454 = vld [vmem:[%s2 + $0x114] sm:$0xff]
      %v455 = vld [vmem:[%s2 + $0x11c] sm:$0xf]
      %v456 = vld [vmem:[%s2 + $0x120] sm:$0xff]
      %v457 = vld [vmem:[%s2 + $0x128] sm:$0xf]
      %v458 = vld [vmem:[%s2 + $0x12c] sm:$0xff]
      %v459 = vld [vmem:[%s2 + $0x134] sm:$0xf]
      %v460 = vld [vmem:[%s2 + $0x138] sm:$0xff]
      %v461 = vld [vmem:[%s2 + $0x140] sm:$0xf]
      %v462 = vld [vmem:[%s2 + $0x144] sm:$0xff]
      %v463 = vld [vmem:[%s2 + $0x14c] sm:$0xf]
      %v464 = vld [vmem:[%s2 + $0x150] sm:$0xff]
      %v465 = vld [vmem:[%s2 + $0x158] sm:$0xf]
      %v466 = vld [vmem:[%s2 + $0x15c] sm:$0xff]
      %v467 = vld [vmem:[%s2 + $0x164] sm:$0xf]
      %v468 = vld [vmem:[%s2 + $0x168] sm:$0xff]
      %v469 = vld [vmem:[%s2 + $0x170] sm:$0xf]
      %v470 = vld [vmem:[%s2 + $0x174] sm:$0xff]
      %v471 = vld [vmem:[%s2 + $0x17c] sm:$0xf]
      %v472 = vld [vmem:[%s2 + $0x180] sm:$0xff]
      %v473 = vld [vmem:[%s2 + $0x188] sm:$0xf]
      %v474 = vld [vmem:[%s2 + $0x18c] sm:$0xff]
      %v475 = vld [vmem:[%s2 + $0x194] sm:$0xf]
      %v476 = vld [vmem:[%s2 + $0x198] sm:$0xff]
      %v477 = vld [vmem:[%s2 + $0x1a0] sm:$0xf]
      %v478 = vld [vmem:[%s2 + $0x1a4] sm:$0xff]
      %v479 = vld [vmem:[%s2 + $0x1ac] sm:$0xf]
      %v480 = vld [vmem:[%s2 + $0x1b0] sm:$0xff]
      %v481 = vld [vmem:[%s2 + $0x1b8] sm:$0xf]
      %v482 = vld [vmem:[%s2 + $0x1bc] sm:$0xff]
      %v483 = vld [vmem:[%s2 + $0x1c4] sm:$0xf]
      %v484 = vld [vmem:[%s2 + $0x1c8] sm:$0xff]
      %v485 = vld [vmem:[%s2 + $0x1d0] sm:$0xf]
      %v486 = vld [vmem:[%s2 + $0x1d4] sm:$0xff]
      %v487 = vld [vmem:[%s2 + $0x1dc] sm:$0xf]
      %v488 = vld [vmem:[%s2 + $0x1e0] sm:$0xff]
      %v489 = vld [vmem:[%s2 + $0x1e8] sm:$0xf]
      %v490 = vld [vmem:[%s2 + $0x1ec] sm:$0xff]
      %v491 = vld [vmem:[%s2 + $0x1f4] sm:$0xf]
      %v492 = vld [vmem:[%s2 + $0x1f8] sm:$0xff]
      %v493 = vld [vmem:[%s2 + $0x200] sm:$0xf]
      %v494 = vld [vmem:[%s2 + $0x204] sm:$0xff]
      %v495 = vld [vmem:[%s2 + $0x20c] sm:$0xf]
      %v496 = vld [vmem:[%s2 + $0x210] sm:$0xff]
      %v497 = vld [vmem:[%s2 + $0x218] sm:$0xf]
      %v498 = vld [vmem:[%s2 + $0x21c] sm:$0xff]
      %v499 = vld [vmem:[%s2 + $0x224] sm:$0xf]
      %v500 = vld [vmem:[%s2 + $0x228] sm:$0xff]
      %v501 = vld [vmem:[%s2 + $0x230] sm:$0xf]
      %v502 = vld [vmem:[%s2 + $0x234] sm:$0xff]
      %v503 = vld [vmem:[%s2 + $0x23c] sm:$0xf]
      %v504 = vld [vmem:[%s2 + $0x240] sm:$0xff]
      %v505 = vld [vmem:[%s2 + $0x248] sm:$0xf]
      %v506 = vld [vmem:[%s2 + $0x24c] sm:$0xff]
      %v507 = vld [vmem:[%s2 + $0x254] sm:$0xf]
      %v508 = vld [vmem:[%s2 + $0x258] sm:$0xff]
      %v509 = vld [vmem:[%s2 + $0x260] sm:$0xf]
      %v510 = vld [vmem:[%s2 + $0x264] sm:$0xff]
      %v511 = vld [vmem:[%s2 + $0x26c] sm:$0xf]
      %v512 = vld [vmem:[%s2 + $0x270] sm:$0xff]
      %v513 = vld [vmem:[%s2 + $0x278] sm:$0xf]
      %v514 = vld [vmem:[%s2 + $0x27c] sm:$0xff]
      %v515 = vld [vmem:[%s2 + $0x284] sm:$0xf]
      %v516 = vld [vmem:[%s2 + $0x288] sm:$0xff]
      %v517 = vld [vmem:[%s2 + $0x290] sm:$0xf]
      %v518 = vld [vmem:[%s2 + $0x294] sm:$0xff]
      %v519 = vld [vmem:[%s2 + $0x29c] sm:$0xf]
      %v520 = vld [vmem:[%s2 + $0x2a0] sm:$0xff]
      %v521 = vld [vmem:[%s2 + $0x2a8] sm:$0xf]
      %v522 = vld [vmem:[%s2 + $0x2ac] sm:$0xff]
      %v523 = vld [vmem:[%s2 + $0x2b4] sm:$0xf]
      %v524 = vld [vmem:[%s2 + $0x2b8] sm:$0xff]
      %v525 = vld [vmem:[%s2 + $0x2c0] sm:$0xf]
      %v526 = vld [vmem:[%s2 + $0x2c4] sm:$0xff]
      %v527 = vld [vmem:[%s2 + $0x2cc] sm:$0xf]
      %v528 = vld [vmem:[%s2 + $0x2d0] sm:$0xff]
      %v529 = vld [vmem:[%s2 + $0x2d8] sm:$0xf]
      %v530 = vld [vmem:[%s2 + $0x2dc] sm:$0xff]
      %v531 = vld [vmem:[%s2 + $0x2e4] sm:$0xf]
      %v532 = vld [vmem:[%s2 + $0x2e8] sm:$0xff]
      %v533 = vld [vmem:[%s2 + $0x2f0] sm:$0xf]
      %v534 = vld [vmem:[%s2 + $0x2f4] sm:$0xff]
      %v535 = vld [vmem:[%s2 + $0x2fc] sm:$0xf]
      %v536 = vld [vmem:[%s3] sm:$0xff]
      %v537 = vld [vmem:[%s3 + $0x8] sm:$0xff]
      %v538 = vld [vmem:[%s3 + $0x10] sm:$0xff]
      %v539 = vld [vmem:[%s3 + $0x18] sm:$0xff]
      %v540 = vld [vmem:[%s3 + $0x20] sm:$0xff]
      %v541 = vld [vmem:[%s3 + $0x28] sm:$0xff]
      %v542 = vld [vmem:[%s3 + $0x30] sm:$0xff]
      %v543 = vld [vmem:[%s3 + $0x38] sm:$0xff]
      %v544 = vld [vmem:[%s3 + $0x40] sm:$0xff]
      %v545 = vld [vmem:[%s3 + $0x48] sm:$0xff]
      %v546 = vld [vmem:[%s3 + $0x50] sm:$0xff]
      %v547 = vld [vmem:[%s3 + $0x58] sm:$0xff]
      %v548 = vld [vmem:[%s3 + $0x60] sm:$0xff]
      %v549 = vld [vmem:[%s3 + $0x68] sm:$0xff]
      %v550 = vld [vmem:[%s3 + $0x70] sm:$0xff]
      %v551 = vld [vmem:[%s3 + $0x78] sm:$0xff]
      %v552 = vld [vmem:[%s3 + $0x80] sm:$0xff]
      %v553 = vld [vmem:[%s3 + $0x88] sm:$0xff]
      %v554 = vld [vmem:[%s3 + $0x90] sm:$0xff]
      %v555 = vld [vmem:[%s3 + $0x98] sm:$0xff]
      %v556 = vld [vmem:[%s3 + $0xa0] sm:$0xff]
      %v557 = vld [vmem:[%s3 + $0xa8] sm:$0xff]
      %v558 = vld [vmem:[%s3 + $0xb0] sm:$0xff]
      %v559 = vld [vmem:[%s3 + $0xb8] sm:$0xff]
      %v560 = vld [vmem:[%s3 + $0xc0] sm:$0xff]
      %v561 = vld [vmem:[%s3 + $0xc8] sm:$0xff]
      %v562 = vld [vmem:[%s3 + $0xd0] sm:$0xff]
      %v563 = vld [vmem:[%s3 + $0xd8] sm:$0xff]
      %v564 = vld [vmem:[%s3 + $0xe0] sm:$0xff]
      %v565 = vld [vmem:[%s3 + $0xe8] sm:$0xff]
      %v566 = vld [vmem:[%s3 + $0xf0] sm:$0xff]
      %v567 = vld [vmem:[%s3 + $0xf8] sm:$0xff]
      %v568 = vld [vmem:[%s3 + $0x100] sm:$0xff]
      %v569 = vld [vmem:[%s3 + $0x108] sm:$0xff]
      %v570 = vld [vmem:[%s3 + $0x110] sm:$0xff]
      %v571 = vld [vmem:[%s3 + $0x118] sm:$0xff]
      %v572 = vld [vmem:[%s3 + $0x120] sm:$0xff]
      %v573 = vld [vmem:[%s3 + $0x128] sm:$0xff]
      %v574 = vld [vmem:[%s3 + $0x130] sm:$0xff]
      %v575 = vld [vmem:[%s3 + $0x138] sm:$0xff]
      %v576 = vld [vmem:[%s3 + $0x140] sm:$0xff]
      %v577 = vld [vmem:[%s3 + $0x148] sm:$0xff]
      %v578 = vld [vmem:[%s3 + $0x150] sm:$0xff]
      %v579 = vld [vmem:[%s3 + $0x158] sm:$0xff]
      %v580 = vld [vmem:[%s3 + $0x160] sm:$0xff]
      %v581 = vld [vmem:[%s3 + $0x168] sm:$0xff]
      %v582 = vld [vmem:[%s3 + $0x170] sm:$0xff]
      %v583 = vld [vmem:[%s3 + $0x178] sm:$0xff]
      %v584 = vld [vmem:[%s3 + $0x180] sm:$0xff]
      %v585 = vld [vmem:[%s3 + $0x188] sm:$0xff]
      %v586 = vld [vmem:[%s3 + $0x190] sm:$0xff]
      %v587 = vld [vmem:[%s3 + $0x198] sm:$0xff]
      %v588 = vld [vmem:[%s3 + $0x1a0] sm:$0xff]
      %v589 = vld [vmem:[%s3 + $0x1a8] sm:$0xff]
      %v590 = vld [vmem:[%s3 + $0x1b0] sm:$0xff]
      %v591 = vld [vmem:[%s3 + $0x1b8] sm:$0xff]
      %v592 = vld [vmem:[%s3 + $0x1c0] sm:$0xff]
      %v593 = vld [vmem:[%s3 + $0x1c8] sm:$0xff]
      %v594 = vld [vmem:[%s3 + $0x1d0] sm:$0xff]
      %v595 = vld [vmem:[%s3 + $0x1d8] sm:$0xff]
      %v596 = vld [vmem:[%s3 + $0x1e0] sm:$0xff]
      %v597 = vld [vmem:[%s3 + $0x1e8] sm:$0xff]
      %v598 = vld [vmem:[%s3 + $0x1f0] sm:$0xff]
      %v599 = vld [vmem:[%s3 + $0x1f8] sm:$0xff]
      %601 = vset.pattern.permute.xlu0 0
      %602 = vperm.xlu0 %601, %v536
      %v603 = vpop.permute.xlu0 %602
      %606 = vset.pattern.permute.xlu0 0
      %607 = vperm.xlu0 %606, %v537
      %v608 = vpop.permute.xlu0 %607
      %611 = vset.pattern.permute.xlu0 0
      %612 = vperm.xlu0 %611, %v538
      %v613 = vpop.permute.xlu0 %612
      %616 = vset.pattern.permute.xlu0 0
      %617 = vperm.xlu0 %616, %v539
      %v618 = vpop.permute.xlu0 %617
      %621 = vset.pattern.permute.xlu0 0
      %622 = vperm.xlu0 %621, %v540
      %v623 = vpop.permute.xlu0 %622
      %626 = vset.pattern.permute.xlu0 0
      %627 = vperm.xlu0 %626, %v541
      %v628 = vpop.permute.xlu0 %627
      %631 = vset.pattern.permute.xlu0 0
      %632 = vperm.xlu0 %631, %v542
      %v633 = vpop.permute.xlu0 %632
      %636 = vset.pattern.permute.xlu0 0
      %637 = vperm.xlu0 %636, %v543
      %v638 = vpop.permute.xlu0 %637
      %641 = vset.pattern.permute.xlu0 0
      %642 = vperm.xlu0 %641, %v544
      %v643 = vpop.permute.xlu0 %642
      %646 = vset.pattern.permute.xlu0 0
      %647 = vperm.xlu0 %646, %v545
      %v648 = vpop.permute.xlu0 %647
      %651 = vset.pattern.permute.xlu0 0
      %652 = vperm.xlu0 %651, %v546
      %v653 = vpop.permute.xlu0 %652
      %656 = vset.pattern.permute.xlu0 0
      %657 = vperm.xlu0 %656, %v547
      %v658 = vpop.permute.xlu0 %657
      %661 = vset.pattern.permute.xlu0 0
      %662 = vperm.xlu0 %661, %v548
      %v663 = vpop.permute.xlu0 %662
      %666 = vset.pattern.permute.xlu0 0
      %667 = vperm.xlu0 %666, %v549
      %v668 = vpop.permute.xlu0 %667
      %671 = vset.pattern.permute.xlu0 0
      %672 = vperm.xlu0 %671, %v550
      %v673 = vpop.permute.xlu0 %672
      %676 = vset.pattern.permute.xlu0 0
      %677 = vperm.xlu0 %676, %v551
      %v678 = vpop.permute.xlu0 %677
      %681 = vset.pattern.permute.xlu0 0
      %682 = vperm.xlu0 %681, %v552
      %v683 = vpop.permute.xlu0 %682
      %686 = vset.pattern.permute.xlu0 0
      %687 = vperm.xlu0 %686, %v553
      %v688 = vpop.permute.xlu0 %687
      %691 = vset.pattern.permute.xlu0 0
      %692 = vperm.xlu0 %691, %v554
      %v693 = vpop.permute.xlu0 %692
      %696 = vset.pattern.permute.xlu0 0
      %697 = vperm.xlu0 %696, %v555
      %v698 = vpop.permute.xlu0 %697
      %701 = vset.pattern.permute.xlu0 0
      %702 = vperm.xlu0 %701, %v556
      %v703 = vpop.permute.xlu0 %702
      %706 = vset.pattern.permute.xlu0 0
      %707 = vperm.xlu0 %706, %v557
      %v708 = vpop.permute.xlu0 %707
      %711 = vset.pattern.permute.xlu0 0
      %712 = vperm.xlu0 %711, %v558
      %v713 = vpop.permute.xlu0 %712
      %716 = vset.pattern.permute.xlu0 0
      %717 = vperm.xlu0 %716, %v559
      %v718 = vpop.permute.xlu0 %717
      %721 = vset.pattern.permute.xlu0 0
      %722 = vperm.xlu0 %721, %v560
      %v723 = vpop.permute.xlu0 %722
      %726 = vset.pattern.permute.xlu0 0
      %727 = vperm.xlu0 %726, %v561
      %v728 = vpop.permute.xlu0 %727
      %731 = vset.pattern.permute.xlu0 0
      %732 = vperm.xlu0 %731, %v562
      %v733 = vpop.permute.xlu0 %732
      %736 = vset.pattern.permute.xlu0 0
      %737 = vperm.xlu0 %736, %v563
      %v738 = vpop.permute.xlu0 %737
      %741 = vset.pattern.permute.xlu0 0
      %742 = vperm.xlu0 %741, %v564
      %v743 = vpop.permute.xlu0 %742
      %746 = vset.pattern.permute.xlu0 0
      %747 = vperm.xlu0 %746, %v565
      %v748 = vpop.permute.xlu0 %747
      %751 = vset.pattern.permute.xlu0 0
      %752 = vperm.xlu0 %751, %v566
      %v753 = vpop.permute.xlu0 %752
      %756 = vset.pattern.permute.xlu0 0
      %757 = vperm.xlu0 %756, %v567
      %v758 = vpop.permute.xlu0 %757
      %761 = vset.pattern.permute.xlu0 0
      %762 = vperm.xlu0 %761, %v568
      %v763 = vpop.permute.xlu0 %762
      %766 = vset.pattern.permute.xlu0 0
      %767 = vperm.xlu0 %766, %v569
      %v768 = vpop.permute.xlu0 %767
      %771 = vset.pattern.permute.xlu0 0
      %772 = vperm.xlu0 %771, %v570
      %v773 = vpop.permute.xlu0 %772
      %776 = vset.pattern.permute.xlu0 0
      %777 = vperm.xlu0 %776, %v571
      %v778 = vpop.permute.xlu0 %777
      %781 = vset.pattern.permute.xlu0 0
      %782 = vperm.xlu0 %781, %v572
      %v783 = vpop.permute.xlu0 %782
      %786 = vset.pattern.permute.xlu0 0
      %787 = vperm.xlu0 %786, %v573
      %v788 = vpop.permute.xlu0 %787
      %791 = vset.pattern.permute.xlu0 0
      %792 = vperm.xlu0 %791, %v574
      %v793 = vpop.permute.xlu0 %792
      %796 = vset.pattern.permute.xlu0 0
      %797 = vperm.xlu0 %796, %v575
      %v798 = vpop.permute.xlu0 %797
      %801 = vset.pattern.permute.xlu0 0
      %802 = vperm.xlu0 %801, %v576
      %v803 = vpop.permute.xlu0 %802
      %806 = vset.pattern.permute.xlu0 0
      %807 = vperm.xlu0 %806, %v577
      %v808 = vpop.permute.xlu0 %807
      %811 = vset.pattern.permute.xlu0 0
      %812 = vperm.xlu0 %811, %v578
      %v813 = vpop.permute.xlu0 %812
      %816 = vset.pattern.permute.xlu0 0
      %817 = vperm.xlu0 %816, %v579
      %v818 = vpop.permute.xlu0 %817
      %821 = vset.pattern.permute.xlu0 0
      %822 = vperm.xlu0 %821, %v580
      %v823 = vpop.permute.xlu0 %822
      %826 = vset.pattern.permute.xlu0 0
      %827 = vperm.xlu0 %826, %v581
      %v828 = vpop.permute.xlu0 %827
      %831 = vset.pattern.permute.xlu0 0
      %832 = vperm.xlu0 %831, %v582
      %v833 = vpop.permute.xlu0 %832
      %836 = vset.pattern.permute.xlu0 0
      %837 = vperm.xlu0 %836, %v583
      %v838 = vpop.permute.xlu0 %837
      %841 = vset.pattern.permute.xlu0 0
      %842 = vperm.xlu0 %841, %v584
      %v843 = vpop.permute.xlu0 %842
      %846 = vset.pattern.permute.xlu0 0
      %847 = vperm.xlu0 %846, %v585
      %v848 = vpop.permute.xlu0 %847
      %851 = vset.pattern.permute.xlu0 0
      %852 = vperm.xlu0 %851, %v586
      %v853 = vpop.permute.xlu0 %852
      %856 = vset.pattern.permute.xlu0 0
      %857 = vperm.xlu0 %856, %v587
      %v858 = vpop.permute.xlu0 %857
      %861 = vset.pattern.permute.xlu0 0
      %862 = vperm.xlu0 %861, %v588
      %v863 = vpop.permute.xlu0 %862
      %866 = vset.pattern.permute.xlu0 0
      %867 = vperm.xlu0 %866, %v589
      %v868 = vpop.permute.xlu0 %867
      %871 = vset.pattern.permute.xlu0 0
      %872 = vperm.xlu0 %871, %v590
      %v873 = vpop.permute.xlu0 %872
      %876 = vset.pattern.permute.xlu0 0
      %877 = vperm.xlu0 %876, %v591
      %v878 = vpop.permute.xlu0 %877
      %881 = vset.pattern.permute.xlu0 0
      %882 = vperm.xlu0 %881, %v592
      %v883 = vpop.permute.xlu0 %882
      %886 = vset.pattern.permute.xlu0 0
      %887 = vperm.xlu0 %886, %v593
      %v888 = vpop.permute.xlu0 %887
      %891 = vset.pattern.permute.xlu0 0
      %892 = vperm.xlu0 %891, %v594
      %v893 = vpop.permute.xlu0 %892
      %896 = vset.pattern.permute.xlu0 0
      %897 = vperm.xlu0 %896, %v595
      %v898 = vpop.permute.xlu0 %897
      %901 = vset.pattern.permute.xlu0 0
      %902 = vperm.xlu0 %901, %v596
      %v903 = vpop.permute.xlu0 %902
      %906 = vset.pattern.permute.xlu0 0
      %907 = vperm.xlu0 %906, %v597
      %v908 = vpop.permute.xlu0 %907
      %911 = vset.pattern.permute.xlu0 0
      %912 = vperm.xlu0 %911, %v598
      %v913 = vpop.permute.xlu0 %912
      %916 = vset.pattern.permute.xlu0 0
      %917 = vperm.xlu0 %916, %v599
      %v918 = vpop.permute.xlu0 %917
      %v1048 = vunpack.c.l.b16 %v408
      %v1049 = vunpack.c.h.b16 %v408
      %v1050 = vunpack.c.l.b16 %v409
      %v1051 = vunpack.c.l.b16 %v410
      %v1052 = vunpack.c.h.b16 %v410
      %v1053 = vunpack.c.l.b16 %v411
      %v1054 = vunpack.c.l.b16 %v412
      %v1055 = vunpack.c.h.b16 %v412
      %v1056 = vunpack.c.l.b16 %v413
      %v1057 = vunpack.c.l.b16 %v414
      %v1058 = vunpack.c.h.b16 %v414
      %v1059 = vunpack.c.l.b16 %v415
      %v1060 = vunpack.c.l.b16 %v416
      %v1061 = vunpack.c.h.b16 %v416
      %v1062 = vunpack.c.l.b16 %v417
      %v1063 = vunpack.c.l.b16 %v418
      %v1064 = vunpack.c.h.b16 %v418
      %v1065 = vunpack.c.l.b16 %v419
      %v1066 = vunpack.c.l.b16 %v420
      %v1067 = vunpack.c.h.b16 %v420
      %v1068 = vunpack.c.l.b16 %v421
      %v1069 = vunpack.c.l.b16 %v422
      %v1070 = vunpack.c.h.b16 %v422
      %v1071 = vunpack.c.l.b16 %v423
      %v1072 = vunpack.c.l.b16 %v424
      %v1073 = vunpack.c.h.b16 %v424
      %v1074 = vunpack.c.l.b16 %v425
      %v1075 = vunpack.c.l.b16 %v426
      %v1076 = vunpack.c.h.b16 %v426
      %v1077 = vunpack.c.l.b16 %v427
      %v1078 = vunpack.c.l.b16 %v428
      %v1079 = vunpack.c.h.b16 %v428
      %v1080 = vunpack.c.l.b16 %v429
      %v1081 = vunpack.c.l.b16 %v430
      %v1082 = vunpack.c.h.b16 %v430
      %v1083 = vunpack.c.l.b16 %v431
      %v1084 = vunpack.c.l.b16 %v432
      %v1085 = vunpack.c.h.b16 %v432
      %v1086 = vunpack.c.l.b16 %v433
      %v1087 = vunpack.c.l.b16 %v434
      %v1088 = vunpack.c.h.b16 %v434
      %v1089 = vunpack.c.l.b16 %v435
      %v1090 = vunpack.c.l.b16 %v436
      %v1091 = vunpack.c.h.b16 %v436
      %v1092 = vunpack.c.l.b16 %v437
      %v1093 = vunpack.c.l.b16 %v438
      %v1094 = vunpack.c.h.b16 %v438
      %v1095 = vunpack.c.l.b16 %v439
      %v1096 = vunpack.c.l.b16 %v440
      %v1097 = vunpack.c.h.b16 %v440
      %v1098 = vunpack.c.l.b16 %v441
      %v1099 = vunpack.c.l.b16 %v442
      %v1100 = vunpack.c.h.b16 %v442
      %v1101 = vunpack.c.l.b16 %v443
      %v1102 = vunpack.c.l.b16 %v444
      %v1103 = vunpack.c.h.b16 %v444
      %v1104 = vunpack.c.l.b16 %v445
      %v1105 = vunpack.c.l.b16 %v446
      %v1106 = vunpack.c.h.b16 %v446
      %v1107 = vunpack.c.l.b16 %v447
      %v1108 = vunpack.c.l.b16 %v448
      %v1109 = vunpack.c.h.b16 %v448
      %v1110 = vunpack.c.l.b16 %v449
      %v1111 = vunpack.c.l.b16 %v450
      %v1112 = vunpack.c.h.b16 %v450
      %v1113 = vunpack.c.l.b16 %v451
      %v1114 = vunpack.c.l.b16 %v452
      %v1115 = vunpack.c.h.b16 %v452
      %v1116 = vunpack.c.l.b16 %v453
      %v1117 = vunpack.c.l.b16 %v454
      %v1118 = vunpack.c.h.b16 %v454
      %v1119 = vunpack.c.l.b16 %v455
      %v1120 = vunpack.c.l.b16 %v456
      %v1121 = vunpack.c.h.b16 %v456
      %v1122 = vunpack.c.l.b16 %v457
      %v1123 = vunpack.c.l.b16 %v458
      %v1124 = vunpack.c.h.b16 %v458
      %v1125 = vunpack.c.l.b16 %v459
      %v1126 = vunpack.c.l.b16 %v460
      %v1127 = vunpack.c.h.b16 %v460
      %v1128 = vunpack.c.l.b16 %v461
      %v1129 = vunpack.c.l.b16 %v462
      %v1130 = vunpack.c.h.b16 %v462
      %v1131 = vunpack.c.l.b16 %v463
      %v1132 = vunpack.c.l.b16 %v464
      %v1133 = vunpack.c.h.b16 %v464
      %v1134 = vunpack.c.l.b16 %v465
      %v1135 = vunpack.c.l.b16 %v466
      %v1136 = vunpack.c.h.b16 %v466
      %v1137 = vunpack.c.l.b16 %v467
      %v1138 = vunpack.c.l.b16 %v468
      %v1139 = vunpack.c.h.b16 %v468
      %v1140 = vunpack.c.l.b16 %v469
      %v1141 = vunpack.c.l.b16 %v470
      %v1142 = vunpack.c.h.b16 %v470
      %v1143 = vunpack.c.l.b16 %v471
      %v1144 = vunpack.c.l.b16 %v472
      %v1145 = vunpack.c.h.b16 %v472
      %v1146 = vunpack.c.l.b16 %v473
      %v1147 = vunpack.c.l.b16 %v474
      %v1148 = vunpack.c.h.b16 %v474
      %v1149 = vunpack.c.l.b16 %v475
      %v1150 = vunpack.c.l.b16 %v476
      %v1151 = vunpack.c.h.b16 %v476
      %v1152 = vunpack.c.l.b16 %v477
      %v1153 = vunpack.c.l.b16 %v478
      %v1154 = vunpack.c.h.b16 %v478
      %v1155 = vunpack.c.l.b16 %v479
      %v1156 = vunpack.c.l.b16 %v480
      %v1157 = vunpack.c.h.b16 %v480
      %v1158 = vunpack.c.l.b16 %v481
      %v1159 = vunpack.c.l.b16 %v482
      %v1160 = vunpack.c.h.b16 %v482
      %v1161 = vunpack.c.l.b16 %v483
      %v1162 = vunpack.c.l.b16 %v484
      %v1163 = vunpack.c.h.b16 %v484
      %v1164 = vunpack.c.l.b16 %v485
      %v1165 = vunpack.c.l.b16 %v486
      %v1166 = vunpack.c.h.b16 %v486
      %v1167 = vunpack.c.l.b16 %v487
      %v1168 = vunpack.c.l.b16 %v488
      %v1169 = vunpack.c.h.b16 %v488
      %v1170 = vunpack.c.l.b16 %v489
      %v1171 = vunpack.c.l.b16 %v490
      %v1172 = vunpack.c.h.b16 %v490
      %v1173 = vunpack.c.l.b16 %v491
      %v1174 = vunpack.c.l.b16 %v492
      %v1175 = vunpack.c.h.b16 %v492
      %v1176 = vunpack.c.l.b16 %v493
      %v1177 = vunpack.c.l.b16 %v494
      %v1178 = vunpack.c.h.b16 %v494
      %v1179 = vunpack.c.l.b16 %v495
      %v1180 = vunpack.c.l.b16 %v496
      %v1181 = vunpack.c.h.b16 %v496
      %v1182 = vunpack.c.l.b16 %v497
      %v1183 = vunpack.c.l.b16 %v498
      %v1184 = vunpack.c.h.b16 %v498
      %v1185 = vunpack.c.l.b16 %v499
      %v1186 = vunpack.c.l.b16 %v500
      %v1187 = vunpack.c.h.b16 %v500
      %v1188 = vunpack.c.l.b16 %v501
      %v1189 = vunpack.c.l.b16 %v502
      %v1190 = vunpack.c.h.b16 %v502
      %v1191 = vunpack.c.l.b16 %v503
      %v1192 = vunpack.c.l.b16 %v504
      %v1193 = vunpack.c.h.b16 %v504
      %v1194 = vunpack.c.l.b16 %v505
      %v1195 = vunpack.c.l.b16 %v506
      %v1196 = vunpack.c.h.b16 %v506
      %v1197 = vunpack.c.l.b16 %v507
      %v1198 = vunpack.c.l.b16 %v508
      %v1199 = vunpack.c.h.b16 %v508
      %v1200 = vunpack.c.l.b16 %v509
      %v1201 = vunpack.c.l.b16 %v510
      %v1202 = vunpack.c.h.b16 %v510
      %v1203 = vunpack.c.l.b16 %v511
      %v1204 = vunpack.c.l.b16 %v512
      %v1205 = vunpack.c.h.b16 %v512
      %v1206 = vunpack.c.l.b16 %v513
      %v1207 = vunpack.c.l.b16 %v514
      %v1208 = vunpack.c.h.b16 %v514
      %v1209 = vunpack.c.l.b16 %v515
      %v1210 = vunpack.c.l.b16 %v516
      %v1211 = vunpack.c.h.b16 %v516
      %v1212 = vunpack.c.l.b16 %v517
      %v1213 = vunpack.c.l.b16 %v518
      %v1214 = vunpack.c.h.b16 %v518
      %v1215 = vunpack.c.l.b16 %v519
      %v1216 = vunpack.c.l.b16 %v520
      %v1217 = vunpack.c.h.b16 %v520
      %v1218 = vunpack.c.l.b16 %v521
      %v1219 = vunpack.c.l.b16 %v522
      %v1220 = vunpack.c.h.b16 %v522
      %v1221 = vunpack.c.l.b16 %v523
      %v1222 = vunpack.c.l.b16 %v524
      %v1223 = vunpack.c.h.b16 %v524
      %v1224 = vunpack.c.l.b16 %v525
      %v1225 = vunpack.c.l.b16 %v526
      %v1226 = vunpack.c.h.b16 %v526
      %v1227 = vunpack.c.l.b16 %v527
      %v1228 = vunpack.c.l.b16 %v528
      %v1229 = vunpack.c.h.b16 %v528
      %v1230 = vunpack.c.l.b16 %v529
      %v1231 = vunpack.c.l.b16 %v530
      %v1232 = vunpack.c.h.b16 %v530
      %v1233 = vunpack.c.l.b16 %v531
      %v1234 = vunpack.c.l.b16 %v532
      %v1235 = vunpack.c.h.b16 %v532
      %v1236 = vunpack.c.l.b16 %v533
      %v1237 = vunpack.c.l.b16 %v534
      %v1238 = vunpack.c.h.b16 %v534
      %v1239 = vunpack.c.l.b16 %v535
      %v1240 = vpack.c.b16 %v1051, %v1048
      %v1241 = vpack.c.b16 %v1052, %v1049
      %v1242 = vpack.c.b16 %v1053, %v1050
      %v1243 = vpack.c.b16 %v1057, %v1054
      %v1244 = vpack.c.b16 %v1058, %v1055
      %v1245 = vpack.c.b16 %v1059, %v1056
      %v1246 = vpack.c.b16 %v1063, %v1060
      %v1247 = vpack.c.b16 %v1064, %v1061
      %v1248 = vpack.c.b16 %v1065, %v1062
      %v1249 = vpack.c.b16 %v1069, %v1066
      %v1250 = vpack.c.b16 %v1070, %v1067
      %v1251 = vpack.c.b16 %v1071, %v1068
      %v1252 = vpack.c.b16 %v1075, %v1072
      %v1253 = vpack.c.b16 %v1076, %v1073
      %v1254 = vpack.c.b16 %v1077, %v1074
      %v1255 = vpack.c.b16 %v1081, %v1078
      %v1256 = vpack.c.b16 %v1082, %v1079
      %v1257 = vpack.c.b16 %v1083, %v1080
      %v1258 = vpack.c.b16 %v1087, %v1084
      %v1259 = vpack.c.b16 %v1088, %v1085
      %v1260 = vpack.c.b16 %v1089, %v1086
      %v1261 = vpack.c.b16 %v1093, %v1090
      %v1262 = vpack.c.b16 %v1094, %v1091
      %v1263 = vpack.c.b16 %v1095, %v1092
      %v1264 = vpack.c.b16 %v1099, %v1096
      %v1265 = vpack.c.b16 %v1100, %v1097
      %v1266 = vpack.c.b16 %v1101, %v1098
      %v1267 = vpack.c.b16 %v1105, %v1102
      %v1268 = vpack.c.b16 %v1106, %v1103
      %v1269 = vpack.c.b16 %v1107, %v1104
      %v1270 = vpack.c.b16 %v1111, %v1108
      %v1271 = vpack.c.b16 %v1112, %v1109
      %v1272 = vpack.c.b16 %v1113, %v1110
      %v1273 = vpack.c.b16 %v1117, %v1114
      %v1274 = vpack.c.b16 %v1118, %v1115
      %v1275 = vpack.c.b16 %v1119, %v1116
      %v1276 = vpack.c.b16 %v1123, %v1120
      %v1277 = vpack.c.b16 %v1124, %v1121
      %v1278 = vpack.c.b16 %v1125, %v1122
      %v1279 = vpack.c.b16 %v1129, %v1126
      %v1280 = vpack.c.b16 %v1130, %v1127
      %v1281 = vpack.c.b16 %v1131, %v1128
      %v1282 = vpack.c.b16 %v1135, %v1132
      %v1283 = vpack.c.b16 %v1136, %v1133
      %v1284 = vpack.c.b16 %v1137, %v1134
      %v1285 = vpack.c.b16 %v1141, %v1138
      %v1286 = vpack.c.b16 %v1142, %v1139
      %v1287 = vpack.c.b16 %v1143, %v1140
      %v1288 = vpack.c.b16 %v1147, %v1144
      %v1289 = vpack.c.b16 %v1148, %v1145
      %v1290 = vpack.c.b16 %v1149, %v1146
      %v1291 = vpack.c.b16 %v1153, %v1150
      %v1292 = vpack.c.b16 %v1154, %v1151
      %v1293 = vpack.c.b16 %v1155, %v1152
      %v1294 = vpack.c.b16 %v1159, %v1156
      %v1295 = vpack.c.b16 %v1160, %v1157
      %v1296 = vpack.c.b16 %v1161, %v1158
      %v1297 = vpack.c.b16 %v1165, %v1162
      %v1298 = vpack.c.b16 %v1166, %v1163
      %v1299 = vpack.c.b16 %v1167, %v1164
      %v1300 = vpack.c.b16 %v1171, %v1168
      %v1301 = vpack.c.b16 %v1172, %v1169
      %v1302 = vpack.c.b16 %v1173, %v1170
      %v1303 = vpack.c.b16 %v1177, %v1174
      %v1304 = vpack.c.b16 %v1178, %v1175
      %v1305 = vpack.c.b16 %v1179, %v1176
      %v1306 = vpack.c.b16 %v1183, %v1180
      %v1307 = vpack.c.b16 %v1184, %v1181
      %v1308 = vpack.c.b16 %v1185, %v1182
      %v1309 = vpack.c.b16 %v1189, %v1186
      %v1310 = vpack.c.b16 %v1190, %v1187
      %v1311 = vpack.c.b16 %v1191, %v1188
      %v1312 = vpack.c.b16 %v1195, %v1192
      %v1313 = vpack.c.b16 %v1196, %v1193
      %v1314 = vpack.c.b16 %v1197, %v1194
      %v1315 = vpack.c.b16 %v1201, %v1198
      %v1316 = vpack.c.b16 %v1202, %v1199
      %v1317 = vpack.c.b16 %v1203, %v1200
      %v1318 = vpack.c.b16 %v1207, %v1204
      %v1319 = vpack.c.b16 %v1208, %v1205
      %v1320 = vpack.c.b16 %v1209, %v1206
      %v1321 = vpack.c.b16 %v1213, %v1210
      %v1322 = vpack.c.b16 %v1214, %v1211
      %v1323 = vpack.c.b16 %v1215, %v1212
      %v1324 = vpack.c.b16 %v1219, %v1216
      %v1325 = vpack.c.b16 %v1220, %v1217
      %v1326 = vpack.c.b16 %v1221, %v1218
      %v1327 = vpack.c.b16 %v1225, %v1222
      %v1328 = vpack.c.b16 %v1226, %v1223
      %v1329 = vpack.c.b16 %v1227, %v1224
      %v1330 = vpack.c.b16 %v1231, %v1228
      %v1331 = vpack.c.b16 %v1232, %v1229
      %v1332 = vpack.c.b16 %v1233, %v1230
      %v1333 = vpack.c.b16 %v1237, %v1234
      %v1334 = vpack.c.b16 %v1238, %v1235
      %v1335 = vpack.c.b16 %v1239, %v1236
      %vm1400 = vcmask 23552
      %v1402 = vsel %vm1400, %v1242, 0
      %v1405 = vsel %vm1400, %v1245, 0
      %v1408 = vsel %vm1400, %v1248, 0
      %v1411 = vsel %vm1400, %v1251, 0
      %v1414 = vsel %vm1400, %v1254, 0
      %v1417 = vsel %vm1400, %v1257, 0
      %v1420 = vsel %vm1400, %v1260, 0
      %v1423 = vsel %vm1400, %v1263, 0
      %v1426 = vsel %vm1400, %v1266, 0
      %v1429 = vsel %vm1400, %v1269, 0
      %v1432 = vsel %vm1400, %v1272, 0
      %v1435 = vsel %vm1400, %v1275, 0
      %v1438 = vsel %vm1400, %v1278, 0
      %v1441 = vsel %vm1400, %v1281, 0
      %v1444 = vsel %vm1400, %v1284, 0
      %v1447 = vsel %vm1400, %v1287, 0
      %v1450 = vsel %vm1400, %v1290, 0
      %v1453 = vsel %vm1400, %v1293, 0
      %v1456 = vsel %vm1400, %v1296, 0
      %v1459 = vsel %vm1400, %v1299, 0
      %v1462 = vsel %vm1400, %v1302, 0
      %v1465 = vsel %vm1400, %v1305, 0
      %v1468 = vsel %vm1400, %v1308, 0
      %v1471 = vsel %vm1400, %v1311, 0
      %v1474 = vsel %vm1400, %v1314, 0
      %v1477 = vsel %vm1400, %v1317, 0
      %v1480 = vsel %vm1400, %v1320, 0
      %v1483 = vsel %vm1400, %v1323, 0
      %v1486 = vsel %vm1400, %v1326, 0
      %v1489 = vsel %vm1400, %v1329, 0
      %v1492 = vsel %vm1400, %v1332, 0
      %v1495 = vsel %vm1400, %v1335, 0
      %vm1497 = vcmask 1040384
      %vm1498 = vcmask 1041408
      %v1499 = vsel %vm1497, 4294967295, 65535
      %v1500 = vsel %vm1498, %v1499, 0
      %v1502 = vand.u32 %v407, %v1500
      %1504 = vmatprep.subr.bf16.mxu0 0
      %1505 = vmatpush1.bf16.msra.mxu0 %v391
      %1506 = vmatprep.subr.bf16.mxu0 0
      %1507 = vmatpush1.bf16.msra.mxu0 %v392
      %1508 = vmatprep.subr.bf16.mxu0 0
      %1509 = vmatpush1.bf16.msra.mxu0 %v393
      %1510 = vmatprep.subr.bf16.mxu0 0
      %1511 = vmatpush1.bf16.msra.mxu0 %v394
      %1512 = vmatprep.subr.bf16.mxu0 0
      %1513 = vmatpush1.bf16.msra.mxu0 %v395
      %1514 = vmatprep.subr.bf16.mxu0 0
      %1515 = vmatpush1.bf16.msra.mxu0 %v396
      %1516 = vmatprep.subr.bf16.mxu0 0
      %1517 = vmatpush1.bf16.msra.mxu0 %v397
      %1518 = vmatprep.subr.bf16.mxu0 0
      %1519 = vmatpush1.bf16.msra.mxu0 %v398
      %1520 = vmatprep.subr.bf16.mxu0 0
      %1521 = vmatpush1.bf16.msra.mxu0 %v399
      %1522 = vmatprep.subr.bf16.mxu0 0
      %1523 = vmatpush1.bf16.msra.mxu0 %v400
      %1524 = vmatprep.subr.bf16.mxu0 0
      %1525 = vmatpush1.bf16.msra.mxu0 %v401
      %1526 = vmatprep.subr.bf16.mxu0 0
      %1527 = vmatpush1.bf16.msra.mxu0 %v402
      %1528 = vmatprep.subr.bf16.mxu0 0
      %1529 = vmatpush1.bf16.msra.mxu0 %v403
      %1530 = vmatprep.subr.bf16.mxu0 0
      %1531 = vmatpush1.bf16.msra.mxu0 %v404
      %1532 = vmatprep.subr.bf16.mxu0 0
      %1533 = vmatpush1.bf16.msra.mxu0 %v405
      %1534 = vmatprep.subr.bf16.mxu0 0
      %1535 = vmatpush1.bf16.msra.mxu0 %v406
      %1536 = vmatprep.mubr.bf16.mxu0 %v1241
      %1537 = vmatmul.mubr.bf16.gmra.mrb[0].mxu0 %v1240
      %v1538 = vpop.f32.mrb[0].mxu0
      %v1539 = vadd.f32 %v603, %v1538
      %v1540 = vpop.f32.mrb[0].mxu0
      %v1541 = vpop.f32.mrb[0].mxu0
      %v1542 = vadd.f32 %v608, %v1541
      %v1543 = vpop.f32.mrb[0].mxu0
      %1544 = vmatprep.mubr.bf16.mxu0 %v1244
      %1545 = vmatmul.mubr.bf16.gmra.mrb[0].mxu0 %v1243
      %v1546 = vpop.f32.mrb[0].mxu0
      %v1547 = vadd.f32 %v613, %v1546
      %v1548 = vpop.f32.mrb[0].mxu0
      %v1549 = vpop.f32.mrb[0].mxu0
      %v1550 = vadd.f32 %v618, %v1549
      %v1551 = vpop.f32.mrb[0].mxu0
      %1552 = vmatprep.mubr.bf16.mxu0 %v1247
      %1553 = vmatmul.mubr.bf16.gmra.mrb[0].mxu0 %v1246
      %v1554 = vpop.f32.mrb[0].mxu0
      %v1555 = vadd.f32 %v623, %v1554
      %v1556 = vpop.f32.mrb[0].mxu0
      %v1557 = vpop.f32.mrb[0].mxu0
      %v1558 = vadd.f32 %v628, %v1557
      %v1559 = vpop.f32.mrb[0].mxu0
      %1560 = vmatprep.mubr.bf16.mxu0 %v1250
      %1561 = vmatmul.mubr.bf16.gmra.mrb[0].mxu0 %v1249
      %v1562 = vpop.f32.mrb[0].mxu0
      %v1563 = vadd.f32 %v633, %v1562
      %v1564 = vpop.f32.mrb[0].mxu0
      %v1565 = vpop.f32.mrb[0].mxu0
      %v1566 = vadd.f32 %v638, %v1565
      %v1567 = vpop.f32.mrb[0].mxu0
      %1568 = vmatprep.mubr.bf16.mxu0 %v1253
      %1569 = vmatmul.mubr.bf16.gmra.mrb[0].mxu0 %v1252
      %v1570 = vpop.f32.mrb[0].mxu0
      %v1571 = vadd.f32 %v643, %v1570
      %v1572 = vpop.f32.mrb[0].mxu0
      %v1573 = vpop.f32.mrb[0].mxu0
      %v1574 = vadd.f32 %v648, %v1573
      %v1575 = vpop.f32.mrb[0].mxu0
      %1576 = vmatprep.mubr.bf16.mxu0 %v1256
      %1577 = vmatmul.mubr.bf16.gmra.mrb[0].mxu0 %v1255
      %v1578 = vpop.f32.mrb[0].mxu0
      %v1579 = vadd.f32 %v653, %v1578
      %v1580 = vpop.f32.mrb[0].mxu0
      %v1581 = vpop.f32.mrb[0].mxu0
      %v1582 = vadd.f32 %v658, %v1581
      %v1583 = vpop.f32.mrb[0].mxu0
      %1584 = vmatprep.mubr.bf16.mxu0 %v1259
      %1585 = vmatmul.mubr.bf16.gmra.mrb[0].mxu0 %v1258
      %v1586 = vpop.f32.mrb[0].mxu0
      %v1587 = vadd.f32 %v663, %v1586
      %v1588 = vpop.f32.mrb[0].mxu0
      %v1589 = vpop.f32.mrb[0].mxu0
      %v1590 = vadd.f32 %v668, %v1589
      %v1591 = vpop.f32.mrb[0].mxu0
      %1592 = vmatprep.mubr.bf16.mxu0 %v1262
      %1593 = vmatmul.mubr.bf16.gmra.mrb[0].mxu0 %v1261
      %v1594 = vpop.f32.mrb[0].mxu0
      %v1595 = vadd.f32 %v673, %v1594
      %v1596 = vpop.f32.mrb[0].mxu0
      %v1597 = vpop.f32.mrb[0].mxu0
      %v1598 = vadd.f32 %v678, %v1597
      %v1599 = vpop.f32.mrb[0].mxu0
      %1600 = vmatprep.mubr.bf16.mxu0 %v1265
      %1601 = vmatmul.mubr.bf16.gmra.mrb[0].mxu0 %v1264
      %v1602 = vpop.f32.mrb[0].mxu0
      %v1603 = vadd.f32 %v683, %v1602
      %v1604 = vpop.f32.mrb[0].mxu0
      %v1605 = vpop.f32.mrb[0].mxu0
      %v1606 = vadd.f32 %v688, %v1605
      %v1607 = vpop.f32.mrb[0].mxu0
      %1608 = vmatprep.mubr.bf16.mxu0 %v1268
      %1609 = vmatmul.mubr.bf16.gmra.mrb[0].mxu0 %v1267
      %v1610 = vpop.f32.mrb[0].mxu0
      %v1611 = vadd.f32 %v693, %v1610
      %v1612 = vpop.f32.mrb[0].mxu0
      %v1613 = vpop.f32.mrb[0].mxu0
      %v1614 = vadd.f32 %v698, %v1613
      %v1615 = vpop.f32.mrb[0].mxu0
      %1616 = vmatprep.mubr.bf16.mxu0 %v1271
      %1617 = vmatmul.mubr.bf16.gmra.mrb[0].mxu0 %v1270
      %v1618 = vpop.f32.mrb[0].mxu0
      %v1619 = vadd.f32 %v703, %v1618
      %v1620 = vpop.f32.mrb[0].mxu0
      %v1621 = vpop.f32.mrb[0].mxu0
      %v1622 = vadd.f32 %v708, %v1621
      %v1623 = vpop.f32.mrb[0].mxu0
      %1624 = vmatprep.mubr.bf16.mxu0 %v1274
      %1625 = vmatmul.mubr.bf16.gmra.mrb[0].mxu0 %v1273
      %v1626 = vpop.f32.mrb[0].mxu0
      %v1627 = vadd.f32 %v713, %v1626
      %v1628 = vpop.f32.mrb[0].mxu0
      %v1629 = vpop.f32.mrb[0].mxu0
      %v1630 = vadd.f32 %v718, %v1629
      %v1631 = vpop.f32.mrb[0].mxu0
      %1632 = vmatprep.mubr.bf16.mxu0 %v1277
      %1633 = vmatmul.mubr.bf16.gmra.mrb[0].mxu0 %v1276
      %v1634 = vpop.f32.mrb[0].mxu0
      %v1635 = vadd.f32 %v723, %v1634
      %v1636 = vpop.f32.mrb[0].mxu0
      %v1637 = vpop.f32.mrb[0].mxu0
      %v1638 = vadd.f32 %v728, %v1637
      %v1639 = vpop.f32.mrb[0].mxu0
      %1640 = vmatprep.mubr.bf16.mxu0 %v1280
      %1641 = vmatmul.mubr.bf16.gmra.mrb[0].mxu0 %v1279
      %v1642 = vpop.f32.mrb[0].mxu0
      %v1643 = vadd.f32 %v733, %v1642
      %v1644 = vpop.f32.mrb[0].mxu0
      %v1645 = vpop.f32.mrb[0].mxu0
      %v1646 = vadd.f32 %v738, %v1645
      %v1647 = vpop.f32.mrb[0].mxu0
      %1648 = vmatprep.mubr.bf16.mxu0 %v1283
      %1649 = vmatmul.mubr.bf16.gmra.mrb[0].mxu0 %v1282
      %v1650 = vpop.f32.mrb[0].mxu0
      %v1651 = vadd.f32 %v743, %v1650
      %v1652 = vpop.f32.mrb[0].mxu0
      %v1653 = vpop.f32.mrb[0].mxu0
      %v1654 = vadd.f32 %v748, %v1653
      %v1655 = vpop.f32.mrb[0].mxu0
      %1656 = vmatprep.mubr.bf16.mxu0 %v1286
      %1657 = vmatmul.mubr.bf16.gmra.mrb[0].mxu0 %v1285
      %v1658 = vpop.f32.mrb[0].mxu0
      %v1659 = vadd.f32 %v753, %v1658
      %v1660 = vpop.f32.mrb[0].mxu0
      %v1661 = vpop.f32.mrb[0].mxu0
      %v1662 = vadd.f32 %v758, %v1661
      %v1663 = vpop.f32.mrb[0].mxu0
      %1664 = vmatprep.mubr.bf16.mxu0 %v1289
      %1665 = vmatmul.mubr.bf16.gmra.mrb[0].mxu0 %v1288
      %v1666 = vpop.f32.mrb[0].mxu0
      %v1667 = vadd.f32 %v763, %v1666
      %v1668 = vpop.f32.mrb[0].mxu0
      %v1669 = vpop.f32.mrb[0].mxu0
      %v1670 = vadd.f32 %v768, %v1669
      %v1671 = vpop.f32.mrb[0].mxu0
      %1672 = vmatprep.mubr.bf16.mxu0 %v1292
      %1673 = vmatmul.mubr.bf16.gmra.mrb[0].mxu0 %v1291
      %v1674 = vpop.f32.mrb[0].mxu0
      %v1675 = vadd.f32 %v773, %v1674
      %v1676 = vpop.f32.mrb[0].mxu0
      %v1677 = vpop.f32.mrb[0].mxu0
      %v1678 = vadd.f32 %v778, %v1677
      %v1679 = vpop.f32.mrb[0].mxu0
      %1680 = vmatprep.mubr.bf16.mxu0 %v1295
      %1681 = vmatmul.mubr.bf16.gmra.mrb[0].mxu0 %v1294
      %v1682 = vpop.f32.mrb[0].mxu0
      %v1683 = vadd.f32 %v783, %v1682
      %v1684 = vpop.f32.mrb[0].mxu0
      %v1685 = vpop.f32.mrb[0].mxu0
      %v1686 = vadd.f32 %v788, %v1685
      %v1687 = vpop.f32.mrb[0].mxu0
      %1688 = vmatprep.mubr.bf16.mxu0 %v1298
      %1689 = vmatmul.mubr.bf16.gmra.mrb[0].mxu0 %v1297
      %v1690 = vpop.f32.mrb[0].mxu0
      %v1691 = vadd.f32 %v793, %v1690
      %v1692 = vpop.f32.mrb[0].mxu0
      %v1693 = vpop.f32.mrb[0].mxu0
      %v1694 = vadd.f32 %v798, %v1693
      %v1695 = vpop.f32.mrb[0].mxu0
      %1696 = vmatprep.mubr.bf16.mxu0 %v1301
      %1697 = vmatmul.mubr.bf16.gmra.mrb[0].mxu0 %v1300
      %v1698 = vpop.f32.mrb[0].mxu0
      %v1699 = vadd.f32 %v803, %v1698
      %v1700 = vpop.f32.mrb[0].mxu0
      %v1701 = vpop.f32.mrb[0].mxu0
      %v1702 = vadd.f32 %v808, %v1701
      %v1703 = vpop.f32.mrb[0].mxu0
      %1704 = vmatprep.mubr.bf16.mxu0 %v1304
      %1705 = vmatmul.mubr.bf16.gmra.mrb[0].mxu0 %v1303
      %v1706 = vpop.f32.mrb[0].mxu0
      %v1707 = vadd.f32 %v813, %v1706
      %v1708 = vpop.f32.mrb[0].mxu0
      %v1709 = vpop.f32.mrb[0].mxu0
      %v1710 = vadd.f32 %v818, %v1709
      %v1711 = vpop.f32.mrb[0].mxu0
      %1712 = vmatprep.mubr.bf16.mxu0 %v1307
      %1713 = vmatmul.mubr.bf16.gmra.mrb[0].mxu0 %v1306
      %v1714 = vpop.f32.mrb[0].mxu0
      %v1715 = vadd.f32 %v823, %v1714
      %v1716 = vpop.f32.mrb[0].mxu0
      %v1717 = vpop.f32.mrb[0].mxu0
      %v1718 = vadd.f32 %v828, %v1717
      %v1719 = vpop.f32.mrb[0].mxu0
      %1720 = vmatprep.mubr.bf16.mxu0 %v1310
      %1721 = vmatmul.mubr.bf16.gmra.mrb[0].mxu0 %v1309
      %v1722 = vpop.f32.mrb[0].mxu0
      %v1723 = vadd.f32 %v833, %v1722
      %v1724 = vpop.f32.mrb[0].mxu0
      %v1725 = vpop.f32.mrb[0].mxu0
      %v1726 = vadd.f32 %v838, %v1725
      %v1727 = vpop.f32.mrb[0].mxu0
      %1728 = vmatprep.mubr.bf16.mxu0 %v1313
      %1729 = vmatmul.mubr.bf16.gmra.mrb[0].mxu0 %v1312
      %v1730 = vpop.f32.mrb[0].mxu0
      %v1731 = vadd.f32 %v843, %v1730
      %v1732 = vpop.f32.mrb[0].mxu0
      %v1733 = vpop.f32.mrb[0].mxu0
      %v1734 = vadd.f32 %v848, %v1733
      %v1735 = vpop.f32.mrb[0].mxu0
      %1736 = vmatprep.mubr.bf16.mxu0 %v1316
      %1737 = vmatmul.mubr.bf16.gmra.mrb[0].mxu0 %v1315
      %v1738 = vpop.f32.mrb[0].mxu0
      %v1739 = vadd.f32 %v853, %v1738
      %v1740 = vpop.f32.mrb[0].mxu0
      %v1741 = vpop.f32.mrb[0].mxu0
      %v1742 = vadd.f32 %v858, %v1741
      %v1743 = vpop.f32.mrb[0].mxu0
      %1744 = vmatprep.mubr.bf16.mxu0 %v1319
      %1745 = vmatmul.mubr.bf16.gmra.mrb[0].mxu0 %v1318
      %v1746 = vpop.f32.mrb[0].mxu0
      %v1747 = vadd.f32 %v863, %v1746
      %v1748 = vpop.f32.mrb[0].mxu0
      %v1749 = vpop.f32.mrb[0].mxu0
      %v1750 = vadd.f32 %v868, %v1749
      %v1751 = vpop.f32.mrb[0].mxu0
      %1752 = vmatprep.mubr.bf16.mxu0 %v1322
      %1753 = vmatmul.mubr.bf16.gmra.mrb[0].mxu0 %v1321
      %v1754 = vpop.f32.mrb[0].mxu0
      %v1755 = vadd.f32 %v873, %v1754
      %v1756 = vpop.f32.mrb[0].mxu0
      %v1757 = vpop.f32.mrb[0].mxu0
      %v1758 = vadd.f32 %v878, %v1757
      %v1759 = vpop.f32.mrb[0].mxu0
      %1760 = vmatprep.mubr.bf16.mxu0 %v1325
      %1761 = vmatmul.mubr.bf16.gmra.mrb[0].mxu0 %v1324
      %v1762 = vpop.f32.mrb[0].mxu0
      %v1763 = vadd.f32 %v883, %v1762
      %v1764 = vpop.f32.mrb[0].mxu0
      %v1765 = vpop.f32.mrb[0].mxu0
      %v1766 = vadd.f32 %v888, %v1765
      %v1767 = vpop.f32.mrb[0].mxu0
      %1768 = vmatprep.mubr.bf16.mxu0 %v1328
      %1769 = vmatmul.mubr.bf16.gmra.mrb[0].mxu0 %v1327
      %v1770 = vpop.f32.mrb[0].mxu0
      %v1771 = vadd.f32 %v893, %v1770
      %v1772 = vpop.f32.mrb[0].mxu0
      %v1773 = vpop.f32.mrb[0].mxu0
      %v1774 = vadd.f32 %v898, %v1773
      %v1775 = vpop.f32.mrb[0].mxu0
      %1776 = vmatprep.mubr.bf16.mxu0 %v1331
      %1777 = vmatmul.mubr.bf16.gmra.mrb[0].mxu0 %v1330
      %v1778 = vpop.f32.mrb[0].mxu0
      %v1779 = vadd.f32 %v903, %v1778
      %v1780 = vpop.f32.mrb[0].mxu0
      %v1781 = vpop.f32.mrb[0].mxu0
      %v1782 = vadd.f32 %v908, %v1781
      %v1783 = vpop.f32.mrb[0].mxu0
      %1784 = vmatprep.mubr.bf16.mxu0 %v1334
      %1785 = vmatmul.mubr.bf16.gmra.mrb[0].mxu0 %v1333
      %v1786 = vpop.f32.mrb[0].mxu0
      %v1787 = vadd.f32 %v913, %v1786
      %v1788 = vpop.f32.mrb[0].mxu0
      %v1789 = vpop.f32.mrb[0].mxu0
      %v1790 = vadd.f32 %v918, %v1789
      %v1791 = vpop.f32.mrb[0].mxu0
      %1792 = vdwg.mxu0
      %1793 = vmatprep.subr.bf16.mxu0 0
      %1794 = vmatpush1.bf16.msra.mxu0 %v1502
      %1795 = vmatprep.subr.bf16.mxu0 0
      %1796 = vmatpush1.bf16.msra.mxu0 0
      %1797 = vmatprep.subr.bf16.mxu0 0
      %1798 = vmatpush1.bf16.msra.mxu0 0
      %1799 = vmatprep.subr.bf16.mxu0 0
      %1800 = vmatpush1.bf16.msra.mxu0 0
      %1801 = vmatprep.subr.bf16.mxu0 0
      %1802 = vmatpush1.bf16.msra.mxu0 0
      %1803 = vmatprep.subr.bf16.mxu0 0
      %1804 = vmatpush1.bf16.msra.mxu0 0
      %1805 = vmatprep.subr.bf16.mxu0 0
      %1806 = vmatpush1.bf16.msra.mxu0 0
      %1807 = vmatprep.subr.bf16.mxu0 0
      %1808 = vmatpush1.bf16.msra.mxu0 0
      %1809 = vmatprep.subr.bf16.mxu0 0
      %1810 = vmatpush1.bf16.msra.mxu0 0
      %1811 = vmatprep.subr.bf16.mxu0 0
      %1812 = vmatpush1.bf16.msra.mxu0 0
      %1813 = vmatprep.subr.bf16.mxu0 0
      %1814 = vmatpush1.bf16.msra.mxu0 0
      %1815 = vmatprep.subr.bf16.mxu0 0
      %1816 = vmatpush1.bf16.msra.mxu0 0
      %1817 = vmatprep.subr.bf16.mxu0 0
      %1818 = vmatpush1.bf16.msra.mxu0 0
      %1819 = vmatprep.subr.bf16.mxu0 0
      %1820 = vmatpush1.bf16.msra.mxu0 0
      %1821 = vmatprep.subr.bf16.mxu0 0
      %1822 = vmatpush1.bf16.msra.mxu0 0
      %1823 = vmatprep.subr.bf16.mxu0 0
      %1824 = vmatpush1.bf16.msra.mxu0 0
      %1825 = vmatprep.mubr.bf16.mxu0 0
      %1826 = vmatmul.mubr.bf16.gmra.mrb[0].mxu0 %v1402
      %v1827 = vpop.f32.mrb[0].mxu0
      %v1828 = vadd.f32 %v1539, %v1827
      %v1829 = vpop.f32.mrb[0].mxu0
      %v1830 = vpop.f32.mrb[0].mxu0
      %v1831 = vadd.f32 %v1542, %v1830
      %v1832 = vpop.f32.mrb[0].mxu0
      %1833 = vmatprep.mubr.bf16.mxu0 0
      %1834 = vmatmul.mubr.bf16.gmra.mrb[0].mxu0 %v1405
      %v1835 = vpop.f32.mrb[0].mxu0
      %v1836 = vadd.f32 %v1547, %v1835
      %v1837 = vpop.f32.mrb[0].mxu0
      %v1838 = vpop.f32.mrb[0].mxu0
      %v1839 = vadd.f32 %v1550, %v1838
      %v1840 = vpop.f32.mrb[0].mxu0
      %1841 = vmatprep.mubr.bf16.mxu0 0
      %1842 = vmatmul.mubr.bf16.gmra.mrb[0].mxu0 %v1408
      %v1843 = vpop.f32.mrb[0].mxu0
      %v1844 = vadd.f32 %v1555, %v1843
      %v1845 = vpop.f32.mrb[0].mxu0
      %v1846 = vpop.f32.mrb[0].mxu0
      %v1847 = vadd.f32 %v1558, %v1846
      %v1848 = vpop.f32.mrb[0].mxu0
      %1849 = vmatprep.mubr.bf16.mxu0 0
      %1850 = vmatmul.mubr.bf16.gmra.mrb[0].mxu0 %v1411
      %v1851 = vpop.f32.mrb[0].mxu0
      %v1852 = vadd.f32 %v1563, %v1851
      %v1853 = vpop.f32.mrb[0].mxu0
      %v1854 = vpop.f32.mrb[0].mxu0
      %v1855 = vadd.f32 %v1566, %v1854
      %v1856 = vpop.f32.mrb[0].mxu0
      %1857 = vmatprep.mubr.bf16.mxu0 0
      %1858 = vmatmul.mubr.bf16.gmra.mrb[0].mxu0 %v1414
      %v1859 = vpop.f32.mrb[0].mxu0
      %v1860 = vadd.f32 %v1571, %v1859
      %v1861 = vpop.f32.mrb[0].mxu0
      %v1862 = vpop.f32.mrb[0].mxu0
      %v1863 = vadd.f32 %v1574, %v1862
      %v1864 = vpop.f32.mrb[0].mxu0
      %1865 = vmatprep.mubr.bf16.mxu0 0
      %1866 = vmatmul.mubr.bf16.gmra.mrb[0].mxu0 %v1417
      %v1867 = vpop.f32.mrb[0].mxu0
      %v1868 = vadd.f32 %v1579, %v1867
      %v1869 = vpop.f32.mrb[0].mxu0
      %v1870 = vpop.f32.mrb[0].mxu0
      %v1871 = vadd.f32 %v1582, %v1870
      %v1872 = vpop.f32.mrb[0].mxu0
      %1873 = vmatprep.mubr.bf16.mxu0 0
      %1874 = vmatmul.mubr.bf16.gmra.mrb[0].mxu0 %v1420
      %v1875 = vpop.f32.mrb[0].mxu0
      %v1876 = vadd.f32 %v1587, %v1875
      %v1877 = vpop.f32.mrb[0].mxu0
      %v1878 = vpop.f32.mrb[0].mxu0
      %v1879 = vadd.f32 %v1590, %v1878
      %v1880 = vpop.f32.mrb[0].mxu0
      %1881 = vmatprep.mubr.bf16.mxu0 0
      %1882 = vmatmul.mubr.bf16.gmra.mrb[0].mxu0 %v1423
      %v1883 = vpop.f32.mrb[0].mxu0
      %v1884 = vadd.f32 %v1595, %v1883
      %v1885 = vpop.f32.mrb[0].mxu0
      %v1886 = vpop.f32.mrb[0].mxu0
      %v1887 = vadd.f32 %v1598, %v1886
      %v1888 = vpop.f32.mrb[0].mxu0
      %1889 = vmatprep.mubr.bf16.mxu0 0
      %1890 = vmatmul.mubr.bf16.gmra.mrb[0].mxu0 %v1426
      %v1891 = vpop.f32.mrb[0].mxu0
      %v1892 = vadd.f32 %v1603, %v1891
      %v1893 = vpop.f32.mrb[0].mxu0
      %v1894 = vpop.f32.mrb[0].mxu0
      %v1895 = vadd.f32 %v1606, %v1894
      %v1896 = vpop.f32.mrb[0].mxu0
      %1897 = vmatprep.mubr.bf16.mxu0 0
      %1898 = vmatmul.mubr.bf16.gmra.mrb[0].mxu0 %v1429
      %v1899 = vpop.f32.mrb[0].mxu0
      %v1900 = vadd.f32 %v1611, %v1899
      %v1901 = vpop.f32.mrb[0].mxu0
      %v1902 = vpop.f32.mrb[0].mxu0
      %v1903 = vadd.f32 %v1614, %v1902
      %v1904 = vpop.f32.mrb[0].mxu0
      %1905 = vmatprep.mubr.bf16.mxu0 0
      %1906 = vmatmul.mubr.bf16.gmra.mrb[0].mxu0 %v1432
      %v1907 = vpop.f32.mrb[0].mxu0
      %v1908 = vadd.f32 %v1619, %v1907
      %v1909 = vpop.f32.mrb[0].mxu0
      %v1910 = vpop.f32.mrb[0].mxu0
      %v1911 = vadd.f32 %v1622, %v1910
      %v1912 = vpop.f32.mrb[0].mxu0
      %1913 = vmatprep.mubr.bf16.mxu0 0
      %1914 = vmatmul.mubr.bf16.gmra.mrb[0].mxu0 %v1435
      %v1915 = vpop.f32.mrb[0].mxu0
      %v1916 = vadd.f32 %v1627, %v1915
      %v1917 = vpop.f32.mrb[0].mxu0
      %v1918 = vpop.f32.mrb[0].mxu0
      %v1919 = vadd.f32 %v1630, %v1918
      %v1920 = vpop.f32.mrb[0].mxu0
      %1921 = vmatprep.mubr.bf16.mxu0 0
      %1922 = vmatmul.mubr.bf16.gmra.mrb[0].mxu0 %v1438
      %v1923 = vpop.f32.mrb[0].mxu0
      %v1924 = vadd.f32 %v1635, %v1923
      %v1925 = vpop.f32.mrb[0].mxu0
      %v1926 = vpop.f32.mrb[0].mxu0
      %v1927 = vadd.f32 %v1638, %v1926
      %v1928 = vpop.f32.mrb[0].mxu0
      %1929 = vmatprep.mubr.bf16.mxu0 0
      %1930 = vmatmul.mubr.bf16.gmra.mrb[0].mxu0 %v1441
      %v1931 = vpop.f32.mrb[0].mxu0
      %v1932 = vadd.f32 %v1643, %v1931
      %v1933 = vpop.f32.mrb[0].mxu0
      %v1934 = vpop.f32.mrb[0].mxu0
      %v1935 = vadd.f32 %v1646, %v1934
      %v1936 = vpop.f32.mrb[0].mxu0
      %1937 = vmatprep.mubr.bf16.mxu0 0
      %1938 = vmatmul.mubr.bf16.gmra.mrb[0].mxu0 %v1444
      %v1939 = vpop.f32.mrb[0].mxu0
      %v1940 = vadd.f32 %v1651, %v1939
      %v1941 = vpop.f32.mrb[0].mxu0
      %v1942 = vpop.f32.mrb[0].mxu0
      %v1943 = vadd.f32 %v1654, %v1942
      %v1944 = vpop.f32.mrb[0].mxu0
      %1945 = vmatprep.mubr.bf16.mxu0 0
      %1946 = vmatmul.mubr.bf16.gmra.mrb[0].mxu0 %v1447
      %v1947 = vpop.f32.mrb[0].mxu0
      %v1948 = vadd.f32 %v1659, %v1947
      %v1949 = vpop.f32.mrb[0].mxu0
      %v1950 = vpop.f32.mrb[0].mxu0
      %v1951 = vadd.f32 %v1662, %v1950
      %v1952 = vpop.f32.mrb[0].mxu0
      %1953 = vmatprep.mubr.bf16.mxu0 0
      %1954 = vmatmul.mubr.bf16.gmra.mrb[0].mxu0 %v1450
      %v1955 = vpop.f32.mrb[0].mxu0
      %v1956 = vadd.f32 %v1667, %v1955
      %v1957 = vpop.f32.mrb[0].mxu0
      %v1958 = vpop.f32.mrb[0].mxu0
      %v1959 = vadd.f32 %v1670, %v1958
      %v1960 = vpop.f32.mrb[0].mxu0
      %1961 = vmatprep.mubr.bf16.mxu0 0
      %1962 = vmatmul.mubr.bf16.gmra.mrb[0].mxu0 %v1453
      %v1963 = vpop.f32.mrb[0].mxu0
      %v1964 = vadd.f32 %v1675, %v1963
      %v1965 = vpop.f32.mrb[0].mxu0
      %v1966 = vpop.f32.mrb[0].mxu0
      %v1967 = vadd.f32 %v1678, %v1966
      %v1968 = vpop.f32.mrb[0].mxu0
      %1969 = vmatprep.mubr.bf16.mxu0 0
      %1970 = vmatmul.mubr.bf16.gmra.mrb[0].mxu0 %v1456
      %v1971 = vpop.f32.mrb[0].mxu0
      %v1972 = vadd.f32 %v1683, %v1971
      %v1973 = vpop.f32.mrb[0].mxu0
      %v1974 = vpop.f32.mrb[0].mxu0
      %v1975 = vadd.f32 %v1686, %v1974
      %v1976 = vpop.f32.mrb[0].mxu0
      %1977 = vmatprep.mubr.bf16.mxu0 0
      %1978 = vmatmul.mubr.bf16.gmra.mrb[0].mxu0 %v1459
      %v1979 = vpop.f32.mrb[0].mxu0
      %v1980 = vadd.f32 %v1691, %v1979
      %v1981 = vpop.f32.mrb[0].mxu0
      %v1982 = vpop.f32.mrb[0].mxu0
      %v1983 = vadd.f32 %v1694, %v1982
      %v1984 = vpop.f32.mrb[0].mxu0
      %1985 = vmatprep.mubr.bf16.mxu0 0
      %1986 = vmatmul.mubr.bf16.gmra.mrb[0].mxu0 %v1462
      %v1987 = vpop.f32.mrb[0].mxu0
      %v1988 = vadd.f32 %v1699, %v1987
      %v1989 = vpop.f32.mrb[0].mxu0
      %v1990 = vpop.f32.mrb[0].mxu0
      %v1991 = vadd.f32 %v1702, %v1990
      %v1992 = vpop.f32.mrb[0].mxu0
      %1993 = vmatprep.mubr.bf16.mxu0 0
      %1994 = vmatmul.mubr.bf16.gmra.mrb[0].mxu0 %v1465
      %v1995 = vpop.f32.mrb[0].mxu0
      %v1996 = vadd.f32 %v1707, %v1995
      %v1997 = vpop.f32.mrb[0].mxu0
      %v1998 = vpop.f32.mrb[0].mxu0
      %v1999 = vadd.f32 %v1710, %v1998
      %v2000 = vpop.f32.mrb[0].mxu0
      %2001 = vmatprep.mubr.bf16.mxu0 0
      %2002 = vmatmul.mubr.bf16.gmra.mrb[0].mxu0 %v1468
      %v2003 = vpop.f32.mrb[0].mxu0
      %v2004 = vadd.f32 %v1715, %v2003
      %v2005 = vpop.f32.mrb[0].mxu0
      %v2006 = vpop.f32.mrb[0].mxu0
      %v2007 = vadd.f32 %v1718, %v2006
      %v2008 = vpop.f32.mrb[0].mxu0
      %2009 = vmatprep.mubr.bf16.mxu0 0
      %2010 = vmatmul.mubr.bf16.gmra.mrb[0].mxu0 %v1471
      %v2011 = vpop.f32.mrb[0].mxu0
      %v2012 = vadd.f32 %v1723, %v2011
      %v2013 = vpop.f32.mrb[0].mxu0
      %v2014 = vpop.f32.mrb[0].mxu0
      %v2015 = vadd.f32 %v1726, %v2014
      %v2016 = vpop.f32.mrb[0].mxu0
      %2017 = vmatprep.mubr.bf16.mxu0 0
      %2018 = vmatmul.mubr.bf16.gmra.mrb[0].mxu0 %v1474
      %v2019 = vpop.f32.mrb[0].mxu0
      %v2020 = vadd.f32 %v1731, %v2019
      %v2021 = vpop.f32.mrb[0].mxu0
      %v2022 = vpop.f32.mrb[0].mxu0
      %v2023 = vadd.f32 %v1734, %v2022
      %v2024 = vpop.f32.mrb[0].mxu0
      %2025 = vmatprep.mubr.bf16.mxu0 0
      %2026 = vmatmul.mubr.bf16.gmra.mrb[0].mxu0 %v1477
      %v2027 = vpop.f32.mrb[0].mxu0
      %v2028 = vadd.f32 %v1739, %v2027
      %v2029 = vpop.f32.mrb[0].mxu0
      %v2030 = vpop.f32.mrb[0].mxu0
      %v2031 = vadd.f32 %v1742, %v2030
      %v2032 = vpop.f32.mrb[0].mxu0
      %2033 = vmatprep.mubr.bf16.mxu0 0
      %2034 = vmatmul.mubr.bf16.gmra.mrb[0].mxu0 %v1480
      %v2035 = vpop.f32.mrb[0].mxu0
      %v2036 = vadd.f32 %v1747, %v2035
      %v2037 = vpop.f32.mrb[0].mxu0
      %v2038 = vpop.f32.mrb[0].mxu0
      %v2039 = vadd.f32 %v1750, %v2038
      %v2040 = vpop.f32.mrb[0].mxu0
      %2041 = vmatprep.mubr.bf16.mxu0 0
      %2042 = vmatmul.mubr.bf16.gmra.mrb[0].mxu0 %v1483
      %v2043 = vpop.f32.mrb[0].mxu0
      %v2044 = vadd.f32 %v1755, %v2043
      %v2045 = vpop.f32.mrb[0].mxu0
      %v2046 = vpop.f32.mrb[0].mxu0
      %v2047 = vadd.f32 %v1758, %v2046
      %v2048 = vpop.f32.mrb[0].mxu0
      %2049 = vmatprep.mubr.bf16.mxu0 0
      %2050 = vmatmul.mubr.bf16.gmra.mrb[0].mxu0 %v1486
      %v2051 = vpop.f32.mrb[0].mxu0
      %v2052 = vadd.f32 %v1763, %v2051
      %v2053 = vpop.f32.mrb[0].mxu0
      %v2054 = vpop.f32.mrb[0].mxu0
      %v2055 = vadd.f32 %v1766, %v2054
      %v2056 = vpop.f32.mrb[0].mxu0
      %2057 = vmatprep.mubr.bf16.mxu0 0
      %2058 = vmatmul.mubr.bf16.gmra.mrb[0].mxu0 %v1489
      %v2059 = vpop.f32.mrb[0].mxu0
      %v2060 = vadd.f32 %v1771, %v2059
      %v2061 = vpop.f32.mrb[0].mxu0
      %v2062 = vpop.f32.mrb[0].mxu0
      %v2063 = vadd.f32 %v1774, %v2062
      %v2064 = vpop.f32.mrb[0].mxu0
      %2065 = vmatprep.mubr.bf16.mxu0 0
      %2066 = vmatmul.mubr.bf16.gmra.mrb[0].mxu0 %v1492
      %v2067 = vpop.f32.mrb[0].mxu0
      %v2068 = vadd.f32 %v1779, %v2067
      %v2069 = vpop.f32.mrb[0].mxu0
      %v2070 = vpop.f32.mrb[0].mxu0
      %v2071 = vadd.f32 %v1782, %v2070
      %v2072 = vpop.f32.mrb[0].mxu0
      %2073 = vmatprep.mubr.bf16.mxu0 0
      %2074 = vmatmul.mubr.bf16.gmra.mrb[0].mxu0 %v1495
      %v2075 = vpop.f32.mrb[0].mxu0
      %v2076 = vadd.f32 %v1787, %v2075
      %v2077 = vpop.f32.mrb[0].mxu0
      %v2078 = vpop.f32.mrb[0].mxu0
      %v2079 = vadd.f32 %v1790, %v2078
      %v2080 = vpop.f32.mrb[0].mxu0
      %2081 = vdwg.mxu0
      %v2082 = vmax.f32 %v1828, 0.0
      %v2083 = vmax.f32 %v1831, 0.0
      %v2084 = vmax.f32 %v1836, 0.0
      %v2085 = vmax.f32 %v1839, 0.0
      %v2086 = vmax.f32 %v1844, 0.0
      %v2087 = vmax.f32 %v1847, 0.0
      %v2088 = vmax.f32 %v1852, 0.0
      %v2089 = vmax.f32 %v1855, 0.0
      %v2090 = vmax.f32 %v1860, 0.0
      %v2091 = vmax.f32 %v1863, 0.0
      %v2092 = vmax.f32 %v1868, 0.0
      %v2093 = vmax.f32 %v1871, 0.0
      %v2094 = vmax.f32 %v1876, 0.0
      %v2095 = vmax.f32 %v1879, 0.0
      %v2096 = vmax.f32 %v1884, 0.0
      %v2097 = vmax.f32 %v1887, 0.0
      %v2098 = vmax.f32 %v1892, 0.0
      %v2099 = vmax.f32 %v1895, 0.0
      %v2100 = vmax.f32 %v1900, 0.0
      %v2101 = vmax.f32 %v1903, 0.0
      %v2102 = vmax.f32 %v1908, 0.0
      %v2103 = vmax.f32 %v1911, 0.0
      %v2104 = vmax.f32 %v1916, 0.0
      %v2105 = vmax.f32 %v1919, 0.0
      %v2106 = vmax.f32 %v1924, 0.0
      %v2107 = vmax.f32 %v1927, 0.0
      %v2108 = vmax.f32 %v1932, 0.0
      %v2109 = vmax.f32 %v1935, 0.0
      %v2110 = vmax.f32 %v1940, 0.0
      %v2111 = vmax.f32 %v1943, 0.0
      %v2112 = vmax.f32 %v1948, 0.0
      %v2113 = vmax.f32 %v1951, 0.0
      %v2114 = vmax.f32 %v1956, 0.0
      %v2115 = vmax.f32 %v1959, 0.0
      %v2116 = vmax.f32 %v1964, 0.0
      %v2117 = vmax.f32 %v1967, 0.0
      %v2118 = vmax.f32 %v1972, 0.0
      %v2119 = vmax.f32 %v1975, 0.0
      %v2120 = vmax.f32 %v1980, 0.0
      %v2121 = vmax.f32 %v1983, 0.0
      %v2122 = vmax.f32 %v1988, 0.0
      %v2123 = vmax.f32 %v1991, 0.0
      %v2124 = vmax.f32 %v1996, 0.0
      %v2125 = vmax.f32 %v1999, 0.0
      %v2126 = vmax.f32 %v2004, 0.0
      %v2127 = vmax.f32 %v2007, 0.0
      %v2128 = vmax.f32 %v2012, 0.0
      %v2129 = vmax.f32 %v2015, 0.0
      %v2130 = vmax.f32 %v2020, 0.0
      %v2131 = vmax.f32 %v2023, 0.0
      %v2132 = vmax.f32 %v2028, 0.0
      %v2133 = vmax.f32 %v2031, 0.0
      %v2134 = vmax.f32 %v2036, 0.0
      %v2135 = vmax.f32 %v2039, 0.0
      %v2136 = vmax.f32 %v2044, 0.0
      %v2137 = vmax.f32 %v2047, 0.0
      %v2138 = vmax.f32 %v2052, 0.0
      %v2139 = vmax.f32 %v2055, 0.0
      %v2140 = vmax.f32 %v2060, 0.0
      %v2141 = vmax.f32 %v2063, 0.0
      %v2142 = vmax.f32 %v2068, 0.0
      %v2143 = vmax.f32 %v2071, 0.0
      %v2144 = vmax.f32 %v2076, 0.0
      %v2145 = vmax.f32 %v2079, 0.0
      %v2146 = vld [vmem:[%s4] sm:$0xff]
      %v2147 = vld [vmem:[%s4 + $0x8] sm:$0xff]
      %v2148 = vld [vmem:[%s4 + $0x10] sm:$0xff]
      %v2149 = vld [vmem:[%s4 + $0x18] sm:$0xff]
      %v2150 = vld [vmem:[%s4 + $0x20] sm:$0xff]
      %v2151 = vld [vmem:[%s4 + $0x28] sm:$0xff]
      %v2152 = vld [vmem:[%s4 + $0x30] sm:$0xff]
      %v2153 = vld [vmem:[%s4 + $0x38] sm:$0xff]
      %v2154 = vld [vmem:[%s4 + $0x40] sm:$0xff]
      %v2155 = vld [vmem:[%s4 + $0x48] sm:$0xff]
      %v2156 = vld [vmem:[%s4 + $0x50] sm:$0xff]
      %v2157 = vld [vmem:[%s4 + $0x58] sm:$0xff]
      %v2158 = vld [vmem:[%s4 + $0x60] sm:$0xff]
      %v2159 = vld [vmem:[%s4 + $0x68] sm:$0xff]
      %v2160 = vld [vmem:[%s4 + $0x70] sm:$0xff]
      %v2161 = vld [vmem:[%s4 + $0x78] sm:$0xff]
      %v2162 = vld [vmem:[%s4 + $0x80] sm:$0xff]
      %v2163 = vld [vmem:[%s4 + $0x88] sm:$0xff]
      %v2164 = vld [vmem:[%s4 + $0x90] sm:$0xff]
      %v2165 = vld [vmem:[%s4 + $0x98] sm:$0xff]
      %v2166 = vld [vmem:[%s4 + $0xa0] sm:$0xff]
      %v2167 = vld [vmem:[%s4 + $0xa8] sm:$0xff]
      %v2168 = vld [vmem:[%s4 + $0xb0] sm:$0xff]
      %v2169 = vld [vmem:[%s4 + $0xb8] sm:$0xff]
      %v2170 = vld [vmem:[%s4 + $0xc0] sm:$0xff]
      %v2171 = vld [vmem:[%s4 + $0xc8] sm:$0xff]
      %v2172 = vld [vmem:[%s4 + $0xd0] sm:$0xff]
      %v2173 = vld [vmem:[%s4 + $0xd8] sm:$0xff]
      %v2174 = vld [vmem:[%s4 + $0xe0] sm:$0xff]
      %v2175 = vld [vmem:[%s4 + $0xe8] sm:$0xff]
      %v2176 = vld [vmem:[%s4 + $0xf0] sm:$0xff]
      %v2177 = vld [vmem:[%s4 + $0xf8] sm:$0xff]
      %v2178 = vld [vmem:[%s4 + $0x100] sm:$0xff]
      %v2179 = vld [vmem:[%s4 + $0x108] sm:$0xff]
      %v2180 = vld [vmem:[%s4 + $0x110] sm:$0xff]
      %v2181 = vld [vmem:[%s4 + $0x118] sm:$0xff]
      %v2182 = vld [vmem:[%s4 + $0x120] sm:$0xff]
      %v2183 = vld [vmem:[%s4 + $0x128] sm:$0xff]
      %v2184 = vld [vmem:[%s4 + $0x130] sm:$0xff]
      %v2185 = vld [vmem:[%s4 + $0x138] sm:$0xff]
      %v2186 = vld [vmem:[%s4 + $0x140] sm:$0xff]
      %v2187 = vld [vmem:[%s4 + $0x148] sm:$0xff]
      %v2188 = vld [vmem:[%s4 + $0x150] sm:$0xff]
      %v2189 = vld [vmem:[%s4 + $0x158] sm:$0xff]
      %v2190 = vld [vmem:[%s4 + $0x160] sm:$0xff]
      %v2191 = vld [vmem:[%s4 + $0x168] sm:$0xff]
      %v2192 = vld [vmem:[%s4 + $0x170] sm:$0xff]
      %v2193 = vld [vmem:[%s4 + $0x178] sm:$0xff]
      %v2194 = vld [vmem:[%s4 + $0x180] sm:$0xff]
      %v2195 = vld [vmem:[%s4 + $0x188] sm:$0xff]
      %v2196 = vld [vmem:[%s4 + $0x190] sm:$0xff]
      %v2197 = vld [vmem:[%s4 + $0x198] sm:$0xff]
      %v2198 = vld [vmem:[%s4 + $0x1a0] sm:$0xff]
      %v2199 = vld [vmem:[%s4 + $0x1a8] sm:$0xff]
      %v2200 = vld [vmem:[%s4 + $0x1b0] sm:$0xff]
      %v2201 = vld [vmem:[%s4 + $0x1b8] sm:$0xff]
      %v2202 = vld [vmem:[%s4 + $0x1c0] sm:$0xff]
      %v2203 = vld [vmem:[%s4 + $0x1c8] sm:$0xff]
      %v2204 = vld [vmem:[%s4 + $0x1d0] sm:$0xff]
      %v2205 = vld [vmem:[%s4 + $0x1d8] sm:$0xff]
      %v2206 = vld [vmem:[%s4 + $0x1e0] sm:$0xff]
      %v2207 = vld [vmem:[%s4 + $0x1e8] sm:$0xff]
      %v2208 = vld [vmem:[%s4 + $0x1f0] sm:$0xff]
      %v2209 = vld [vmem:[%s4 + $0x1f8] sm:$0xff]
      %v2210 = vld [vmem:[%s4 + $0x200] sm:$0xff]
      %v2211 = vld [vmem:[%s4 + $0x208] sm:$0xff]
      %v2212 = vld [vmem:[%s4 + $0x210] sm:$0xff]
      %v2213 = vld [vmem:[%s4 + $0x218] sm:$0xff]
      %v2214 = vld [vmem:[%s4 + $0x220] sm:$0xff]
      %v2215 = vld [vmem:[%s4 + $0x228] sm:$0xff]
      %v2216 = vld [vmem:[%s4 + $0x230] sm:$0xff]
      %v2217 = vld [vmem:[%s4 + $0x238] sm:$0xff]
      %v2218 = vld [vmem:[%s4 + $0x240] sm:$0xff]
      %v2219 = vld [vmem:[%s4 + $0x248] sm:$0xff]
      %v2220 = vld [vmem:[%s4 + $0x250] sm:$0xff]
      %v2221 = vld [vmem:[%s4 + $0x258] sm:$0xff]
      %v2222 = vld [vmem:[%s4 + $0x260] sm:$0xff]
      %v2223 = vld [vmem:[%s4 + $0x268] sm:$0xff]
      %v2224 = vld [vmem:[%s4 + $0x270] sm:$0xff]
      %v2225 = vld [vmem:[%s4 + $0x278] sm:$0xff]
      %v2226 = vld [vmem:[%s4 + $0x280] sm:$0xff]
      %v2227 = vld [vmem:[%s4 + $0x288] sm:$0xff]
      %v2228 = vld [vmem:[%s4 + $0x290] sm:$0xff]
      %v2229 = vld [vmem:[%s4 + $0x298] sm:$0xff]
      %v2230 = vld [vmem:[%s4 + $0x2a0] sm:$0xff]
      %v2231 = vld [vmem:[%s4 + $0x2a8] sm:$0xff]
      %v2232 = vld [vmem:[%s4 + $0x2b0] sm:$0xff]
      %v2233 = vld [vmem:[%s4 + $0x2b8] sm:$0xff]
      %v2234 = vld [vmem:[%s4 + $0x2c0] sm:$0xff]
      %v2235 = vld [vmem:[%s4 + $0x2c8] sm:$0xff]
      %v2236 = vld [vmem:[%s4 + $0x2d0] sm:$0xff]
      %v2237 = vld [vmem:[%s4 + $0x2d8] sm:$0xff]
      %v2238 = vld [vmem:[%s4 + $0x2e0] sm:$0xff]
      %v2239 = vld [vmem:[%s4 + $0x2e8] sm:$0xff]
      %v2240 = vld [vmem:[%s4 + $0x2f0] sm:$0xff]
      %v2241 = vld [vmem:[%s4 + $0x2f8] sm:$0xff]
      %v2242 = vld [vmem:[%s4 + $0x300] sm:$0xff]
      %v2243 = vld [vmem:[%s4 + $0x308] sm:$0xff]
      %v2244 = vld [vmem:[%s4 + $0x310] sm:$0xff]
      %v2245 = vld [vmem:[%s4 + $0x318] sm:$0xff]
      %v2246 = vld [vmem:[%s4 + $0x320] sm:$0xff]
      %v2247 = vld [vmem:[%s4 + $0x328] sm:$0xff]
      %v2248 = vld [vmem:[%s4 + $0x330] sm:$0xff]
      %v2249 = vld [vmem:[%s4 + $0x338] sm:$0xff]
      %v2250 = vld [vmem:[%s4 + $0x340] sm:$0xff]
      %v2251 = vld [vmem:[%s4 + $0x348] sm:$0xff]
      %v2252 = vld [vmem:[%s4 + $0x350] sm:$0xff]
      %v2253 = vld [vmem:[%s4 + $0x358] sm:$0xff]
      %v2254 = vld [vmem:[%s4 + $0x360] sm:$0xff]
      %v2255 = vld [vmem:[%s4 + $0x368] sm:$0xff]
      %v2256 = vld [vmem:[%s4 + $0x370] sm:$0xff]
      %v2257 = vld [vmem:[%s4 + $0x378] sm:$0xff]
      %v2258 = vld [vmem:[%s4 + $0x380] sm:$0xff]
      %v2259 = vld [vmem:[%s4 + $0x388] sm:$0xff]
      %v2260 = vld [vmem:[%s4 + $0x390] sm:$0xff]
      %v2261 = vld [vmem:[%s4 + $0x398] sm:$0xff]
      %v2262 = vld [vmem:[%s4 + $0x3a0] sm:$0xff]
      %v2263 = vld [vmem:[%s4 + $0x3a8] sm:$0xff]
      %v2264 = vld [vmem:[%s4 + $0x3b0] sm:$0xff]
      %v2265 = vld [vmem:[%s4 + $0x3b8] sm:$0xff]
      %v2266 = vld [vmem:[%s4 + $0x3c0] sm:$0xff]
      %v2267 = vld [vmem:[%s4 + $0x3c8] sm:$0xff]
      %v2268 = vld [vmem:[%s4 + $0x3d0] sm:$0xff]
      %v2269 = vld [vmem:[%s4 + $0x3d8] sm:$0xff]
      %v2270 = vld [vmem:[%s4 + $0x3e0] sm:$0xff]
      %v2271 = vld [vmem:[%s4 + $0x3e8] sm:$0xff]
      %v2272 = vld [vmem:[%s4 + $0x3f0] sm:$0xff]
      %v2273 = vld [vmem:[%s4 + $0x3f8] sm:$0xff]
      %v2274 = vpack.c.bf16 %v2083, %v2082
      %v2275 = vpack.c.bf16 %v2085, %v2084
      %v2276 = vpack.c.bf16 %v2087, %v2086
      %v2277 = vpack.c.bf16 %v2089, %v2088
      %v2278 = vpack.c.bf16 %v2091, %v2090
      %v2279 = vpack.c.bf16 %v2093, %v2092
      %v2280 = vpack.c.bf16 %v2095, %v2094
      %v2281 = vpack.c.bf16 %v2097, %v2096
      %v2282 = vpack.c.bf16 %v2099, %v2098
      %v2283 = vpack.c.bf16 %v2101, %v2100
      %v2284 = vpack.c.bf16 %v2103, %v2102
      %v2285 = vpack.c.bf16 %v2105, %v2104
      %v2286 = vpack.c.bf16 %v2107, %v2106
      %v2287 = vpack.c.bf16 %v2109, %v2108
      %v2288 = vpack.c.bf16 %v2111, %v2110
      %v2289 = vpack.c.bf16 %v2113, %v2112
      %v2290 = vpack.c.bf16 %v2115, %v2114
      %v2291 = vpack.c.bf16 %v2117, %v2116
      %v2292 = vpack.c.bf16 %v2119, %v2118
      %v2293 = vpack.c.bf16 %v2121, %v2120
      %v2294 = vpack.c.bf16 %v2123, %v2122
      %v2295 = vpack.c.bf16 %v2125, %v2124
      %v2296 = vpack.c.bf16 %v2127, %v2126
      %v2297 = vpack.c.bf16 %v2129, %v2128
      %v2298 = vpack.c.bf16 %v2131, %v2130
      %v2299 = vpack.c.bf16 %v2133, %v2132
      %v2300 = vpack.c.bf16 %v2135, %v2134
      %v2301 = vpack.c.bf16 %v2137, %v2136
      %v2302 = vpack.c.bf16 %v2139, %v2138
      %v2303 = vpack.c.bf16 %v2141, %v2140
      %v2304 = vpack.c.bf16 %v2143, %v2142
      %v2305 = vpack.c.bf16 %v2145, %v2144
      %v2306 = vld [vmem:[%s5] sm:$0xff]
      %v2307 = vld [vmem:[%s5 + $0x8] sm:$0xff]
      %v2308 = vld [vmem:[%s5 + $0x10] sm:$0xff]
      %v2309 = vld [vmem:[%s5 + $0x18] sm:$0xff]
      %v2310 = vld [vmem:[%s5 + $0x20] sm:$0xff]
      %v2311 = vld [vmem:[%s5 + $0x28] sm:$0xff]
      %v2312 = vld [vmem:[%s5 + $0x30] sm:$0xff]
      %v2313 = vld [vmem:[%s5 + $0x38] sm:$0xff]
      %v2314 = vld [vmem:[%s5 + $0x40] sm:$0xff]
      %v2315 = vld [vmem:[%s5 + $0x48] sm:$0xff]
      %v2316 = vld [vmem:[%s5 + $0x50] sm:$0xff]
      %v2317 = vld [vmem:[%s5 + $0x58] sm:$0xff]
      %v2318 = vld [vmem:[%s5 + $0x60] sm:$0xff]
      %v2319 = vld [vmem:[%s5 + $0x68] sm:$0xff]
      %v2320 = vld [vmem:[%s5 + $0x70] sm:$0xff]
      %v2321 = vld [vmem:[%s5 + $0x78] sm:$0xff]
      %v2322 = vld [vmem:[%s5 + $0x80] sm:$0xff]
      %v2323 = vld [vmem:[%s5 + $0x88] sm:$0xff]
      %v2324 = vld [vmem:[%s5 + $0x90] sm:$0xff]
      %v2325 = vld [vmem:[%s5 + $0x98] sm:$0xff]
      %v2326 = vld [vmem:[%s5 + $0xa0] sm:$0xff]
      %v2327 = vld [vmem:[%s5 + $0xa8] sm:$0xff]
      %v2328 = vld [vmem:[%s5 + $0xb0] sm:$0xff]
      %v2329 = vld [vmem:[%s5 + $0xb8] sm:$0xff]
      %v2330 = vld [vmem:[%s5 + $0xc0] sm:$0xff]
      %v2331 = vld [vmem:[%s5 + $0xc8] sm:$0xff]
      %v2332 = vld [vmem:[%s5 + $0xd0] sm:$0xff]
      %v2333 = vld [vmem:[%s5 + $0xd8] sm:$0xff]
      %v2334 = vld [vmem:[%s5 + $0xe0] sm:$0xff]
      %v2335 = vld [vmem:[%s5 + $0xe8] sm:$0xff]
      %v2336 = vld [vmem:[%s5 + $0xf0] sm:$0xff]
      %v2337 = vld [vmem:[%s5 + $0xf8] sm:$0xff]
      %v2338 = vld [vmem:[%s5 + $0x100] sm:$0xff]
      %v2339 = vld [vmem:[%s5 + $0x108] sm:$0xff]
      %v2340 = vld [vmem:[%s5 + $0x110] sm:$0xff]
      %v2341 = vld [vmem:[%s5 + $0x118] sm:$0xff]
      %v2342 = vld [vmem:[%s5 + $0x120] sm:$0xff]
      %v2343 = vld [vmem:[%s5 + $0x128] sm:$0xff]
      %v2344 = vld [vmem:[%s5 + $0x130] sm:$0xff]
      %v2345 = vld [vmem:[%s5 + $0x138] sm:$0xff]
      %v2346 = vld [vmem:[%s5 + $0x140] sm:$0xff]
      %v2347 = vld [vmem:[%s5 + $0x148] sm:$0xff]
      %v2348 = vld [vmem:[%s5 + $0x150] sm:$0xff]
      %v2349 = vld [vmem:[%s5 + $0x158] sm:$0xff]
      %v2350 = vld [vmem:[%s5 + $0x160] sm:$0xff]
      %v2351 = vld [vmem:[%s5 + $0x168] sm:$0xff]
      %v2352 = vld [vmem:[%s5 + $0x170] sm:$0xff]
      %v2353 = vld [vmem:[%s5 + $0x178] sm:$0xff]
      %v2354 = vld [vmem:[%s5 + $0x180] sm:$0xff]
      %v2355 = vld [vmem:[%s5 + $0x188] sm:$0xff]
      %v2356 = vld [vmem:[%s5 + $0x190] sm:$0xff]
      %v2357 = vld [vmem:[%s5 + $0x198] sm:$0xff]
      %v2358 = vld [vmem:[%s5 + $0x1a0] sm:$0xff]
      %v2359 = vld [vmem:[%s5 + $0x1a8] sm:$0xff]
      %v2360 = vld [vmem:[%s5 + $0x1b0] sm:$0xff]
      %v2361 = vld [vmem:[%s5 + $0x1b8] sm:$0xff]
      %v2362 = vld [vmem:[%s5 + $0x1c0] sm:$0xff]
      %v2363 = vld [vmem:[%s5 + $0x1c8] sm:$0xff]
      %v2364 = vld [vmem:[%s5 + $0x1d0] sm:$0xff]
      %v2365 = vld [vmem:[%s5 + $0x1d8] sm:$0xff]
      %v2366 = vld [vmem:[%s5 + $0x1e0] sm:$0xff]
      %v2367 = vld [vmem:[%s5 + $0x1e8] sm:$0xff]
      %v2368 = vld [vmem:[%s5 + $0x1f0] sm:$0xff]
      %v2369 = vld [vmem:[%s5 + $0x1f8] sm:$0xff]
      %2371 = vset.pattern.permute.xlu0 0
      %2372 = vperm.xlu0 %2371, %v2306
      %v2373 = vpop.permute.xlu0 %2372
      %2376 = vset.pattern.permute.xlu0 0
      %2377 = vperm.xlu0 %2376, %v2307
      %v2378 = vpop.permute.xlu0 %2377
      %2381 = vset.pattern.permute.xlu0 0
      %2382 = vperm.xlu0 %2381, %v2308
      %v2383 = vpop.permute.xlu0 %2382
      %2386 = vset.pattern.permute.xlu0 0
      %2387 = vperm.xlu0 %2386, %v2309
      %v2388 = vpop.permute.xlu0 %2387
      %2391 = vset.pattern.permute.xlu0 0
      %2392 = vperm.xlu0 %2391, %v2310
      %v2393 = vpop.permute.xlu0 %2392
      %2396 = vset.pattern.permute.xlu0 0
      %2397 = vperm.xlu0 %2396, %v2311
      %v2398 = vpop.permute.xlu0 %2397
      %2401 = vset.pattern.permute.xlu0 0
      %2402 = vperm.xlu0 %2401, %v2312
      %v2403 = vpop.permute.xlu0 %2402
      %2406 = vset.pattern.permute.xlu0 0
      %2407 = vperm.xlu0 %2406, %v2313
      %v2408 = vpop.permute.xlu0 %2407
      %2411 = vset.pattern.permute.xlu0 0
      %2412 = vperm.xlu0 %2411, %v2314
      %v2413 = vpop.permute.xlu0 %2412
      %2416 = vset.pattern.permute.xlu0 0
      %2417 = vperm.xlu0 %2416, %v2315
      %v2418 = vpop.permute.xlu0 %2417
      %2421 = vset.pattern.permute.xlu0 0
      %2422 = vperm.xlu0 %2421, %v2316
      %v2423 = vpop.permute.xlu0 %2422
      %2426 = vset.pattern.permute.xlu0 0
      %2427 = vperm.xlu0 %2426, %v2317
      %v2428 = vpop.permute.xlu0 %2427
      %2431 = vset.pattern.permute.xlu0 0
      %2432 = vperm.xlu0 %2431, %v2318
      %v2433 = vpop.permute.xlu0 %2432
      %2436 = vset.pattern.permute.xlu0 0
      %2437 = vperm.xlu0 %2436, %v2319
      %v2438 = vpop.permute.xlu0 %2437
      %2441 = vset.pattern.permute.xlu0 0
      %2442 = vperm.xlu0 %2441, %v2320
      %v2443 = vpop.permute.xlu0 %2442
      %2446 = vset.pattern.permute.xlu0 0
      %2447 = vperm.xlu0 %2446, %v2321
      %v2448 = vpop.permute.xlu0 %2447
      %2451 = vset.pattern.permute.xlu0 0
      %2452 = vperm.xlu0 %2451, %v2322
      %v2453 = vpop.permute.xlu0 %2452
      %2456 = vset.pattern.permute.xlu0 0
      %2457 = vperm.xlu0 %2456, %v2323
      %v2458 = vpop.permute.xlu0 %2457
      %2461 = vset.pattern.permute.xlu0 0
      %2462 = vperm.xlu0 %2461, %v2324
      %v2463 = vpop.permute.xlu0 %2462
      %2466 = vset.pattern.permute.xlu0 0
      %2467 = vperm.xlu0 %2466, %v2325
      %v2468 = vpop.permute.xlu0 %2467
      %2471 = vset.pattern.permute.xlu0 0
      %2472 = vperm.xlu0 %2471, %v2326
      %v2473 = vpop.permute.xlu0 %2472
      %2476 = vset.pattern.permute.xlu0 0
      %2477 = vperm.xlu0 %2476, %v2327
      %v2478 = vpop.permute.xlu0 %2477
      %2481 = vset.pattern.permute.xlu0 0
      %2482 = vperm.xlu0 %2481, %v2328
      %v2483 = vpop.permute.xlu0 %2482
      %2486 = vset.pattern.permute.xlu0 0
      %2487 = vperm.xlu0 %2486, %v2329
      %v2488 = vpop.permute.xlu0 %2487
      %2491 = vset.pattern.permute.xlu0 0
      %2492 = vperm.xlu0 %2491, %v2330
      %v2493 = vpop.permute.xlu0 %2492
      %2496 = vset.pattern.permute.xlu0 0
      %2497 = vperm.xlu0 %2496, %v2331
      %v2498 = vpop.permute.xlu0 %2497
      %2501 = vset.pattern.permute.xlu0 0
      %2502 = vperm.xlu0 %2501, %v2332
      %v2503 = vpop.permute.xlu0 %2502
      %2506 = vset.pattern.permute.xlu0 0
      %2507 = vperm.xlu0 %2506, %v2333
      %v2508 = vpop.permute.xlu0 %2507
      %2511 = vset.pattern.permute.xlu0 0
      %2512 = vperm.xlu0 %2511, %v2334
      %v2513 = vpop.permute.xlu0 %2512
      %2516 = vset.pattern.permute.xlu0 0
      %2517 = vperm.xlu0 %2516, %v2335
      %v2518 = vpop.permute.xlu0 %2517
      %2521 = vset.pattern.permute.xlu0 0
      %2522 = vperm.xlu0 %2521, %v2336
      %v2523 = vpop.permute.xlu0 %2522
      %2526 = vset.pattern.permute.xlu0 0
      %2527 = vperm.xlu0 %2526, %v2337
      %v2528 = vpop.permute.xlu0 %2527
      %2531 = vset.pattern.permute.xlu0 0
      %2532 = vperm.xlu0 %2531, %v2338
      %v2533 = vpop.permute.xlu0 %2532
      %2536 = vset.pattern.permute.xlu0 0
      %2537 = vperm.xlu0 %2536, %v2339
      %v2538 = vpop.permute.xlu0 %2537
      %2541 = vset.pattern.permute.xlu0 0
      %2542 = vperm.xlu0 %2541, %v2340
      %v2543 = vpop.permute.xlu0 %2542
      %2546 = vset.pattern.permute.xlu0 0
      %2547 = vperm.xlu0 %2546, %v2341
      %v2548 = vpop.permute.xlu0 %2547
      %2551 = vset.pattern.permute.xlu0 0
      %2552 = vperm.xlu0 %2551, %v2342
      %v2553 = vpop.permute.xlu0 %2552
      %2556 = vset.pattern.permute.xlu0 0
      %2557 = vperm.xlu0 %2556, %v2343
      %v2558 = vpop.permute.xlu0 %2557
      %2561 = vset.pattern.permute.xlu0 0
      %2562 = vperm.xlu0 %2561, %v2344
      %v2563 = vpop.permute.xlu0 %2562
      %2566 = vset.pattern.permute.xlu0 0
      %2567 = vperm.xlu0 %2566, %v2345
      %v2568 = vpop.permute.xlu0 %2567
      %2571 = vset.pattern.permute.xlu0 0
      %2572 = vperm.xlu0 %2571, %v2346
      %v2573 = vpop.permute.xlu0 %2572
      %2576 = vset.pattern.permute.xlu0 0
      %2577 = vperm.xlu0 %2576, %v2347
      %v2578 = vpop.permute.xlu0 %2577
      %2581 = vset.pattern.permute.xlu0 0
      %2582 = vperm.xlu0 %2581, %v2348
      %v2583 = vpop.permute.xlu0 %2582
      %2586 = vset.pattern.permute.xlu0 0
      %2587 = vperm.xlu0 %2586, %v2349
      %v2588 = vpop.permute.xlu0 %2587
      %2591 = vset.pattern.permute.xlu0 0
      %2592 = vperm.xlu0 %2591, %v2350
      %v2593 = vpop.permute.xlu0 %2592
      %2596 = vset.pattern.permute.xlu0 0
      %2597 = vperm.xlu0 %2596, %v2351
      %v2598 = vpop.permute.xlu0 %2597
      %2601 = vset.pattern.permute.xlu0 0
      %2602 = vperm.xlu0 %2601, %v2352
      %v2603 = vpop.permute.xlu0 %2602
      %2606 = vset.pattern.permute.xlu0 0
      %2607 = vperm.xlu0 %2606, %v2353
      %v2608 = vpop.permute.xlu0 %2607
      %2611 = vset.pattern.permute.xlu0 0
      %2612 = vperm.xlu0 %2611, %v2354
      %v2613 = vpop.permute.xlu0 %2612
      %2616 = vset.pattern.permute.xlu0 0
      %2617 = vperm.xlu0 %2616, %v2355
      %v2618 = vpop.permute.xlu0 %2617
      %2621 = vset.pattern.permute.xlu0 0
      %2622 = vperm.xlu0 %2621, %v2356
      %v2623 = vpop.permute.xlu0 %2622
      %2626 = vset.pattern.permute.xlu0 0
      %2627 = vperm.xlu0 %2626, %v2357
      %v2628 = vpop.permute.xlu0 %2627
      %2631 = vset.pattern.permute.xlu0 0
      %2632 = vperm.xlu0 %2631, %v2358
      %v2633 = vpop.permute.xlu0 %2632
      %2636 = vset.pattern.permute.xlu0 0
      %2637 = vperm.xlu0 %2636, %v2359
      %v2638 = vpop.permute.xlu0 %2637
      %2641 = vset.pattern.permute.xlu0 0
      %2642 = vperm.xlu0 %2641, %v2360
      %v2643 = vpop.permute.xlu0 %2642
      %2646 = vset.pattern.permute.xlu0 0
      %2647 = vperm.xlu0 %2646, %v2361
      %v2648 = vpop.permute.xlu0 %2647
      %2651 = vset.pattern.permute.xlu0 0
      %2652 = vperm.xlu0 %2651, %v2362
      %v2653 = vpop.permute.xlu0 %2652
      %2656 = vset.pattern.permute.xlu0 0
      %2657 = vperm.xlu0 %2656, %v2363
      %v2658 = vpop.permute.xlu0 %2657
      %2661 = vset.pattern.permute.xlu0 0
      %2662 = vperm.xlu0 %2661, %v2364
      %v2663 = vpop.permute.xlu0 %2662
      %2666 = vset.pattern.permute.xlu0 0
      %2667 = vperm.xlu0 %2666, %v2365
      %v2668 = vpop.permute.xlu0 %2667
      %2671 = vset.pattern.permute.xlu0 0
      %2672 = vperm.xlu0 %2671, %v2366
      %v2673 = vpop.permute.xlu0 %2672
      %2676 = vset.pattern.permute.xlu0 0
      %2677 = vperm.xlu0 %2676, %v2367
      %v2678 = vpop.permute.xlu0 %2677
      %2681 = vset.pattern.permute.xlu0 0
      %2682 = vperm.xlu0 %2681, %v2368
      %v2683 = vpop.permute.xlu0 %2682
      %2686 = vset.pattern.permute.xlu0 0
      %2687 = vperm.xlu0 %2686, %v2369
      %v2688 = vpop.permute.xlu0 %2687
      %v2818 = vunpack.c.l.b16 %v2146
      %v2819 = vunpack.c.h.b16 %v2146
      %v2820 = vunpack.c.l.b16 %v2147
      %v2821 = vunpack.c.h.b16 %v2147
      %v2822 = vunpack.c.l.b16 %v2148
      %v2823 = vunpack.c.h.b16 %v2148
      %v2824 = vunpack.c.l.b16 %v2149
      %v2825 = vunpack.c.h.b16 %v2149
      %v2826 = vunpack.c.l.b16 %v2150
      %v2827 = vunpack.c.h.b16 %v2150
      %v2828 = vunpack.c.l.b16 %v2151
      %v2829 = vunpack.c.h.b16 %v2151
      %v2830 = vunpack.c.l.b16 %v2152
      %v2831 = vunpack.c.h.b16 %v2152
      %v2832 = vunpack.c.l.b16 %v2153
      %v2833 = vunpack.c.h.b16 %v2153
      %v2834 = vunpack.c.l.b16 %v2154
      %v2835 = vunpack.c.h.b16 %v2154
      %v2836 = vunpack.c.l.b16 %v2155
      %v2837 = vunpack.c.h.b16 %v2155
      %v2838 = vunpack.c.l.b16 %v2156
      %v2839 = vunpack.c.h.b16 %v2156
      %v2840 = vunpack.c.l.b16 %v2157
      %v2841 = vunpack.c.h.b16 %v2157
      %v2842 = vunpack.c.l.b16 %v2158
      %v2843 = vunpack.c.h.b16 %v2158
      %v2844 = vunpack.c.l.b16 %v2159
      %v2845 = vunpack.c.h.b16 %v2159
      %v2846 = vunpack.c.l.b16 %v2160
      %v2847 = vunpack.c.h.b16 %v2160
      %v2848 = vunpack.c.l.b16 %v2161
      %v2849 = vunpack.c.h.b16 %v2161
      %v2850 = vunpack.c.l.b16 %v2162
      %v2851 = vunpack.c.h.b16 %v2162
      %v2852 = vunpack.c.l.b16 %v2163
      %v2853 = vunpack.c.h.b16 %v2163
      %v2854 = vunpack.c.l.b16 %v2164
      %v2855 = vunpack.c.h.b16 %v2164
      %v2856 = vunpack.c.l.b16 %v2165
      %v2857 = vunpack.c.h.b16 %v2165
      %v2858 = vunpack.c.l.b16 %v2166
      %v2859 = vunpack.c.h.b16 %v2166
      %v2860 = vunpack.c.l.b16 %v2167
      %v2861 = vunpack.c.h.b16 %v2167
      %v2862 = vunpack.c.l.b16 %v2168
      %v2863 = vunpack.c.h.b16 %v2168
      %v2864 = vunpack.c.l.b16 %v2169
      %v2865 = vunpack.c.h.b16 %v2169
      %v2866 = vunpack.c.l.b16 %v2170
      %v2867 = vunpack.c.h.b16 %v2170
      %v2868 = vunpack.c.l.b16 %v2171
      %v2869 = vunpack.c.h.b16 %v2171
      %v2870 = vunpack.c.l.b16 %v2172
      %v2871 = vunpack.c.h.b16 %v2172
      %v2872 = vunpack.c.l.b16 %v2173
      %v2873 = vunpack.c.h.b16 %v2173
      %v2874 = vunpack.c.l.b16 %v2174
      %v2875 = vunpack.c.h.b16 %v2174
      %v2876 = vunpack.c.l.b16 %v2175
      %v2877 = vunpack.c.h.b16 %v2175
      %v2878 = vunpack.c.l.b16 %v2176
      %v2879 = vunpack.c.h.b16 %v2176
      %v2880 = vunpack.c.l.b16 %v2177
      %v2881 = vunpack.c.h.b16 %v2177
      %v2882 = vunpack.c.l.b16 %v2178
      %v2883 = vunpack.c.h.b16 %v2178
      %v2884 = vunpack.c.l.b16 %v2179
      %v2885 = vunpack.c.h.b16 %v2179
      %v2886 = vunpack.c.l.b16 %v2180
      %v2887 = vunpack.c.h.b16 %v2180
      %v2888 = vunpack.c.l.b16 %v2181
      %v2889 = vunpack.c.h.b16 %v2181
      %v2890 = vunpack.c.l.b16 %v2182
      %v2891 = vunpack.c.h.b16 %v2182
      %v2892 = vunpack.c.l.b16 %v2183
      %v2893 = vunpack.c.h.b16 %v2183
      %v2894 = vunpack.c.l.b16 %v2184
      %v2895 = vunpack.c.h.b16 %v2184
      %v2896 = vunpack.c.l.b16 %v2185
      %v2897 = vunpack.c.h.b16 %v2185
      %v2898 = vunpack.c.l.b16 %v2186
      %v2899 = vunpack.c.h.b16 %v2186
      %v2900 = vunpack.c.l.b16 %v2187
      %v2901 = vunpack.c.h.b16 %v2187
      %v2902 = vunpack.c.l.b16 %v2188
      %v2903 = vunpack.c.h.b16 %v2188
      %v2904 = vunpack.c.l.b16 %v2189
      %v2905 = vunpack.c.h.b16 %v2189
      %v2906 = vunpack.c.l.b16 %v2190
      %v2907 = vunpack.c.h.b16 %v2190
      %v2908 = vunpack.c.l.b16 %v2191
      %v2909 = vunpack.c.h.b16 %v2191
      %v2910 = vunpack.c.l.b16 %v2192
      %v2911 = vunpack.c.h.b16 %v2192
      %v2912 = vunpack.c.l.b16 %v2193
      %v2913 = vunpack.c.h.b16 %v2193
      %v2914 = vunpack.c.l.b16 %v2194
      %v2915 = vunpack.c.h.b16 %v2194
      %v2916 = vunpack.c.l.b16 %v2195
      %v2917 = vunpack.c.h.b16 %v2195
      %v2918 = vunpack.c.l.b16 %v2196
      %v2919 = vunpack.c.h.b16 %v2196
      %v2920 = vunpack.c.l.b16 %v2197
      %v2921 = vunpack.c.h.b16 %v2197
      %v2922 = vunpack.c.l.b16 %v2198
      %v2923 = vunpack.c.h.b16 %v2198
      %v2924 = vunpack.c.l.b16 %v2199
      %v2925 = vunpack.c.h.b16 %v2199
      %v2926 = vunpack.c.l.b16 %v2200
      %v2927 = vunpack.c.h.b16 %v2200
      %v2928 = vunpack.c.l.b16 %v2201
      %v2929 = vunpack.c.h.b16 %v2201
      %v2930 = vunpack.c.l.b16 %v2202
      %v2931 = vunpack.c.h.b16 %v2202
      %v2932 = vunpack.c.l.b16 %v2203
      %v2933 = vunpack.c.h.b16 %v2203
      %v2934 = vunpack.c.l.b16 %v2204
      %v2935 = vunpack.c.h.b16 %v2204
      %v2936 = vunpack.c.l.b16 %v2205
      %v2937 = vunpack.c.h.b16 %v2205
      %v2938 = vunpack.c.l.b16 %v2206
      %v2939 = vunpack.c.h.b16 %v2206
      %v2940 = vunpack.c.l.b16 %v2207
      %v2941 = vunpack.c.h.b16 %v2207
      %v2942 = vunpack.c.l.b16 %v2208
      %v2943 = vunpack.c.h.b16 %v2208
      %v2944 = vunpack.c.l.b16 %v2209
      %v2945 = vunpack.c.h.b16 %v2209
      %v2946 = vunpack.c.l.b16 %v2210
      %v2947 = vunpack.c.h.b16 %v2210
      %v2948 = vunpack.c.l.b16 %v2211
      %v2949 = vunpack.c.h.b16 %v2211
      %v2950 = vunpack.c.l.b16 %v2212
      %v2951 = vunpack.c.h.b16 %v2212
      %v2952 = vunpack.c.l.b16 %v2213
      %v2953 = vunpack.c.h.b16 %v2213
      %v2954 = vunpack.c.l.b16 %v2214
      %v2955 = vunpack.c.h.b16 %v2214
      %v2956 = vunpack.c.l.b16 %v2215
      %v2957 = vunpack.c.h.b16 %v2215
      %v2958 = vunpack.c.l.b16 %v2216
      %v2959 = vunpack.c.h.b16 %v2216
      %v2960 = vunpack.c.l.b16 %v2217
      %v2961 = vunpack.c.h.b16 %v2217
      %v2962 = vunpack.c.l.b16 %v2218
      %v2963 = vunpack.c.h.b16 %v2218
      %v2964 = vunpack.c.l.b16 %v2219
      %v2965 = vunpack.c.h.b16 %v2219
      %v2966 = vunpack.c.l.b16 %v2220
      %v2967 = vunpack.c.h.b16 %v2220
      %v2968 = vunpack.c.l.b16 %v2221
      %v2969 = vunpack.c.h.b16 %v2221
      %v2970 = vunpack.c.l.b16 %v2222
      %v2971 = vunpack.c.h.b16 %v2222
      %v2972 = vunpack.c.l.b16 %v2223
      %v2973 = vunpack.c.h.b16 %v2223
      %v2974 = vunpack.c.l.b16 %v2224
      %v2975 = vunpack.c.h.b16 %v2224
      %v2976 = vunpack.c.l.b16 %v2225
      %v2977 = vunpack.c.h.b16 %v2225
      %v2978 = vunpack.c.l.b16 %v2226
      %v2979 = vunpack.c.h.b16 %v2226
      %v2980 = vunpack.c.l.b16 %v2227
      %v2981 = vunpack.c.h.b16 %v2227
      %v2982 = vunpack.c.l.b16 %v2228
      %v2983 = vunpack.c.h.b16 %v2228
      %v2984 = vunpack.c.l.b16 %v2229
      %v2985 = vunpack.c.h.b16 %v2229
      %v2986 = vunpack.c.l.b16 %v2230
      %v2987 = vunpack.c.h.b16 %v2230
      %v2988 = vunpack.c.l.b16 %v2231
      %v2989 = vunpack.c.h.b16 %v2231
      %v2990 = vunpack.c.l.b16 %v2232
      %v2991 = vunpack.c.h.b16 %v2232
      %v2992 = vunpack.c.l.b16 %v2233
      %v2993 = vunpack.c.h.b16 %v2233
      %v2994 = vunpack.c.l.b16 %v2234
      %v2995 = vunpack.c.h.b16 %v2234
      %v2996 = vunpack.c.l.b16 %v2235
      %v2997 = vunpack.c.h.b16 %v2235
      %v2998 = vunpack.c.l.b16 %v2236
      %v2999 = vunpack.c.h.b16 %v2236
      %v3000 = vunpack.c.l.b16 %v2237
      %v3001 = vunpack.c.h.b16 %v2237
      %v3002 = vunpack.c.l.b16 %v2238
      %v3003 = vunpack.c.h.b16 %v2238
      %v3004 = vunpack.c.l.b16 %v2239
      %v3005 = vunpack.c.h.b16 %v2239
      %v3006 = vunpack.c.l.b16 %v2240
      %v3007 = vunpack.c.h.b16 %v2240
      %v3008 = vunpack.c.l.b16 %v2241
      %v3009 = vunpack.c.h.b16 %v2241
      %v3010 = vunpack.c.l.b16 %v2242
      %v3011 = vunpack.c.h.b16 %v2242
      %v3012 = vunpack.c.l.b16 %v2243
      %v3013 = vunpack.c.h.b16 %v2243
      %v3014 = vunpack.c.l.b16 %v2244
      %v3015 = vunpack.c.h.b16 %v2244
      %v3016 = vunpack.c.l.b16 %v2245
      %v3017 = vunpack.c.h.b16 %v2245
      %v3018 = vunpack.c.l.b16 %v2246
      %v3019 = vunpack.c.h.b16 %v2246
      %v3020 = vunpack.c.l.b16 %v2247
      %v3021 = vunpack.c.h.b16 %v2247
      %v3022 = vunpack.c.l.b16 %v2248
      %v3023 = vunpack.c.h.b16 %v2248
      %v3024 = vunpack.c.l.b16 %v2249
      %v3025 = vunpack.c.h.b16 %v2249
      %v3026 = vunpack.c.l.b16 %v2250
      %v3027 = vunpack.c.h.b16 %v2250
      %v3028 = vunpack.c.l.b16 %v2251
      %v3029 = vunpack.c.h.b16 %v2251
      %v3030 = vunpack.c.l.b16 %v2252
      %v3031 = vunpack.c.h.b16 %v2252
      %v3032 = vunpack.c.l.b16 %v2253
      %v3033 = vunpack.c.h.b16 %v2253
      %v3034 = vunpack.c.l.b16 %v2254
      %v3035 = vunpack.c.h.b16 %v2254
      %v3036 = vunpack.c.l.b16 %v2255
      %v3037 = vunpack.c.h.b16 %v2255
      %v3038 = vunpack.c.l.b16 %v2256
      %v3039 = vunpack.c.h.b16 %v2256
      %v3040 = vunpack.c.l.b16 %v2257
      %v3041 = vunpack.c.h.b16 %v2257
      %v3042 = vunpack.c.l.b16 %v2258
      %v3043 = vunpack.c.h.b16 %v2258
      %v3044 = vunpack.c.l.b16 %v2259
      %v3045 = vunpack.c.h.b16 %v2259
      %v3046 = vunpack.c.l.b16 %v2260
      %v3047 = vunpack.c.h.b16 %v2260
      %v3048 = vunpack.c.l.b16 %v2261
      %v3049 = vunpack.c.h.b16 %v2261
      %v3050 = vunpack.c.l.b16 %v2262
      %v3051 = vunpack.c.h.b16 %v2262
      %v3052 = vunpack.c.l.b16 %v2263
      %v3053 = vunpack.c.h.b16 %v2263
      %v3054 = vunpack.c.l.b16 %v2264
      %v3055 = vunpack.c.h.b16 %v2264
      %v3056 = vunpack.c.l.b16 %v2265
      %v3057 = vunpack.c.h.b16 %v2265
      %v3058 = vunpack.c.l.b16 %v2266
      %v3059 = vunpack.c.h.b16 %v2266
      %v3060 = vunpack.c.l.b16 %v2267
      %v3061 = vunpack.c.h.b16 %v2267
      %v3062 = vunpack.c.l.b16 %v2268
      %v3063 = vunpack.c.h.b16 %v2268
      %v3064 = vunpack.c.l.b16 %v2269
      %v3065 = vunpack.c.h.b16 %v2269
      %v3066 = vunpack.c.l.b16 %v2270
      %v3067 = vunpack.c.h.b16 %v2270
      %v3068 = vunpack.c.l.b16 %v2271
      %v3069 = vunpack.c.h.b16 %v2271
      %v3070 = vunpack.c.l.b16 %v2272
      %v3071 = vunpack.c.h.b16 %v2272
      %v3072 = vunpack.c.l.b16 %v2273
      %v3073 = vunpack.c.h.b16 %v2273
      %v3074 = vpack.c.b16 %v2822, %v2818
      %v3075 = vpack.c.b16 %v2823, %v2819
      %v3076 = vpack.c.b16 %v2824, %v2820
      %v3077 = vpack.c.b16 %v2825, %v2821
      %v3078 = vpack.c.b16 %v2830, %v2826
      %v3079 = vpack.c.b16 %v2831, %v2827
      %v3080 = vpack.c.b16 %v2832, %v2828
      %v3081 = vpack.c.b16 %v2833, %v2829
      %v3082 = vpack.c.b16 %v2838, %v2834
      %v3083 = vpack.c.b16 %v2839, %v2835
      %v3084 = vpack.c.b16 %v2840, %v2836
      %v3085 = vpack.c.b16 %v2841, %v2837
      %v3086 = vpack.c.b16 %v2846, %v2842
      %v3087 = vpack.c.b16 %v2847, %v2843
      %v3088 = vpack.c.b16 %v2848, %v2844
      %v3089 = vpack.c.b16 %v2849, %v2845
      %v3090 = vpack.c.b16 %v2854, %v2850
      %v3091 = vpack.c.b16 %v2855, %v2851
      %v3092 = vpack.c.b16 %v2856, %v2852
      %v3093 = vpack.c.b16 %v2857, %v2853
      %v3094 = vpack.c.b16 %v2862, %v2858
      %v3095 = vpack.c.b16 %v2863, %v2859
      %v3096 = vpack.c.b16 %v2864, %v2860
      %v3097 = vpack.c.b16 %v2865, %v2861
      %v3098 = vpack.c.b16 %v2870, %v2866
      %v3099 = vpack.c.b16 %v2871, %v2867
      %v3100 = vpack.c.b16 %v2872, %v2868
      %v3101 = vpack.c.b16 %v2873, %v2869
      %v3102 = vpack.c.b16 %v2878, %v2874
      %v3103 = vpack.c.b16 %v2879, %v2875
      %v3104 = vpack.c.b16 %v2880, %v2876
      %v3105 = vpack.c.b16 %v2881, %v2877
      %v3106 = vpack.c.b16 %v2886, %v2882
      %v3107 = vpack.c.b16 %v2887, %v2883
      %v3108 = vpack.c.b16 %v2888, %v2884
      %v3109 = vpack.c.b16 %v2889, %v2885
      %v3110 = vpack.c.b16 %v2894, %v2890
      %v3111 = vpack.c.b16 %v2895, %v2891
      %v3112 = vpack.c.b16 %v2896, %v2892
      %v3113 = vpack.c.b16 %v2897, %v2893
      %v3114 = vpack.c.b16 %v2902, %v2898
      %v3115 = vpack.c.b16 %v2903, %v2899
      %v3116 = vpack.c.b16 %v2904, %v2900
      %v3117 = vpack.c.b16 %v2905, %v2901
      %v3118 = vpack.c.b16 %v2910, %v2906
      %v3119 = vpack.c.b16 %v2911, %v2907
      %v3120 = vpack.c.b16 %v2912, %v2908
      %v3121 = vpack.c.b16 %v2913, %v2909
      %v3122 = vpack.c.b16 %v2918, %v2914
      %v3123 = vpack.c.b16 %v2919, %v2915
      %v3124 = vpack.c.b16 %v2920, %v2916
      %v3125 = vpack.c.b16 %v2921, %v2917
      %v3126 = vpack.c.b16 %v2926, %v2922
      %v3127 = vpack.c.b16 %v2927, %v2923
      %v3128 = vpack.c.b16 %v2928, %v2924
      %v3129 = vpack.c.b16 %v2929, %v2925
      %v3130 = vpack.c.b16 %v2934, %v2930
      %v3131 = vpack.c.b16 %v2935, %v2931
      %v3132 = vpack.c.b16 %v2936, %v2932
      %v3133 = vpack.c.b16 %v2937, %v2933
      %v3134 = vpack.c.b16 %v2942, %v2938
      %v3135 = vpack.c.b16 %v2943, %v2939
      %v3136 = vpack.c.b16 %v2944, %v2940
      %v3137 = vpack.c.b16 %v2945, %v2941
      %v3138 = vpack.c.b16 %v2950, %v2946
      %v3139 = vpack.c.b16 %v2951, %v2947
      %v3140 = vpack.c.b16 %v2952, %v2948
      %v3141 = vpack.c.b16 %v2953, %v2949
      %v3142 = vpack.c.b16 %v2958, %v2954
      %v3143 = vpack.c.b16 %v2959, %v2955
      %v3144 = vpack.c.b16 %v2960, %v2956
      %v3145 = vpack.c.b16 %v2961, %v2957
      %v3146 = vpack.c.b16 %v2966, %v2962
      %v3147 = vpack.c.b16 %v2967, %v2963
      %v3148 = vpack.c.b16 %v2968, %v2964
      %v3149 = vpack.c.b16 %v2969, %v2965
      %v3150 = vpack.c.b16 %v2974, %v2970
      %v3151 = vpack.c.b16 %v2975, %v2971
      %v3152 = vpack.c.b16 %v2976, %v2972
      %v3153 = vpack.c.b16 %v2977, %v2973
      %v3154 = vpack.c.b16 %v2982, %v2978
      %v3155 = vpack.c.b16 %v2983, %v2979
      %v3156 = vpack.c.b16 %v2984, %v2980
      %v3157 = vpack.c.b16 %v2985, %v2981
      %v3158 = vpack.c.b16 %v2990, %v2986
      %v3159 = vpack.c.b16 %v2991, %v2987
      %v3160 = vpack.c.b16 %v2992, %v2988
      %v3161 = vpack.c.b16 %v2993, %v2989
      %v3162 = vpack.c.b16 %v2998, %v2994
      %v3163 = vpack.c.b16 %v2999, %v2995
      %v3164 = vpack.c.b16 %v3000, %v2996
      %v3165 = vpack.c.b16 %v3001, %v2997
      %v3166 = vpack.c.b16 %v3006, %v3002
      %v3167 = vpack.c.b16 %v3007, %v3003
      %v3168 = vpack.c.b16 %v3008, %v3004
      %v3169 = vpack.c.b16 %v3009, %v3005
      %v3170 = vpack.c.b16 %v3014, %v3010
      %v3171 = vpack.c.b16 %v3015, %v3011
      %v3172 = vpack.c.b16 %v3016, %v3012
      %v3173 = vpack.c.b16 %v3017, %v3013
      %v3174 = vpack.c.b16 %v3022, %v3018
      %v3175 = vpack.c.b16 %v3023, %v3019
      %v3176 = vpack.c.b16 %v3024, %v3020
      %v3177 = vpack.c.b16 %v3025, %v3021
      %v3178 = vpack.c.b16 %v3030, %v3026
      %v3179 = vpack.c.b16 %v3031, %v3027
      %v3180 = vpack.c.b16 %v3032, %v3028
      %v3181 = vpack.c.b16 %v3033, %v3029
      %v3182 = vpack.c.b16 %v3038, %v3034
      %v3183 = vpack.c.b16 %v3039, %v3035
      %v3184 = vpack.c.b16 %v3040, %v3036
      %v3185 = vpack.c.b16 %v3041, %v3037
      %v3186 = vpack.c.b16 %v3046, %v3042
      %v3187 = vpack.c.b16 %v3047, %v3043
      %v3188 = vpack.c.b16 %v3048, %v3044
      %v3189 = vpack.c.b16 %v3049, %v3045
      %v3190 = vpack.c.b16 %v3054, %v3050
      %v3191 = vpack.c.b16 %v3055, %v3051
      %v3192 = vpack.c.b16 %v3056, %v3052
      %v3193 = vpack.c.b16 %v3057, %v3053
      %v3194 = vpack.c.b16 %v3062, %v3058
      %v3195 = vpack.c.b16 %v3063, %v3059
      %v3196 = vpack.c.b16 %v3064, %v3060
      %v3197 = vpack.c.b16 %v3065, %v3061
      %v3198 = vpack.c.b16 %v3070, %v3066
      %v3199 = vpack.c.b16 %v3071, %v3067
      %v3200 = vpack.c.b16 %v3072, %v3068
      %v3201 = vpack.c.b16 %v3073, %v3069
      %3330 = vmatprep.subr.bf16.mxu0 0
      %3331 = vmatpush1.bf16.msra.mxu0 %v2274
      %3332 = vmatprep.subr.bf16.mxu0 0
      %3333 = vmatpush1.bf16.msra.mxu0 %v2275
      %3334 = vmatprep.subr.bf16.mxu0 0
      %3335 = vmatpush1.bf16.msra.mxu0 %v2276
      %3336 = vmatprep.subr.bf16.mxu0 0
      %3337 = vmatpush1.bf16.msra.mxu0 %v2277
      %3338 = vmatprep.subr.bf16.mxu0 0
      %3339 = vmatpush1.bf16.msra.mxu0 %v2278
      %3340 = vmatprep.subr.bf16.mxu0 0
      %3341 = vmatpush1.bf16.msra.mxu0 %v2279
      %3342 = vmatprep.subr.bf16.mxu0 0
      %3343 = vmatpush1.bf16.msra.mxu0 %v2280
      %3344 = vmatprep.subr.bf16.mxu0 0
      %3345 = vmatpush1.bf16.msra.mxu0 %v2281
      %3346 = vmatprep.subr.bf16.mxu0 0
      %3347 = vmatpush1.bf16.msra.mxu0 %v2282
      %3348 = vmatprep.subr.bf16.mxu0 0
      %3349 = vmatpush1.bf16.msra.mxu0 %v2283
      %3350 = vmatprep.subr.bf16.mxu0 0
      %3351 = vmatpush1.bf16.msra.mxu0 %v2284
      %3352 = vmatprep.subr.bf16.mxu0 0
      %3353 = vmatpush1.bf16.msra.mxu0 %v2285
      %3354 = vmatprep.subr.bf16.mxu0 0
      %3355 = vmatpush1.bf16.msra.mxu0 %v2286
      %3356 = vmatprep.subr.bf16.mxu0 0
      %3357 = vmatpush1.bf16.msra.mxu0 %v2287
      %3358 = vmatprep.subr.bf16.mxu0 0
      %3359 = vmatpush1.bf16.msra.mxu0 %v2288
      %3360 = vmatprep.subr.bf16.mxu0 0
      %3361 = vmatpush1.bf16.msra.mxu0 %v2289
      %3362 = vmatprep.mubr.bf16.mxu0 %v3075
      %3363 = vmatmul.mubr.bf16.gmra.mrb[0].mxu0 %v3074
      %v3364 = vpop.f32.mrb[0].mxu0
      %v3365 = vadd.f32 %v2373, %v3364
      %v3366 = vpop.f32.mrb[0].mxu0
      %v3367 = vpop.f32.mrb[0].mxu0
      %v3368 = vadd.f32 %v2378, %v3367
      %v3369 = vpop.f32.mrb[0].mxu0
      %3370 = vmatprep.mubr.bf16.mxu0 %v3079
      %3371 = vmatmul.mubr.bf16.gmra.mrb[0].mxu0 %v3078
      %v3372 = vpop.f32.mrb[0].mxu0
      %v3373 = vadd.f32 %v2383, %v3372
      %v3374 = vpop.f32.mrb[0].mxu0
      %v3375 = vpop.f32.mrb[0].mxu0
      %v3376 = vadd.f32 %v2388, %v3375
      %v3377 = vpop.f32.mrb[0].mxu0
      %3378 = vmatprep.mubr.bf16.mxu0 %v3083
      %3379 = vmatmul.mubr.bf16.gmra.mrb[0].mxu0 %v3082
      %v3380 = vpop.f32.mrb[0].mxu0
      %v3381 = vadd.f32 %v2393, %v3380
      %v3382 = vpop.f32.mrb[0].mxu0
      %v3383 = vpop.f32.mrb[0].mxu0
      %v3384 = vadd.f32 %v2398, %v3383
      %v3385 = vpop.f32.mrb[0].mxu0
      %3386 = vmatprep.mubr.bf16.mxu0 %v3087
      %3387 = vmatmul.mubr.bf16.gmra.mrb[0].mxu0 %v3086
      %v3388 = vpop.f32.mrb[0].mxu0
      %v3389 = vadd.f32 %v2403, %v3388
      %v3390 = vpop.f32.mrb[0].mxu0
      %v3391 = vpop.f32.mrb[0].mxu0
      %v3392 = vadd.f32 %v2408, %v3391
      %v3393 = vpop.f32.mrb[0].mxu0
      %3394 = vmatprep.mubr.bf16.mxu0 %v3091
      %3395 = vmatmul.mubr.bf16.gmra.mrb[0].mxu0 %v3090
      %v3396 = vpop.f32.mrb[0].mxu0
      %v3397 = vadd.f32 %v2413, %v3396
      %v3398 = vpop.f32.mrb[0].mxu0
      %v3399 = vpop.f32.mrb[0].mxu0
      %v3400 = vadd.f32 %v2418, %v3399
      %v3401 = vpop.f32.mrb[0].mxu0
      %3402 = vmatprep.mubr.bf16.mxu0 %v3095
      %3403 = vmatmul.mubr.bf16.gmra.mrb[0].mxu0 %v3094
      %v3404 = vpop.f32.mrb[0].mxu0
      %v3405 = vadd.f32 %v2423, %v3404
      %v3406 = vpop.f32.mrb[0].mxu0
      %v3407 = vpop.f32.mrb[0].mxu0
      %v3408 = vadd.f32 %v2428, %v3407
      %v3409 = vpop.f32.mrb[0].mxu0
      %3410 = vmatprep.mubr.bf16.mxu0 %v3099
      %3411 = vmatmul.mubr.bf16.gmra.mrb[0].mxu0 %v3098
      %v3412 = vpop.f32.mrb[0].mxu0
      %v3413 = vadd.f32 %v2433, %v3412
      %v3414 = vpop.f32.mrb[0].mxu0
      %v3415 = vpop.f32.mrb[0].mxu0
      %v3416 = vadd.f32 %v2438, %v3415
      %v3417 = vpop.f32.mrb[0].mxu0
      %3418 = vmatprep.mubr.bf16.mxu0 %v3103
      %3419 = vmatmul.mubr.bf16.gmra.mrb[0].mxu0 %v3102
      %v3420 = vpop.f32.mrb[0].mxu0
      %v3421 = vadd.f32 %v2443, %v3420
      %v3422 = vpop.f32.mrb[0].mxu0
      %v3423 = vpop.f32.mrb[0].mxu0
      %v3424 = vadd.f32 %v2448, %v3423
      %v3425 = vpop.f32.mrb[0].mxu0
      %3426 = vmatprep.mubr.bf16.mxu0 %v3107
      %3427 = vmatmul.mubr.bf16.gmra.mrb[0].mxu0 %v3106
      %v3428 = vpop.f32.mrb[0].mxu0
      %v3429 = vadd.f32 %v2453, %v3428
      %v3430 = vpop.f32.mrb[0].mxu0
      %v3431 = vpop.f32.mrb[0].mxu0
      %v3432 = vadd.f32 %v2458, %v3431
      %v3433 = vpop.f32.mrb[0].mxu0
      %3434 = vmatprep.mubr.bf16.mxu0 %v3111
      %3435 = vmatmul.mubr.bf16.gmra.mrb[0].mxu0 %v3110
      %v3436 = vpop.f32.mrb[0].mxu0
      %v3437 = vadd.f32 %v2463, %v3436
      %v3438 = vpop.f32.mrb[0].mxu0
      %v3439 = vpop.f32.mrb[0].mxu0
      %v3440 = vadd.f32 %v2468, %v3439
      %v3441 = vpop.f32.mrb[0].mxu0
      %3442 = vmatprep.mubr.bf16.mxu0 %v3115
      %3443 = vmatmul.mubr.bf16.gmra.mrb[0].mxu0 %v3114
      %v3444 = vpop.f32.mrb[0].mxu0
      %v3445 = vadd.f32 %v2473, %v3444
      %v3446 = vpop.f32.mrb[0].mxu0
      %v3447 = vpop.f32.mrb[0].mxu0
      %v3448 = vadd.f32 %v2478, %v3447
      %v3449 = vpop.f32.mrb[0].mxu0
      %3450 = vmatprep.mubr.bf16.mxu0 %v3119
      %3451 = vmatmul.mubr.bf16.gmra.mrb[0].mxu0 %v3118
      %v3452 = vpop.f32.mrb[0].mxu0
      %v3453 = vadd.f32 %v2483, %v3452
      %v3454 = vpop.f32.mrb[0].mxu0
      %v3455 = vpop.f32.mrb[0].mxu0
      %v3456 = vadd.f32 %v2488, %v3455
      %v3457 = vpop.f32.mrb[0].mxu0
      %3458 = vmatprep.mubr.bf16.mxu0 %v3123
      %3459 = vmatmul.mubr.bf16.gmra.mrb[0].mxu0 %v3122
      %v3460 = vpop.f32.mrb[0].mxu0
      %v3461 = vadd.f32 %v2493, %v3460
      %v3462 = vpop.f32.mrb[0].mxu0
      %v3463 = vpop.f32.mrb[0].mxu0
      %v3464 = vadd.f32 %v2498, %v3463
      %v3465 = vpop.f32.mrb[0].mxu0
      %3466 = vmatprep.mubr.bf16.mxu0 %v3127
      %3467 = vmatmul.mubr.bf16.gmra.mrb[0].mxu0 %v3126
      %v3468 = vpop.f32.mrb[0].mxu0
      %v3469 = vadd.f32 %v2503, %v3468
      %v3470 = vpop.f32.mrb[0].mxu0
      %v3471 = vpop.f32.mrb[0].mxu0
      %v3472 = vadd.f32 %v2508, %v3471
      %v3473 = vpop.f32.mrb[0].mxu0
      %3474 = vmatprep.mubr.bf16.mxu0 %v3131
      %3475 = vmatmul.mubr.bf16.gmra.mrb[0].mxu0 %v3130
      %v3476 = vpop.f32.mrb[0].mxu0
      %v3477 = vadd.f32 %v2513, %v3476
      %v3478 = vpop.f32.mrb[0].mxu0
      %v3479 = vpop.f32.mrb[0].mxu0
      %v3480 = vadd.f32 %v2518, %v3479
      %v3481 = vpop.f32.mrb[0].mxu0
      %3482 = vmatprep.mubr.bf16.mxu0 %v3135
      %3483 = vmatmul.mubr.bf16.gmra.mrb[0].mxu0 %v3134
      %v3484 = vpop.f32.mrb[0].mxu0
      %v3485 = vadd.f32 %v2523, %v3484
      %v3486 = vpop.f32.mrb[0].mxu0
      %v3487 = vpop.f32.mrb[0].mxu0
      %v3488 = vadd.f32 %v2528, %v3487
      %v3489 = vpop.f32.mrb[0].mxu0
      %3490 = vmatprep.mubr.bf16.mxu0 %v3139
      %3491 = vmatmul.mubr.bf16.gmra.mrb[0].mxu0 %v3138
      %v3492 = vpop.f32.mrb[0].mxu0
      %v3493 = vadd.f32 %v2533, %v3492
      %v3494 = vpop.f32.mrb[0].mxu0
      %v3495 = vpop.f32.mrb[0].mxu0
      %v3496 = vadd.f32 %v2538, %v3495
      %v3497 = vpop.f32.mrb[0].mxu0
      %3498 = vmatprep.mubr.bf16.mxu0 %v3143
      %3499 = vmatmul.mubr.bf16.gmra.mrb[0].mxu0 %v3142
      %v3500 = vpop.f32.mrb[0].mxu0
      %v3501 = vadd.f32 %v2543, %v3500
      %v3502 = vpop.f32.mrb[0].mxu0
      %v3503 = vpop.f32.mrb[0].mxu0
      %v3504 = vadd.f32 %v2548, %v3503
      %v3505 = vpop.f32.mrb[0].mxu0
      %3506 = vmatprep.mubr.bf16.mxu0 %v3147
      %3507 = vmatmul.mubr.bf16.gmra.mrb[0].mxu0 %v3146
      %v3508 = vpop.f32.mrb[0].mxu0
      %v3509 = vadd.f32 %v2553, %v3508
      %v3510 = vpop.f32.mrb[0].mxu0
      %v3511 = vpop.f32.mrb[0].mxu0
      %v3512 = vadd.f32 %v2558, %v3511
      %v3513 = vpop.f32.mrb[0].mxu0
      %3514 = vmatprep.mubr.bf16.mxu0 %v3151
      %3515 = vmatmul.mubr.bf16.gmra.mrb[0].mxu0 %v3150
      %v3516 = vpop.f32.mrb[0].mxu0
      %v3517 = vadd.f32 %v2563, %v3516
      %v3518 = vpop.f32.mrb[0].mxu0
      %v3519 = vpop.f32.mrb[0].mxu0
      %v3520 = vadd.f32 %v2568, %v3519
      %v3521 = vpop.f32.mrb[0].mxu0
      %3522 = vmatprep.mubr.bf16.mxu0 %v3155
      %3523 = vmatmul.mubr.bf16.gmra.mrb[0].mxu0 %v3154
      %v3524 = vpop.f32.mrb[0].mxu0
      %v3525 = vadd.f32 %v2573, %v3524
      %v3526 = vpop.f32.mrb[0].mxu0
      %v3527 = vpop.f32.mrb[0].mxu0
      %v3528 = vadd.f32 %v2578, %v3527
      %v3529 = vpop.f32.mrb[0].mxu0
      %3530 = vmatprep.mubr.bf16.mxu0 %v3159
      %3531 = vmatmul.mubr.bf16.gmra.mrb[0].mxu0 %v3158
      %v3532 = vpop.f32.mrb[0].mxu0
      %v3533 = vadd.f32 %v2583, %v3532
      %v3534 = vpop.f32.mrb[0].mxu0
      %v3535 = vpop.f32.mrb[0].mxu0
      %v3536 = vadd.f32 %v2588, %v3535
      %v3537 = vpop.f32.mrb[0].mxu0
      %3538 = vmatprep.mubr.bf16.mxu0 %v3163
      %3539 = vmatmul.mubr.bf16.gmra.mrb[0].mxu0 %v3162
      %v3540 = vpop.f32.mrb[0].mxu0
      %v3541 = vadd.f32 %v2593, %v3540
      %v3542 = vpop.f32.mrb[0].mxu0
      %v3543 = vpop.f32.mrb[0].mxu0
      %v3544 = vadd.f32 %v2598, %v3543
      %v3545 = vpop.f32.mrb[0].mxu0
      %3546 = vmatprep.mubr.bf16.mxu0 %v3167
      %3547 = vmatmul.mubr.bf16.gmra.mrb[0].mxu0 %v3166
      %v3548 = vpop.f32.mrb[0].mxu0
      %v3549 = vadd.f32 %v2603, %v3548
      %v3550 = vpop.f32.mrb[0].mxu0
      %v3551 = vpop.f32.mrb[0].mxu0
      %v3552 = vadd.f32 %v2608, %v3551
      %v3553 = vpop.f32.mrb[0].mxu0
      %3554 = vmatprep.mubr.bf16.mxu0 %v3171
      %3555 = vmatmul.mubr.bf16.gmra.mrb[0].mxu0 %v3170
      %v3556 = vpop.f32.mrb[0].mxu0
      %v3557 = vadd.f32 %v2613, %v3556
      %v3558 = vpop.f32.mrb[0].mxu0
      %v3559 = vpop.f32.mrb[0].mxu0
      %v3560 = vadd.f32 %v2618, %v3559
      %v3561 = vpop.f32.mrb[0].mxu0
      %3562 = vmatprep.mubr.bf16.mxu0 %v3175
      %3563 = vmatmul.mubr.bf16.gmra.mrb[0].mxu0 %v3174
      %v3564 = vpop.f32.mrb[0].mxu0
      %v3565 = vadd.f32 %v2623, %v3564
      %v3566 = vpop.f32.mrb[0].mxu0
      %v3567 = vpop.f32.mrb[0].mxu0
      %v3568 = vadd.f32 %v2628, %v3567
      %v3569 = vpop.f32.mrb[0].mxu0
      %3570 = vmatprep.mubr.bf16.mxu0 %v3179
      %3571 = vmatmul.mubr.bf16.gmra.mrb[0].mxu0 %v3178
      %v3572 = vpop.f32.mrb[0].mxu0
      %v3573 = vadd.f32 %v2633, %v3572
      %v3574 = vpop.f32.mrb[0].mxu0
      %v3575 = vpop.f32.mrb[0].mxu0
      %v3576 = vadd.f32 %v2638, %v3575
      %v3577 = vpop.f32.mrb[0].mxu0
      %3578 = vmatprep.mubr.bf16.mxu0 %v3183
      %3579 = vmatmul.mubr.bf16.gmra.mrb[0].mxu0 %v3182
      %v3580 = vpop.f32.mrb[0].mxu0
      %v3581 = vadd.f32 %v2643, %v3580
      %v3582 = vpop.f32.mrb[0].mxu0
      %v3583 = vpop.f32.mrb[0].mxu0
      %v3584 = vadd.f32 %v2648, %v3583
      %v3585 = vpop.f32.mrb[0].mxu0
      %3586 = vmatprep.mubr.bf16.mxu0 %v3187
      %3587 = vmatmul.mubr.bf16.gmra.mrb[0].mxu0 %v3186
      %v3588 = vpop.f32.mrb[0].mxu0
      %v3589 = vadd.f32 %v2653, %v3588
      %v3590 = vpop.f32.mrb[0].mxu0
      %v3591 = vpop.f32.mrb[0].mxu0
      %v3592 = vadd.f32 %v2658, %v3591
      %v3593 = vpop.f32.mrb[0].mxu0
      %3594 = vmatprep.mubr.bf16.mxu0 %v3191
      %3595 = vmatmul.mubr.bf16.gmra.mrb[0].mxu0 %v3190
      %v3596 = vpop.f32.mrb[0].mxu0
      %v3597 = vadd.f32 %v2663, %v3596
      %v3598 = vpop.f32.mrb[0].mxu0
      %v3599 = vpop.f32.mrb[0].mxu0
      %v3600 = vadd.f32 %v2668, %v3599
      %v3601 = vpop.f32.mrb[0].mxu0
      %3602 = vmatprep.mubr.bf16.mxu0 %v3195
      %3603 = vmatmul.mubr.bf16.gmra.mrb[0].mxu0 %v3194
      %v3604 = vpop.f32.mrb[0].mxu0
      %v3605 = vadd.f32 %v2673, %v3604
      %v3606 = vpop.f32.mrb[0].mxu0
      %v3607 = vpop.f32.mrb[0].mxu0
      %v3608 = vadd.f32 %v2678, %v3607
      %v3609 = vpop.f32.mrb[0].mxu0
      %3610 = vmatprep.mubr.bf16.mxu0 %v3199
      %3611 = vmatmul.mubr.bf16.gmra.mrb[0].mxu0 %v3198
      %v3612 = vpop.f32.mrb[0].mxu0
      %v3613 = vadd.f32 %v2683, %v3612
      %v3614 = vpop.f32.mrb[0].mxu0
      %v3615 = vpop.f32.mrb[0].mxu0
      %v3616 = vadd.f32 %v2688, %v3615
      %v3617 = vpop.f32.mrb[0].mxu0
      %3618 = vdwg.mxu0
      %3619 = vmatprep.subr.bf16.mxu0 0
      %3620 = vmatpush1.bf16.msra.mxu0 %v2290
      %3621 = vmatprep.subr.bf16.mxu0 0
      %3622 = vmatpush1.bf16.msra.mxu0 %v2291
      %3623 = vmatprep.subr.bf16.mxu0 0
      %3624 = vmatpush1.bf16.msra.mxu0 %v2292
      %3625 = vmatprep.subr.bf16.mxu0 0
      %3626 = vmatpush1.bf16.msra.mxu0 %v2293
      %3627 = vmatprep.subr.bf16.mxu0 0
      %3628 = vmatpush1.bf16.msra.mxu0 %v2294
      %3629 = vmatprep.subr.bf16.mxu0 0
      %3630 = vmatpush1.bf16.msra.mxu0 %v2295
      %3631 = vmatprep.subr.bf16.mxu0 0
      %3632 = vmatpush1.bf16.msra.mxu0 %v2296
      %3633 = vmatprep.subr.bf16.mxu0 0
      %3634 = vmatpush1.bf16.msra.mxu0 %v2297
      %3635 = vmatprep.subr.bf16.mxu0 0
      %3636 = vmatpush1.bf16.msra.mxu0 %v2298
      %3637 = vmatprep.subr.bf16.mxu0 0
      %3638 = vmatpush1.bf16.msra.mxu0 %v2299
      %3639 = vmatprep.subr.bf16.mxu0 0
      %3640 = vmatpush1.bf16.msra.mxu0 %v2300
      %3641 = vmatprep.subr.bf16.mxu0 0
      %3642 = vmatpush1.bf16.msra.mxu0 %v2301
      %3643 = vmatprep.subr.bf16.mxu0 0
      %3644 = vmatpush1.bf16.msra.mxu0 %v2302
      %3645 = vmatprep.subr.bf16.mxu0 0
      %3646 = vmatpush1.bf16.msra.mxu0 %v2303
      %3647 = vmatprep.subr.bf16.mxu0 0
      %3648 = vmatpush1.bf16.msra.mxu0 %v2304
      %3649 = vmatprep.subr.bf16.mxu0 0
      %3650 = vmatpush1.bf16.msra.mxu0 %v2305
      %3651 = vmatprep.mubr.bf16.mxu0 %v3077
      %3652 = vmatmul.mubr.bf16.gmra.mrb[0].mxu0 %v3076
      %v3653 = vpop.f32.mrb[0].mxu0
      %v3654 = vadd.f32 %v3365, %v3653
      %v3655 = vpop.f32.mrb[0].mxu0
      %v3656 = vpop.f32.mrb[0].mxu0
      %v3657 = vadd.f32 %v3368, %v3656
      %v3658 = vpop.f32.mrb[0].mxu0
      %3659 = vmatprep.mubr.bf16.mxu0 %v3081
      %3660 = vmatmul.mubr.bf16.gmra.mrb[0].mxu0 %v3080
      %v3661 = vpop.f32.mrb[0].mxu0
      %v3662 = vadd.f32 %v3373, %v3661
      %v3663 = vpop.f32.mrb[0].mxu0
      %v3664 = vpop.f32.mrb[0].mxu0
      %v3665 = vadd.f32 %v3376, %v3664
      %v3666 = vpop.f32.mrb[0].mxu0
      %3667 = vmatprep.mubr.bf16.mxu0 %v3085
      %3668 = vmatmul.mubr.bf16.gmra.mrb[0].mxu0 %v3084
      %v3669 = vpop.f32.mrb[0].mxu0
      %v3670 = vadd.f32 %v3381, %v3669
      %v3671 = vpop.f32.mrb[0].mxu0
      %v3672 = vpop.f32.mrb[0].mxu0
      %v3673 = vadd.f32 %v3384, %v3672
      %v3674 = vpop.f32.mrb[0].mxu0
      %3675 = vmatprep.mubr.bf16.mxu0 %v3089
      %3676 = vmatmul.mubr.bf16.gmra.mrb[0].mxu0 %v3088
      %v3677 = vpop.f32.mrb[0].mxu0
      %v3678 = vadd.f32 %v3389, %v3677
      %v3679 = vpop.f32.mrb[0].mxu0
      %v3680 = vpop.f32.mrb[0].mxu0
      %v3681 = vadd.f32 %v3392, %v3680
      %v3682 = vpop.f32.mrb[0].mxu0
      %3683 = vmatprep.mubr.bf16.mxu0 %v3093
      %3684 = vmatmul.mubr.bf16.gmra.mrb[0].mxu0 %v3092
      %v3685 = vpop.f32.mrb[0].mxu0
      %v3686 = vadd.f32 %v3397, %v3685
      %v3687 = vpop.f32.mrb[0].mxu0
      %v3688 = vpop.f32.mrb[0].mxu0
      %v3689 = vadd.f32 %v3400, %v3688
      %v3690 = vpop.f32.mrb[0].mxu0
      %3691 = vmatprep.mubr.bf16.mxu0 %v3097
      %3692 = vmatmul.mubr.bf16.gmra.mrb[0].mxu0 %v3096
      %v3693 = vpop.f32.mrb[0].mxu0
      %v3694 = vadd.f32 %v3405, %v3693
      %v3695 = vpop.f32.mrb[0].mxu0
      %v3696 = vpop.f32.mrb[0].mxu0
      %v3697 = vadd.f32 %v3408, %v3696
      %v3698 = vpop.f32.mrb[0].mxu0
      %3699 = vmatprep.mubr.bf16.mxu0 %v3101
      %3700 = vmatmul.mubr.bf16.gmra.mrb[0].mxu0 %v3100
      %v3701 = vpop.f32.mrb[0].mxu0
      %v3702 = vadd.f32 %v3413, %v3701
      %v3703 = vpop.f32.mrb[0].mxu0
      %v3704 = vpop.f32.mrb[0].mxu0
      %v3705 = vadd.f32 %v3416, %v3704
      %v3706 = vpop.f32.mrb[0].mxu0
      %3707 = vmatprep.mubr.bf16.mxu0 %v3105
      %3708 = vmatmul.mubr.bf16.gmra.mrb[0].mxu0 %v3104
      %v3709 = vpop.f32.mrb[0].mxu0
      %v3710 = vadd.f32 %v3421, %v3709
      %v3711 = vpop.f32.mrb[0].mxu0
      %v3712 = vpop.f32.mrb[0].mxu0
      %v3713 = vadd.f32 %v3424, %v3712
      %v3714 = vpop.f32.mrb[0].mxu0
      %3715 = vmatprep.mubr.bf16.mxu0 %v3109
      %3716 = vmatmul.mubr.bf16.gmra.mrb[0].mxu0 %v3108
      %v3717 = vpop.f32.mrb[0].mxu0
      %v3718 = vadd.f32 %v3429, %v3717
      %v3719 = vpop.f32.mrb[0].mxu0
      %v3720 = vpop.f32.mrb[0].mxu0
      %v3721 = vadd.f32 %v3432, %v3720
      %v3722 = vpop.f32.mrb[0].mxu0
      %3723 = vmatprep.mubr.bf16.mxu0 %v3113
      %3724 = vmatmul.mubr.bf16.gmra.mrb[0].mxu0 %v3112
      %v3725 = vpop.f32.mrb[0].mxu0
      %v3726 = vadd.f32 %v3437, %v3725
      %v3727 = vpop.f32.mrb[0].mxu0
      %v3728 = vpop.f32.mrb[0].mxu0
      %v3729 = vadd.f32 %v3440, %v3728
      %v3730 = vpop.f32.mrb[0].mxu0
      %3731 = vmatprep.mubr.bf16.mxu0 %v3117
      %3732 = vmatmul.mubr.bf16.gmra.mrb[0].mxu0 %v3116
      %v3733 = vpop.f32.mrb[0].mxu0
      %v3734 = vadd.f32 %v3445, %v3733
      %v3735 = vpop.f32.mrb[0].mxu0
      %v3736 = vpop.f32.mrb[0].mxu0
      %v3737 = vadd.f32 %v3448, %v3736
      %v3738 = vpop.f32.mrb[0].mxu0
      %3739 = vmatprep.mubr.bf16.mxu0 %v3121
      %3740 = vmatmul.mubr.bf16.gmra.mrb[0].mxu0 %v3120
      %v3741 = vpop.f32.mrb[0].mxu0
      %v3742 = vadd.f32 %v3453, %v3741
      %v3743 = vpop.f32.mrb[0].mxu0
      %v3744 = vpop.f32.mrb[0].mxu0
      %v3745 = vadd.f32 %v3456, %v3744
      %v3746 = vpop.f32.mrb[0].mxu0
      %3747 = vmatprep.mubr.bf16.mxu0 %v3125
      %3748 = vmatmul.mubr.bf16.gmra.mrb[0].mxu0 %v3124
      %v3749 = vpop.f32.mrb[0].mxu0
      %v3750 = vadd.f32 %v3461, %v3749
      %v3751 = vpop.f32.mrb[0].mxu0
      %v3752 = vpop.f32.mrb[0].mxu0
      %v3753 = vadd.f32 %v3464, %v3752
      %v3754 = vpop.f32.mrb[0].mxu0
      %3755 = vmatprep.mubr.bf16.mxu0 %v3129
      %3756 = vmatmul.mubr.bf16.gmra.mrb[0].mxu0 %v3128
      %v3757 = vpop.f32.mrb[0].mxu0
      %v3758 = vadd.f32 %v3469, %v3757
      %v3759 = vpop.f32.mrb[0].mxu0
      %v3760 = vpop.f32.mrb[0].mxu0
      %v3761 = vadd.f32 %v3472, %v3760
      %v3762 = vpop.f32.mrb[0].mxu0
      %3763 = vmatprep.mubr.bf16.mxu0 %v3133
      %3764 = vmatmul.mubr.bf16.gmra.mrb[0].mxu0 %v3132
      %v3765 = vpop.f32.mrb[0].mxu0
      %v3766 = vadd.f32 %v3477, %v3765
      %v3767 = vpop.f32.mrb[0].mxu0
      %v3768 = vpop.f32.mrb[0].mxu0
      %v3769 = vadd.f32 %v3480, %v3768
      %v3770 = vpop.f32.mrb[0].mxu0
      %3771 = vmatprep.mubr.bf16.mxu0 %v3137
      %3772 = vmatmul.mubr.bf16.gmra.mrb[0].mxu0 %v3136
      %v3773 = vpop.f32.mrb[0].mxu0
      %v3774 = vadd.f32 %v3485, %v3773
      %v3775 = vpop.f32.mrb[0].mxu0
      %v3776 = vpop.f32.mrb[0].mxu0
      %v3777 = vadd.f32 %v3488, %v3776
      %v3778 = vpop.f32.mrb[0].mxu0
      %3779 = vmatprep.mubr.bf16.mxu0 %v3141
      %3780 = vmatmul.mubr.bf16.gmra.mrb[0].mxu0 %v3140
      %v3781 = vpop.f32.mrb[0].mxu0
      %v3782 = vadd.f32 %v3493, %v3781
      %v3783 = vpop.f32.mrb[0].mxu0
      %v3784 = vpop.f32.mrb[0].mxu0
      %v3785 = vadd.f32 %v3496, %v3784
      %v3786 = vpop.f32.mrb[0].mxu0
      %3787 = vmatprep.mubr.bf16.mxu0 %v3145
      %3788 = vmatmul.mubr.bf16.gmra.mrb[0].mxu0 %v3144
      %v3789 = vpop.f32.mrb[0].mxu0
      %v3790 = vadd.f32 %v3501, %v3789
      %v3791 = vpop.f32.mrb[0].mxu0
      %v3792 = vpop.f32.mrb[0].mxu0
      %v3793 = vadd.f32 %v3504, %v3792
      %v3794 = vpop.f32.mrb[0].mxu0
      %3795 = vmatprep.mubr.bf16.mxu0 %v3149
      %3796 = vmatmul.mubr.bf16.gmra.mrb[0].mxu0 %v3148
      %v3797 = vpop.f32.mrb[0].mxu0
      %v3798 = vadd.f32 %v3509, %v3797
      %v3799 = vpop.f32.mrb[0].mxu0
      %v3800 = vpop.f32.mrb[0].mxu0
      %v3801 = vadd.f32 %v3512, %v3800
      %v3802 = vpop.f32.mrb[0].mxu0
      %3803 = vmatprep.mubr.bf16.mxu0 %v3153
      %3804 = vmatmul.mubr.bf16.gmra.mrb[0].mxu0 %v3152
      %v3805 = vpop.f32.mrb[0].mxu0
      %v3806 = vadd.f32 %v3517, %v3805
      %v3807 = vpop.f32.mrb[0].mxu0
      %v3808 = vpop.f32.mrb[0].mxu0
      %v3809 = vadd.f32 %v3520, %v3808
      %v3810 = vpop.f32.mrb[0].mxu0
      %3811 = vmatprep.mubr.bf16.mxu0 %v3157
      %3812 = vmatmul.mubr.bf16.gmra.mrb[0].mxu0 %v3156
      %v3813 = vpop.f32.mrb[0].mxu0
      %v3814 = vadd.f32 %v3525, %v3813
      %v3815 = vpop.f32.mrb[0].mxu0
      %v3816 = vpop.f32.mrb[0].mxu0
      %v3817 = vadd.f32 %v3528, %v3816
      %v3818 = vpop.f32.mrb[0].mxu0
      %3819 = vmatprep.mubr.bf16.mxu0 %v3161
      %3820 = vmatmul.mubr.bf16.gmra.mrb[0].mxu0 %v3160
      %v3821 = vpop.f32.mrb[0].mxu0
      %v3822 = vadd.f32 %v3533, %v3821
      %v3823 = vpop.f32.mrb[0].mxu0
      %v3824 = vpop.f32.mrb[0].mxu0
      %v3825 = vadd.f32 %v3536, %v3824
      %v3826 = vpop.f32.mrb[0].mxu0
      %3827 = vmatprep.mubr.bf16.mxu0 %v3165
      %3828 = vmatmul.mubr.bf16.gmra.mrb[0].mxu0 %v3164
      %v3829 = vpop.f32.mrb[0].mxu0
      %v3830 = vadd.f32 %v3541, %v3829
      %v3831 = vpop.f32.mrb[0].mxu0
      %v3832 = vpop.f32.mrb[0].mxu0
      %v3833 = vadd.f32 %v3544, %v3832
      %v3834 = vpop.f32.mrb[0].mxu0
      %3835 = vmatprep.mubr.bf16.mxu0 %v3169
      %3836 = vmatmul.mubr.bf16.gmra.mrb[0].mxu0 %v3168
      %v3837 = vpop.f32.mrb[0].mxu0
      %v3838 = vadd.f32 %v3549, %v3837
      %v3839 = vpop.f32.mrb[0].mxu0
      %v3840 = vpop.f32.mrb[0].mxu0
      %v3841 = vadd.f32 %v3552, %v3840
      %v3842 = vpop.f32.mrb[0].mxu0
      %3843 = vmatprep.mubr.bf16.mxu0 %v3173
      %3844 = vmatmul.mubr.bf16.gmra.mrb[0].mxu0 %v3172
      %v3845 = vpop.f32.mrb[0].mxu0
      %v3846 = vadd.f32 %v3557, %v3845
      %v3847 = vpop.f32.mrb[0].mxu0
      %v3848 = vpop.f32.mrb[0].mxu0
      %v3849 = vadd.f32 %v3560, %v3848
      %v3850 = vpop.f32.mrb[0].mxu0
      %3851 = vmatprep.mubr.bf16.mxu0 %v3177
      %3852 = vmatmul.mubr.bf16.gmra.mrb[0].mxu0 %v3176
      %v3853 = vpop.f32.mrb[0].mxu0
      %v3854 = vadd.f32 %v3565, %v3853
      %v3855 = vpop.f32.mrb[0].mxu0
      %v3856 = vpop.f32.mrb[0].mxu0
      %v3857 = vadd.f32 %v3568, %v3856
      %v3858 = vpop.f32.mrb[0].mxu0
      %3859 = vmatprep.mubr.bf16.mxu0 %v3181
      %3860 = vmatmul.mubr.bf16.gmra.mrb[0].mxu0 %v3180
      %v3861 = vpop.f32.mrb[0].mxu0
      %v3862 = vadd.f32 %v3573, %v3861
      %v3863 = vpop.f32.mrb[0].mxu0
      %v3864 = vpop.f32.mrb[0].mxu0
      %v3865 = vadd.f32 %v3576, %v3864
      %v3866 = vpop.f32.mrb[0].mxu0
      %3867 = vmatprep.mubr.bf16.mxu0 %v3185
      %3868 = vmatmul.mubr.bf16.gmra.mrb[0].mxu0 %v3184
      %v3869 = vpop.f32.mrb[0].mxu0
      %v3870 = vadd.f32 %v3581, %v3869
      %v3871 = vpop.f32.mrb[0].mxu0
      %v3872 = vpop.f32.mrb[0].mxu0
      %v3873 = vadd.f32 %v3584, %v3872
      %v3874 = vpop.f32.mrb[0].mxu0
      %3875 = vmatprep.mubr.bf16.mxu0 %v3189
      %3876 = vmatmul.mubr.bf16.gmra.mrb[0].mxu0 %v3188
      %v3877 = vpop.f32.mrb[0].mxu0
      %v3878 = vadd.f32 %v3589, %v3877
      %v3879 = vpop.f32.mrb[0].mxu0
      %v3880 = vpop.f32.mrb[0].mxu0
      %v3881 = vadd.f32 %v3592, %v3880
      %v3882 = vpop.f32.mrb[0].mxu0
      %3883 = vmatprep.mubr.bf16.mxu0 %v3193
      %3884 = vmatmul.mubr.bf16.gmra.mrb[0].mxu0 %v3192
      %v3885 = vpop.f32.mrb[0].mxu0
      %v3886 = vadd.f32 %v3597, %v3885
      %v3887 = vpop.f32.mrb[0].mxu0
      %v3888 = vpop.f32.mrb[0].mxu0
      %v3889 = vadd.f32 %v3600, %v3888
      %v3890 = vpop.f32.mrb[0].mxu0
      %3891 = vmatprep.mubr.bf16.mxu0 %v3197
      %3892 = vmatmul.mubr.bf16.gmra.mrb[0].mxu0 %v3196
      %v3893 = vpop.f32.mrb[0].mxu0
      %v3894 = vadd.f32 %v3605, %v3893
      %v3895 = vpop.f32.mrb[0].mxu0
      %v3896 = vpop.f32.mrb[0].mxu0
      %v3897 = vadd.f32 %v3608, %v3896
      %v3898 = vpop.f32.mrb[0].mxu0
      %3899 = vmatprep.mubr.bf16.mxu0 %v3201
      %3900 = vmatmul.mubr.bf16.gmra.mrb[0].mxu0 %v3200
      %v3901 = vpop.f32.mrb[0].mxu0
      %v3902 = vadd.f32 %v3613, %v3901
      %v3903 = vpop.f32.mrb[0].mxu0
      %v3904 = vpop.f32.mrb[0].mxu0
      %v3905 = vadd.f32 %v3616, %v3904
      %v3906 = vpop.f32.mrb[0].mxu0
      %3907 = vdwg.mxu0
      %v3908 = vmax.f32 %v3654, 0.0
      %v3909 = vmax.f32 %v3657, 0.0
      %v3910 = vmax.f32 %v3662, 0.0
      %v3911 = vmax.f32 %v3665, 0.0
      %v3912 = vmax.f32 %v3670, 0.0
      %v3913 = vmax.f32 %v3673, 0.0
      %v3914 = vmax.f32 %v3678, 0.0
      %v3915 = vmax.f32 %v3681, 0.0
      %v3916 = vmax.f32 %v3686, 0.0
      %v3917 = vmax.f32 %v3689, 0.0
      %v3918 = vmax.f32 %v3694, 0.0
      %v3919 = vmax.f32 %v3697, 0.0
      %v3920 = vmax.f32 %v3702, 0.0
      %v3921 = vmax.f32 %v3705, 0.0
      %v3922 = vmax.f32 %v3710, 0.0
      %v3923 = vmax.f32 %v3713, 0.0
      %v3924 = vmax.f32 %v3718, 0.0
      %v3925 = vmax.f32 %v3721, 0.0
      %v3926 = vmax.f32 %v3726, 0.0
      %v3927 = vmax.f32 %v3729, 0.0
      %v3928 = vmax.f32 %v3734, 0.0
      %v3929 = vmax.f32 %v3737, 0.0
      %v3930 = vmax.f32 %v3742, 0.0
      %v3931 = vmax.f32 %v3745, 0.0
      %v3932 = vmax.f32 %v3750, 0.0
      %v3933 = vmax.f32 %v3753, 0.0
      %v3934 = vmax.f32 %v3758, 0.0
      %v3935 = vmax.f32 %v3761, 0.0
      %v3936 = vmax.f32 %v3766, 0.0
      %v3937 = vmax.f32 %v3769, 0.0
      %v3938 = vmax.f32 %v3774, 0.0
      %v3939 = vmax.f32 %v3777, 0.0
      %v3940 = vmax.f32 %v3782, 0.0
      %v3941 = vmax.f32 %v3785, 0.0
      %v3942 = vmax.f32 %v3790, 0.0
      %v3943 = vmax.f32 %v3793, 0.0
      %v3944 = vmax.f32 %v3798, 0.0
      %v3945 = vmax.f32 %v3801, 0.0
      %v3946 = vmax.f32 %v3806, 0.0
      %v3947 = vmax.f32 %v3809, 0.0
      %v3948 = vmax.f32 %v3814, 0.0
      %v3949 = vmax.f32 %v3817, 0.0
      %v3950 = vmax.f32 %v3822, 0.0
      %v3951 = vmax.f32 %v3825, 0.0
      %v3952 = vmax.f32 %v3830, 0.0
      %v3953 = vmax.f32 %v3833, 0.0
      %v3954 = vmax.f32 %v3838, 0.0
      %v3955 = vmax.f32 %v3841, 0.0
      %v3956 = vmax.f32 %v3846, 0.0
      %v3957 = vmax.f32 %v3849, 0.0
      %v3958 = vmax.f32 %v3854, 0.0
      %v3959 = vmax.f32 %v3857, 0.0
      %v3960 = vmax.f32 %v3862, 0.0
      %v3961 = vmax.f32 %v3865, 0.0
      %v3962 = vmax.f32 %v3870, 0.0
      %v3963 = vmax.f32 %v3873, 0.0
      %v3964 = vmax.f32 %v3878, 0.0
      %v3965 = vmax.f32 %v3881, 0.0
      %v3966 = vmax.f32 %v3886, 0.0
      %v3967 = vmax.f32 %v3889, 0.0
      %v3968 = vmax.f32 %v3894, 0.0
      %v3969 = vmax.f32 %v3897, 0.0
      %v3970 = vmax.f32 %v3902, 0.0
      %v3971 = vmax.f32 %v3905, 0.0
      %v3972 = vld [vmem:[%s6] sm:$0xff]
      %v3973 = vld [vmem:[%s6 + $0x8] sm:$0xff]
      %v3974 = vld [vmem:[%s6 + $0x10] sm:$0xff]
      %v3975 = vld [vmem:[%s6 + $0x18] sm:$0xff]
      %v3976 = vld [vmem:[%s6 + $0x20] sm:$0xff]
      %v3977 = vld [vmem:[%s6 + $0x28] sm:$0xff]
      %v3978 = vld [vmem:[%s6 + $0x30] sm:$0xff]
      %v3979 = vld [vmem:[%s6 + $0x38] sm:$0xff]
      %v3980 = vld [vmem:[%s6 + $0x40] sm:$0xff]
      %v3981 = vld [vmem:[%s6 + $0x48] sm:$0xff]
      %v3982 = vld [vmem:[%s6 + $0x50] sm:$0xff]
      %v3983 = vld [vmem:[%s6 + $0x58] sm:$0xff]
      %v3984 = vld [vmem:[%s6 + $0x60] sm:$0xff]
      %v3985 = vld [vmem:[%s6 + $0x68] sm:$0xff]
      %v3986 = vld [vmem:[%s6 + $0x70] sm:$0xff]
      %v3987 = vld [vmem:[%s6 + $0x78] sm:$0xff]
      %v3988 = vld [vmem:[%s6 + $0x80] sm:$0xff]
      %v3989 = vld [vmem:[%s6 + $0x88] sm:$0xff]
      %v3990 = vld [vmem:[%s6 + $0x90] sm:$0xff]
      %v3991 = vld [vmem:[%s6 + $0x98] sm:$0xff]
      %v3992 = vld [vmem:[%s6 + $0xa0] sm:$0xff]
      %v3993 = vld [vmem:[%s6 + $0xa8] sm:$0xff]
      %v3994 = vld [vmem:[%s6 + $0xb0] sm:$0xff]
      %v3995 = vld [vmem:[%s6 + $0xb8] sm:$0xff]
      %v3996 = vld [vmem:[%s6 + $0xc0] sm:$0xff]
      %v3997 = vld [vmem:[%s6 + $0xc8] sm:$0xff]
      %v3998 = vld [vmem:[%s6 + $0xd0] sm:$0xff]
      %v3999 = vld [vmem:[%s6 + $0xd8] sm:$0xff]
      %v4000 = vld [vmem:[%s6 + $0xe0] sm:$0xff]
      %v4001 = vld [vmem:[%s6 + $0xe8] sm:$0xff]
      %v4002 = vld [vmem:[%s6 + $0xf0] sm:$0xff]
      %v4003 = vld [vmem:[%s6 + $0xf8] sm:$0xff]
      %v4004 = vld [vmem:[%s6 + $0x100] sm:$0xff]
      %v4005 = vld [vmem:[%s6 + $0x108] sm:$0xff]
      %v4006 = vld [vmem:[%s6 + $0x110] sm:$0xff]
      %v4007 = vld [vmem:[%s6 + $0x118] sm:$0xff]
      %v4008 = vld [vmem:[%s6 + $0x120] sm:$0xff]
      %v4009 = vld [vmem:[%s6 + $0x128] sm:$0xff]
      %v4010 = vld [vmem:[%s6 + $0x130] sm:$0xff]
      %v4011 = vld [vmem:[%s6 + $0x138] sm:$0xff]
      %v4012 = vld [vmem:[%s6 + $0x140] sm:$0xff]
      %v4013 = vld [vmem:[%s6 + $0x148] sm:$0xff]
      %v4014 = vld [vmem:[%s6 + $0x150] sm:$0xff]
      %v4015 = vld [vmem:[%s6 + $0x158] sm:$0xff]
      %v4016 = vld [vmem:[%s6 + $0x160] sm:$0xff]
      %v4017 = vld [vmem:[%s6 + $0x168] sm:$0xff]
      %v4018 = vld [vmem:[%s6 + $0x170] sm:$0xff]
      %v4019 = vld [vmem:[%s6 + $0x178] sm:$0xff]
      %v4020 = vld [vmem:[%s6 + $0x180] sm:$0xff]
      %v4021 = vld [vmem:[%s6 + $0x188] sm:$0xff]
      %v4022 = vld [vmem:[%s6 + $0x190] sm:$0xff]
      %v4023 = vld [vmem:[%s6 + $0x198] sm:$0xff]
      %v4024 = vld [vmem:[%s6 + $0x1a0] sm:$0xff]
      %v4025 = vld [vmem:[%s6 + $0x1a8] sm:$0xff]
      %v4026 = vld [vmem:[%s6 + $0x1b0] sm:$0xff]
      %v4027 = vld [vmem:[%s6 + $0x1b8] sm:$0xff]
      %v4028 = vld [vmem:[%s6 + $0x1c0] sm:$0xff]
      %v4029 = vld [vmem:[%s6 + $0x1c8] sm:$0xff]
      %v4030 = vld [vmem:[%s6 + $0x1d0] sm:$0xff]
      %v4031 = vld [vmem:[%s6 + $0x1d8] sm:$0xff]
      %v4032 = vld [vmem:[%s6 + $0x1e0] sm:$0xff]
      %v4033 = vld [vmem:[%s6 + $0x1e8] sm:$0xff]
      %v4034 = vld [vmem:[%s6 + $0x1f0] sm:$0xff]
      %v4035 = vld [vmem:[%s6 + $0x1f8] sm:$0xff]
      %v4036 = vld [vmem:[%s6 + $0x200] sm:$0xff]
      %v4037 = vld [vmem:[%s6 + $0x208] sm:$0xff]
      %v4038 = vld [vmem:[%s6 + $0x210] sm:$0xff]
      %v4039 = vld [vmem:[%s6 + $0x218] sm:$0xff]
      %v4040 = vld [vmem:[%s6 + $0x220] sm:$0xff]
      %v4041 = vld [vmem:[%s6 + $0x228] sm:$0xff]
      %v4042 = vld [vmem:[%s6 + $0x230] sm:$0xff]
      %v4043 = vld [vmem:[%s6 + $0x238] sm:$0xff]
      %v4044 = vld [vmem:[%s6 + $0x240] sm:$0xff]
      %v4045 = vld [vmem:[%s6 + $0x248] sm:$0xff]
      %v4046 = vld [vmem:[%s6 + $0x250] sm:$0xff]
      %v4047 = vld [vmem:[%s6 + $0x258] sm:$0xff]
      %v4048 = vld [vmem:[%s6 + $0x260] sm:$0xff]
      %v4049 = vld [vmem:[%s6 + $0x268] sm:$0xff]
      %v4050 = vld [vmem:[%s6 + $0x270] sm:$0xff]
      %v4051 = vld [vmem:[%s6 + $0x278] sm:$0xff]
      %v4052 = vld [vmem:[%s6 + $0x280] sm:$0xff]
      %v4053 = vld [vmem:[%s6 + $0x288] sm:$0xff]
      %v4054 = vld [vmem:[%s6 + $0x290] sm:$0xff]
      %v4055 = vld [vmem:[%s6 + $0x298] sm:$0xff]
      %v4056 = vld [vmem:[%s6 + $0x2a0] sm:$0xff]
      %v4057 = vld [vmem:[%s6 + $0x2a8] sm:$0xff]
      %v4058 = vld [vmem:[%s6 + $0x2b0] sm:$0xff]
      %v4059 = vld [vmem:[%s6 + $0x2b8] sm:$0xff]
      %v4060 = vld [vmem:[%s6 + $0x2c0] sm:$0xff]
      %v4061 = vld [vmem:[%s6 + $0x2c8] sm:$0xff]
      %v4062 = vld [vmem:[%s6 + $0x2d0] sm:$0xff]
      %v4063 = vld [vmem:[%s6 + $0x2d8] sm:$0xff]
      %v4064 = vld [vmem:[%s6 + $0x2e0] sm:$0xff]
      %v4065 = vld [vmem:[%s6 + $0x2e8] sm:$0xff]
      %v4066 = vld [vmem:[%s6 + $0x2f0] sm:$0xff]
      %v4067 = vld [vmem:[%s6 + $0x2f8] sm:$0xff]
      %v4068 = vld [vmem:[%s6 + $0x300] sm:$0xff]
      %v4069 = vld [vmem:[%s6 + $0x308] sm:$0xff]
      %v4070 = vld [vmem:[%s6 + $0x310] sm:$0xff]
      %v4071 = vld [vmem:[%s6 + $0x318] sm:$0xff]
      %v4072 = vld [vmem:[%s6 + $0x320] sm:$0xff]
      %v4073 = vld [vmem:[%s6 + $0x328] sm:$0xff]
      %v4074 = vld [vmem:[%s6 + $0x330] sm:$0xff]
      %v4075 = vld [vmem:[%s6 + $0x338] sm:$0xff]
      %v4076 = vld [vmem:[%s6 + $0x340] sm:$0xff]
      %v4077 = vld [vmem:[%s6 + $0x348] sm:$0xff]
      %v4078 = vld [vmem:[%s6 + $0x350] sm:$0xff]
      %v4079 = vld [vmem:[%s6 + $0x358] sm:$0xff]
      %v4080 = vld [vmem:[%s6 + $0x360] sm:$0xff]
      %v4081 = vld [vmem:[%s6 + $0x368] sm:$0xff]
      %v4082 = vld [vmem:[%s6 + $0x370] sm:$0xff]
      %v4083 = vld [vmem:[%s6 + $0x378] sm:$0xff]
      %v4084 = vld [vmem:[%s6 + $0x380] sm:$0xff]
      %v4085 = vld [vmem:[%s6 + $0x388] sm:$0xff]
      %v4086 = vld [vmem:[%s6 + $0x390] sm:$0xff]
      %v4087 = vld [vmem:[%s6 + $0x398] sm:$0xff]
      %v4088 = vld [vmem:[%s6 + $0x3a0] sm:$0xff]
      %v4089 = vld [vmem:[%s6 + $0x3a8] sm:$0xff]
      %v4090 = vld [vmem:[%s6 + $0x3b0] sm:$0xff]
      %v4091 = vld [vmem:[%s6 + $0x3b8] sm:$0xff]
      %v4092 = vld [vmem:[%s6 + $0x3c0] sm:$0xff]
      %v4093 = vld [vmem:[%s6 + $0x3c8] sm:$0xff]
      %v4094 = vld [vmem:[%s6 + $0x3d0] sm:$0xff]
      %v4095 = vld [vmem:[%s6 + $0x3d8] sm:$0xff]
      %v4096 = vld [vmem:[%s6 + $0x3e0] sm:$0xff]
      %v4097 = vld [vmem:[%s6 + $0x3e8] sm:$0xff]
      %v4098 = vld [vmem:[%s6 + $0x3f0] sm:$0xff]
      %v4099 = vld [vmem:[%s6 + $0x3f8] sm:$0xff]
      %v4100 = vld [vmem:[%s6 + $0x400] sm:$0xff]
      %v4101 = vld [vmem:[%s6 + $0x408] sm:$0xff]
      %v4102 = vld [vmem:[%s6 + $0x410] sm:$0xff]
      %v4103 = vld [vmem:[%s6 + $0x418] sm:$0xff]
      %v4104 = vld [vmem:[%s6 + $0x420] sm:$0xff]
      %v4105 = vld [vmem:[%s6 + $0x428] sm:$0xff]
      %v4106 = vld [vmem:[%s6 + $0x430] sm:$0xff]
      %v4107 = vld [vmem:[%s6 + $0x438] sm:$0xff]
      %v4108 = vld [vmem:[%s6 + $0x440] sm:$0xff]
      %v4109 = vld [vmem:[%s6 + $0x448] sm:$0xff]
      %v4110 = vld [vmem:[%s6 + $0x450] sm:$0xff]
      %v4111 = vld [vmem:[%s6 + $0x458] sm:$0xff]
      %v4112 = vld [vmem:[%s6 + $0x460] sm:$0xff]
      %v4113 = vld [vmem:[%s6 + $0x468] sm:$0xff]
      %v4114 = vld [vmem:[%s6 + $0x470] sm:$0xff]
      %v4115 = vld [vmem:[%s6 + $0x478] sm:$0xff]
      %v4116 = vld [vmem:[%s6 + $0x480] sm:$0xff]
      %v4117 = vld [vmem:[%s6 + $0x488] sm:$0xff]
      %v4118 = vld [vmem:[%s6 + $0x490] sm:$0xff]
      %v4119 = vld [vmem:[%s6 + $0x498] sm:$0xff]
      %v4120 = vld [vmem:[%s6 + $0x4a0] sm:$0xff]
      %v4121 = vld [vmem:[%s6 + $0x4a8] sm:$0xff]
      %v4122 = vld [vmem:[%s6 + $0x4b0] sm:$0xff]
      %v4123 = vld [vmem:[%s6 + $0x4b8] sm:$0xff]
      %v4124 = vld [vmem:[%s6 + $0x4c0] sm:$0xff]
      %v4125 = vld [vmem:[%s6 + $0x4c8] sm:$0xff]
      %v4126 = vld [vmem:[%s6 + $0x4d0] sm:$0xff]
      %v4127 = vld [vmem:[%s6 + $0x4d8] sm:$0xff]
      %v4128 = vld [vmem:[%s6 + $0x4e0] sm:$0xff]
      %v4129 = vld [vmem:[%s6 + $0x4e8] sm:$0xff]
      %v4130 = vld [vmem:[%s6 + $0x4f0] sm:$0xff]
      %v4131 = vld [vmem:[%s6 + $0x4f8] sm:$0xff]
      %v4132 = vld [vmem:[%s6 + $0x500] sm:$0xff]
      %v4133 = vld [vmem:[%s6 + $0x508] sm:$0xff]
      %v4134 = vld [vmem:[%s6 + $0x510] sm:$0xff]
      %v4135 = vld [vmem:[%s6 + $0x518] sm:$0xff]
      %v4136 = vld [vmem:[%s6 + $0x520] sm:$0xff]
      %v4137 = vld [vmem:[%s6 + $0x528] sm:$0xff]
      %v4138 = vld [vmem:[%s6 + $0x530] sm:$0xff]
      %v4139 = vld [vmem:[%s6 + $0x538] sm:$0xff]
      %v4140 = vld [vmem:[%s6 + $0x540] sm:$0xff]
      %v4141 = vld [vmem:[%s6 + $0x548] sm:$0xff]
      %v4142 = vld [vmem:[%s6 + $0x550] sm:$0xff]
      %v4143 = vld [vmem:[%s6 + $0x558] sm:$0xff]
      %v4144 = vld [vmem:[%s6 + $0x560] sm:$0xff]
      %v4145 = vld [vmem:[%s6 + $0x568] sm:$0xff]
      %v4146 = vld [vmem:[%s6 + $0x570] sm:$0xff]
      %v4147 = vld [vmem:[%s6 + $0x578] sm:$0xff]
      %v4148 = vld [vmem:[%s6 + $0x580] sm:$0xff]
      %v4149 = vld [vmem:[%s6 + $0x588] sm:$0xff]
      %v4150 = vld [vmem:[%s6 + $0x590] sm:$0xff]
      %v4151 = vld [vmem:[%s6 + $0x598] sm:$0xff]
      %v4152 = vld [vmem:[%s6 + $0x5a0] sm:$0xff]
      %v4153 = vld [vmem:[%s6 + $0x5a8] sm:$0xff]
      %v4154 = vld [vmem:[%s6 + $0x5b0] sm:$0xff]
      %v4155 = vld [vmem:[%s6 + $0x5b8] sm:$0xff]
      %v4156 = vld [vmem:[%s6 + $0x5c0] sm:$0xff]
      %v4157 = vld [vmem:[%s6 + $0x5c8] sm:$0xff]
      %v4158 = vld [vmem:[%s6 + $0x5d0] sm:$0xff]
      %v4159 = vld [vmem:[%s6 + $0x5d8] sm:$0xff]
      %v4160 = vld [vmem:[%s6 + $0x5e0] sm:$0xff]
      %v4161 = vld [vmem:[%s6 + $0x5e8] sm:$0xff]
      %v4162 = vld [vmem:[%s6 + $0x5f0] sm:$0xff]
      %v4163 = vld [vmem:[%s6 + $0x5f8] sm:$0xff]
      %v4164 = vld [vmem:[%s6 + $0x600] sm:$0xff]
      %v4165 = vld [vmem:[%s6 + $0x608] sm:$0xff]
      %v4166 = vld [vmem:[%s6 + $0x610] sm:$0xff]
      %v4167 = vld [vmem:[%s6 + $0x618] sm:$0xff]
      %v4168 = vld [vmem:[%s6 + $0x620] sm:$0xff]
      %v4169 = vld [vmem:[%s6 + $0x628] sm:$0xff]
      %v4170 = vld [vmem:[%s6 + $0x630] sm:$0xff]
      %v4171 = vld [vmem:[%s6 + $0x638] sm:$0xff]
      %v4172 = vld [vmem:[%s6 + $0x640] sm:$0xff]
      %v4173 = vld [vmem:[%s6 + $0x648] sm:$0xff]
      %v4174 = vld [vmem:[%s6 + $0x650] sm:$0xff]
      %v4175 = vld [vmem:[%s6 + $0x658] sm:$0xff]
      %v4176 = vld [vmem:[%s6 + $0x660] sm:$0xff]
      %v4177 = vld [vmem:[%s6 + $0x668] sm:$0xff]
      %v4178 = vld [vmem:[%s6 + $0x670] sm:$0xff]
      %v4179 = vld [vmem:[%s6 + $0x678] sm:$0xff]
      %v4180 = vld [vmem:[%s6 + $0x680] sm:$0xff]
      %v4181 = vld [vmem:[%s6 + $0x688] sm:$0xff]
      %v4182 = vld [vmem:[%s6 + $0x690] sm:$0xff]
      %v4183 = vld [vmem:[%s6 + $0x698] sm:$0xff]
      %v4184 = vld [vmem:[%s6 + $0x6a0] sm:$0xff]
      %v4185 = vld [vmem:[%s6 + $0x6a8] sm:$0xff]
      %v4186 = vld [vmem:[%s6 + $0x6b0] sm:$0xff]
      %v4187 = vld [vmem:[%s6 + $0x6b8] sm:$0xff]
      %v4188 = vld [vmem:[%s6 + $0x6c0] sm:$0xff]
      %v4189 = vld [vmem:[%s6 + $0x6c8] sm:$0xff]
      %v4190 = vld [vmem:[%s6 + $0x6d0] sm:$0xff]
      %v4191 = vld [vmem:[%s6 + $0x6d8] sm:$0xff]
      %v4192 = vld [vmem:[%s6 + $0x6e0] sm:$0xff]
      %v4193 = vld [vmem:[%s6 + $0x6e8] sm:$0xff]
      %v4194 = vld [vmem:[%s6 + $0x6f0] sm:$0xff]
      %v4195 = vld [vmem:[%s6 + $0x6f8] sm:$0xff]
      %v4196 = vld [vmem:[%s6 + $0x700] sm:$0xff]
      %v4197 = vld [vmem:[%s6 + $0x708] sm:$0xff]
      %v4198 = vld [vmem:[%s6 + $0x710] sm:$0xff]
      %v4199 = vld [vmem:[%s6 + $0x718] sm:$0xff]
      %v4200 = vld [vmem:[%s6 + $0x720] sm:$0xff]
      %v4201 = vld [vmem:[%s6 + $0x728] sm:$0xff]
      %v4202 = vld [vmem:[%s6 + $0x730] sm:$0xff]
      %v4203 = vld [vmem:[%s6 + $0x738] sm:$0xff]
      %v4204 = vld [vmem:[%s6 + $0x740] sm:$0xff]
      %v4205 = vld [vmem:[%s6 + $0x748] sm:$0xff]
      %v4206 = vld [vmem:[%s6 + $0x750] sm:$0xff]
      %v4207 = vld [vmem:[%s6 + $0x758] sm:$0xff]
      %v4208 = vld [vmem:[%s6 + $0x760] sm:$0xff]
      %v4209 = vld [vmem:[%s6 + $0x768] sm:$0xff]
      %v4210 = vld [vmem:[%s6 + $0x770] sm:$0xff]
      %v4211 = vld [vmem:[%s6 + $0x778] sm:$0xff]
      %v4212 = vld [vmem:[%s6 + $0x780] sm:$0xff]
      %v4213 = vld [vmem:[%s6 + $0x788] sm:$0xff]
      %v4214 = vld [vmem:[%s6 + $0x790] sm:$0xff]
      %v4215 = vld [vmem:[%s6 + $0x798] sm:$0xff]
      %v4216 = vld [vmem:[%s6 + $0x7a0] sm:$0xff]
      %v4217 = vld [vmem:[%s6 + $0x7a8] sm:$0xff]
      %v4218 = vld [vmem:[%s6 + $0x7b0] sm:$0xff]
      %v4219 = vld [vmem:[%s6 + $0x7b8] sm:$0xff]
      %v4220 = vld [vmem:[%s6 + $0x7c0] sm:$0xff]
      %v4221 = vld [vmem:[%s6 + $0x7c8] sm:$0xff]
      %v4222 = vld [vmem:[%s6 + $0x7d0] sm:$0xff]
      %v4223 = vld [vmem:[%s6 + $0x7d8] sm:$0xff]
      %v4224 = vld [vmem:[%s6 + $0x7e0] sm:$0xff]
      %v4225 = vld [vmem:[%s6 + $0x7e8] sm:$0xff]
      %v4226 = vld [vmem:[%s6 + $0x7f0] sm:$0xff]
      %v4227 = vld [vmem:[%s6 + $0x7f8] sm:$0xff]
      %v4228 = vpack.c.bf16 %v3909, %v3908
      %v4229 = vpack.c.bf16 %v3911, %v3910
      %v4230 = vpack.c.bf16 %v3913, %v3912
      %v4231 = vpack.c.bf16 %v3915, %v3914
      %v4232 = vpack.c.bf16 %v3917, %v3916
      %v4233 = vpack.c.bf16 %v3919, %v3918
      %v4234 = vpack.c.bf16 %v3921, %v3920
      %v4235 = vpack.c.bf16 %v3923, %v3922
      %v4236 = vpack.c.bf16 %v3925, %v3924
      %v4237 = vpack.c.bf16 %v3927, %v3926
      %v4238 = vpack.c.bf16 %v3929, %v3928
      %v4239 = vpack.c.bf16 %v3931, %v3930
      %v4240 = vpack.c.bf16 %v3933, %v3932
      %v4241 = vpack.c.bf16 %v3935, %v3934
      %v4242 = vpack.c.bf16 %v3937, %v3936
      %v4243 = vpack.c.bf16 %v3939, %v3938
      %v4244 = vpack.c.bf16 %v3941, %v3940
      %v4245 = vpack.c.bf16 %v3943, %v3942
      %v4246 = vpack.c.bf16 %v3945, %v3944
      %v4247 = vpack.c.bf16 %v3947, %v3946
      %v4248 = vpack.c.bf16 %v3949, %v3948
      %v4249 = vpack.c.bf16 %v3951, %v3950
      %v4250 = vpack.c.bf16 %v3953, %v3952
      %v4251 = vpack.c.bf16 %v3955, %v3954
      %v4252 = vpack.c.bf16 %v3957, %v3956
      %v4253 = vpack.c.bf16 %v3959, %v3958
      %v4254 = vpack.c.bf16 %v3961, %v3960
      %v4255 = vpack.c.bf16 %v3963, %v3962
      %v4256 = vpack.c.bf16 %v3965, %v3964
      %v4257 = vpack.c.bf16 %v3967, %v3966
      %v4258 = vpack.c.bf16 %v3969, %v3968
      %v4259 = vpack.c.bf16 %v3971, %v3970
      %v4260 = vld [vmem:[%s7] sm:$0xff]
      %v4261 = vld [vmem:[%s7 + $0x8] sm:$0xff]
      %v4262 = vld [vmem:[%s7 + $0x10] sm:$0xff]
      %v4263 = vld [vmem:[%s7 + $0x18] sm:$0xff]
      %v4264 = vld [vmem:[%s7 + $0x20] sm:$0xff]
      %v4265 = vld [vmem:[%s7 + $0x28] sm:$0xff]
      %v4266 = vld [vmem:[%s7 + $0x30] sm:$0xff]
      %v4267 = vld [vmem:[%s7 + $0x38] sm:$0xff]
      %v4268 = vld [vmem:[%s7 + $0x40] sm:$0xff]
      %v4269 = vld [vmem:[%s7 + $0x48] sm:$0xff]
      %v4270 = vld [vmem:[%s7 + $0x50] sm:$0xff]
      %v4271 = vld [vmem:[%s7 + $0x58] sm:$0xff]
      %v4272 = vld [vmem:[%s7 + $0x60] sm:$0xff]
      %v4273 = vld [vmem:[%s7 + $0x68] sm:$0xff]
      %v4274 = vld [vmem:[%s7 + $0x70] sm:$0xff]
      %v4275 = vld [vmem:[%s7 + $0x78] sm:$0xff]
      %v4276 = vld [vmem:[%s7 + $0x80] sm:$0xff]
      %v4277 = vld [vmem:[%s7 + $0x88] sm:$0xff]
      %v4278 = vld [vmem:[%s7 + $0x90] sm:$0xff]
      %v4279 = vld [vmem:[%s7 + $0x98] sm:$0xff]
      %v4280 = vld [vmem:[%s7 + $0xa0] sm:$0xff]
      %v4281 = vld [vmem:[%s7 + $0xa8] sm:$0xff]
      %v4282 = vld [vmem:[%s7 + $0xb0] sm:$0xff]
      %v4283 = vld [vmem:[%s7 + $0xb8] sm:$0xff]
      %v4284 = vld [vmem:[%s7 + $0xc0] sm:$0xff]
      %v4285 = vld [vmem:[%s7 + $0xc8] sm:$0xff]
      %v4286 = vld [vmem:[%s7 + $0xd0] sm:$0xff]
      %v4287 = vld [vmem:[%s7 + $0xd8] sm:$0xff]
      %v4288 = vld [vmem:[%s7 + $0xe0] sm:$0xff]
      %v4289 = vld [vmem:[%s7 + $0xe8] sm:$0xff]
      %v4290 = vld [vmem:[%s7 + $0xf0] sm:$0xff]
      %v4291 = vld [vmem:[%s7 + $0xf8] sm:$0xff]
      %v4292 = vld [vmem:[%s7 + $0x100] sm:$0xff]
      %v4293 = vld [vmem:[%s7 + $0x108] sm:$0xff]
      %v4294 = vld [vmem:[%s7 + $0x110] sm:$0xff]
      %v4295 = vld [vmem:[%s7 + $0x118] sm:$0xff]
      %v4296 = vld [vmem:[%s7 + $0x120] sm:$0xff]
      %v4297 = vld [vmem:[%s7 + $0x128] sm:$0xff]
      %v4298 = vld [vmem:[%s7 + $0x130] sm:$0xff]
      %v4299 = vld [vmem:[%s7 + $0x138] sm:$0xff]
      %v4300 = vld [vmem:[%s7 + $0x140] sm:$0xff]
      %v4301 = vld [vmem:[%s7 + $0x148] sm:$0xff]
      %v4302 = vld [vmem:[%s7 + $0x150] sm:$0xff]
      %v4303 = vld [vmem:[%s7 + $0x158] sm:$0xff]
      %v4304 = vld [vmem:[%s7 + $0x160] sm:$0xff]
      %v4305 = vld [vmem:[%s7 + $0x168] sm:$0xff]
      %v4306 = vld [vmem:[%s7 + $0x170] sm:$0xff]
      %v4307 = vld [vmem:[%s7 + $0x178] sm:$0xff]
      %v4308 = vld [vmem:[%s7 + $0x180] sm:$0xff]
      %v4309 = vld [vmem:[%s7 + $0x188] sm:$0xff]
      %v4310 = vld [vmem:[%s7 + $0x190] sm:$0xff]
      %v4311 = vld [vmem:[%s7 + $0x198] sm:$0xff]
      %v4312 = vld [vmem:[%s7 + $0x1a0] sm:$0xff]
      %v4313 = vld [vmem:[%s7 + $0x1a8] sm:$0xff]
      %v4314 = vld [vmem:[%s7 + $0x1b0] sm:$0xff]
      %v4315 = vld [vmem:[%s7 + $0x1b8] sm:$0xff]
      %v4316 = vld [vmem:[%s7 + $0x1c0] sm:$0xff]
      %v4317 = vld [vmem:[%s7 + $0x1c8] sm:$0xff]
      %v4318 = vld [vmem:[%s7 + $0x1d0] sm:$0xff]
      %v4319 = vld [vmem:[%s7 + $0x1d8] sm:$0xff]
      %v4320 = vld [vmem:[%s7 + $0x1e0] sm:$0xff]
      %v4321 = vld [vmem:[%s7 + $0x1e8] sm:$0xff]
      %v4322 = vld [vmem:[%s7 + $0x1f0] sm:$0xff]
      %v4323 = vld [vmem:[%s7 + $0x1f8] sm:$0xff]
      %v4324 = vld [vmem:[%s7 + $0x200] sm:$0xff]
      %v4325 = vld [vmem:[%s7 + $0x208] sm:$0xff]
      %v4326 = vld [vmem:[%s7 + $0x210] sm:$0xff]
      %v4327 = vld [vmem:[%s7 + $0x218] sm:$0xff]
      %v4328 = vld [vmem:[%s7 + $0x220] sm:$0xff]
      %v4329 = vld [vmem:[%s7 + $0x228] sm:$0xff]
      %v4330 = vld [vmem:[%s7 + $0x230] sm:$0xff]
      %v4331 = vld [vmem:[%s7 + $0x238] sm:$0xff]
      %v4332 = vld [vmem:[%s7 + $0x240] sm:$0xff]
      %v4333 = vld [vmem:[%s7 + $0x248] sm:$0xff]
      %v4334 = vld [vmem:[%s7 + $0x250] sm:$0xff]
      %v4335 = vld [vmem:[%s7 + $0x258] sm:$0xff]
      %v4336 = vld [vmem:[%s7 + $0x260] sm:$0xff]
      %v4337 = vld [vmem:[%s7 + $0x268] sm:$0xff]
      %v4338 = vld [vmem:[%s7 + $0x270] sm:$0xff]
      %v4339 = vld [vmem:[%s7 + $0x278] sm:$0xff]
      %v4340 = vld [vmem:[%s7 + $0x280] sm:$0xff]
      %v4341 = vld [vmem:[%s7 + $0x288] sm:$0xff]
      %v4342 = vld [vmem:[%s7 + $0x290] sm:$0xff]
      %v4343 = vld [vmem:[%s7 + $0x298] sm:$0xff]
      %v4344 = vld [vmem:[%s7 + $0x2a0] sm:$0xff]
      %v4345 = vld [vmem:[%s7 + $0x2a8] sm:$0xff]
      %v4346 = vld [vmem:[%s7 + $0x2b0] sm:$0xff]
      %v4347 = vld [vmem:[%s7 + $0x2b8] sm:$0xff]
      %v4348 = vld [vmem:[%s7 + $0x2c0] sm:$0xff]
      %v4349 = vld [vmem:[%s7 + $0x2c8] sm:$0xff]
      %v4350 = vld [vmem:[%s7 + $0x2d0] sm:$0xff]
      %v4351 = vld [vmem:[%s7 + $0x2d8] sm:$0xff]
      %v4352 = vld [vmem:[%s7 + $0x2e0] sm:$0xff]
      %v4353 = vld [vmem:[%s7 + $0x2e8] sm:$0xff]
      %v4354 = vld [vmem:[%s7 + $0x2f0] sm:$0xff]
      %v4355 = vld [vmem:[%s7 + $0x2f8] sm:$0xff]
      %v4356 = vld [vmem:[%s7 + $0x300] sm:$0xff]
      %v4357 = vld [vmem:[%s7 + $0x308] sm:$0xff]
      %v4358 = vld [vmem:[%s7 + $0x310] sm:$0xff]
      %v4359 = vld [vmem:[%s7 + $0x318] sm:$0xff]
      %v4360 = vld [vmem:[%s7 + $0x320] sm:$0xff]
      %v4361 = vld [vmem:[%s7 + $0x328] sm:$0xff]
      %v4362 = vld [vmem:[%s7 + $0x330] sm:$0xff]
      %v4363 = vld [vmem:[%s7 + $0x338] sm:$0xff]
      %v4364 = vld [vmem:[%s7 + $0x340] sm:$0xff]
      %v4365 = vld [vmem:[%s7 + $0x348] sm:$0xff]
      %v4366 = vld [vmem:[%s7 + $0x350] sm:$0xff]
      %v4367 = vld [vmem:[%s7 + $0x358] sm:$0xff]
      %v4368 = vld [vmem:[%s7 + $0x360] sm:$0xff]
      %v4369 = vld [vmem:[%s7 + $0x368] sm:$0xff]
      %v4370 = vld [vmem:[%s7 + $0x370] sm:$0xff]
      %v4371 = vld [vmem:[%s7 + $0x378] sm:$0xff]
      %v4372 = vld [vmem:[%s7 + $0x380] sm:$0xff]
      %v4373 = vld [vmem:[%s7 + $0x388] sm:$0xff]
      %v4374 = vld [vmem:[%s7 + $0x390] sm:$0xff]
      %v4375 = vld [vmem:[%s7 + $0x398] sm:$0xff]
      %v4376 = vld [vmem:[%s7 + $0x3a0] sm:$0xff]
      %v4377 = vld [vmem:[%s7 + $0x3a8] sm:$0xff]
      %v4378 = vld [vmem:[%s7 + $0x3b0] sm:$0xff]
      %v4379 = vld [vmem:[%s7 + $0x3b8] sm:$0xff]
      %v4380 = vld [vmem:[%s7 + $0x3c0] sm:$0xff]
      %v4381 = vld [vmem:[%s7 + $0x3c8] sm:$0xff]
      %v4382 = vld [vmem:[%s7 + $0x3d0] sm:$0xff]
      %v4383 = vld [vmem:[%s7 + $0x3d8] sm:$0xff]
      %v4384 = vld [vmem:[%s7 + $0x3e0] sm:$0xff]
      %v4385 = vld [vmem:[%s7 + $0x3e8] sm:$0xff]
      %v4386 = vld [vmem:[%s7 + $0x3f0] sm:$0xff]
      %v4387 = vld [vmem:[%s7 + $0x3f8] sm:$0xff]
      %4389 = vset.pattern.permute.xlu0 0
      %4390 = vperm.xlu0 %4389, %v4260
      %v4391 = vpop.permute.xlu0 %4390
      %4394 = vset.pattern.permute.xlu0 0
      %4395 = vperm.xlu0 %4394, %v4261
      %v4396 = vpop.permute.xlu0 %4395
      %4399 = vset.pattern.permute.xlu0 0
      %4400 = vperm.xlu0 %4399, %v4262
      %v4401 = vpop.permute.xlu0 %4400
      %4404 = vset.pattern.permute.xlu0 0
      %4405 = vperm.xlu0 %4404, %v4263
      %v4406 = vpop.permute.xlu0 %4405
      %4409 = vset.pattern.permute.xlu0 0
      %4410 = vperm.xlu0 %4409, %v4264
      %v4411 = vpop.permute.xlu0 %4410
      %4414 = vset.pattern.permute.xlu0 0
      %4415 = vperm.xlu0 %4414, %v4265
      %v4416 = vpop.permute.xlu0 %4415
      %4419 = vset.pattern.permute.xlu0 0
      %4420 = vperm.xlu0 %4419, %v4266
      %v4421 = vpop.permute.xlu0 %4420
      %4424 = vset.pattern.permute.xlu0 0
      %4425 = vperm.xlu0 %4424, %v4267
      %v4426 = vpop.permute.xlu0 %4425
      %4429 = vset.pattern.permute.xlu0 0
      %4430 = vperm.xlu0 %4429, %v4268
      %v4431 = vpop.permute.xlu0 %4430
      %4434 = vset.pattern.permute.xlu0 0
      %4435 = vperm.xlu0 %4434, %v4269
      %v4436 = vpop.permute.xlu0 %4435
      %4439 = vset.pattern.permute.xlu0 0
      %4440 = vperm.xlu0 %4439, %v4270
      %v4441 = vpop.permute.xlu0 %4440
      %4444 = vset.pattern.permute.xlu0 0
      %4445 = vperm.xlu0 %4444, %v4271
      %v4446 = vpop.permute.xlu0 %4445
      %4449 = vset.pattern.permute.xlu0 0
      %4450 = vperm.xlu0 %4449, %v4272
      %v4451 = vpop.permute.xlu0 %4450
      %4454 = vset.pattern.permute.xlu0 0
      %4455 = vperm.xlu0 %4454, %v4273
      %v4456 = vpop.permute.xlu0 %4455
      %4459 = vset.pattern.permute.xlu0 0
      %4460 = vperm.xlu0 %4459, %v4274
      %v4461 = vpop.permute.xlu0 %4460
      %4464 = vset.pattern.permute.xlu0 0
      %4465 = vperm.xlu0 %4464, %v4275
      %v4466 = vpop.permute.xlu0 %4465
      %4469 = vset.pattern.permute.xlu0 0
      %4470 = vperm.xlu0 %4469, %v4276
      %v4471 = vpop.permute.xlu0 %4470
      %4474 = vset.pattern.permute.xlu0 0
      %4475 = vperm.xlu0 %4474, %v4277
      %v4476 = vpop.permute.xlu0 %4475
      %4479 = vset.pattern.permute.xlu0 0
      %4480 = vperm.xlu0 %4479, %v4278
      %v4481 = vpop.permute.xlu0 %4480
      %4484 = vset.pattern.permute.xlu0 0
      %4485 = vperm.xlu0 %4484, %v4279
      %v4486 = vpop.permute.xlu0 %4485
      %4489 = vset.pattern.permute.xlu0 0
      %4490 = vperm.xlu0 %4489, %v4280
      %v4491 = vpop.permute.xlu0 %4490
      %4494 = vset.pattern.permute.xlu0 0
      %4495 = vperm.xlu0 %4494, %v4281
      %v4496 = vpop.permute.xlu0 %4495
      %4499 = vset.pattern.permute.xlu0 0
      %4500 = vperm.xlu0 %4499, %v4282
      %v4501 = vpop.permute.xlu0 %4500
      %4504 = vset.pattern.permute.xlu0 0
      %4505 = vperm.xlu0 %4504, %v4283
      %v4506 = vpop.permute.xlu0 %4505
      %4509 = vset.pattern.permute.xlu0 0
      %4510 = vperm.xlu0 %4509, %v4284
      %v4511 = vpop.permute.xlu0 %4510
      %4514 = vset.pattern.permute.xlu0 0
      %4515 = vperm.xlu0 %4514, %v4285
      %v4516 = vpop.permute.xlu0 %4515
      %4519 = vset.pattern.permute.xlu0 0
      %4520 = vperm.xlu0 %4519, %v4286
      %v4521 = vpop.permute.xlu0 %4520
      %4524 = vset.pattern.permute.xlu0 0
      %4525 = vperm.xlu0 %4524, %v4287
      %v4526 = vpop.permute.xlu0 %4525
      %4529 = vset.pattern.permute.xlu0 0
      %4530 = vperm.xlu0 %4529, %v4288
      %v4531 = vpop.permute.xlu0 %4530
      %4534 = vset.pattern.permute.xlu0 0
      %4535 = vperm.xlu0 %4534, %v4289
      %v4536 = vpop.permute.xlu0 %4535
      %4539 = vset.pattern.permute.xlu0 0
      %4540 = vperm.xlu0 %4539, %v4290
      %v4541 = vpop.permute.xlu0 %4540
      %4544 = vset.pattern.permute.xlu0 0
      %4545 = vperm.xlu0 %4544, %v4291
      %v4546 = vpop.permute.xlu0 %4545
      %4549 = vset.pattern.permute.xlu0 0
      %4550 = vperm.xlu0 %4549, %v4292
      %v4551 = vpop.permute.xlu0 %4550
      %4554 = vset.pattern.permute.xlu0 0
      %4555 = vperm.xlu0 %4554, %v4293
      %v4556 = vpop.permute.xlu0 %4555
      %4559 = vset.pattern.permute.xlu0 0
      %4560 = vperm.xlu0 %4559, %v4294
      %v4561 = vpop.permute.xlu0 %4560
      %4564 = vset.pattern.permute.xlu0 0
      %4565 = vperm.xlu0 %4564, %v4295
      %v4566 = vpop.permute.xlu0 %4565
      %4569 = vset.pattern.permute.xlu0 0
      %4570 = vperm.xlu0 %4569, %v4296
      %v4571 = vpop.permute.xlu0 %4570
      %4574 = vset.pattern.permute.xlu0 0
      %4575 = vperm.xlu0 %4574, %v4297
      %v4576 = vpop.permute.xlu0 %4575
      %4579 = vset.pattern.permute.xlu0 0
      %4580 = vperm.xlu0 %4579, %v4298
      %v4581 = vpop.permute.xlu0 %4580
      %4584 = vset.pattern.permute.xlu0 0
      %4585 = vperm.xlu0 %4584, %v4299
      %v4586 = vpop.permute.xlu0 %4585
      %4589 = vset.pattern.permute.xlu0 0
      %4590 = vperm.xlu0 %4589, %v4300
      %v4591 = vpop.permute.xlu0 %4590
      %4594 = vset.pattern.permute.xlu0 0
      %4595 = vperm.xlu0 %4594, %v4301
      %v4596 = vpop.permute.xlu0 %4595
      %4599 = vset.pattern.permute.xlu0 0
      %4600 = vperm.xlu0 %4599, %v4302
      %v4601 = vpop.permute.xlu0 %4600
      %4604 = vset.pattern.permute.xlu0 0
      %4605 = vperm.xlu0 %4604, %v4303
      %v4606 = vpop.permute.xlu0 %4605
      %4609 = vset.pattern.permute.xlu0 0
      %4610 = vperm.xlu0 %4609, %v4304
      %v4611 = vpop.permute.xlu0 %4610
      %4614 = vset.pattern.permute.xlu0 0
      %4615 = vperm.xlu0 %4614, %v4305
      %v4616 = vpop.permute.xlu0 %4615
      %4619 = vset.pattern.permute.xlu0 0
      %4620 = vperm.xlu0 %4619, %v4306
      %v4621 = vpop.permute.xlu0 %4620
      %4624 = vset.pattern.permute.xlu0 0
      %4625 = vperm.xlu0 %4624, %v4307
      %v4626 = vpop.permute.xlu0 %4625
      %4629 = vset.pattern.permute.xlu0 0
      %4630 = vperm.xlu0 %4629, %v4308
      %v4631 = vpop.permute.xlu0 %4630
      %4634 = vset.pattern.permute.xlu0 0
      %4635 = vperm.xlu0 %4634, %v4309
      %v4636 = vpop.permute.xlu0 %4635
      %4639 = vset.pattern.permute.xlu0 0
      %4640 = vperm.xlu0 %4639, %v4310
      %v4641 = vpop.permute.xlu0 %4640
      %4644 = vset.pattern.permute.xlu0 0
      %4645 = vperm.xlu0 %4644, %v4311
      %v4646 = vpop.permute.xlu0 %4645
      %4649 = vset.pattern.permute.xlu0 0
      %4650 = vperm.xlu0 %4649, %v4312
      %v4651 = vpop.permute.xlu0 %4650
      %4654 = vset.pattern.permute.xlu0 0
      %4655 = vperm.xlu0 %4654, %v4313
      %v4656 = vpop.permute.xlu0 %4655
      %4659 = vset.pattern.permute.xlu0 0
      %4660 = vperm.xlu0 %4659, %v4314
      %v4661 = vpop.permute.xlu0 %4660
      %4664 = vset.pattern.permute.xlu0 0
      %4665 = vperm.xlu0 %4664, %v4315
      %v4666 = vpop.permute.xlu0 %4665
      %4669 = vset.pattern.permute.xlu0 0
      %4670 = vperm.xlu0 %4669, %v4316
      %v4671 = vpop.permute.xlu0 %4670
      %4674 = vset.pattern.permute.xlu0 0
      %4675 = vperm.xlu0 %4674, %v4317
      %v4676 = vpop.permute.xlu0 %4675
      %4679 = vset.pattern.permute.xlu0 0
      %4680 = vperm.xlu0 %4679, %v4318
      %v4681 = vpop.permute.xlu0 %4680
      %4684 = vset.pattern.permute.xlu0 0
      %4685 = vperm.xlu0 %4684, %v4319
      %v4686 = vpop.permute.xlu0 %4685
      %4689 = vset.pattern.permute.xlu0 0
      %4690 = vperm.xlu0 %4689, %v4320
      %v4691 = vpop.permute.xlu0 %4690
      %4694 = vset.pattern.permute.xlu0 0
      %4695 = vperm.xlu0 %4694, %v4321
      %v4696 = vpop.permute.xlu0 %4695
      %4699 = vset.pattern.permute.xlu0 0
      %4700 = vperm.xlu0 %4699, %v4322
      %v4701 = vpop.permute.xlu0 %4700
      %4704 = vset.pattern.permute.xlu0 0
      %4705 = vperm.xlu0 %4704, %v4323
      %v4706 = vpop.permute.xlu0 %4705
      %4709 = vset.pattern.permute.xlu0 0
      %4710 = vperm.xlu0 %4709, %v4324
      %v4711 = vpop.permute.xlu0 %4710
      %4714 = vset.pattern.permute.xlu0 0
      %4715 = vperm.xlu0 %4714, %v4325
      %v4716 = vpop.permute.xlu0 %4715
      %4719 = vset.pattern.permute.xlu0 0
      %4720 = vperm.xlu0 %4719, %v4326
      %v4721 = vpop.permute.xlu0 %4720
      %4724 = vset.pattern.permute.xlu0 0
      %4725 = vperm.xlu0 %4724, %v4327
      %v4726 = vpop.permute.xlu0 %4725
      %4729 = vset.pattern.permute.xlu0 0
      %4730 = vperm.xlu0 %4729, %v4328
      %v4731 = vpop.permute.xlu0 %4730
      %4734 = vset.pattern.permute.xlu0 0
      %4735 = vperm.xlu0 %4734, %v4329
      %v4736 = vpop.permute.xlu0 %4735
      %4739 = vset.pattern.permute.xlu0 0
      %4740 = vperm.xlu0 %4739, %v4330
      %v4741 = vpop.permute.xlu0 %4740
      %4744 = vset.pattern.permute.xlu0 0
      %4745 = vperm.xlu0 %4744, %v4331
      %v4746 = vpop.permute.xlu0 %4745
      %4749 = vset.pattern.permute.xlu0 0
      %4750 = vperm.xlu0 %4749, %v4332
      %v4751 = vpop.permute.xlu0 %4750
      %4754 = vset.pattern.permute.xlu0 0
      %4755 = vperm.xlu0 %4754, %v4333
      %v4756 = vpop.permute.xlu0 %4755
      %4759 = vset.pattern.permute.xlu0 0
      %4760 = vperm.xlu0 %4759, %v4334
      %v4761 = vpop.permute.xlu0 %4760
      %4764 = vset.pattern.permute.xlu0 0
      %4765 = vperm.xlu0 %4764, %v4335
      %v4766 = vpop.permute.xlu0 %4765
      %4769 = vset.pattern.permute.xlu0 0
      %4770 = vperm.xlu0 %4769, %v4336
      %v4771 = vpop.permute.xlu0 %4770
      %4774 = vset.pattern.permute.xlu0 0
      %4775 = vperm.xlu0 %4774, %v4337
      %v4776 = vpop.permute.xlu0 %4775
      %4779 = vset.pattern.permute.xlu0 0
      %4780 = vperm.xlu0 %4779, %v4338
      %v4781 = vpop.permute.xlu0 %4780
      %4784 = vset.pattern.permute.xlu0 0
      %4785 = vperm.xlu0 %4784, %v4339
      %v4786 = vpop.permute.xlu0 %4785
      %4789 = vset.pattern.permute.xlu0 0
      %4790 = vperm.xlu0 %4789, %v4340
      %v4791 = vpop.permute.xlu0 %4790
      %4794 = vset.pattern.permute.xlu0 0
      %4795 = vperm.xlu0 %4794, %v4341
      %v4796 = vpop.permute.xlu0 %4795
      %4799 = vset.pattern.permute.xlu0 0
      %4800 = vperm.xlu0 %4799, %v4342
      %v4801 = vpop.permute.xlu0 %4800
      %4804 = vset.pattern.permute.xlu0 0
      %4805 = vperm.xlu0 %4804, %v4343
      %v4806 = vpop.permute.xlu0 %4805
      %4809 = vset.pattern.permute.xlu0 0
      %4810 = vperm.xlu0 %4809, %v4344
      %v4811 = vpop.permute.xlu0 %4810
      %4814 = vset.pattern.permute.xlu0 0
      %4815 = vperm.xlu0 %4814, %v4345
      %v4816 = vpop.permute.xlu0 %4815
      %4819 = vset.pattern.permute.xlu0 0
      %4820 = vperm.xlu0 %4819, %v4346
      %v4821 = vpop.permute.xlu0 %4820
      %4824 = vset.pattern.permute.xlu0 0
      %4825 = vperm.xlu0 %4824, %v4347
      %v4826 = vpop.permute.xlu0 %4825
      %4829 = vset.pattern.permute.xlu0 0
      %4830 = vperm.xlu0 %4829, %v4348
      %v4831 = vpop.permute.xlu0 %4830
      %4834 = vset.pattern.permute.xlu0 0
      %4835 = vperm.xlu0 %4834, %v4349
      %v4836 = vpop.permute.xlu0 %4835
      %4839 = vset.pattern.permute.xlu0 0
      %4840 = vperm.xlu0 %4839, %v4350
      %v4841 = vpop.permute.xlu0 %4840
      %4844 = vset.pattern.permute.xlu0 0
      %4845 = vperm.xlu0 %4844, %v4351
      %v4846 = vpop.permute.xlu0 %4845
      %4849 = vset.pattern.permute.xlu0 0
      %4850 = vperm.xlu0 %4849, %v4352
      %v4851 = vpop.permute.xlu0 %4850
      %4854 = vset.pattern.permute.xlu0 0
      %4855 = vperm.xlu0 %4854, %v4353
      %v4856 = vpop.permute.xlu0 %4855
      %4859 = vset.pattern.permute.xlu0 0
      %4860 = vperm.xlu0 %4859, %v4354
      %v4861 = vpop.permute.xlu0 %4860
      %4864 = vset.pattern.permute.xlu0 0
      %4865 = vperm.xlu0 %4864, %v4355
      %v4866 = vpop.permute.xlu0 %4865
      %4869 = vset.pattern.permute.xlu0 0
      %4870 = vperm.xlu0 %4869, %v4356
      %v4871 = vpop.permute.xlu0 %4870
      %4874 = vset.pattern.permute.xlu0 0
      %4875 = vperm.xlu0 %4874, %v4357
      %v4876 = vpop.permute.xlu0 %4875
      %4879 = vset.pattern.permute.xlu0 0
      %4880 = vperm.xlu0 %4879, %v4358
      %v4881 = vpop.permute.xlu0 %4880
      %4884 = vset.pattern.permute.xlu0 0
      %4885 = vperm.xlu0 %4884, %v4359
      %v4886 = vpop.permute.xlu0 %4885
      %4889 = vset.pattern.permute.xlu0 0
      %4890 = vperm.xlu0 %4889, %v4360
      %v4891 = vpop.permute.xlu0 %4890
      %4894 = vset.pattern.permute.xlu0 0
      %4895 = vperm.xlu0 %4894, %v4361
      %v4896 = vpop.permute.xlu0 %4895
      %4899 = vset.pattern.permute.xlu0 0
      %4900 = vperm.xlu0 %4899, %v4362
      %v4901 = vpop.permute.xlu0 %4900
      %4904 = vset.pattern.permute.xlu0 0
      %4905 = vperm.xlu0 %4904, %v4363
      %v4906 = vpop.permute.xlu0 %4905
      %4909 = vset.pattern.permute.xlu0 0
      %4910 = vperm.xlu0 %4909, %v4364
      %v4911 = vpop.permute.xlu0 %4910
      %4914 = vset.pattern.permute.xlu0 0
      %4915 = vperm.xlu0 %4914, %v4365
      %v4916 = vpop.permute.xlu0 %4915
      %4919 = vset.pattern.permute.xlu0 0
      %4920 = vperm.xlu0 %4919, %v4366
      %v4921 = vpop.permute.xlu0 %4920
      %4924 = vset.pattern.permute.xlu0 0
      %4925 = vperm.xlu0 %4924, %v4367
      %v4926 = vpop.permute.xlu0 %4925
      %4929 = vset.pattern.permute.xlu0 0
      %4930 = vperm.xlu0 %4929, %v4368
      %v4931 = vpop.permute.xlu0 %4930
      %4934 = vset.pattern.permute.xlu0 0
      %4935 = vperm.xlu0 %4934, %v4369
      %v4936 = vpop.permute.xlu0 %4935
      %4939 = vset.pattern.permute.xlu0 0
      %4940 = vperm.xlu0 %4939, %v4370
      %v4941 = vpop.permute.xlu0 %4940
      %4944 = vset.pattern.permute.xlu0 0
      %4945 = vperm.xlu0 %4944, %v4371
      %v4946 = vpop.permute.xlu0 %4945
      %4949 = vset.pattern.permute.xlu0 0
      %4950 = vperm.xlu0 %4949, %v4372
      %v4951 = vpop.permute.xlu0 %4950
      %4954 = vset.pattern.permute.xlu0 0
      %4955 = vperm.xlu0 %4954, %v4373
      %v4956 = vpop.permute.xlu0 %4955
      %4959 = vset.pattern.permute.xlu0 0
      %4960 = vperm.xlu0 %4959, %v4374
      %v4961 = vpop.permute.xlu0 %4960
      %4964 = vset.pattern.permute.xlu0 0
      %4965 = vperm.xlu0 %4964, %v4375
      %v4966 = vpop.permute.xlu0 %4965
      %4969 = vset.pattern.permute.xlu0 0
      %4970 = vperm.xlu0 %4969, %v4376
      %v4971 = vpop.permute.xlu0 %4970
      %4974 = vset.pattern.permute.xlu0 0
      %4975 = vperm.xlu0 %4974, %v4377
      %v4976 = vpop.permute.xlu0 %4975
      %4979 = vset.pattern.permute.xlu0 0
      %4980 = vperm.xlu0 %4979, %v4378
      %v4981 = vpop.permute.xlu0 %4980
      %4984 = vset.pattern.permute.xlu0 0
      %4985 = vperm.xlu0 %4984, %v4379
      %v4986 = vpop.permute.xlu0 %4985
      %4989 = vset.pattern.permute.xlu0 0
      %4990 = vperm.xlu0 %4989, %v4380
      %v4991 = vpop.permute.xlu0 %4990
      %4994 = vset.pattern.permute.xlu0 0
      %4995 = vperm.xlu0 %4994, %v4381
      %v4996 = vpop.permute.xlu0 %4995
      %4999 = vset.pattern.permute.xlu0 0
      %5000 = vperm.xlu0 %4999, %v4382
      %v5001 = vpop.permute.xlu0 %5000
      %5004 = vset.pattern.permute.xlu0 0
      %5005 = vperm.xlu0 %5004, %v4383
      %v5006 = vpop.permute.xlu0 %5005
      %5009 = vset.pattern.permute.xlu0 0
      %5010 = vperm.xlu0 %5009, %v4384
      %v5011 = vpop.permute.xlu0 %5010
      %5014 = vset.pattern.permute.xlu0 0
      %5015 = vperm.xlu0 %5014, %v4385
      %v5016 = vpop.permute.xlu0 %5015
      %5019 = vset.pattern.permute.xlu0 0
      %5020 = vperm.xlu0 %5019, %v4386
      %v5021 = vpop.permute.xlu0 %5020
      %5024 = vset.pattern.permute.xlu0 0
      %5025 = vperm.xlu0 %5024, %v4387
      %v5026 = vpop.permute.xlu0 %5025
      %v5284 = vunpack.c.l.b16 %v3972
      %v5285 = vunpack.c.h.b16 %v3972
      %v5286 = vunpack.c.l.b16 %v3973
      %v5287 = vunpack.c.h.b16 %v3973
      %v5288 = vunpack.c.l.b16 %v3974
      %v5289 = vunpack.c.h.b16 %v3974
      %v5290 = vunpack.c.l.b16 %v3975
      %v5291 = vunpack.c.h.b16 %v3975
      %v5292 = vunpack.c.l.b16 %v3976
      %v5293 = vunpack.c.h.b16 %v3976
      %v5294 = vunpack.c.l.b16 %v3977
      %v5295 = vunpack.c.h.b16 %v3977
      %v5296 = vunpack.c.l.b16 %v3978
      %v5297 = vunpack.c.h.b16 %v3978
      %v5298 = vunpack.c.l.b16 %v3979
      %v5299 = vunpack.c.h.b16 %v3979
      %v5300 = vunpack.c.l.b16 %v3980
      %v5301 = vunpack.c.h.b16 %v3980
      %v5302 = vunpack.c.l.b16 %v3981
      %v5303 = vunpack.c.h.b16 %v3981
      %v5304 = vunpack.c.l.b16 %v3982
      %v5305 = vunpack.c.h.b16 %v3982
      %v5306 = vunpack.c.l.b16 %v3983
      %v5307 = vunpack.c.h.b16 %v3983
      %v5308 = vunpack.c.l.b16 %v3984
      %v5309 = vunpack.c.h.b16 %v3984
      %v5310 = vunpack.c.l.b16 %v3985
      %v5311 = vunpack.c.h.b16 %v3985
      %v5312 = vunpack.c.l.b16 %v3986
      %v5313 = vunpack.c.h.b16 %v3986
      %v5314 = vunpack.c.l.b16 %v3987
      %v5315 = vunpack.c.h.b16 %v3987
      %v5316 = vunpack.c.l.b16 %v3988
      %v5317 = vunpack.c.h.b16 %v3988
      %v5318 = vunpack.c.l.b16 %v3989
      %v5319 = vunpack.c.h.b16 %v3989
      %v5320 = vunpack.c.l.b16 %v3990
      %v5321 = vunpack.c.h.b16 %v3990
      %v5322 = vunpack.c.l.b16 %v3991
      %v5323 = vunpack.c.h.b16 %v3991
      %v5324 = vunpack.c.l.b16 %v3992
      %v5325 = vunpack.c.h.b16 %v3992
      %v5326 = vunpack.c.l.b16 %v3993
      %v5327 = vunpack.c.h.b16 %v3993
      %v5328 = vunpack.c.l.b16 %v3994
      %v5329 = vunpack.c.h.b16 %v3994
      %v5330 = vunpack.c.l.b16 %v3995
      %v5331 = vunpack.c.h.b16 %v3995
      %v5332 = vunpack.c.l.b16 %v3996
      %v5333 = vunpack.c.h.b16 %v3996
      %v5334 = vunpack.c.l.b16 %v3997
      %v5335 = vunpack.c.h.b16 %v3997
      %v5336 = vunpack.c.l.b16 %v3998
      %v5337 = vunpack.c.h.b16 %v3998
      %v5338 = vunpack.c.l.b16 %v3999
      %v5339 = vunpack.c.h.b16 %v3999
      %v5340 = vunpack.c.l.b16 %v4000
      %v5341 = vunpack.c.h.b16 %v4000
      %v5342 = vunpack.c.l.b16 %v4001
      %v5343 = vunpack.c.h.b16 %v4001
      %v5344 = vunpack.c.l.b16 %v4002
      %v5345 = vunpack.c.h.b16 %v4002
      %v5346 = vunpack.c.l.b16 %v4003
      %v5347 = vunpack.c.h.b16 %v4003
      %v5348 = vunpack.c.l.b16 %v4004
      %v5349 = vunpack.c.h.b16 %v4004
      %v5350 = vunpack.c.l.b16 %v4005
      %v5351 = vunpack.c.h.b16 %v4005
      %v5352 = vunpack.c.l.b16 %v4006
      %v5353 = vunpack.c.h.b16 %v4006
      %v5354 = vunpack.c.l.b16 %v4007
      %v5355 = vunpack.c.h.b16 %v4007
      %v5356 = vunpack.c.l.b16 %v4008
      %v5357 = vunpack.c.h.b16 %v4008
      %v5358 = vunpack.c.l.b16 %v4009
      %v5359 = vunpack.c.h.b16 %v4009
      %v5360 = vunpack.c.l.b16 %v4010
      %v5361 = vunpack.c.h.b16 %v4010
      %v5362 = vunpack.c.l.b16 %v4011
      %v5363 = vunpack.c.h.b16 %v4011
      %v5364 = vunpack.c.l.b16 %v4012
      %v5365 = vunpack.c.h.b16 %v4012
      %v5366 = vunpack.c.l.b16 %v4013
      %v5367 = vunpack.c.h.b16 %v4013
      %v5368 = vunpack.c.l.b16 %v4014
      %v5369 = vunpack.c.h.b16 %v4014
      %v5370 = vunpack.c.l.b16 %v4015
      %v5371 = vunpack.c.h.b16 %v4015
      %v5372 = vunpack.c.l.b16 %v4016
      %v5373 = vunpack.c.h.b16 %v4016
      %v5374 = vunpack.c.l.b16 %v4017
      %v5375 = vunpack.c.h.b16 %v4017
      %v5376 = vunpack.c.l.b16 %v4018
      %v5377 = vunpack.c.h.b16 %v4018
      %v5378 = vunpack.c.l.b16 %v4019
      %v5379 = vunpack.c.h.b16 %v4019
      %v5380 = vunpack.c.l.b16 %v4020
      %v5381 = vunpack.c.h.b16 %v4020
      %v5382 = vunpack.c.l.b16 %v4021
      %v5383 = vunpack.c.h.b16 %v4021
      %v5384 = vunpack.c.l.b16 %v4022
      %v5385 = vunpack.c.h.b16 %v4022
      %v5386 = vunpack.c.l.b16 %v4023
      %v5387 = vunpack.c.h.b16 %v4023
      %v5388 = vunpack.c.l.b16 %v4024
      %v5389 = vunpack.c.h.b16 %v4024
      %v5390 = vunpack.c.l.b16 %v4025
      %v5391 = vunpack.c.h.b16 %v4025
      %v5392 = vunpack.c.l.b16 %v4026
      %v5393 = vunpack.c.h.b16 %v4026
      %v5394 = vunpack.c.l.b16 %v4027
      %v5395 = vunpack.c.h.b16 %v4027
      %v5396 = vunpack.c.l.b16 %v4028
      %v5397 = vunpack.c.h.b16 %v4028
      %v5398 = vunpack.c.l.b16 %v4029
      %v5399 = vunpack.c.h.b16 %v4029
      %v5400 = vunpack.c.l.b16 %v4030
      %v5401 = vunpack.c.h.b16 %v4030
      %v5402 = vunpack.c.l.b16 %v4031
      %v5403 = vunpack.c.h.b16 %v4031
      %v5404 = vunpack.c.l.b16 %v4032
      %v5405 = vunpack.c.h.b16 %v4032
      %v5406 = vunpack.c.l.b16 %v4033
      %v5407 = vunpack.c.h.b16 %v4033
      %v5408 = vunpack.c.l.b16 %v4034
      %v5409 = vunpack.c.h.b16 %v4034
      %v5410 = vunpack.c.l.b16 %v4035
      %v5411 = vunpack.c.h.b16 %v4035
      %v5412 = vunpack.c.l.b16 %v4036
      %v5413 = vunpack.c.h.b16 %v4036
      %v5414 = vunpack.c.l.b16 %v4037
      %v5415 = vunpack.c.h.b16 %v4037
      %v5416 = vunpack.c.l.b16 %v4038
      %v5417 = vunpack.c.h.b16 %v4038
      %v5418 = vunpack.c.l.b16 %v4039
      %v5419 = vunpack.c.h.b16 %v4039
      %v5420 = vunpack.c.l.b16 %v4040
      %v5421 = vunpack.c.h.b16 %v4040
      %v5422 = vunpack.c.l.b16 %v4041
      %v5423 = vunpack.c.h.b16 %v4041
      %v5424 = vunpack.c.l.b16 %v4042
      %v5425 = vunpack.c.h.b16 %v4042
      %v5426 = vunpack.c.l.b16 %v4043
      %v5427 = vunpack.c.h.b16 %v4043
      %v5428 = vunpack.c.l.b16 %v4044
      %v5429 = vunpack.c.h.b16 %v4044
      %v5430 = vunpack.c.l.b16 %v4045
      %v5431 = vunpack.c.h.b16 %v4045
      %v5432 = vunpack.c.l.b16 %v4046
      %v5433 = vunpack.c.h.b16 %v4046
      %v5434 = vunpack.c.l.b16 %v4047
      %v5435 = vunpack.c.h.b16 %v4047
      %v5436 = vunpack.c.l.b16 %v4048
      %v5437 = vunpack.c.h.b16 %v4048
      %v5438 = vunpack.c.l.b16 %v4049
      %v5439 = vunpack.c.h.b16 %v4049
      %v5440 = vunpack.c.l.b16 %v4050
      %v5441 = vunpack.c.h.b16 %v4050
      %v5442 = vunpack.c.l.b16 %v4051
      %v5443 = vunpack.c.h.b16 %v4051
      %v5444 = vunpack.c.l.b16 %v4052
      %v5445 = vunpack.c.h.b16 %v4052
      %v5446 = vunpack.c.l.b16 %v4053
      %v5447 = vunpack.c.h.b16 %v4053
      %v5448 = vunpack.c.l.b16 %v4054
      %v5449 = vunpack.c.h.b16 %v4054
      %v5450 = vunpack.c.l.b16 %v4055
      %v5451 = vunpack.c.h.b16 %v4055
      %v5452 = vunpack.c.l.b16 %v4056
      %v5453 = vunpack.c.h.b16 %v4056
      %v5454 = vunpack.c.l.b16 %v4057
      %v5455 = vunpack.c.h.b16 %v4057
      %v5456 = vunpack.c.l.b16 %v4058
      %v5457 = vunpack.c.h.b16 %v4058
      %v5458 = vunpack.c.l.b16 %v4059
      %v5459 = vunpack.c.h.b16 %v4059
      %v5460 = vunpack.c.l.b16 %v4060
      %v5461 = vunpack.c.h.b16 %v4060
      %v5462 = vunpack.c.l.b16 %v4061
      %v5463 = vunpack.c.h.b16 %v4061
      %v5464 = vunpack.c.l.b16 %v4062
      %v5465 = vunpack.c.h.b16 %v4062
      %v5466 = vunpack.c.l.b16 %v4063
      %v5467 = vunpack.c.h.b16 %v4063
      %v5468 = vunpack.c.l.b16 %v4064
      %v5469 = vunpack.c.h.b16 %v4064
      %v5470 = vunpack.c.l.b16 %v4065
      %v5471 = vunpack.c.h.b16 %v4065
      %v5472 = vunpack.c.l.b16 %v4066
      %v5473 = vunpack.c.h.b16 %v4066
      %v5474 = vunpack.c.l.b16 %v4067
      %v5475 = vunpack.c.h.b16 %v4067
      %v5476 = vunpack.c.l.b16 %v4068
      %v5477 = vunpack.c.h.b16 %v4068
      %v5478 = vunpack.c.l.b16 %v4069
      %v5479 = vunpack.c.h.b16 %v4069
      %v5480 = vunpack.c.l.b16 %v4070
      %v5481 = vunpack.c.h.b16 %v4070
      %v5482 = vunpack.c.l.b16 %v4071
      %v5483 = vunpack.c.h.b16 %v4071
      %v5484 = vunpack.c.l.b16 %v4072
      %v5485 = vunpack.c.h.b16 %v4072
      %v5486 = vunpack.c.l.b16 %v4073
      %v5487 = vunpack.c.h.b16 %v4073
      %v5488 = vunpack.c.l.b16 %v4074
      %v5489 = vunpack.c.h.b16 %v4074
      %v5490 = vunpack.c.l.b16 %v4075
      %v5491 = vunpack.c.h.b16 %v4075
      %v5492 = vunpack.c.l.b16 %v4076
      %v5493 = vunpack.c.h.b16 %v4076
      %v5494 = vunpack.c.l.b16 %v4077
      %v5495 = vunpack.c.h.b16 %v4077
      %v5496 = vunpack.c.l.b16 %v4078
      %v5497 = vunpack.c.h.b16 %v4078
      %v5498 = vunpack.c.l.b16 %v4079
      %v5499 = vunpack.c.h.b16 %v4079
      %v5500 = vunpack.c.l.b16 %v4080
      %v5501 = vunpack.c.h.b16 %v4080
      %v5502 = vunpack.c.l.b16 %v4081
      %v5503 = vunpack.c.h.b16 %v4081
      %v5504 = vunpack.c.l.b16 %v4082
      %v5505 = vunpack.c.h.b16 %v4082
      %v5506 = vunpack.c.l.b16 %v4083
      %v5507 = vunpack.c.h.b16 %v4083
      %v5508 = vunpack.c.l.b16 %v4084
      %v5509 = vunpack.c.h.b16 %v4084
      %v5510 = vunpack.c.l.b16 %v4085
      %v5511 = vunpack.c.h.b16 %v4085
      %v5512 = vunpack.c.l.b16 %v4086
      %v5513 = vunpack.c.h.b16 %v4086
      %v5514 = vunpack.c.l.b16 %v4087
      %v5515 = vunpack.c.h.b16 %v4087
      %v5516 = vunpack.c.l.b16 %v4088
      %v5517 = vunpack.c.h.b16 %v4088
      %v5518 = vunpack.c.l.b16 %v4089
      %v5519 = vunpack.c.h.b16 %v4089
      %v5520 = vunpack.c.l.b16 %v4090
      %v5521 = vunpack.c.h.b16 %v4090
      %v5522 = vunpack.c.l.b16 %v4091
      %v5523 = vunpack.c.h.b16 %v4091
      %v5524 = vunpack.c.l.b16 %v4092
      %v5525 = vunpack.c.h.b16 %v4092
      %v5526 = vunpack.c.l.b16 %v4093
      %v5527 = vunpack.c.h.b16 %v4093
      %v5528 = vunpack.c.l.b16 %v4094
      %v5529 = vunpack.c.h.b16 %v4094
      %v5530 = vunpack.c.l.b16 %v4095
      %v5531 = vunpack.c.h.b16 %v4095
      %v5532 = vunpack.c.l.b16 %v4096
      %v5533 = vunpack.c.h.b16 %v4096
      %v5534 = vunpack.c.l.b16 %v4097
      %v5535 = vunpack.c.h.b16 %v4097
      %v5536 = vunpack.c.l.b16 %v4098
      %v5537 = vunpack.c.h.b16 %v4098
      %v5538 = vunpack.c.l.b16 %v4099
      %v5539 = vunpack.c.h.b16 %v4099
      %v5540 = vunpack.c.l.b16 %v4100
      %v5541 = vunpack.c.h.b16 %v4100
      %v5542 = vunpack.c.l.b16 %v4101
      %v5543 = vunpack.c.h.b16 %v4101
      %v5544 = vunpack.c.l.b16 %v4102
      %v5545 = vunpack.c.h.b16 %v4102
      %v5546 = vunpack.c.l.b16 %v4103
      %v5547 = vunpack.c.h.b16 %v4103
      %v5548 = vunpack.c.l.b16 %v4104
      %v5549 = vunpack.c.h.b16 %v4104
      %v5550 = vunpack.c.l.b16 %v4105
      %v5551 = vunpack.c.h.b16 %v4105
      %v5552 = vunpack.c.l.b16 %v4106
      %v5553 = vunpack.c.h.b16 %v4106
      %v5554 = vunpack.c.l.b16 %v4107
      %v5555 = vunpack.c.h.b16 %v4107
      %v5556 = vunpack.c.l.b16 %v4108
      %v5557 = vunpack.c.h.b16 %v4108
      %v5558 = vunpack.c.l.b16 %v4109
      %v5559 = vunpack.c.h.b16 %v4109
      %v5560 = vunpack.c.l.b16 %v4110
      %v5561 = vunpack.c.h.b16 %v4110
      %v5562 = vunpack.c.l.b16 %v4111
      %v5563 = vunpack.c.h.b16 %v4111
      %v5564 = vunpack.c.l.b16 %v4112
      %v5565 = vunpack.c.h.b16 %v4112
      %v5566 = vunpack.c.l.b16 %v4113
      %v5567 = vunpack.c.h.b16 %v4113
      %v5568 = vunpack.c.l.b16 %v4114
      %v5569 = vunpack.c.h.b16 %v4114
      %v5570 = vunpack.c.l.b16 %v4115
      %v5571 = vunpack.c.h.b16 %v4115
      %v5572 = vunpack.c.l.b16 %v4116
      %v5573 = vunpack.c.h.b16 %v4116
      %v5574 = vunpack.c.l.b16 %v4117
      %v5575 = vunpack.c.h.b16 %v4117
      %v5576 = vunpack.c.l.b16 %v4118
      %v5577 = vunpack.c.h.b16 %v4118
      %v5578 = vunpack.c.l.b16 %v4119
      %v5579 = vunpack.c.h.b16 %v4119
      %v5580 = vunpack.c.l.b16 %v4120
      %v5581 = vunpack.c.h.b16 %v4120
      %v5582 = vunpack.c.l.b16 %v4121
      %v5583 = vunpack.c.h.b16 %v4121
      %v5584 = vunpack.c.l.b16 %v4122
      %v5585 = vunpack.c.h.b16 %v4122
      %v5586 = vunpack.c.l.b16 %v4123
      %v5587 = vunpack.c.h.b16 %v4123
      %v5588 = vunpack.c.l.b16 %v4124
      %v5589 = vunpack.c.h.b16 %v4124
      %v5590 = vunpack.c.l.b16 %v4125
      %v5591 = vunpack.c.h.b16 %v4125
      %v5592 = vunpack.c.l.b16 %v4126
      %v5593 = vunpack.c.h.b16 %v4126
      %v5594 = vunpack.c.l.b16 %v4127
      %v5595 = vunpack.c.h.b16 %v4127
      %v5596 = vunpack.c.l.b16 %v4128
      %v5597 = vunpack.c.h.b16 %v4128
      %v5598 = vunpack.c.l.b16 %v4129
      %v5599 = vunpack.c.h.b16 %v4129
      %v5600 = vunpack.c.l.b16 %v4130
      %v5601 = vunpack.c.h.b16 %v4130
      %v5602 = vunpack.c.l.b16 %v4131
      %v5603 = vunpack.c.h.b16 %v4131
      %v5604 = vunpack.c.l.b16 %v4132
      %v5605 = vunpack.c.h.b16 %v4132
      %v5606 = vunpack.c.l.b16 %v4133
      %v5607 = vunpack.c.h.b16 %v4133
      %v5608 = vunpack.c.l.b16 %v4134
      %v5609 = vunpack.c.h.b16 %v4134
      %v5610 = vunpack.c.l.b16 %v4135
      %v5611 = vunpack.c.h.b16 %v4135
      %v5612 = vunpack.c.l.b16 %v4136
      %v5613 = vunpack.c.h.b16 %v4136
      %v5614 = vunpack.c.l.b16 %v4137
      %v5615 = vunpack.c.h.b16 %v4137
      %v5616 = vunpack.c.l.b16 %v4138
      %v5617 = vunpack.c.h.b16 %v4138
      %v5618 = vunpack.c.l.b16 %v4139
      %v5619 = vunpack.c.h.b16 %v4139
      %v5620 = vunpack.c.l.b16 %v4140
      %v5621 = vunpack.c.h.b16 %v4140
      %v5622 = vunpack.c.l.b16 %v4141
      %v5623 = vunpack.c.h.b16 %v4141
      %v5624 = vunpack.c.l.b16 %v4142
      %v5625 = vunpack.c.h.b16 %v4142
      %v5626 = vunpack.c.l.b16 %v4143
      %v5627 = vunpack.c.h.b16 %v4143
      %v5628 = vunpack.c.l.b16 %v4144
      %v5629 = vunpack.c.h.b16 %v4144
      %v5630 = vunpack.c.l.b16 %v4145
      %v5631 = vunpack.c.h.b16 %v4145
      %v5632 = vunpack.c.l.b16 %v4146
      %v5633 = vunpack.c.h.b16 %v4146
      %v5634 = vunpack.c.l.b16 %v4147
      %v5635 = vunpack.c.h.b16 %v4147
      %v5636 = vunpack.c.l.b16 %v4148
      %v5637 = vunpack.c.h.b16 %v4148
      %v5638 = vunpack.c.l.b16 %v4149
      %v5639 = vunpack.c.h.b16 %v4149
      %v5640 = vunpack.c.l.b16 %v4150
      %v5641 = vunpack.c.h.b16 %v4150
      %v5642 = vunpack.c.l.b16 %v4151
      %v5643 = vunpack.c.h.b16 %v4151
      %v5644 = vunpack.c.l.b16 %v4152
      %v5645 = vunpack.c.h.b16 %v4152
      %v5646 = vunpack.c.l.b16 %v4153
      %v5647 = vunpack.c.h.b16 %v4153
      %v5648 = vunpack.c.l.b16 %v4154
      %v5649 = vunpack.c.h.b16 %v4154
      %v5650 = vunpack.c.l.b16 %v4155
      %v5651 = vunpack.c.h.b16 %v4155
      %v5652 = vunpack.c.l.b16 %v4156
      %v5653 = vunpack.c.h.b16 %v4156
      %v5654 = vunpack.c.l.b16 %v4157
      %v5655 = vunpack.c.h.b16 %v4157
      %v5656 = vunpack.c.l.b16 %v4158
      %v5657 = vunpack.c.h.b16 %v4158
      %v5658 = vunpack.c.l.b16 %v4159
      %v5659 = vunpack.c.h.b16 %v4159
      %v5660 = vunpack.c.l.b16 %v4160
      %v5661 = vunpack.c.h.b16 %v4160
      %v5662 = vunpack.c.l.b16 %v4161
      %v5663 = vunpack.c.h.b16 %v4161
      %v5664 = vunpack.c.l.b16 %v4162
      %v5665 = vunpack.c.h.b16 %v4162
      %v5666 = vunpack.c.l.b16 %v4163
      %v5667 = vunpack.c.h.b16 %v4163
      %v5668 = vunpack.c.l.b16 %v4164
      %v5669 = vunpack.c.h.b16 %v4164
      %v5670 = vunpack.c.l.b16 %v4165
      %v5671 = vunpack.c.h.b16 %v4165
      %v5672 = vunpack.c.l.b16 %v4166
      %v5673 = vunpack.c.h.b16 %v4166
      %v5674 = vunpack.c.l.b16 %v4167
      %v5675 = vunpack.c.h.b16 %v4167
      %v5676 = vunpack.c.l.b16 %v4168
      %v5677 = vunpack.c.h.b16 %v4168
      %v5678 = vunpack.c.l.b16 %v4169
      %v5679 = vunpack.c.h.b16 %v4169
      %v5680 = vunpack.c.l.b16 %v4170
      %v5681 = vunpack.c.h.b16 %v4170
      %v5682 = vunpack.c.l.b16 %v4171
      %v5683 = vunpack.c.h.b16 %v4171
      %v5684 = vunpack.c.l.b16 %v4172
      %v5685 = vunpack.c.h.b16 %v4172
      %v5686 = vunpack.c.l.b16 %v4173
      %v5687 = vunpack.c.h.b16 %v4173
      %v5688 = vunpack.c.l.b16 %v4174
      %v5689 = vunpack.c.h.b16 %v4174
      %v5690 = vunpack.c.l.b16 %v4175
      %v5691 = vunpack.c.h.b16 %v4175
      %v5692 = vunpack.c.l.b16 %v4176
      %v5693 = vunpack.c.h.b16 %v4176
      %v5694 = vunpack.c.l.b16 %v4177
      %v5695 = vunpack.c.h.b16 %v4177
      %v5696 = vunpack.c.l.b16 %v4178
      %v5697 = vunpack.c.h.b16 %v4178
      %v5698 = vunpack.c.l.b16 %v4179
      %v5699 = vunpack.c.h.b16 %v4179
      %v5700 = vunpack.c.l.b16 %v4180
      %v5701 = vunpack.c.h.b16 %v4180
      %v5702 = vunpack.c.l.b16 %v4181
      %v5703 = vunpack.c.h.b16 %v4181
      %v5704 = vunpack.c.l.b16 %v4182
      %v5705 = vunpack.c.h.b16 %v4182
      %v5706 = vunpack.c.l.b16 %v4183
      %v5707 = vunpack.c.h.b16 %v4183
      %v5708 = vunpack.c.l.b16 %v4184
      %v5709 = vunpack.c.h.b16 %v4184
      %v5710 = vunpack.c.l.b16 %v4185
      %v5711 = vunpack.c.h.b16 %v4185
      %v5712 = vunpack.c.l.b16 %v4186
      %v5713 = vunpack.c.h.b16 %v4186
      %v5714 = vunpack.c.l.b16 %v4187
      %v5715 = vunpack.c.h.b16 %v4187
      %v5716 = vunpack.c.l.b16 %v4188
      %v5717 = vunpack.c.h.b16 %v4188
      %v5718 = vunpack.c.l.b16 %v4189
      %v5719 = vunpack.c.h.b16 %v4189
      %v5720 = vunpack.c.l.b16 %v4190
      %v5721 = vunpack.c.h.b16 %v4190
      %v5722 = vunpack.c.l.b16 %v4191
      %v5723 = vunpack.c.h.b16 %v4191
      %v5724 = vunpack.c.l.b16 %v4192
      %v5725 = vunpack.c.h.b16 %v4192
      %v5726 = vunpack.c.l.b16 %v4193
      %v5727 = vunpack.c.h.b16 %v4193
      %v5728 = vunpack.c.l.b16 %v4194
      %v5729 = vunpack.c.h.b16 %v4194
      %v5730 = vunpack.c.l.b16 %v4195
      %v5731 = vunpack.c.h.b16 %v4195
      %v5732 = vunpack.c.l.b16 %v4196
      %v5733 = vunpack.c.h.b16 %v4196
      %v5734 = vunpack.c.l.b16 %v4197
      %v5735 = vunpack.c.h.b16 %v4197
      %v5736 = vunpack.c.l.b16 %v4198
      %v5737 = vunpack.c.h.b16 %v4198
      %v5738 = vunpack.c.l.b16 %v4199
      %v5739 = vunpack.c.h.b16 %v4199
      %v5740 = vunpack.c.l.b16 %v4200
      %v5741 = vunpack.c.h.b16 %v4200
      %v5742 = vunpack.c.l.b16 %v4201
      %v5743 = vunpack.c.h.b16 %v4201
      %v5744 = vunpack.c.l.b16 %v4202
      %v5745 = vunpack.c.h.b16 %v4202
      %v5746 = vunpack.c.l.b16 %v4203
      %v5747 = vunpack.c.h.b16 %v4203
      %v5748 = vunpack.c.l.b16 %v4204
      %v5749 = vunpack.c.h.b16 %v4204
      %v5750 = vunpack.c.l.b16 %v4205
      %v5751 = vunpack.c.h.b16 %v4205
      %v5752 = vunpack.c.l.b16 %v4206
      %v5753 = vunpack.c.h.b16 %v4206
      %v5754 = vunpack.c.l.b16 %v4207
      %v5755 = vunpack.c.h.b16 %v4207
      %v5756 = vunpack.c.l.b16 %v4208
      %v5757 = vunpack.c.h.b16 %v4208
      %v5758 = vunpack.c.l.b16 %v4209
      %v5759 = vunpack.c.h.b16 %v4209
      %v5760 = vunpack.c.l.b16 %v4210
      %v5761 = vunpack.c.h.b16 %v4210
      %v5762 = vunpack.c.l.b16 %v4211
      %v5763 = vunpack.c.h.b16 %v4211
      %v5764 = vunpack.c.l.b16 %v4212
      %v5765 = vunpack.c.h.b16 %v4212
      %v5766 = vunpack.c.l.b16 %v4213
      %v5767 = vunpack.c.h.b16 %v4213
      %v5768 = vunpack.c.l.b16 %v4214
      %v5769 = vunpack.c.h.b16 %v4214
      %v5770 = vunpack.c.l.b16 %v4215
      %v5771 = vunpack.c.h.b16 %v4215
      %v5772 = vunpack.c.l.b16 %v4216
      %v5773 = vunpack.c.h.b16 %v4216
      %v5774 = vunpack.c.l.b16 %v4217
      %v5775 = vunpack.c.h.b16 %v4217
      %v5776 = vunpack.c.l.b16 %v4218
      %v5777 = vunpack.c.h.b16 %v4218
      %v5778 = vunpack.c.l.b16 %v4219
      %v5779 = vunpack.c.h.b16 %v4219
      %v5780 = vunpack.c.l.b16 %v4220
      %v5781 = vunpack.c.h.b16 %v4220
      %v5782 = vunpack.c.l.b16 %v4221
      %v5783 = vunpack.c.h.b16 %v4221
      %v5784 = vunpack.c.l.b16 %v4222
      %v5785 = vunpack.c.h.b16 %v4222
      %v5786 = vunpack.c.l.b16 %v4223
      %v5787 = vunpack.c.h.b16 %v4223
      %v5788 = vunpack.c.l.b16 %v4224
      %v5789 = vunpack.c.h.b16 %v4224
      %v5790 = vunpack.c.l.b16 %v4225
      %v5791 = vunpack.c.h.b16 %v4225
      %v5792 = vunpack.c.l.b16 %v4226
      %v5793 = vunpack.c.h.b16 %v4226
      %v5794 = vunpack.c.l.b16 %v4227
      %v5795 = vunpack.c.h.b16 %v4227
      %v5796 = vpack.c.b16 %v5288, %v5284
      %v5797 = vpack.c.b16 %v5289, %v5285
      %v5798 = vpack.c.b16 %v5290, %v5286
      %v5799 = vpack.c.b16 %v5291, %v5287
      %v5800 = vpack.c.b16 %v5296, %v5292
      %v5801 = vpack.c.b16 %v5297, %v5293
      %v5802 = vpack.c.b16 %v5298, %v5294
      %v5803 = vpack.c.b16 %v5299, %v5295
      %v5804 = vpack.c.b16 %v5304, %v5300
      %v5805 = vpack.c.b16 %v5305, %v5301
      %v5806 = vpack.c.b16 %v5306, %v5302
      %v5807 = vpack.c.b16 %v5307, %v5303
      %v5808 = vpack.c.b16 %v5312, %v5308
      %v5809 = vpack.c.b16 %v5313, %v5309
      %v5810 = vpack.c.b16 %v5314, %v5310
      %v5811 = vpack.c.b16 %v5315, %v5311
      %v5812 = vpack.c.b16 %v5320, %v5316
      %v5813 = vpack.c.b16 %v5321, %v5317
      %v5814 = vpack.c.b16 %v5322, %v5318
      %v5815 = vpack.c.b16 %v5323, %v5319
      %v5816 = vpack.c.b16 %v5328, %v5324
      %v5817 = vpack.c.b16 %v5329, %v5325
      %v5818 = vpack.c.b16 %v5330, %v5326
      %v5819 = vpack.c.b16 %v5331, %v5327
      %v5820 = vpack.c.b16 %v5336, %v5332
      %v5821 = vpack.c.b16 %v5337, %v5333
      %v5822 = vpack.c.b16 %v5338, %v5334
      %v5823 = vpack.c.b16 %v5339, %v5335
      %v5824 = vpack.c.b16 %v5344, %v5340
      %v5825 = vpack.c.b16 %v5345, %v5341
      %v5826 = vpack.c.b16 %v5346, %v5342
      %v5827 = vpack.c.b16 %v5347, %v5343
      %v5828 = vpack.c.b16 %v5352, %v5348
      %v5829 = vpack.c.b16 %v5353, %v5349
      %v5830 = vpack.c.b16 %v5354, %v5350
      %v5831 = vpack.c.b16 %v5355, %v5351
      %v5832 = vpack.c.b16 %v5360, %v5356
      %v5833 = vpack.c.b16 %v5361, %v5357
      %v5834 = vpack.c.b16 %v5362, %v5358
      %v5835 = vpack.c.b16 %v5363, %v5359
      %v5836 = vpack.c.b16 %v5368, %v5364
      %v5837 = vpack.c.b16 %v5369, %v5365
      %v5838 = vpack.c.b16 %v5370, %v5366
      %v5839 = vpack.c.b16 %v5371, %v5367
      %v5840 = vpack.c.b16 %v5376, %v5372
      %v5841 = vpack.c.b16 %v5377, %v5373
      %v5842 = vpack.c.b16 %v5378, %v5374
      %v5843 = vpack.c.b16 %v5379, %v5375
      %v5844 = vpack.c.b16 %v5384, %v5380
      %v5845 = vpack.c.b16 %v5385, %v5381
      %v5846 = vpack.c.b16 %v5386, %v5382
      %v5847 = vpack.c.b16 %v5387, %v5383
      %v5848 = vpack.c.b16 %v5392, %v5388
      %v5849 = vpack.c.b16 %v5393, %v5389
      %v5850 = vpack.c.b16 %v5394, %v5390
      %v5851 = vpack.c.b16 %v5395, %v5391
      %v5852 = vpack.c.b16 %v5400, %v5396
      %v5853 = vpack.c.b16 %v5401, %v5397
      %v5854 = vpack.c.b16 %v5402, %v5398
      %v5855 = vpack.c.b16 %v5403, %v5399
      %v5856 = vpack.c.b16 %v5408, %v5404
      %v5857 = vpack.c.b16 %v5409, %v5405
      %v5858 = vpack.c.b16 %v5410, %v5406
      %v5859 = vpack.c.b16 %v5411, %v5407
      %v5860 = vpack.c.b16 %v5416, %v5412
      %v5861 = vpack.c.b16 %v5417, %v5413
      %v5862 = vpack.c.b16 %v5418, %v5414
      %v5863 = vpack.c.b16 %v5419, %v5415
      %v5864 = vpack.c.b16 %v5424, %v5420
      %v5865 = vpack.c.b16 %v5425, %v5421
      %v5866 = vpack.c.b16 %v5426, %v5422
      %v5867 = vpack.c.b16 %v5427, %v5423
      %v5868 = vpack.c.b16 %v5432, %v5428
      %v5869 = vpack.c.b16 %v5433, %v5429
      %v5870 = vpack.c.b16 %v5434, %v5430
      %v5871 = vpack.c.b16 %v5435, %v5431
      %v5872 = vpack.c.b16 %v5440, %v5436
      %v5873 = vpack.c.b16 %v5441, %v5437
      %v5874 = vpack.c.b16 %v5442, %v5438
      %v5875 = vpack.c.b16 %v5443, %v5439
      %v5876 = vpack.c.b16 %v5448, %v5444
      %v5877 = vpack.c.b16 %v5449, %v5445
      %v5878 = vpack.c.b16 %v5450, %v5446
      %v5879 = vpack.c.b16 %v5451, %v5447
      %v5880 = vpack.c.b16 %v5456, %v5452
      %v5881 = vpack.c.b16 %v5457, %v5453
      %v5882 = vpack.c.b16 %v5458, %v5454
      %v5883 = vpack.c.b16 %v5459, %v5455
      %v5884 = vpack.c.b16 %v5464, %v5460
      %v5885 = vpack.c.b16 %v5465, %v5461
      %v5886 = vpack.c.b16 %v5466, %v5462
      %v5887 = vpack.c.b16 %v5467, %v5463
      %v5888 = vpack.c.b16 %v5472, %v5468
      %v5889 = vpack.c.b16 %v5473, %v5469
      %v5890 = vpack.c.b16 %v5474, %v5470
      %v5891 = vpack.c.b16 %v5475, %v5471
      %v5892 = vpack.c.b16 %v5480, %v5476
      %v5893 = vpack.c.b16 %v5481, %v5477
      %v5894 = vpack.c.b16 %v5482, %v5478
      %v5895 = vpack.c.b16 %v5483, %v5479
      %v5896 = vpack.c.b16 %v5488, %v5484
      %v5897 = vpack.c.b16 %v5489, %v5485
      %v5898 = vpack.c.b16 %v5490, %v5486
      %v5899 = vpack.c.b16 %v5491, %v5487
      %v5900 = vpack.c.b16 %v5496, %v5492
      %v5901 = vpack.c.b16 %v5497, %v5493
      %v5902 = vpack.c.b16 %v5498, %v5494
      %v5903 = vpack.c.b16 %v5499, %v5495
      %v5904 = vpack.c.b16 %v5504, %v5500
      %v5905 = vpack.c.b16 %v5505, %v5501
      %v5906 = vpack.c.b16 %v5506, %v5502
      %v5907 = vpack.c.b16 %v5507, %v5503
      %v5908 = vpack.c.b16 %v5512, %v5508
      %v5909 = vpack.c.b16 %v5513, %v5509
      %v5910 = vpack.c.b16 %v5514, %v5510
      %v5911 = vpack.c.b16 %v5515, %v5511
      %v5912 = vpack.c.b16 %v5520, %v5516
      %v5913 = vpack.c.b16 %v5521, %v5517
      %v5914 = vpack.c.b16 %v5522, %v5518
      %v5915 = vpack.c.b16 %v5523, %v5519
      %v5916 = vpack.c.b16 %v5528, %v5524
      %v5917 = vpack.c.b16 %v5529, %v5525
      %v5918 = vpack.c.b16 %v5530, %v5526
      %v5919 = vpack.c.b16 %v5531, %v5527
      %v5920 = vpack.c.b16 %v5536, %v5532
      %v5921 = vpack.c.b16 %v5537, %v5533
      %v5922 = vpack.c.b16 %v5538, %v5534
      %v5923 = vpack.c.b16 %v5539, %v5535
      %v5924 = vpack.c.b16 %v5544, %v5540
      %v5925 = vpack.c.b16 %v5545, %v5541
      %v5926 = vpack.c.b16 %v5546, %v5542
      %v5927 = vpack.c.b16 %v5547, %v5543
      %v5928 = vpack.c.b16 %v5552, %v5548
      %v5929 = vpack.c.b16 %v5553, %v5549
      %v5930 = vpack.c.b16 %v5554, %v5550
      %v5931 = vpack.c.b16 %v5555, %v5551
      %v5932 = vpack.c.b16 %v5560, %v5556
      %v5933 = vpack.c.b16 %v5561, %v5557
      %v5934 = vpack.c.b16 %v5562, %v5558
      %v5935 = vpack.c.b16 %v5563, %v5559
      %v5936 = vpack.c.b16 %v5568, %v5564
      %v5937 = vpack.c.b16 %v5569, %v5565
      %v5938 = vpack.c.b16 %v5570, %v5566
      %v5939 = vpack.c.b16 %v5571, %v5567
      %v5940 = vpack.c.b16 %v5576, %v5572
      %v5941 = vpack.c.b16 %v5577, %v5573
      %v5942 = vpack.c.b16 %v5578, %v5574
      %v5943 = vpack.c.b16 %v5579, %v5575
      %v5944 = vpack.c.b16 %v5584, %v5580
      %v5945 = vpack.c.b16 %v5585, %v5581
      %v5946 = vpack.c.b16 %v5586, %v5582
      %v5947 = vpack.c.b16 %v5587, %v5583
      %v5948 = vpack.c.b16 %v5592, %v5588
      %v5949 = vpack.c.b16 %v5593, %v5589
      %v5950 = vpack.c.b16 %v5594, %v5590
      %v5951 = vpack.c.b16 %v5595, %v5591
      %v5952 = vpack.c.b16 %v5600, %v5596
      %v5953 = vpack.c.b16 %v5601, %v5597
      %v5954 = vpack.c.b16 %v5602, %v5598
      %v5955 = vpack.c.b16 %v5603, %v5599
      %v5956 = vpack.c.b16 %v5608, %v5604
      %v5957 = vpack.c.b16 %v5609, %v5605
      %v5958 = vpack.c.b16 %v5610, %v5606
      %v5959 = vpack.c.b16 %v5611, %v5607
      %v5960 = vpack.c.b16 %v5616, %v5612
      %v5961 = vpack.c.b16 %v5617, %v5613
      %v5962 = vpack.c.b16 %v5618, %v5614
      %v5963 = vpack.c.b16 %v5619, %v5615
      %v5964 = vpack.c.b16 %v5624, %v5620
      %v5965 = vpack.c.b16 %v5625, %v5621
      %v5966 = vpack.c.b16 %v5626, %v5622
      %v5967 = vpack.c.b16 %v5627, %v5623
      %v5968 = vpack.c.b16 %v5632, %v5628
      %v5969 = vpack.c.b16 %v5633, %v5629
      %v5970 = vpack.c.b16 %v5634, %v5630
      %v5971 = vpack.c.b16 %v5635, %v5631
      %v5972 = vpack.c.b16 %v5640, %v5636
      %v5973 = vpack.c.b16 %v5641, %v5637
      %v5974 = vpack.c.b16 %v5642, %v5638
      %v5975 = vpack.c.b16 %v5643, %v5639
      %v5976 = vpack.c.b16 %v5648, %v5644
      %v5977 = vpack.c.b16 %v5649, %v5645
      %v5978 = vpack.c.b16 %v5650, %v5646
      %v5979 = vpack.c.b16 %v5651, %v5647
      %v5980 = vpack.c.b16 %v5656, %v5652
      %v5981 = vpack.c.b16 %v5657, %v5653
      %v5982 = vpack.c.b16 %v5658, %v5654
      %v5983 = vpack.c.b16 %v5659, %v5655
      %v5984 = vpack.c.b16 %v5664, %v5660
      %v5985 = vpack.c.b16 %v5665, %v5661
      %v5986 = vpack.c.b16 %v5666, %v5662
      %v5987 = vpack.c.b16 %v5667, %v5663
      %v5988 = vpack.c.b16 %v5672, %v5668
      %v5989 = vpack.c.b16 %v5673, %v5669
      %v5990 = vpack.c.b16 %v5674, %v5670
      %v5991 = vpack.c.b16 %v5675, %v5671
      %v5992 = vpack.c.b16 %v5680, %v5676
      %v5993 = vpack.c.b16 %v5681, %v5677
      %v5994 = vpack.c.b16 %v5682, %v5678
      %v5995 = vpack.c.b16 %v5683, %v5679
      %v5996 = vpack.c.b16 %v5688, %v5684
      %v5997 = vpack.c.b16 %v5689, %v5685
      %v5998 = vpack.c.b16 %v5690, %v5686
      %v5999 = vpack.c.b16 %v5691, %v5687
      %v6000 = vpack.c.b16 %v5696, %v5692
      %v6001 = vpack.c.b16 %v5697, %v5693
      %v6002 = vpack.c.b16 %v5698, %v5694
      %v6003 = vpack.c.b16 %v5699, %v5695
      %v6004 = vpack.c.b16 %v5704, %v5700
      %v6005 = vpack.c.b16 %v5705, %v5701
      %v6006 = vpack.c.b16 %v5706, %v5702
      %v6007 = vpack.c.b16 %v5707, %v5703
      %v6008 = vpack.c.b16 %v5712, %v5708
      %v6009 = vpack.c.b16 %v5713, %v5709
      %v6010 = vpack.c.b16 %v5714, %v5710
      %v6011 = vpack.c.b16 %v5715, %v5711
      %v6012 = vpack.c.b16 %v5720, %v5716
      %v6013 = vpack.c.b16 %v5721, %v5717
      %v6014 = vpack.c.b16 %v5722, %v5718
      %v6015 = vpack.c.b16 %v5723, %v5719
      %v6016 = vpack.c.b16 %v5728, %v5724
      %v6017 = vpack.c.b16 %v5729, %v5725
      %v6018 = vpack.c.b16 %v5730, %v5726
      %v6019 = vpack.c.b16 %v5731, %v5727
      %v6020 = vpack.c.b16 %v5736, %v5732
      %v6021 = vpack.c.b16 %v5737, %v5733
      %v6022 = vpack.c.b16 %v5738, %v5734
      %v6023 = vpack.c.b16 %v5739, %v5735
      %v6024 = vpack.c.b16 %v5744, %v5740
      %v6025 = vpack.c.b16 %v5745, %v5741
      %v6026 = vpack.c.b16 %v5746, %v5742
      %v6027 = vpack.c.b16 %v5747, %v5743
      %v6028 = vpack.c.b16 %v5752, %v5748
      %v6029 = vpack.c.b16 %v5753, %v5749
      %v6030 = vpack.c.b16 %v5754, %v5750
      %v6031 = vpack.c.b16 %v5755, %v5751
      %v6032 = vpack.c.b16 %v5760, %v5756
      %v6033 = vpack.c.b16 %v5761, %v5757
      %v6034 = vpack.c.b16 %v5762, %v5758
      %v6035 = vpack.c.b16 %v5763, %v5759
      %v6036 = vpack.c.b16 %v5768, %v5764
      %v6037 = vpack.c.b16 %v5769, %v5765
      %v6038 = vpack.c.b16 %v5770, %v5766
      %v6039 = vpack.c.b16 %v5771, %v5767
      %v6040 = vpack.c.b16 %v5776, %v5772
      %v6041 = vpack.c.b16 %v5777, %v5773
      %v6042 = vpack.c.b16 %v5778, %v5774
      %v6043 = vpack.c.b16 %v5779, %v5775
      %v6044 = vpack.c.b16 %v5784, %v5780
      %v6045 = vpack.c.b16 %v5785, %v5781
      %v6046 = vpack.c.b16 %v5786, %v5782
      %v6047 = vpack.c.b16 %v5787, %v5783
      %v6048 = vpack.c.b16 %v5792, %v5788
      %v6049 = vpack.c.b16 %v5793, %v5789
      %v6050 = vpack.c.b16 %v5794, %v5790
      %v6051 = vpack.c.b16 %v5795, %v5791
      %6308 = vmatprep.subr.bf16.mxu0 0
      %6309 = vmatpush1.bf16.msra.mxu0 %v4228
      %6310 = vmatprep.subr.bf16.mxu0 0
      %6311 = vmatpush1.bf16.msra.mxu0 %v4229
      %6312 = vmatprep.subr.bf16.mxu0 0
      %6313 = vmatpush1.bf16.msra.mxu0 %v4230
      %6314 = vmatprep.subr.bf16.mxu0 0
      %6315 = vmatpush1.bf16.msra.mxu0 %v4231
      %6316 = vmatprep.subr.bf16.mxu0 0
      %6317 = vmatpush1.bf16.msra.mxu0 %v4232
      %6318 = vmatprep.subr.bf16.mxu0 0
      %6319 = vmatpush1.bf16.msra.mxu0 %v4233
      %6320 = vmatprep.subr.bf16.mxu0 0
      %6321 = vmatpush1.bf16.msra.mxu0 %v4234
      %6322 = vmatprep.subr.bf16.mxu0 0
      %6323 = vmatpush1.bf16.msra.mxu0 %v4235
      %6324 = vmatprep.subr.bf16.mxu0 0
      %6325 = vmatpush1.bf16.msra.mxu0 %v4236
      %6326 = vmatprep.subr.bf16.mxu0 0
      %6327 = vmatpush1.bf16.msra.mxu0 %v4237
      %6328 = vmatprep.subr.bf16.mxu0 0
      %6329 = vmatpush1.bf16.msra.mxu0 %v4238
      %6330 = vmatprep.subr.bf16.mxu0 0
      %6331 = vmatpush1.bf16.msra.mxu0 %v4239
      %6332 = vmatprep.subr.bf16.mxu0 0
      %6333 = vmatpush1.bf16.msra.mxu0 %v4240
      %6334 = vmatprep.subr.bf16.mxu0 0
      %6335 = vmatpush1.bf16.msra.mxu0 %v4241
      %6336 = vmatprep.subr.bf16.mxu0 0
      %6337 = vmatpush1.bf16.msra.mxu0 %v4242
      %6338 = vmatprep.subr.bf16.mxu0 0
      %6339 = vmatpush1.bf16.msra.mxu0 %v4243
      %6340 = vmatprep.mubr.bf16.mxu0 %v5797
      %6341 = vmatmul.mubr.bf16.gmra.mrb[0].mxu0 %v5796
      %v6342 = vpop.f32.mrb[0].mxu0
      %v6343 = vadd.f32 %v4391, %v6342
      %v6344 = vpop.f32.mrb[0].mxu0
      %v6345 = vpop.f32.mrb[0].mxu0
      %v6346 = vadd.f32 %v4396, %v6345
      %v6347 = vpop.f32.mrb[0].mxu0
      %6348 = vmatprep.mubr.bf16.mxu0 %v5801
      %6349 = vmatmul.mubr.bf16.gmra.mrb[0].mxu0 %v5800
      %v6350 = vpop.f32.mrb[0].mxu0
      %v6351 = vadd.f32 %v4401, %v6350
      %v6352 = vpop.f32.mrb[0].mxu0
      %v6353 = vpop.f32.mrb[0].mxu0
      %v6354 = vadd.f32 %v4406, %v6353
      %v6355 = vpop.f32.mrb[0].mxu0
      %6356 = vmatprep.mubr.bf16.mxu0 %v5805
      %6357 = vmatmul.mubr.bf16.gmra.mrb[0].mxu0 %v5804
      %v6358 = vpop.f32.mrb[0].mxu0
      %v6359 = vadd.f32 %v4411, %v6358
      %v6360 = vpop.f32.mrb[0].mxu0
      %v6361 = vpop.f32.mrb[0].mxu0
      %v6362 = vadd.f32 %v4416, %v6361
      %v6363 = vpop.f32.mrb[0].mxu0
      %6364 = vmatprep.mubr.bf16.mxu0 %v5809
      %6365 = vmatmul.mubr.bf16.gmra.mrb[0].mxu0 %v5808
      %v6366 = vpop.f32.mrb[0].mxu0
      %v6367 = vadd.f32 %v4421, %v6366
      %v6368 = vpop.f32.mrb[0].mxu0
      %v6369 = vpop.f32.mrb[0].mxu0
      %v6370 = vadd.f32 %v4426, %v6369
      %v6371 = vpop.f32.mrb[0].mxu0
      %6372 = vmatprep.mubr.bf16.mxu0 %v5813
      %6373 = vmatmul.mubr.bf16.gmra.mrb[0].mxu0 %v5812
      %v6374 = vpop.f32.mrb[0].mxu0
      %v6375 = vadd.f32 %v4431, %v6374
      %v6376 = vpop.f32.mrb[0].mxu0
      %v6377 = vpop.f32.mrb[0].mxu0
      %v6378 = vadd.f32 %v4436, %v6377
      %v6379 = vpop.f32.mrb[0].mxu0
      %6380 = vmatprep.mubr.bf16.mxu0 %v5817
      %6381 = vmatmul.mubr.bf16.gmra.mrb[0].mxu0 %v5816
      %v6382 = vpop.f32.mrb[0].mxu0
      %v6383 = vadd.f32 %v4441, %v6382
      %v6384 = vpop.f32.mrb[0].mxu0
      %v6385 = vpop.f32.mrb[0].mxu0
      %v6386 = vadd.f32 %v4446, %v6385
      %v6387 = vpop.f32.mrb[0].mxu0
      %6388 = vmatprep.mubr.bf16.mxu0 %v5821
      %6389 = vmatmul.mubr.bf16.gmra.mrb[0].mxu0 %v5820
      %v6390 = vpop.f32.mrb[0].mxu0
      %v6391 = vadd.f32 %v4451, %v6390
      %v6392 = vpop.f32.mrb[0].mxu0
      %v6393 = vpop.f32.mrb[0].mxu0
      %v6394 = vadd.f32 %v4456, %v6393
      %v6395 = vpop.f32.mrb[0].mxu0
      %6396 = vmatprep.mubr.bf16.mxu0 %v5825
      %6397 = vmatmul.mubr.bf16.gmra.mrb[0].mxu0 %v5824
      %v6398 = vpop.f32.mrb[0].mxu0
      %v6399 = vadd.f32 %v4461, %v6398
      %v6400 = vpop.f32.mrb[0].mxu0
      %v6401 = vpop.f32.mrb[0].mxu0
      %v6402 = vadd.f32 %v4466, %v6401
      %v6403 = vpop.f32.mrb[0].mxu0
      %6404 = vmatprep.mubr.bf16.mxu0 %v5829
      %6405 = vmatmul.mubr.bf16.gmra.mrb[0].mxu0 %v5828
      %v6406 = vpop.f32.mrb[0].mxu0
      %v6407 = vadd.f32 %v4471, %v6406
      %v6408 = vpop.f32.mrb[0].mxu0
      %v6409 = vpop.f32.mrb[0].mxu0
      %v6410 = vadd.f32 %v4476, %v6409
      %v6411 = vpop.f32.mrb[0].mxu0
      %6412 = vmatprep.mubr.bf16.mxu0 %v5833
      %6413 = vmatmul.mubr.bf16.gmra.mrb[0].mxu0 %v5832
      %v6414 = vpop.f32.mrb[0].mxu0
      %v6415 = vadd.f32 %v4481, %v6414
      %v6416 = vpop.f32.mrb[0].mxu0
      %v6417 = vpop.f32.mrb[0].mxu0
      %v6418 = vadd.f32 %v4486, %v6417
      %v6419 = vpop.f32.mrb[0].mxu0
      %6420 = vmatprep.mubr.bf16.mxu0 %v5837
      %6421 = vmatmul.mubr.bf16.gmra.mrb[0].mxu0 %v5836
      %v6422 = vpop.f32.mrb[0].mxu0
      %v6423 = vadd.f32 %v4491, %v6422
      %v6424 = vpop.f32.mrb[0].mxu0
      %v6425 = vpop.f32.mrb[0].mxu0
      %v6426 = vadd.f32 %v4496, %v6425
      %v6427 = vpop.f32.mrb[0].mxu0
      %6428 = vmatprep.mubr.bf16.mxu0 %v5841
      %6429 = vmatmul.mubr.bf16.gmra.mrb[0].mxu0 %v5840
      %v6430 = vpop.f32.mrb[0].mxu0
      %v6431 = vadd.f32 %v4501, %v6430
      %v6432 = vpop.f32.mrb[0].mxu0
      %v6433 = vpop.f32.mrb[0].mxu0
      %v6434 = vadd.f32 %v4506, %v6433
      %v6435 = vpop.f32.mrb[0].mxu0
      %6436 = vmatprep.mubr.bf16.mxu0 %v5845
      %6437 = vmatmul.mubr.bf16.gmra.mrb[0].mxu0 %v5844
      %v6438 = vpop.f32.mrb[0].mxu0
      %v6439 = vadd.f32 %v4511, %v6438
      %v6440 = vpop.f32.mrb[0].mxu0
      %v6441 = vpop.f32.mrb[0].mxu0
      %v6442 = vadd.f32 %v4516, %v6441
      %v6443 = vpop.f32.mrb[0].mxu0
      %6444 = vmatprep.mubr.bf16.mxu0 %v5849
      %6445 = vmatmul.mubr.bf16.gmra.mrb[0].mxu0 %v5848
      %v6446 = vpop.f32.mrb[0].mxu0
      %v6447 = vadd.f32 %v4521, %v6446
      %v6448 = vpop.f32.mrb[0].mxu0
      %v6449 = vpop.f32.mrb[0].mxu0
      %v6450 = vadd.f32 %v4526, %v6449
      %v6451 = vpop.f32.mrb[0].mxu0
      %6452 = vmatprep.mubr.bf16.mxu0 %v5853
      %6453 = vmatmul.mubr.bf16.gmra.mrb[0].mxu0 %v5852
      %v6454 = vpop.f32.mrb[0].mxu0
      %v6455 = vadd.f32 %v4531, %v6454
      %v6456 = vpop.f32.mrb[0].mxu0
      %v6457 = vpop.f32.mrb[0].mxu0
      %v6458 = vadd.f32 %v4536, %v6457
      %v6459 = vpop.f32.mrb[0].mxu0
      %6460 = vmatprep.mubr.bf16.mxu0 %v5857
      %6461 = vmatmul.mubr.bf16.gmra.mrb[0].mxu0 %v5856
      %v6462 = vpop.f32.mrb[0].mxu0
      %v6463 = vadd.f32 %v4541, %v6462
      %v6464 = vpop.f32.mrb[0].mxu0
      %v6465 = vpop.f32.mrb[0].mxu0
      %v6466 = vadd.f32 %v4546, %v6465
      %v6467 = vpop.f32.mrb[0].mxu0
      %6468 = vmatprep.mubr.bf16.mxu0 %v5861
      %6469 = vmatmul.mubr.bf16.gmra.mrb[0].mxu0 %v5860
      %v6470 = vpop.f32.mrb[0].mxu0
      %v6471 = vadd.f32 %v4551, %v6470
      %v6472 = vpop.f32.mrb[0].mxu0
      %v6473 = vpop.f32.mrb[0].mxu0
      %v6474 = vadd.f32 %v4556, %v6473
      %v6475 = vpop.f32.mrb[0].mxu0
      %6476 = vmatprep.mubr.bf16.mxu0 %v5865
      %6477 = vmatmul.mubr.bf16.gmra.mrb[0].mxu0 %v5864
      %v6478 = vpop.f32.mrb[0].mxu0
      %v6479 = vadd.f32 %v4561, %v6478
      %v6480 = vpop.f32.mrb[0].mxu0
      %v6481 = vpop.f32.mrb[0].mxu0
      %v6482 = vadd.f32 %v4566, %v6481
      %v6483 = vpop.f32.mrb[0].mxu0
      %6484 = vmatprep.mubr.bf16.mxu0 %v5869
      %6485 = vmatmul.mubr.bf16.gmra.mrb[0].mxu0 %v5868
      %v6486 = vpop.f32.mrb[0].mxu0
      %v6487 = vadd.f32 %v4571, %v6486
      %v6488 = vpop.f32.mrb[0].mxu0
      %v6489 = vpop.f32.mrb[0].mxu0
      %v6490 = vadd.f32 %v4576, %v6489
      %v6491 = vpop.f32.mrb[0].mxu0
      %6492 = vmatprep.mubr.bf16.mxu0 %v5873
      %6493 = vmatmul.mubr.bf16.gmra.mrb[0].mxu0 %v5872
      %v6494 = vpop.f32.mrb[0].mxu0
      %v6495 = vadd.f32 %v4581, %v6494
      %v6496 = vpop.f32.mrb[0].mxu0
      %v6497 = vpop.f32.mrb[0].mxu0
      %v6498 = vadd.f32 %v4586, %v6497
      %v6499 = vpop.f32.mrb[0].mxu0
      %6500 = vmatprep.mubr.bf16.mxu0 %v5877
      %6501 = vmatmul.mubr.bf16.gmra.mrb[0].mxu0 %v5876
      %v6502 = vpop.f32.mrb[0].mxu0
      %v6503 = vadd.f32 %v4591, %v6502
      %v6504 = vpop.f32.mrb[0].mxu0
      %v6505 = vpop.f32.mrb[0].mxu0
      %v6506 = vadd.f32 %v4596, %v6505
      %v6507 = vpop.f32.mrb[0].mxu0
      %6508 = vmatprep.mubr.bf16.mxu0 %v5881
      %6509 = vmatmul.mubr.bf16.gmra.mrb[0].mxu0 %v5880
      %v6510 = vpop.f32.mrb[0].mxu0
      %v6511 = vadd.f32 %v4601, %v6510
      %v6512 = vpop.f32.mrb[0].mxu0
      %v6513 = vpop.f32.mrb[0].mxu0
      %v6514 = vadd.f32 %v4606, %v6513
      %v6515 = vpop.f32.mrb[0].mxu0
      %6516 = vmatprep.mubr.bf16.mxu0 %v5885
      %6517 = vmatmul.mubr.bf16.gmra.mrb[0].mxu0 %v5884
      %v6518 = vpop.f32.mrb[0].mxu0
      %v6519 = vadd.f32 %v4611, %v6518
      %v6520 = vpop.f32.mrb[0].mxu0
      %v6521 = vpop.f32.mrb[0].mxu0
      %v6522 = vadd.f32 %v4616, %v6521
      %v6523 = vpop.f32.mrb[0].mxu0
      %6524 = vmatprep.mubr.bf16.mxu0 %v5889
      %6525 = vmatmul.mubr.bf16.gmra.mrb[0].mxu0 %v5888
      %v6526 = vpop.f32.mrb[0].mxu0
      %v6527 = vadd.f32 %v4621, %v6526
      %v6528 = vpop.f32.mrb[0].mxu0
      %v6529 = vpop.f32.mrb[0].mxu0
      %v6530 = vadd.f32 %v4626, %v6529
      %v6531 = vpop.f32.mrb[0].mxu0
      %6532 = vmatprep.mubr.bf16.mxu0 %v5893
      %6533 = vmatmul.mubr.bf16.gmra.mrb[0].mxu0 %v5892
      %v6534 = vpop.f32.mrb[0].mxu0
      %v6535 = vadd.f32 %v4631, %v6534
      %v6536 = vpop.f32.mrb[0].mxu0
      %v6537 = vpop.f32.mrb[0].mxu0
      %v6538 = vadd.f32 %v4636, %v6537
      %v6539 = vpop.f32.mrb[0].mxu0
      %6540 = vmatprep.mubr.bf16.mxu0 %v5897
      %6541 = vmatmul.mubr.bf16.gmra.mrb[0].mxu0 %v5896
      %v6542 = vpop.f32.mrb[0].mxu0
      %v6543 = vadd.f32 %v4641, %v6542
      %v6544 = vpop.f32.mrb[0].mxu0
      %v6545 = vpop.f32.mrb[0].mxu0
      %v6546 = vadd.f32 %v4646, %v6545
      %v6547 = vpop.f32.mrb[0].mxu0
      %6548 = vmatprep.mubr.bf16.mxu0 %v5901
      %6549 = vmatmul.mubr.bf16.gmra.mrb[0].mxu0 %v5900
      %v6550 = vpop.f32.mrb[0].mxu0
      %v6551 = vadd.f32 %v4651, %v6550
      %v6552 = vpop.f32.mrb[0].mxu0
      %v6553 = vpop.f32.mrb[0].mxu0
      %v6554 = vadd.f32 %v4656, %v6553
      %v6555 = vpop.f32.mrb[0].mxu0
      %6556 = vmatprep.mubr.bf16.mxu0 %v5905
      %6557 = vmatmul.mubr.bf16.gmra.mrb[0].mxu0 %v5904
      %v6558 = vpop.f32.mrb[0].mxu0
      %v6559 = vadd.f32 %v4661, %v6558
      %v6560 = vpop.f32.mrb[0].mxu0
      %v6561 = vpop.f32.mrb[0].mxu0
      %v6562 = vadd.f32 %v4666, %v6561
      %v6563 = vpop.f32.mrb[0].mxu0
      %6564 = vmatprep.mubr.bf16.mxu0 %v5909
      %6565 = vmatmul.mubr.bf16.gmra.mrb[0].mxu0 %v5908
      %v6566 = vpop.f32.mrb[0].mxu0
      %v6567 = vadd.f32 %v4671, %v6566
      %v6568 = vpop.f32.mrb[0].mxu0
      %v6569 = vpop.f32.mrb[0].mxu0
      %v6570 = vadd.f32 %v4676, %v6569
      %v6571 = vpop.f32.mrb[0].mxu0
      %6572 = vmatprep.mubr.bf16.mxu0 %v5913
      %6573 = vmatmul.mubr.bf16.gmra.mrb[0].mxu0 %v5912
      %v6574 = vpop.f32.mrb[0].mxu0
      %v6575 = vadd.f32 %v4681, %v6574
      %v6576 = vpop.f32.mrb[0].mxu0
      %v6577 = vpop.f32.mrb[0].mxu0
      %v6578 = vadd.f32 %v4686, %v6577
      %v6579 = vpop.f32.mrb[0].mxu0
      %6580 = vmatprep.mubr.bf16.mxu0 %v5917
      %6581 = vmatmul.mubr.bf16.gmra.mrb[0].mxu0 %v5916
      %v6582 = vpop.f32.mrb[0].mxu0
      %v6583 = vadd.f32 %v4691, %v6582
      %v6584 = vpop.f32.mrb[0].mxu0
      %v6585 = vpop.f32.mrb[0].mxu0
      %v6586 = vadd.f32 %v4696, %v6585
      %v6587 = vpop.f32.mrb[0].mxu0
      %6588 = vmatprep.mubr.bf16.mxu0 %v5921
      %6589 = vmatmul.mubr.bf16.gmra.mrb[0].mxu0 %v5920
      %v6590 = vpop.f32.mrb[0].mxu0
      %v6591 = vadd.f32 %v4701, %v6590
      %v6592 = vpop.f32.mrb[0].mxu0
      %v6593 = vpop.f32.mrb[0].mxu0
      %v6594 = vadd.f32 %v4706, %v6593
      %v6595 = vpop.f32.mrb[0].mxu0
      %6596 = vmatprep.mubr.bf16.mxu0 %v5925
      %6597 = vmatmul.mubr.bf16.gmra.mrb[0].mxu0 %v5924
      %v6598 = vpop.f32.mrb[0].mxu0
      %v6599 = vadd.f32 %v4711, %v6598
      %v6600 = vpop.f32.mrb[0].mxu0
      %v6601 = vpop.f32.mrb[0].mxu0
      %v6602 = vadd.f32 %v4716, %v6601
      %v6603 = vpop.f32.mrb[0].mxu0
      %6604 = vmatprep.mubr.bf16.mxu0 %v5929
      %6605 = vmatmul.mubr.bf16.gmra.mrb[0].mxu0 %v5928
      %v6606 = vpop.f32.mrb[0].mxu0
      %v6607 = vadd.f32 %v4721, %v6606
      %v6608 = vpop.f32.mrb[0].mxu0
      %v6609 = vpop.f32.mrb[0].mxu0
      %v6610 = vadd.f32 %v4726, %v6609
      %v6611 = vpop.f32.mrb[0].mxu0
      %6612 = vmatprep.mubr.bf16.mxu0 %v5933
      %6613 = vmatmul.mubr.bf16.gmra.mrb[0].mxu0 %v5932
      %v6614 = vpop.f32.mrb[0].mxu0
      %v6615 = vadd.f32 %v4731, %v6614
      %v6616 = vpop.f32.mrb[0].mxu0
      %v6617 = vpop.f32.mrb[0].mxu0
      %v6618 = vadd.f32 %v4736, %v6617
      %v6619 = vpop.f32.mrb[0].mxu0
      %6620 = vmatprep.mubr.bf16.mxu0 %v5937
      %6621 = vmatmul.mubr.bf16.gmra.mrb[0].mxu0 %v5936
      %v6622 = vpop.f32.mrb[0].mxu0
      %v6623 = vadd.f32 %v4741, %v6622
      %v6624 = vpop.f32.mrb[0].mxu0
      %v6625 = vpop.f32.mrb[0].mxu0
      %v6626 = vadd.f32 %v4746, %v6625
      %v6627 = vpop.f32.mrb[0].mxu0
      %6628 = vmatprep.mubr.bf16.mxu0 %v5941
      %6629 = vmatmul.mubr.bf16.gmra.mrb[0].mxu0 %v5940
      %v6630 = vpop.f32.mrb[0].mxu0
      %v6631 = vadd.f32 %v4751, %v6630
      %v6632 = vpop.f32.mrb[0].mxu0
      %v6633 = vpop.f32.mrb[0].mxu0
      %v6634 = vadd.f32 %v4756, %v6633
      %v6635 = vpop.f32.mrb[0].mxu0
      %6636 = vmatprep.mubr.bf16.mxu0 %v5945
      %6637 = vmatmul.mubr.bf16.gmra.mrb[0].mxu0 %v5944
      %v6638 = vpop.f32.mrb[0].mxu0
      %v6639 = vadd.f32 %v4761, %v6638
      %v6640 = vpop.f32.mrb[0].mxu0
      %v6641 = vpop.f32.mrb[0].mxu0
      %v6642 = vadd.f32 %v4766, %v6641
      %v6643 = vpop.f32.mrb[0].mxu0
      %6644 = vmatprep.mubr.bf16.mxu0 %v5949
      %6645 = vmatmul.mubr.bf16.gmra.mrb[0].mxu0 %v5948
      %v6646 = vpop.f32.mrb[0].mxu0
      %v6647 = vadd.f32 %v4771, %v6646
      %v6648 = vpop.f32.mrb[0].mxu0
      %v6649 = vpop.f32.mrb[0].mxu0
      %v6650 = vadd.f32 %v4776, %v6649
      %v6651 = vpop.f32.mrb[0].mxu0
      %6652 = vmatprep.mubr.bf16.mxu0 %v5953
      %6653 = vmatmul.mubr.bf16.gmra.mrb[0].mxu0 %v5952
      %v6654 = vpop.f32.mrb[0].mxu0
      %v6655 = vadd.f32 %v4781, %v6654
      %v6656 = vpop.f32.mrb[0].mxu0
      %v6657 = vpop.f32.mrb[0].mxu0
      %v6658 = vadd.f32 %v4786, %v6657
      %v6659 = vpop.f32.mrb[0].mxu0
      %6660 = vmatprep.mubr.bf16.mxu0 %v5957
      %6661 = vmatmul.mubr.bf16.gmra.mrb[0].mxu0 %v5956
      %v6662 = vpop.f32.mrb[0].mxu0
      %v6663 = vadd.f32 %v4791, %v6662
      %v6664 = vpop.f32.mrb[0].mxu0
      %v6665 = vpop.f32.mrb[0].mxu0
      %v6666 = vadd.f32 %v4796, %v6665
      %v6667 = vpop.f32.mrb[0].mxu0
      %6668 = vmatprep.mubr.bf16.mxu0 %v5961
      %6669 = vmatmul.mubr.bf16.gmra.mrb[0].mxu0 %v5960
      %v6670 = vpop.f32.mrb[0].mxu0
      %v6671 = vadd.f32 %v4801, %v6670
      %v6672 = vpop.f32.mrb[0].mxu0
      %v6673 = vpop.f32.mrb[0].mxu0
      %v6674 = vadd.f32 %v4806, %v6673
      %v6675 = vpop.f32.mrb[0].mxu0
      %6676 = vmatprep.mubr.bf16.mxu0 %v5965
      %6677 = vmatmul.mubr.bf16.gmra.mrb[0].mxu0 %v5964
      %v6678 = vpop.f32.mrb[0].mxu0
      %v6679 = vadd.f32 %v4811, %v6678
      %v6680 = vpop.f32.mrb[0].mxu0
      %v6681 = vpop.f32.mrb[0].mxu0
      %v6682 = vadd.f32 %v4816, %v6681
      %v6683 = vpop.f32.mrb[0].mxu0
      %6684 = vmatprep.mubr.bf16.mxu0 %v5969
      %6685 = vmatmul.mubr.bf16.gmra.mrb[0].mxu0 %v5968
      %v6686 = vpop.f32.mrb[0].mxu0
      %v6687 = vadd.f32 %v4821, %v6686
      %v6688 = vpop.f32.mrb[0].mxu0
      %v6689 = vpop.f32.mrb[0].mxu0
      %v6690 = vadd.f32 %v4826, %v6689
      %v6691 = vpop.f32.mrb[0].mxu0
      %6692 = vmatprep.mubr.bf16.mxu0 %v5973
      %6693 = vmatmul.mubr.bf16.gmra.mrb[0].mxu0 %v5972
      %v6694 = vpop.f32.mrb[0].mxu0
      %v6695 = vadd.f32 %v4831, %v6694
      %v6696 = vpop.f32.mrb[0].mxu0
      %v6697 = vpop.f32.mrb[0].mxu0
      %v6698 = vadd.f32 %v4836, %v6697
      %v6699 = vpop.f32.mrb[0].mxu0
      %6700 = vmatprep.mubr.bf16.mxu0 %v5977
      %6701 = vmatmul.mubr.bf16.gmra.mrb[0].mxu0 %v5976
      %v6702 = vpop.f32.mrb[0].mxu0
      %v6703 = vadd.f32 %v4841, %v6702
      %v6704 = vpop.f32.mrb[0].mxu0
      %v6705 = vpop.f32.mrb[0].mxu0
      %v6706 = vadd.f32 %v4846, %v6705
      %v6707 = vpop.f32.mrb[0].mxu0
      %6708 = vmatprep.mubr.bf16.mxu0 %v5981
      %6709 = vmatmul.mubr.bf16.gmra.mrb[0].mxu0 %v5980
      %v6710 = vpop.f32.mrb[0].mxu0
      %v6711 = vadd.f32 %v4851, %v6710
      %v6712 = vpop.f32.mrb[0].mxu0
      %v6713 = vpop.f32.mrb[0].mxu0
      %v6714 = vadd.f32 %v4856, %v6713
      %v6715 = vpop.f32.mrb[0].mxu0
      %6716 = vmatprep.mubr.bf16.mxu0 %v5985
      %6717 = vmatmul.mubr.bf16.gmra.mrb[0].mxu0 %v5984
      %v6718 = vpop.f32.mrb[0].mxu0
      %v6719 = vadd.f32 %v4861, %v6718
      %v6720 = vpop.f32.mrb[0].mxu0
      %v6721 = vpop.f32.mrb[0].mxu0
      %v6722 = vadd.f32 %v4866, %v6721
      %v6723 = vpop.f32.mrb[0].mxu0
      %6724 = vmatprep.mubr.bf16.mxu0 %v5989
      %6725 = vmatmul.mubr.bf16.gmra.mrb[0].mxu0 %v5988
      %v6726 = vpop.f32.mrb[0].mxu0
      %v6727 = vadd.f32 %v4871, %v6726
      %v6728 = vpop.f32.mrb[0].mxu0
      %v6729 = vpop.f32.mrb[0].mxu0
      %v6730 = vadd.f32 %v4876, %v6729
      %v6731 = vpop.f32.mrb[0].mxu0
      %6732 = vmatprep.mubr.bf16.mxu0 %v5993
      %6733 = vmatmul.mubr.bf16.gmra.mrb[0].mxu0 %v5992
      %v6734 = vpop.f32.mrb[0].mxu0
      %v6735 = vadd.f32 %v4881, %v6734
      %v6736 = vpop.f32.mrb[0].mxu0
      %v6737 = vpop.f32.mrb[0].mxu0
      %v6738 = vadd.f32 %v4886, %v6737
      %v6739 = vpop.f32.mrb[0].mxu0
      %6740 = vmatprep.mubr.bf16.mxu0 %v5997
      %6741 = vmatmul.mubr.bf16.gmra.mrb[0].mxu0 %v5996
      %v6742 = vpop.f32.mrb[0].mxu0
      %v6743 = vadd.f32 %v4891, %v6742
      %v6744 = vpop.f32.mrb[0].mxu0
      %v6745 = vpop.f32.mrb[0].mxu0
      %v6746 = vadd.f32 %v4896, %v6745
      %v6747 = vpop.f32.mrb[0].mxu0
      %6748 = vmatprep.mubr.bf16.mxu0 %v6001
      %6749 = vmatmul.mubr.bf16.gmra.mrb[0].mxu0 %v6000
      %v6750 = vpop.f32.mrb[0].mxu0
      %v6751 = vadd.f32 %v4901, %v6750
      %v6752 = vpop.f32.mrb[0].mxu0
      %v6753 = vpop.f32.mrb[0].mxu0
      %v6754 = vadd.f32 %v4906, %v6753
      %v6755 = vpop.f32.mrb[0].mxu0
      %6756 = vmatprep.mubr.bf16.mxu0 %v6005
      %6757 = vmatmul.mubr.bf16.gmra.mrb[0].mxu0 %v6004
      %v6758 = vpop.f32.mrb[0].mxu0
      %v6759 = vadd.f32 %v4911, %v6758
      %v6760 = vpop.f32.mrb[0].mxu0
      %v6761 = vpop.f32.mrb[0].mxu0
      %v6762 = vadd.f32 %v4916, %v6761
      %v6763 = vpop.f32.mrb[0].mxu0
      %6764 = vmatprep.mubr.bf16.mxu0 %v6009
      %6765 = vmatmul.mubr.bf16.gmra.mrb[0].mxu0 %v6008
      %v6766 = vpop.f32.mrb[0].mxu0
      %v6767 = vadd.f32 %v4921, %v6766
      %v6768 = vpop.f32.mrb[0].mxu0
      %v6769 = vpop.f32.mrb[0].mxu0
      %v6770 = vadd.f32 %v4926, %v6769
      %v6771 = vpop.f32.mrb[0].mxu0
      %6772 = vmatprep.mubr.bf16.mxu0 %v6013
      %6773 = vmatmul.mubr.bf16.gmra.mrb[0].mxu0 %v6012
      %v6774 = vpop.f32.mrb[0].mxu0
      %v6775 = vadd.f32 %v4931, %v6774
      %v6776 = vpop.f32.mrb[0].mxu0
      %v6777 = vpop.f32.mrb[0].mxu0
      %v6778 = vadd.f32 %v4936, %v6777
      %v6779 = vpop.f32.mrb[0].mxu0
      %6780 = vmatprep.mubr.bf16.mxu0 %v6017
      %6781 = vmatmul.mubr.bf16.gmra.mrb[0].mxu0 %v6016
      %v6782 = vpop.f32.mrb[0].mxu0
      %v6783 = vadd.f32 %v4941, %v6782
      %v6784 = vpop.f32.mrb[0].mxu0
      %v6785 = vpop.f32.mrb[0].mxu0
      %v6786 = vadd.f32 %v4946, %v6785
      %v6787 = vpop.f32.mrb[0].mxu0
      %6788 = vmatprep.mubr.bf16.mxu0 %v6021
      %6789 = vmatmul.mubr.bf16.gmra.mrb[0].mxu0 %v6020
      %v6790 = vpop.f32.mrb[0].mxu0
      %v6791 = vadd.f32 %v4951, %v6790
      %v6792 = vpop.f32.mrb[0].mxu0
      %v6793 = vpop.f32.mrb[0].mxu0
      %v6794 = vadd.f32 %v4956, %v6793
      %v6795 = vpop.f32.mrb[0].mxu0
      %6796 = vmatprep.mubr.bf16.mxu0 %v6025
      %6797 = vmatmul.mubr.bf16.gmra.mrb[0].mxu0 %v6024
      %v6798 = vpop.f32.mrb[0].mxu0
      %v6799 = vadd.f32 %v4961, %v6798
      %v6800 = vpop.f32.mrb[0].mxu0
      %v6801 = vpop.f32.mrb[0].mxu0
      %v6802 = vadd.f32 %v4966, %v6801
      %v6803 = vpop.f32.mrb[0].mxu0
      %6804 = vmatprep.mubr.bf16.mxu0 %v6029
      %6805 = vmatmul.mubr.bf16.gmra.mrb[0].mxu0 %v6028
      %v6806 = vpop.f32.mrb[0].mxu0
      %v6807 = vadd.f32 %v4971, %v6806
      %v6808 = vpop.f32.mrb[0].mxu0
      %v6809 = vpop.f32.mrb[0].mxu0
      %v6810 = vadd.f32 %v4976, %v6809
      %v6811 = vpop.f32.mrb[0].mxu0
      %6812 = vmatprep.mubr.bf16.mxu0 %v6033
      %6813 = vmatmul.mubr.bf16.gmra.mrb[0].mxu0 %v6032
      %v6814 = vpop.f32.mrb[0].mxu0
      %v6815 = vadd.f32 %v4981, %v6814
      %v6816 = vpop.f32.mrb[0].mxu0
      %v6817 = vpop.f32.mrb[0].mxu0
      %v6818 = vadd.f32 %v4986, %v6817
      %v6819 = vpop.f32.mrb[0].mxu0
      %6820 = vmatprep.mubr.bf16.mxu0 %v6037
      %6821 = vmatmul.mubr.bf16.gmra.mrb[0].mxu0 %v6036
      %v6822 = vpop.f32.mrb[0].mxu0
      %v6823 = vadd.f32 %v4991, %v6822
      %v6824 = vpop.f32.mrb[0].mxu0
      %v6825 = vpop.f32.mrb[0].mxu0
      %v6826 = vadd.f32 %v4996, %v6825
      %v6827 = vpop.f32.mrb[0].mxu0
      %6828 = vmatprep.mubr.bf16.mxu0 %v6041
      %6829 = vmatmul.mubr.bf16.gmra.mrb[0].mxu0 %v6040
      %v6830 = vpop.f32.mrb[0].mxu0
      %v6831 = vadd.f32 %v5001, %v6830
      %v6832 = vpop.f32.mrb[0].mxu0
      %v6833 = vpop.f32.mrb[0].mxu0
      %v6834 = vadd.f32 %v5006, %v6833
      %v6835 = vpop.f32.mrb[0].mxu0
      %6836 = vmatprep.mubr.bf16.mxu0 %v6045
      %6837 = vmatmul.mubr.bf16.gmra.mrb[0].mxu0 %v6044
      %v6838 = vpop.f32.mrb[0].mxu0
      %v6839 = vadd.f32 %v5011, %v6838
      %v6840 = vpop.f32.mrb[0].mxu0
      %v6841 = vpop.f32.mrb[0].mxu0
      %v6842 = vadd.f32 %v5016, %v6841
      %v6843 = vpop.f32.mrb[0].mxu0
      %6844 = vmatprep.mubr.bf16.mxu0 %v6049
      %6845 = vmatmul.mubr.bf16.gmra.mrb[0].mxu0 %v6048
      %v6846 = vpop.f32.mrb[0].mxu0
      %v6847 = vadd.f32 %v5021, %v6846
      %v6848 = vpop.f32.mrb[0].mxu0
      %v6849 = vpop.f32.mrb[0].mxu0
      %v6850 = vadd.f32 %v5026, %v6849
      %v6851 = vpop.f32.mrb[0].mxu0
      %6852 = vdwg.mxu0
      %6853 = vmatprep.subr.bf16.mxu0 0
      %6854 = vmatpush1.bf16.msra.mxu0 %v4244
      %6855 = vmatprep.subr.bf16.mxu0 0
      %6856 = vmatpush1.bf16.msra.mxu0 %v4245
      %6857 = vmatprep.subr.bf16.mxu0 0
      %6858 = vmatpush1.bf16.msra.mxu0 %v4246
      %6859 = vmatprep.subr.bf16.mxu0 0
      %6860 = vmatpush1.bf16.msra.mxu0 %v4247
      %6861 = vmatprep.subr.bf16.mxu0 0
      %6862 = vmatpush1.bf16.msra.mxu0 %v4248
      %6863 = vmatprep.subr.bf16.mxu0 0
      %6864 = vmatpush1.bf16.msra.mxu0 %v4249
      %6865 = vmatprep.subr.bf16.mxu0 0
      %6866 = vmatpush1.bf16.msra.mxu0 %v4250
      %6867 = vmatprep.subr.bf16.mxu0 0
      %6868 = vmatpush1.bf16.msra.mxu0 %v4251
      %6869 = vmatprep.subr.bf16.mxu0 0
      %6870 = vmatpush1.bf16.msra.mxu0 %v4252
      %6871 = vmatprep.subr.bf16.mxu0 0
      %6872 = vmatpush1.bf16.msra.mxu0 %v4253
      %6873 = vmatprep.subr.bf16.mxu0 0
      %6874 = vmatpush1.bf16.msra.mxu0 %v4254
      %6875 = vmatprep.subr.bf16.mxu0 0
      %6876 = vmatpush1.bf16.msra.mxu0 %v4255
      %6877 = vmatprep.subr.bf16.mxu0 0
      %6878 = vmatpush1.bf16.msra.mxu0 %v4256
      %6879 = vmatprep.subr.bf16.mxu0 0
      %6880 = vmatpush1.bf16.msra.mxu0 %v4257
      %6881 = vmatprep.subr.bf16.mxu0 0
      %6882 = vmatpush1.bf16.msra.mxu0 %v4258
      %6883 = vmatprep.subr.bf16.mxu0 0
      %6884 = vmatpush1.bf16.msra.mxu0 %v4259
      %6885 = vmatprep.mubr.bf16.mxu0 %v5799
      %6886 = vmatmul.mubr.bf16.gmra.mrb[0].mxu0 %v5798
      %v6887 = vpop.f32.mrb[0].mxu0
      %v6888 = vadd.f32 %v6343, %v6887
      %v6889 = vpop.f32.mrb[0].mxu0
      %v6890 = vpop.f32.mrb[0].mxu0
      %v6891 = vadd.f32 %v6346, %v6890
      %v6892 = vpop.f32.mrb[0].mxu0
      %6893 = vmatprep.mubr.bf16.mxu0 %v5803
      %6894 = vmatmul.mubr.bf16.gmra.mrb[0].mxu0 %v5802
      %v6895 = vpop.f32.mrb[0].mxu0
      %v6896 = vadd.f32 %v6351, %v6895
      %v6897 = vpop.f32.mrb[0].mxu0
      %v6898 = vpop.f32.mrb[0].mxu0
      %v6899 = vadd.f32 %v6354, %v6898
      %v6900 = vpop.f32.mrb[0].mxu0
      %6901 = vmatprep.mubr.bf16.mxu0 %v5807
      %6902 = vmatmul.mubr.bf16.gmra.mrb[0].mxu0 %v5806
      %v6903 = vpop.f32.mrb[0].mxu0
      %v6904 = vadd.f32 %v6359, %v6903
      %v6905 = vpop.f32.mrb[0].mxu0
      %v6906 = vpop.f32.mrb[0].mxu0
      %v6907 = vadd.f32 %v6362, %v6906
      %v6908 = vpop.f32.mrb[0].mxu0
      %6909 = vmatprep.mubr.bf16.mxu0 %v5811
      %6910 = vmatmul.mubr.bf16.gmra.mrb[0].mxu0 %v5810
      %v6911 = vpop.f32.mrb[0].mxu0
      %v6912 = vadd.f32 %v6367, %v6911
      %v6913 = vpop.f32.mrb[0].mxu0
      %v6914 = vpop.f32.mrb[0].mxu0
      %v6915 = vadd.f32 %v6370, %v6914
      %v6916 = vpop.f32.mrb[0].mxu0
      %6917 = vmatprep.mubr.bf16.mxu0 %v5815
      %6918 = vmatmul.mubr.bf16.gmra.mrb[0].mxu0 %v5814
      %v6919 = vpop.f32.mrb[0].mxu0
      %v6920 = vadd.f32 %v6375, %v6919
      %v6921 = vpop.f32.mrb[0].mxu0
      %v6922 = vpop.f32.mrb[0].mxu0
      %v6923 = vadd.f32 %v6378, %v6922
      %v6924 = vpop.f32.mrb[0].mxu0
      %6925 = vmatprep.mubr.bf16.mxu0 %v5819
      %6926 = vmatmul.mubr.bf16.gmra.mrb[0].mxu0 %v5818
      %v6927 = vpop.f32.mrb[0].mxu0
      %v6928 = vadd.f32 %v6383, %v6927
      %v6929 = vpop.f32.mrb[0].mxu0
      %v6930 = vpop.f32.mrb[0].mxu0
      %v6931 = vadd.f32 %v6386, %v6930
      %v6932 = vpop.f32.mrb[0].mxu0
      %6933 = vmatprep.mubr.bf16.mxu0 %v5823
      %6934 = vmatmul.mubr.bf16.gmra.mrb[0].mxu0 %v5822
      %v6935 = vpop.f32.mrb[0].mxu0
      %v6936 = vadd.f32 %v6391, %v6935
      %v6937 = vpop.f32.mrb[0].mxu0
      %v6938 = vpop.f32.mrb[0].mxu0
      %v6939 = vadd.f32 %v6394, %v6938
      %v6940 = vpop.f32.mrb[0].mxu0
      %6941 = vmatprep.mubr.bf16.mxu0 %v5827
      %6942 = vmatmul.mubr.bf16.gmra.mrb[0].mxu0 %v5826
      %v6943 = vpop.f32.mrb[0].mxu0
      %v6944 = vadd.f32 %v6399, %v6943
      %v6945 = vpop.f32.mrb[0].mxu0
      %v6946 = vpop.f32.mrb[0].mxu0
      %v6947 = vadd.f32 %v6402, %v6946
      %v6948 = vpop.f32.mrb[0].mxu0
      %6949 = vmatprep.mubr.bf16.mxu0 %v5831
      %6950 = vmatmul.mubr.bf16.gmra.mrb[0].mxu0 %v5830
      %v6951 = vpop.f32.mrb[0].mxu0
      %v6952 = vadd.f32 %v6407, %v6951
      %v6953 = vpop.f32.mrb[0].mxu0
      %v6954 = vpop.f32.mrb[0].mxu0
      %v6955 = vadd.f32 %v6410, %v6954
      %v6956 = vpop.f32.mrb[0].mxu0
      %6957 = vmatprep.mubr.bf16.mxu0 %v5835
      %6958 = vmatmul.mubr.bf16.gmra.mrb[0].mxu0 %v5834
      %v6959 = vpop.f32.mrb[0].mxu0
      %v6960 = vadd.f32 %v6415, %v6959
      %v6961 = vpop.f32.mrb[0].mxu0
      %v6962 = vpop.f32.mrb[0].mxu0
      %v6963 = vadd.f32 %v6418, %v6962
      %v6964 = vpop.f32.mrb[0].mxu0
      %6965 = vmatprep.mubr.bf16.mxu0 %v5839
      %6966 = vmatmul.mubr.bf16.gmra.mrb[0].mxu0 %v5838
      %v6967 = vpop.f32.mrb[0].mxu0
      %v6968 = vadd.f32 %v6423, %v6967
      %v6969 = vpop.f32.mrb[0].mxu0
      %v6970 = vpop.f32.mrb[0].mxu0
      %v6971 = vadd.f32 %v6426, %v6970
      %v6972 = vpop.f32.mrb[0].mxu0
      %6973 = vmatprep.mubr.bf16.mxu0 %v5843
      %6974 = vmatmul.mubr.bf16.gmra.mrb[0].mxu0 %v5842
      %v6975 = vpop.f32.mrb[0].mxu0
      %v6976 = vadd.f32 %v6431, %v6975
      %v6977 = vpop.f32.mrb[0].mxu0
      %v6978 = vpop.f32.mrb[0].mxu0
      %v6979 = vadd.f32 %v6434, %v6978
      %v6980 = vpop.f32.mrb[0].mxu0
      %6981 = vmatprep.mubr.bf16.mxu0 %v5847
      %6982 = vmatmul.mubr.bf16.gmra.mrb[0].mxu0 %v5846
      %v6983 = vpop.f32.mrb[0].mxu0
      %v6984 = vadd.f32 %v6439, %v6983
      %v6985 = vpop.f32.mrb[0].mxu0
      %v6986 = vpop.f32.mrb[0].mxu0
      %v6987 = vadd.f32 %v6442, %v6986
      %v6988 = vpop.f32.mrb[0].mxu0
      %6989 = vmatprep.mubr.bf16.mxu0 %v5851
      %6990 = vmatmul.mubr.bf16.gmra.mrb[0].mxu0 %v5850
      %v6991 = vpop.f32.mrb[0].mxu0
      %v6992 = vadd.f32 %v6447, %v6991
      %v6993 = vpop.f32.mrb[0].mxu0
      %v6994 = vpop.f32.mrb[0].mxu0
      %v6995 = vadd.f32 %v6450, %v6994
      %v6996 = vpop.f32.mrb[0].mxu0
      %6997 = vmatprep.mubr.bf16.mxu0 %v5855
      %6998 = vmatmul.mubr.bf16.gmra.mrb[0].mxu0 %v5854
      %v6999 = vpop.f32.mrb[0].mxu0
      %v7000 = vadd.f32 %v6455, %v6999
      %v7001 = vpop.f32.mrb[0].mxu0
      %v7002 = vpop.f32.mrb[0].mxu0
      %v7003 = vadd.f32 %v6458, %v7002
      %v7004 = vpop.f32.mrb[0].mxu0
      %7005 = vmatprep.mubr.bf16.mxu0 %v5859
      %7006 = vmatmul.mubr.bf16.gmra.mrb[0].mxu0 %v5858
      %v7007 = vpop.f32.mrb[0].mxu0
      %v7008 = vadd.f32 %v6463, %v7007
      %v7009 = vpop.f32.mrb[0].mxu0
      %v7010 = vpop.f32.mrb[0].mxu0
      %v7011 = vadd.f32 %v6466, %v7010
      %v7012 = vpop.f32.mrb[0].mxu0
      %7013 = vmatprep.mubr.bf16.mxu0 %v5863
      %7014 = vmatmul.mubr.bf16.gmra.mrb[0].mxu0 %v5862
      %v7015 = vpop.f32.mrb[0].mxu0
      %v7016 = vadd.f32 %v6471, %v7015
      %v7017 = vpop.f32.mrb[0].mxu0
      %v7018 = vpop.f32.mrb[0].mxu0
      %v7019 = vadd.f32 %v6474, %v7018
      %v7020 = vpop.f32.mrb[0].mxu0
      %7021 = vmatprep.mubr.bf16.mxu0 %v5867
      %7022 = vmatmul.mubr.bf16.gmra.mrb[0].mxu0 %v5866
      %v7023 = vpop.f32.mrb[0].mxu0
      %v7024 = vadd.f32 %v6479, %v7023
      %v7025 = vpop.f32.mrb[0].mxu0
      %v7026 = vpop.f32.mrb[0].mxu0
      %v7027 = vadd.f32 %v6482, %v7026
      %v7028 = vpop.f32.mrb[0].mxu0
      %7029 = vmatprep.mubr.bf16.mxu0 %v5871
      %7030 = vmatmul.mubr.bf16.gmra.mrb[0].mxu0 %v5870
      %v7031 = vpop.f32.mrb[0].mxu0
      %v7032 = vadd.f32 %v6487, %v7031
      %v7033 = vpop.f32.mrb[0].mxu0
      %v7034 = vpop.f32.mrb[0].mxu0
      %v7035 = vadd.f32 %v6490, %v7034
      %v7036 = vpop.f32.mrb[0].mxu0
      %7037 = vmatprep.mubr.bf16.mxu0 %v5875
      %7038 = vmatmul.mubr.bf16.gmra.mrb[0].mxu0 %v5874
      %v7039 = vpop.f32.mrb[0].mxu0
      %v7040 = vadd.f32 %v6495, %v7039
      %v7041 = vpop.f32.mrb[0].mxu0
      %v7042 = vpop.f32.mrb[0].mxu0
      %v7043 = vadd.f32 %v6498, %v7042
      %v7044 = vpop.f32.mrb[0].mxu0
      %7045 = vmatprep.mubr.bf16.mxu0 %v5879
      %7046 = vmatmul.mubr.bf16.gmra.mrb[0].mxu0 %v5878
      %v7047 = vpop.f32.mrb[0].mxu0
      %v7048 = vadd.f32 %v6503, %v7047
      %v7049 = vpop.f32.mrb[0].mxu0
      %v7050 = vpop.f32.mrb[0].mxu0
      %v7051 = vadd.f32 %v6506, %v7050
      %v7052 = vpop.f32.mrb[0].mxu0
      %7053 = vmatprep.mubr.bf16.mxu0 %v5883
      %7054 = vmatmul.mubr.bf16.gmra.mrb[0].mxu0 %v5882
      %v7055 = vpop.f32.mrb[0].mxu0
      %v7056 = vadd.f32 %v6511, %v7055
      %v7057 = vpop.f32.mrb[0].mxu0
      %v7058 = vpop.f32.mrb[0].mxu0
      %v7059 = vadd.f32 %v6514, %v7058
      %v7060 = vpop.f32.mrb[0].mxu0
      %7061 = vmatprep.mubr.bf16.mxu0 %v5887
      %7062 = vmatmul.mubr.bf16.gmra.mrb[0].mxu0 %v5886
      %v7063 = vpop.f32.mrb[0].mxu0
      %v7064 = vadd.f32 %v6519, %v7063
      %v7065 = vpop.f32.mrb[0].mxu0
      %v7066 = vpop.f32.mrb[0].mxu0
      %v7067 = vadd.f32 %v6522, %v7066
      %v7068 = vpop.f32.mrb[0].mxu0
      %7069 = vmatprep.mubr.bf16.mxu0 %v5891
      %7070 = vmatmul.mubr.bf16.gmra.mrb[0].mxu0 %v5890
      %v7071 = vpop.f32.mrb[0].mxu0
      %v7072 = vadd.f32 %v6527, %v7071
      %v7073 = vpop.f32.mrb[0].mxu0
      %v7074 = vpop.f32.mrb[0].mxu0
      %v7075 = vadd.f32 %v6530, %v7074
      %v7076 = vpop.f32.mrb[0].mxu0
      %7077 = vmatprep.mubr.bf16.mxu0 %v5895
      %7078 = vmatmul.mubr.bf16.gmra.mrb[0].mxu0 %v5894
      %v7079 = vpop.f32.mrb[0].mxu0
      %v7080 = vadd.f32 %v6535, %v7079
      %v7081 = vpop.f32.mrb[0].mxu0
      %v7082 = vpop.f32.mrb[0].mxu0
      %v7083 = vadd.f32 %v6538, %v7082
      %v7084 = vpop.f32.mrb[0].mxu0
      %7085 = vmatprep.mubr.bf16.mxu0 %v5899
      %7086 = vmatmul.mubr.bf16.gmra.mrb[0].mxu0 %v5898
      %v7087 = vpop.f32.mrb[0].mxu0
      %v7088 = vadd.f32 %v6543, %v7087
      %v7089 = vpop.f32.mrb[0].mxu0
      %v7090 = vpop.f32.mrb[0].mxu0
      %v7091 = vadd.f32 %v6546, %v7090
      %v7092 = vpop.f32.mrb[0].mxu0
      %7093 = vmatprep.mubr.bf16.mxu0 %v5903
      %7094 = vmatmul.mubr.bf16.gmra.mrb[0].mxu0 %v5902
      %v7095 = vpop.f32.mrb[0].mxu0
      %v7096 = vadd.f32 %v6551, %v7095
      %v7097 = vpop.f32.mrb[0].mxu0
      %v7098 = vpop.f32.mrb[0].mxu0
      %v7099 = vadd.f32 %v6554, %v7098
      %v7100 = vpop.f32.mrb[0].mxu0
      %7101 = vmatprep.mubr.bf16.mxu0 %v5907
      %7102 = vmatmul.mubr.bf16.gmra.mrb[0].mxu0 %v5906
      %v7103 = vpop.f32.mrb[0].mxu0
      %v7104 = vadd.f32 %v6559, %v7103
      %v7105 = vpop.f32.mrb[0].mxu0
      %v7106 = vpop.f32.mrb[0].mxu0
      %v7107 = vadd.f32 %v6562, %v7106
      %v7108 = vpop.f32.mrb[0].mxu0
      %7109 = vmatprep.mubr.bf16.mxu0 %v5911
      %7110 = vmatmul.mubr.bf16.gmra.mrb[0].mxu0 %v5910
      %v7111 = vpop.f32.mrb[0].mxu0
      %v7112 = vadd.f32 %v6567, %v7111
      %v7113 = vpop.f32.mrb[0].mxu0
      %v7114 = vpop.f32.mrb[0].mxu0
      %v7115 = vadd.f32 %v6570, %v7114
      %v7116 = vpop.f32.mrb[0].mxu0
      %7117 = vmatprep.mubr.bf16.mxu0 %v5915
      %7118 = vmatmul.mubr.bf16.gmra.mrb[0].mxu0 %v5914
      %v7119 = vpop.f32.mrb[0].mxu0
      %v7120 = vadd.f32 %v6575, %v7119
      %v7121 = vpop.f32.mrb[0].mxu0
      %v7122 = vpop.f32.mrb[0].mxu0
      %v7123 = vadd.f32 %v6578, %v7122
      %v7124 = vpop.f32.mrb[0].mxu0
      %7125 = vmatprep.mubr.bf16.mxu0 %v5919
      %7126 = vmatmul.mubr.bf16.gmra.mrb[0].mxu0 %v5918
      %v7127 = vpop.f32.mrb[0].mxu0
      %v7128 = vadd.f32 %v6583, %v7127
      %v7129 = vpop.f32.mrb[0].mxu0
      %v7130 = vpop.f32.mrb[0].mxu0
      %v7131 = vadd.f32 %v6586, %v7130
      %v7132 = vpop.f32.mrb[0].mxu0
      %7133 = vmatprep.mubr.bf16.mxu0 %v5923
      %7134 = vmatmul.mubr.bf16.gmra.mrb[0].mxu0 %v5922
      %v7135 = vpop.f32.mrb[0].mxu0
      %v7136 = vadd.f32 %v6591, %v7135
      %v7137 = vpop.f32.mrb[0].mxu0
      %v7138 = vpop.f32.mrb[0].mxu0
      %v7139 = vadd.f32 %v6594, %v7138
      %v7140 = vpop.f32.mrb[0].mxu0
      %7141 = vmatprep.mubr.bf16.mxu0 %v5927
      %7142 = vmatmul.mubr.bf16.gmra.mrb[0].mxu0 %v5926
      %v7143 = vpop.f32.mrb[0].mxu0
      %v7144 = vadd.f32 %v6599, %v7143
      %v7145 = vpop.f32.mrb[0].mxu0
      %v7146 = vpop.f32.mrb[0].mxu0
      %v7147 = vadd.f32 %v6602, %v7146
      %v7148 = vpop.f32.mrb[0].mxu0
      %7149 = vmatprep.mubr.bf16.mxu0 %v5931
      %7150 = vmatmul.mubr.bf16.gmra.mrb[0].mxu0 %v5930
      %v7151 = vpop.f32.mrb[0].mxu0
      %v7152 = vadd.f32 %v6607, %v7151
      %v7153 = vpop.f32.mrb[0].mxu0
      %v7154 = vpop.f32.mrb[0].mxu0
      %v7155 = vadd.f32 %v6610, %v7154
      %v7156 = vpop.f32.mrb[0].mxu0
      %7157 = vmatprep.mubr.bf16.mxu0 %v5935
      %7158 = vmatmul.mubr.bf16.gmra.mrb[0].mxu0 %v5934
      %v7159 = vpop.f32.mrb[0].mxu0
      %v7160 = vadd.f32 %v6615, %v7159
      %v7161 = vpop.f32.mrb[0].mxu0
      %v7162 = vpop.f32.mrb[0].mxu0
      %v7163 = vadd.f32 %v6618, %v7162
      %v7164 = vpop.f32.mrb[0].mxu0
      %7165 = vmatprep.mubr.bf16.mxu0 %v5939
      %7166 = vmatmul.mubr.bf16.gmra.mrb[0].mxu0 %v5938
      %v7167 = vpop.f32.mrb[0].mxu0
      %v7168 = vadd.f32 %v6623, %v7167
      %v7169 = vpop.f32.mrb[0].mxu0
      %v7170 = vpop.f32.mrb[0].mxu0
      %v7171 = vadd.f32 %v6626, %v7170
      %v7172 = vpop.f32.mrb[0].mxu0
      %7173 = vmatprep.mubr.bf16.mxu0 %v5943
      %7174 = vmatmul.mubr.bf16.gmra.mrb[0].mxu0 %v5942
      %v7175 = vpop.f32.mrb[0].mxu0
      %v7176 = vadd.f32 %v6631, %v7175
      %v7177 = vpop.f32.mrb[0].mxu0
      %v7178 = vpop.f32.mrb[0].mxu0
      %v7179 = vadd.f32 %v6634, %v7178
      %v7180 = vpop.f32.mrb[0].mxu0
      %7181 = vmatprep.mubr.bf16.mxu0 %v5947
      %7182 = vmatmul.mubr.bf16.gmra.mrb[0].mxu0 %v5946
      %v7183 = vpop.f32.mrb[0].mxu0
      %v7184 = vadd.f32 %v6639, %v7183
      %v7185 = vpop.f32.mrb[0].mxu0
      %v7186 = vpop.f32.mrb[0].mxu0
      %v7187 = vadd.f32 %v6642, %v7186
      %v7188 = vpop.f32.mrb[0].mxu0
      %7189 = vmatprep.mubr.bf16.mxu0 %v5951
      %7190 = vmatmul.mubr.bf16.gmra.mrb[0].mxu0 %v5950
      %v7191 = vpop.f32.mrb[0].mxu0
      %v7192 = vadd.f32 %v6647, %v7191
      %v7193 = vpop.f32.mrb[0].mxu0
      %v7194 = vpop.f32.mrb[0].mxu0
      %v7195 = vadd.f32 %v6650, %v7194
      %v7196 = vpop.f32.mrb[0].mxu0
      %7197 = vmatprep.mubr.bf16.mxu0 %v5955
      %7198 = vmatmul.mubr.bf16.gmra.mrb[0].mxu0 %v5954
      %v7199 = vpop.f32.mrb[0].mxu0
      %v7200 = vadd.f32 %v6655, %v7199
      %v7201 = vpop.f32.mrb[0].mxu0
      %v7202 = vpop.f32.mrb[0].mxu0
      %v7203 = vadd.f32 %v6658, %v7202
      %v7204 = vpop.f32.mrb[0].mxu0
      %7205 = vmatprep.mubr.bf16.mxu0 %v5959
      %7206 = vmatmul.mubr.bf16.gmra.mrb[0].mxu0 %v5958
      %v7207 = vpop.f32.mrb[0].mxu0
      %v7208 = vadd.f32 %v6663, %v7207
      %v7209 = vpop.f32.mrb[0].mxu0
      %v7210 = vpop.f32.mrb[0].mxu0
      %v7211 = vadd.f32 %v6666, %v7210
      %v7212 = vpop.f32.mrb[0].mxu0
      %7213 = vmatprep.mubr.bf16.mxu0 %v5963
      %7214 = vmatmul.mubr.bf16.gmra.mrb[0].mxu0 %v5962
      %v7215 = vpop.f32.mrb[0].mxu0
      %v7216 = vadd.f32 %v6671, %v7215
      %v7217 = vpop.f32.mrb[0].mxu0
      %v7218 = vpop.f32.mrb[0].mxu0
      %v7219 = vadd.f32 %v6674, %v7218
      %v7220 = vpop.f32.mrb[0].mxu0
      %7221 = vmatprep.mubr.bf16.mxu0 %v5967
      %7222 = vmatmul.mubr.bf16.gmra.mrb[0].mxu0 %v5966
      %v7223 = vpop.f32.mrb[0].mxu0
      %v7224 = vadd.f32 %v6679, %v7223
      %v7225 = vpop.f32.mrb[0].mxu0
      %v7226 = vpop.f32.mrb[0].mxu0
      %v7227 = vadd.f32 %v6682, %v7226
      %v7228 = vpop.f32.mrb[0].mxu0
      %7229 = vmatprep.mubr.bf16.mxu0 %v5971
      %7230 = vmatmul.mubr.bf16.gmra.mrb[0].mxu0 %v5970
      %v7231 = vpop.f32.mrb[0].mxu0
      %v7232 = vadd.f32 %v6687, %v7231
      %v7233 = vpop.f32.mrb[0].mxu0
      %v7234 = vpop.f32.mrb[0].mxu0
      %v7235 = vadd.f32 %v6690, %v7234
      %v7236 = vpop.f32.mrb[0].mxu0
      %7237 = vmatprep.mubr.bf16.mxu0 %v5975
      %7238 = vmatmul.mubr.bf16.gmra.mrb[0].mxu0 %v5974
      %v7239 = vpop.f32.mrb[0].mxu0
      %v7240 = vadd.f32 %v6695, %v7239
      %v7241 = vpop.f32.mrb[0].mxu0
      %v7242 = vpop.f32.mrb[0].mxu0
      %v7243 = vadd.f32 %v6698, %v7242
      %v7244 = vpop.f32.mrb[0].mxu0
      %7245 = vmatprep.mubr.bf16.mxu0 %v5979
      %7246 = vmatmul.mubr.bf16.gmra.mrb[0].mxu0 %v5978
      %v7247 = vpop.f32.mrb[0].mxu0
      %v7248 = vadd.f32 %v6703, %v7247
      %v7249 = vpop.f32.mrb[0].mxu0
      %v7250 = vpop.f32.mrb[0].mxu0
      %v7251 = vadd.f32 %v6706, %v7250
      %v7252 = vpop.f32.mrb[0].mxu0
      %7253 = vmatprep.mubr.bf16.mxu0 %v5983
      %7254 = vmatmul.mubr.bf16.gmra.mrb[0].mxu0 %v5982
      %v7255 = vpop.f32.mrb[0].mxu0
      %v7256 = vadd.f32 %v6711, %v7255
      %v7257 = vpop.f32.mrb[0].mxu0
      %v7258 = vpop.f32.mrb[0].mxu0
      %v7259 = vadd.f32 %v6714, %v7258
      %v7260 = vpop.f32.mrb[0].mxu0
      %7261 = vmatprep.mubr.bf16.mxu0 %v5987
      %7262 = vmatmul.mubr.bf16.gmra.mrb[0].mxu0 %v5986
      %v7263 = vpop.f32.mrb[0].mxu0
      %v7264 = vadd.f32 %v6719, %v7263
      %v7265 = vpop.f32.mrb[0].mxu0
      %v7266 = vpop.f32.mrb[0].mxu0
      %v7267 = vadd.f32 %v6722, %v7266
      %v7268 = vpop.f32.mrb[0].mxu0
      %7269 = vmatprep.mubr.bf16.mxu0 %v5991
      %7270 = vmatmul.mubr.bf16.gmra.mrb[0].mxu0 %v5990
      %v7271 = vpop.f32.mrb[0].mxu0
      %v7272 = vadd.f32 %v6727, %v7271
      %v7273 = vpop.f32.mrb[0].mxu0
      %v7274 = vpop.f32.mrb[0].mxu0
      %v7275 = vadd.f32 %v6730, %v7274
      %v7276 = vpop.f32.mrb[0].mxu0
      %7277 = vmatprep.mubr.bf16.mxu0 %v5995
      %7278 = vmatmul.mubr.bf16.gmra.mrb[0].mxu0 %v5994
      %v7279 = vpop.f32.mrb[0].mxu0
      %v7280 = vadd.f32 %v6735, %v7279
      %v7281 = vpop.f32.mrb[0].mxu0
      %v7282 = vpop.f32.mrb[0].mxu0
      %v7283 = vadd.f32 %v6738, %v7282
      %v7284 = vpop.f32.mrb[0].mxu0
      %7285 = vmatprep.mubr.bf16.mxu0 %v5999
      %7286 = vmatmul.mubr.bf16.gmra.mrb[0].mxu0 %v5998
      %v7287 = vpop.f32.mrb[0].mxu0
      %v7288 = vadd.f32 %v6743, %v7287
      %v7289 = vpop.f32.mrb[0].mxu0
      %v7290 = vpop.f32.mrb[0].mxu0
      %v7291 = vadd.f32 %v6746, %v7290
      %v7292 = vpop.f32.mrb[0].mxu0
      %7293 = vmatprep.mubr.bf16.mxu0 %v6003
      %7294 = vmatmul.mubr.bf16.gmra.mrb[0].mxu0 %v6002
      %v7295 = vpop.f32.mrb[0].mxu0
      %v7296 = vadd.f32 %v6751, %v7295
      %v7297 = vpop.f32.mrb[0].mxu0
      %v7298 = vpop.f32.mrb[0].mxu0
      %v7299 = vadd.f32 %v6754, %v7298
      %v7300 = vpop.f32.mrb[0].mxu0
      %7301 = vmatprep.mubr.bf16.mxu0 %v6007
      %7302 = vmatmul.mubr.bf16.gmra.mrb[0].mxu0 %v6006
      %v7303 = vpop.f32.mrb[0].mxu0
      %v7304 = vadd.f32 %v6759, %v7303
      %v7305 = vpop.f32.mrb[0].mxu0
      %v7306 = vpop.f32.mrb[0].mxu0
      %v7307 = vadd.f32 %v6762, %v7306
      %v7308 = vpop.f32.mrb[0].mxu0
      %7309 = vmatprep.mubr.bf16.mxu0 %v6011
      %7310 = vmatmul.mubr.bf16.gmra.mrb[0].mxu0 %v6010
      %v7311 = vpop.f32.mrb[0].mxu0
      %v7312 = vadd.f32 %v6767, %v7311
      %v7313 = vpop.f32.mrb[0].mxu0
      %v7314 = vpop.f32.mrb[0].mxu0
      %v7315 = vadd.f32 %v6770, %v7314
      %v7316 = vpop.f32.mrb[0].mxu0
      %7317 = vmatprep.mubr.bf16.mxu0 %v6015
      %7318 = vmatmul.mubr.bf16.gmra.mrb[0].mxu0 %v6014
      %v7319 = vpop.f32.mrb[0].mxu0
      %v7320 = vadd.f32 %v6775, %v7319
      %v7321 = vpop.f32.mrb[0].mxu0
      %v7322 = vpop.f32.mrb[0].mxu0
      %v7323 = vadd.f32 %v6778, %v7322
      %v7324 = vpop.f32.mrb[0].mxu0
      %7325 = vmatprep.mubr.bf16.mxu0 %v6019
      %7326 = vmatmul.mubr.bf16.gmra.mrb[0].mxu0 %v6018
      %v7327 = vpop.f32.mrb[0].mxu0
      %v7328 = vadd.f32 %v6783, %v7327
      %v7329 = vpop.f32.mrb[0].mxu0
      %v7330 = vpop.f32.mrb[0].mxu0
      %v7331 = vadd.f32 %v6786, %v7330
      %v7332 = vpop.f32.mrb[0].mxu0
      %7333 = vmatprep.mubr.bf16.mxu0 %v6023
      %7334 = vmatmul.mubr.bf16.gmra.mrb[0].mxu0 %v6022
      %v7335 = vpop.f32.mrb[0].mxu0
      %v7336 = vadd.f32 %v6791, %v7335
      %v7337 = vpop.f32.mrb[0].mxu0
      %v7338 = vpop.f32.mrb[0].mxu0
      %v7339 = vadd.f32 %v6794, %v7338
      %v7340 = vpop.f32.mrb[0].mxu0
      %7341 = vmatprep.mubr.bf16.mxu0 %v6027
      %7342 = vmatmul.mubr.bf16.gmra.mrb[0].mxu0 %v6026
      %v7343 = vpop.f32.mrb[0].mxu0
      %v7344 = vadd.f32 %v6799, %v7343
      %v7345 = vpop.f32.mrb[0].mxu0
      %v7346 = vpop.f32.mrb[0].mxu0
      %v7347 = vadd.f32 %v6802, %v7346
      %v7348 = vpop.f32.mrb[0].mxu0
      %7349 = vmatprep.mubr.bf16.mxu0 %v6031
      %7350 = vmatmul.mubr.bf16.gmra.mrb[0].mxu0 %v6030
      %v7351 = vpop.f32.mrb[0].mxu0
      %v7352 = vadd.f32 %v6807, %v7351
      %v7353 = vpop.f32.mrb[0].mxu0
      %v7354 = vpop.f32.mrb[0].mxu0
      %v7355 = vadd.f32 %v6810, %v7354
      %v7356 = vpop.f32.mrb[0].mxu0
      %7357 = vmatprep.mubr.bf16.mxu0 %v6035
      %7358 = vmatmul.mubr.bf16.gmra.mrb[0].mxu0 %v6034
      %v7359 = vpop.f32.mrb[0].mxu0
      %v7360 = vadd.f32 %v6815, %v7359
      %v7361 = vpop.f32.mrb[0].mxu0
      %v7362 = vpop.f32.mrb[0].mxu0
      %v7363 = vadd.f32 %v6818, %v7362
      %v7364 = vpop.f32.mrb[0].mxu0
      %7365 = vmatprep.mubr.bf16.mxu0 %v6039
      %7366 = vmatmul.mubr.bf16.gmra.mrb[0].mxu0 %v6038
      %v7367 = vpop.f32.mrb[0].mxu0
      %v7368 = vadd.f32 %v6823, %v7367
      %v7369 = vpop.f32.mrb[0].mxu0
      %v7370 = vpop.f32.mrb[0].mxu0
      %v7371 = vadd.f32 %v6826, %v7370
      %v7372 = vpop.f32.mrb[0].mxu0
      %7373 = vmatprep.mubr.bf16.mxu0 %v6043
      %7374 = vmatmul.mubr.bf16.gmra.mrb[0].mxu0 %v6042
      %v7375 = vpop.f32.mrb[0].mxu0
      %v7376 = vadd.f32 %v6831, %v7375
      %v7377 = vpop.f32.mrb[0].mxu0
      %v7378 = vpop.f32.mrb[0].mxu0
      %v7379 = vadd.f32 %v6834, %v7378
      %v7380 = vpop.f32.mrb[0].mxu0
      %7381 = vmatprep.mubr.bf16.mxu0 %v6047
      %7382 = vmatmul.mubr.bf16.gmra.mrb[0].mxu0 %v6046
      %v7383 = vpop.f32.mrb[0].mxu0
      %v7384 = vadd.f32 %v6839, %v7383
      %v7385 = vpop.f32.mrb[0].mxu0
      %v7386 = vpop.f32.mrb[0].mxu0
      %v7387 = vadd.f32 %v6842, %v7386
      %v7388 = vpop.f32.mrb[0].mxu0
      %7389 = vmatprep.mubr.bf16.mxu0 %v6051
      %7390 = vmatmul.mubr.bf16.gmra.mrb[0].mxu0 %v6050
      %v7391 = vpop.f32.mrb[0].mxu0
      %v7392 = vadd.f32 %v6847, %v7391
      %v7393 = vpop.f32.mrb[0].mxu0
      %v7394 = vpop.f32.mrb[0].mxu0
      %v7395 = vadd.f32 %v6850, %v7394
      %v7396 = vpop.f32.mrb[0].mxu0
      %7397 = vdwg.mxu0
      %v7398 = vmax.f32 %v6888, 0.0
      %v7399 = vmax.f32 %v6891, 0.0
      %v7400 = vmax.f32 %v6896, 0.0
      %v7401 = vmax.f32 %v6899, 0.0
      %v7402 = vmax.f32 %v6904, 0.0
      %v7403 = vmax.f32 %v6907, 0.0
      %v7404 = vmax.f32 %v6912, 0.0
      %v7405 = vmax.f32 %v6915, 0.0
      %v7406 = vmax.f32 %v6920, 0.0
      %v7407 = vmax.f32 %v6923, 0.0
      %v7408 = vmax.f32 %v6928, 0.0
      %v7409 = vmax.f32 %v6931, 0.0
      %v7410 = vmax.f32 %v6936, 0.0
      %v7411 = vmax.f32 %v6939, 0.0
      %v7412 = vmax.f32 %v6944, 0.0
      %v7413 = vmax.f32 %v6947, 0.0
      %v7414 = vmax.f32 %v6952, 0.0
      %v7415 = vmax.f32 %v6955, 0.0
      %v7416 = vmax.f32 %v6960, 0.0
      %v7417 = vmax.f32 %v6963, 0.0
      %v7418 = vmax.f32 %v6968, 0.0
      %v7419 = vmax.f32 %v6971, 0.0
      %v7420 = vmax.f32 %v6976, 0.0
      %v7421 = vmax.f32 %v6979, 0.0
      %v7422 = vmax.f32 %v6984, 0.0
      %v7423 = vmax.f32 %v6987, 0.0
      %v7424 = vmax.f32 %v6992, 0.0
      %v7425 = vmax.f32 %v6995, 0.0
      %v7426 = vmax.f32 %v7000, 0.0
      %v7427 = vmax.f32 %v7003, 0.0
      %v7428 = vmax.f32 %v7008, 0.0
      %v7429 = vmax.f32 %v7011, 0.0
      %v7430 = vmax.f32 %v7016, 0.0
      %v7431 = vmax.f32 %v7019, 0.0
      %v7432 = vmax.f32 %v7024, 0.0
      %v7433 = vmax.f32 %v7027, 0.0
      %v7434 = vmax.f32 %v7032, 0.0
      %v7435 = vmax.f32 %v7035, 0.0
      %v7436 = vmax.f32 %v7040, 0.0
      %v7437 = vmax.f32 %v7043, 0.0
      %v7438 = vmax.f32 %v7048, 0.0
      %v7439 = vmax.f32 %v7051, 0.0
      %v7440 = vmax.f32 %v7056, 0.0
      %v7441 = vmax.f32 %v7059, 0.0
      %v7442 = vmax.f32 %v7064, 0.0
      %v7443 = vmax.f32 %v7067, 0.0
      %v7444 = vmax.f32 %v7072, 0.0
      %v7445 = vmax.f32 %v7075, 0.0
      %v7446 = vmax.f32 %v7080, 0.0
      %v7447 = vmax.f32 %v7083, 0.0
      %v7448 = vmax.f32 %v7088, 0.0
      %v7449 = vmax.f32 %v7091, 0.0
      %v7450 = vmax.f32 %v7096, 0.0
      %v7451 = vmax.f32 %v7099, 0.0
      %v7452 = vmax.f32 %v7104, 0.0
      %v7453 = vmax.f32 %v7107, 0.0
      %v7454 = vmax.f32 %v7112, 0.0
      %v7455 = vmax.f32 %v7115, 0.0
      %v7456 = vmax.f32 %v7120, 0.0
      %v7457 = vmax.f32 %v7123, 0.0
      %v7458 = vmax.f32 %v7128, 0.0
      %v7459 = vmax.f32 %v7131, 0.0
      %v7460 = vmax.f32 %v7136, 0.0
      %v7461 = vmax.f32 %v7139, 0.0
      %v7462 = vmax.f32 %v7144, 0.0
      %v7463 = vmax.f32 %v7147, 0.0
      %v7464 = vmax.f32 %v7152, 0.0
      %v7465 = vmax.f32 %v7155, 0.0
      %v7466 = vmax.f32 %v7160, 0.0
      %v7467 = vmax.f32 %v7163, 0.0
      %v7468 = vmax.f32 %v7168, 0.0
      %v7469 = vmax.f32 %v7171, 0.0
      %v7470 = vmax.f32 %v7176, 0.0
      %v7471 = vmax.f32 %v7179, 0.0
      %v7472 = vmax.f32 %v7184, 0.0
      %v7473 = vmax.f32 %v7187, 0.0
      %v7474 = vmax.f32 %v7192, 0.0
      %v7475 = vmax.f32 %v7195, 0.0
      %v7476 = vmax.f32 %v7200, 0.0
      %v7477 = vmax.f32 %v7203, 0.0
      %v7478 = vmax.f32 %v7208, 0.0
      %v7479 = vmax.f32 %v7211, 0.0
      %v7480 = vmax.f32 %v7216, 0.0
      %v7481 = vmax.f32 %v7219, 0.0
      %v7482 = vmax.f32 %v7224, 0.0
      %v7483 = vmax.f32 %v7227, 0.0
      %v7484 = vmax.f32 %v7232, 0.0
      %v7485 = vmax.f32 %v7235, 0.0
      %v7486 = vmax.f32 %v7240, 0.0
      %v7487 = vmax.f32 %v7243, 0.0
      %v7488 = vmax.f32 %v7248, 0.0
      %v7489 = vmax.f32 %v7251, 0.0
      %v7490 = vmax.f32 %v7256, 0.0
      %v7491 = vmax.f32 %v7259, 0.0
      %v7492 = vmax.f32 %v7264, 0.0
      %v7493 = vmax.f32 %v7267, 0.0
      %v7494 = vmax.f32 %v7272, 0.0
      %v7495 = vmax.f32 %v7275, 0.0
      %v7496 = vmax.f32 %v7280, 0.0
      %v7497 = vmax.f32 %v7283, 0.0
      %v7498 = vmax.f32 %v7288, 0.0
      %v7499 = vmax.f32 %v7291, 0.0
      %v7500 = vmax.f32 %v7296, 0.0
      %v7501 = vmax.f32 %v7299, 0.0
      %v7502 = vmax.f32 %v7304, 0.0
      %v7503 = vmax.f32 %v7307, 0.0
      %v7504 = vmax.f32 %v7312, 0.0
      %v7505 = vmax.f32 %v7315, 0.0
      %v7506 = vmax.f32 %v7320, 0.0
      %v7507 = vmax.f32 %v7323, 0.0
      %v7508 = vmax.f32 %v7328, 0.0
      %v7509 = vmax.f32 %v7331, 0.0
      %v7510 = vmax.f32 %v7336, 0.0
      %v7511 = vmax.f32 %v7339, 0.0
      %v7512 = vmax.f32 %v7344, 0.0
      %v7513 = vmax.f32 %v7347, 0.0
      %v7514 = vmax.f32 %v7352, 0.0
      %v7515 = vmax.f32 %v7355, 0.0
      %v7516 = vmax.f32 %v7360, 0.0
      %v7517 = vmax.f32 %v7363, 0.0
      %v7518 = vmax.f32 %v7368, 0.0
      %v7519 = vmax.f32 %v7371, 0.0
      %v7520 = vmax.f32 %v7376, 0.0
      %v7521 = vmax.f32 %v7379, 0.0
      %v7522 = vmax.f32 %v7384, 0.0
      %v7523 = vmax.f32 %v7387, 0.0
      %v7524 = vmax.f32 %v7392, 0.0
      %v7525 = vmax.f32 %v7395, 0.0
      %v7526 = vld [vmem:[%s347] sm:$0x1]
      %v7527 = vpack.c.bf16 %v7526, %v7526
      %v7528 = vpack.c.bf16 %v7399, %v7398
      %v7529 = vpack.c.bf16 %v7401, %v7400
      %v7530 = vpack.c.bf16 %v7403, %v7402
      %v7531 = vpack.c.bf16 %v7405, %v7404
      %v7532 = vpack.c.bf16 %v7407, %v7406
      %v7533 = vpack.c.bf16 %v7409, %v7408
      %v7534 = vpack.c.bf16 %v7411, %v7410
      %v7535 = vpack.c.bf16 %v7413, %v7412
      %v7536 = vpack.c.bf16 %v7415, %v7414
      %v7537 = vpack.c.bf16 %v7417, %v7416
      %v7538 = vpack.c.bf16 %v7419, %v7418
      %v7539 = vpack.c.bf16 %v7421, %v7420
      %v7540 = vpack.c.bf16 %v7423, %v7422
      %v7541 = vpack.c.bf16 %v7425, %v7424
      %v7542 = vpack.c.bf16 %v7427, %v7426
      %v7543 = vpack.c.bf16 %v7429, %v7428
      %v7544 = vpack.c.bf16 %v7431, %v7430
      %v7545 = vpack.c.bf16 %v7433, %v7432
      %v7546 = vpack.c.bf16 %v7435, %v7434
      %v7547 = vpack.c.bf16 %v7437, %v7436
      %v7548 = vpack.c.bf16 %v7439, %v7438
      %v7549 = vpack.c.bf16 %v7441, %v7440
      %v7550 = vpack.c.bf16 %v7443, %v7442
      %v7551 = vpack.c.bf16 %v7445, %v7444
      %v7552 = vpack.c.bf16 %v7447, %v7446
      %v7553 = vpack.c.bf16 %v7449, %v7448
      %v7554 = vpack.c.bf16 %v7451, %v7450
      %v7555 = vpack.c.bf16 %v7453, %v7452
      %v7556 = vpack.c.bf16 %v7455, %v7454
      %v7557 = vpack.c.bf16 %v7457, %v7456
      %v7558 = vpack.c.bf16 %v7459, %v7458
      %v7559 = vpack.c.bf16 %v7461, %v7460
      %v7560 = vpack.c.bf16 %v7463, %v7462
      %v7561 = vpack.c.bf16 %v7465, %v7464
      %v7562 = vpack.c.bf16 %v7467, %v7466
      %v7563 = vpack.c.bf16 %v7469, %v7468
      %v7564 = vpack.c.bf16 %v7471, %v7470
      %v7565 = vpack.c.bf16 %v7473, %v7472
      %v7566 = vpack.c.bf16 %v7475, %v7474
      %v7567 = vpack.c.bf16 %v7477, %v7476
      %v7568 = vpack.c.bf16 %v7479, %v7478
      %v7569 = vpack.c.bf16 %v7481, %v7480
      %v7570 = vpack.c.bf16 %v7483, %v7482
      %v7571 = vpack.c.bf16 %v7485, %v7484
      %v7572 = vpack.c.bf16 %v7487, %v7486
      %v7573 = vpack.c.bf16 %v7489, %v7488
      %v7574 = vpack.c.bf16 %v7491, %v7490
      %v7575 = vpack.c.bf16 %v7493, %v7492
      %v7576 = vpack.c.bf16 %v7495, %v7494
      %v7577 = vpack.c.bf16 %v7497, %v7496
      %v7578 = vpack.c.bf16 %v7499, %v7498
      %v7579 = vpack.c.bf16 %v7501, %v7500
      %v7580 = vpack.c.bf16 %v7503, %v7502
      %v7581 = vpack.c.bf16 %v7505, %v7504
      %v7582 = vpack.c.bf16 %v7507, %v7506
      %v7583 = vpack.c.bf16 %v7509, %v7508
      %v7584 = vpack.c.bf16 %v7511, %v7510
      %v7585 = vpack.c.bf16 %v7513, %v7512
      %v7586 = vpack.c.bf16 %v7515, %v7514
      %v7587 = vpack.c.bf16 %v7517, %v7516
      %v7588 = vpack.c.bf16 %v7519, %v7518
      %v7589 = vpack.c.bf16 %v7521, %v7520
      %v7590 = vpack.c.bf16 %v7523, %v7522
      %v7591 = vpack.c.bf16 %v7525, %v7524
      %7592 = vmatprep.subr.bf16.mxu0 0
      %7593 = vmatpush1.bf16.xpose.msra.mxu0 %v7528
      %7594 = vmatprep.subr.bf16.mxu0 0
      %7595 = vmatpush1.bf16.xpose.msra.mxu0 %v7529
      %7596 = vmatprep.subr.bf16.mxu0 0
      %7597 = vmatpush1.bf16.xpose.msra.mxu0 %v7530
      %7598 = vmatprep.subr.bf16.mxu0 0
      %7599 = vmatpush1.bf16.xpose.msra.mxu0 %v7531
      %7600 = vmatprep.subr.bf16.mxu0 0
      %7601 = vmatpush1.bf16.xpose.msra.mxu0 %v7532
      %7602 = vmatprep.subr.bf16.mxu0 0
      %7603 = vmatpush1.bf16.xpose.msra.mxu0 %v7533
      %7604 = vmatprep.subr.bf16.mxu0 0
      %7605 = vmatpush1.bf16.xpose.msra.mxu0 %v7534
      %7606 = vmatprep.subr.bf16.mxu0 0
      %7607 = vmatpush1.bf16.xpose.msra.mxu0 %v7535
      %7608 = vmatprep.subr.bf16.mxu0 0
      %7609 = vmatpush1.bf16.xpose.msra.mxu0 %v7536
      %7610 = vmatprep.subr.bf16.mxu0 0
      %7611 = vmatpush1.bf16.xpose.msra.mxu0 %v7537
      %7612 = vmatprep.subr.bf16.mxu0 0
      %7613 = vmatpush1.bf16.xpose.msra.mxu0 %v7538
      %7614 = vmatprep.subr.bf16.mxu0 0
      %7615 = vmatpush1.bf16.xpose.msra.mxu0 %v7539
      %7616 = vmatprep.subr.bf16.mxu0 0
      %7617 = vmatpush1.bf16.xpose.msra.mxu0 %v7540
      %7618 = vmatprep.subr.bf16.mxu0 0
      %7619 = vmatpush1.bf16.xpose.msra.mxu0 %v7541
      %7620 = vmatprep.subr.bf16.mxu0 0
      %7621 = vmatpush1.bf16.xpose.msra.mxu0 %v7542
      %7622 = vmatprep.subr.bf16.mxu0 0
      %7623 = vmatpush1.bf16.xpose.msra.mxu0 %v7543
      %7624 = vmatprep.mubr.bf16.mxu0 0
      %7625 = vmatmul.mubr.bf16.gmra.mrb[0].mxu0 %v7527
      %v7626 = vpop.f32.mrb[0].mxu0
      %v7627 = vadd.f32 0.0, %v7626
      %v7628 = vpop.f32.mrb[0].mxu0
      %v7629 = vadd.f32 0.0, %v7628
      %v7630 = vpop.f32.mrb[0].mxu0
      %v7631 = vpop.f32.mrb[0].mxu0
      %7632 = vdwg.mxu0
      %7633 = vmatprep.subr.bf16.mxu0 0
      %7634 = vmatpush1.bf16.xpose.msra.mxu0 %v7544
      %7635 = vmatprep.subr.bf16.mxu0 0
      %7636 = vmatpush1.bf16.xpose.msra.mxu0 %v7545
      %7637 = vmatprep.subr.bf16.mxu0 0
      %7638 = vmatpush1.bf16.xpose.msra.mxu0 %v7546
      %7639 = vmatprep.subr.bf16.mxu0 0
      %7640 = vmatpush1.bf16.xpose.msra.mxu0 %v7547
      %7641 = vmatprep.subr.bf16.mxu0 0
      %7642 = vmatpush1.bf16.xpose.msra.mxu0 %v7548
      %7643 = vmatprep.subr.bf16.mxu0 0
      %7644 = vmatpush1.bf16.xpose.msra.mxu0 %v7549
      %7645 = vmatprep.subr.bf16.mxu0 0
      %7646 = vmatpush1.bf16.xpose.msra.mxu0 %v7550
      %7647 = vmatprep.subr.bf16.mxu0 0
      %7648 = vmatpush1.bf16.xpose.msra.mxu0 %v7551
      %7649 = vmatprep.subr.bf16.mxu0 0
      %7650 = vmatpush1.bf16.xpose.msra.mxu0 %v7552
      %7651 = vmatprep.subr.bf16.mxu0 0
      %7652 = vmatpush1.bf16.xpose.msra.mxu0 %v7553
      %7653 = vmatprep.subr.bf16.mxu0 0
      %7654 = vmatpush1.bf16.xpose.msra.mxu0 %v7554
      %7655 = vmatprep.subr.bf16.mxu0 0
      %7656 = vmatpush1.bf16.xpose.msra.mxu0 %v7555
      %7657 = vmatprep.subr.bf16.mxu0 0
      %7658 = vmatpush1.bf16.xpose.msra.mxu0 %v7556
      %7659 = vmatprep.subr.bf16.mxu0 0
      %7660 = vmatpush1.bf16.xpose.msra.mxu0 %v7557
      %7661 = vmatprep.subr.bf16.mxu0 0
      %7662 = vmatpush1.bf16.xpose.msra.mxu0 %v7558
      %7663 = vmatprep.subr.bf16.mxu0 0
      %7664 = vmatpush1.bf16.xpose.msra.mxu0 %v7559
      %7665 = vmatprep.mubr.bf16.mxu0 0
      %7666 = vmatmul.mubr.bf16.gmra.mrb[0].mxu0 %v7527
      %v7667 = vpop.f32.mrb[0].mxu0
      %v7668 = vadd.f32 0.0, %v7667
      %v7669 = vpop.f32.mrb[0].mxu0
      %v7670 = vadd.f32 0.0, %v7669
      %v7671 = vpop.f32.mrb[0].mxu0
      %v7672 = vpop.f32.mrb[0].mxu0
      %7673 = vdwg.mxu0
      %7674 = vmatprep.subr.bf16.mxu0 0
      %7675 = vmatpush1.bf16.xpose.msra.mxu0 %v7560
      %7676 = vmatprep.subr.bf16.mxu0 0
      %7677 = vmatpush1.bf16.xpose.msra.mxu0 %v7561
      %7678 = vmatprep.subr.bf16.mxu0 0
      %7679 = vmatpush1.bf16.xpose.msra.mxu0 %v7562
      %7680 = vmatprep.subr.bf16.mxu0 0
      %7681 = vmatpush1.bf16.xpose.msra.mxu0 %v7563
      %7682 = vmatprep.subr.bf16.mxu0 0
      %7683 = vmatpush1.bf16.xpose.msra.mxu0 %v7564
      %7684 = vmatprep.subr.bf16.mxu0 0
      %7685 = vmatpush1.bf16.xpose.msra.mxu0 %v7565
      %7686 = vmatprep.subr.bf16.mxu0 0
      %7687 = vmatpush1.bf16.xpose.msra.mxu0 %v7566
      %7688 = vmatprep.subr.bf16.mxu0 0
      %7689 = vmatpush1.bf16.xpose.msra.mxu0 %v7567
      %7690 = vmatprep.subr.bf16.mxu0 0
      %7691 = vmatpush1.bf16.xpose.msra.mxu0 %v7568
      %7692 = vmatprep.subr.bf16.mxu0 0
      %7693 = vmatpush1.bf16.xpose.msra.mxu0 %v7569
      %7694 = vmatprep.subr.bf16.mxu0 0
      %7695 = vmatpush1.bf16.xpose.msra.mxu0 %v7570
      %7696 = vmatprep.subr.bf16.mxu0 0
      %7697 = vmatpush1.bf16.xpose.msra.mxu0 %v7571
      %7698 = vmatprep.subr.bf16.mxu0 0
      %7699 = vmatpush1.bf16.xpose.msra.mxu0 %v7572
      %7700 = vmatprep.subr.bf16.mxu0 0
      %7701 = vmatpush1.bf16.xpose.msra.mxu0 %v7573
      %7702 = vmatprep.subr.bf16.mxu0 0
      %7703 = vmatpush1.bf16.xpose.msra.mxu0 %v7574
      %7704 = vmatprep.subr.bf16.mxu0 0
      %7705 = vmatpush1.bf16.xpose.msra.mxu0 %v7575
      %7706 = vmatprep.mubr.bf16.mxu0 0
      %7707 = vmatmul.mubr.bf16.gmra.mrb[0].mxu0 %v7527
      %v7708 = vpop.f32.mrb[0].mxu0
      %v7709 = vadd.f32 0.0, %v7708
      %v7710 = vpop.f32.mrb[0].mxu0
      %v7711 = vadd.f32 0.0, %v7710
      %v7712 = vpop.f32.mrb[0].mxu0
      %v7713 = vpop.f32.mrb[0].mxu0
      %7714 = vdwg.mxu0
      %7715 = vmatprep.subr.bf16.mxu0 0
      %7716 = vmatpush1.bf16.xpose.msra.mxu0 %v7576
      %7717 = vmatprep.subr.bf16.mxu0 0
      %7718 = vmatpush1.bf16.xpose.msra.mxu0 %v7577
      %7719 = vmatprep.subr.bf16.mxu0 0
      %7720 = vmatpush1.bf16.xpose.msra.mxu0 %v7578
      %7721 = vmatprep.subr.bf16.mxu0 0
      %7722 = vmatpush1.bf16.xpose.msra.mxu0 %v7579
      %7723 = vmatprep.subr.bf16.mxu0 0
      %7724 = vmatpush1.bf16.xpose.msra.mxu0 %v7580
      %7725 = vmatprep.subr.bf16.mxu0 0
      %7726 = vmatpush1.bf16.xpose.msra.mxu0 %v7581
      %7727 = vmatprep.subr.bf16.mxu0 0
      %7728 = vmatpush1.bf16.xpose.msra.mxu0 %v7582
      %7729 = vmatprep.subr.bf16.mxu0 0
      %7730 = vmatpush1.bf16.xpose.msra.mxu0 %v7583
      %7731 = vmatprep.subr.bf16.mxu0 0
      %7732 = vmatpush1.bf16.xpose.msra.mxu0 %v7584
      %7733 = vmatprep.subr.bf16.mxu0 0
      %7734 = vmatpush1.bf16.xpose.msra.mxu0 %v7585
      %7735 = vmatprep.subr.bf16.mxu0 0
      %7736 = vmatpush1.bf16.xpose.msra.mxu0 %v7586
      %7737 = vmatprep.subr.bf16.mxu0 0
      %7738 = vmatpush1.bf16.xpose.msra.mxu0 %v7587
      %7739 = vmatprep.subr.bf16.mxu0 0
      %7740 = vmatpush1.bf16.xpose.msra.mxu0 %v7588
      %7741 = vmatprep.subr.bf16.mxu0 0
      %7742 = vmatpush1.bf16.xpose.msra.mxu0 %v7589
      %7743 = vmatprep.subr.bf16.mxu0 0
      %7744 = vmatpush1.bf16.xpose.msra.mxu0 %v7590
      %7745 = vmatprep.subr.bf16.mxu0 0
      %7746 = vmatpush1.bf16.xpose.msra.mxu0 %v7591
      %7747 = vmatprep.mubr.bf16.mxu0 0
      %7748 = vmatmul.mubr.bf16.gmra.mrb[0].mxu0 %v7527
      %v7749 = vpop.f32.mrb[0].mxu0
      %v7750 = vadd.f32 0.0, %v7749
      %v7751 = vpop.f32.mrb[0].mxu0
      %v7752 = vadd.f32 0.0, %v7751
      %v7753 = vpop.f32.mrb[0].mxu0
      %v7754 = vpop.f32.mrb[0].mxu0
      %7755 = vdwg.mxu0
      %v7756 = vld [vmem:[%s351] sm:$0xff]
      %v7765 = vcombine.low %v7627, %v7629
      %v7766 = vcombine.low %v7668, %v7670
      %v7767 = vcombine.low %v7709, %v7711
      %v7768 = vcombine.low %v7750, %v7752
      %v7770 = vunpack.c.l.s4 1966171168
      %v7771 = vunpack.c.0.s8 %v7770
      %v7772 = vlaneseq
      %v7773 = vshrl.u32 %v7772, 7
      %v7774 = vsub.s32 %v7771, %v7773
      %v7775 = vrot.slane %v7765, %v7774
      %v7777 = vunpack.c.l.s4 1966171168
      %v7778 = vunpack.c.0.s8 %v7777
      %v7779 = vlaneseq
      %v7780 = vshrl.u32 %v7779, 7
      %v7781 = vsub.s32 %v7778, %v7780
      %v7782 = vrot.slane %v7766, %v7781
      %v7784 = vunpack.c.l.s4 1966171168
      %v7785 = vunpack.c.0.s8 %v7784
      %v7786 = vlaneseq
      %v7787 = vshrl.u32 %v7786, 7
      %v7788 = vsub.s32 %v7785, %v7787
      %v7789 = vrot.slane %v7767, %v7788
      %v7791 = vunpack.c.l.s4 1966171168
      %v7792 = vunpack.c.0.s8 %v7791
      %v7793 = vlaneseq
      %v7794 = vshrl.u32 %v7793, 7
      %v7795 = vsub.s32 %v7792, %v7794
      %v7796 = vrot.slane %v7768, %v7795
      %v7797 = vcombine.low %v7775, %v7782
      %v7798 = vcombine.low %v7789, %v7796
      %v7800 = vunpack.c.l.s4 1966171168
      %v7801 = vunpack.c.0.s8 %v7800
      %v7802 = vlaneseq
      %v7803 = vshrl.u32 %v7802, 7
      %v7804 = vsub.s32 %v7801, %v7803
      %v7805 = vrot.slane %v7797, %v7804
      %v7807 = vunpack.c.l.s4 1966171168
      %v7808 = vunpack.c.0.s8 %v7807
      %v7809 = vlaneseq
      %v7810 = vshrl.u32 %v7809, 7
      %v7811 = vsub.s32 %v7808, %v7810
      %v7812 = vrot.slane %v7798, %v7811
      %v7813 = vcombine.low %v7805, %v7812
      %v7815 = vadd.f32 %v7756, %v7813
      %7816 = vst [vmem:[%s351] sm:$0xff] %v7815
      %p7817 = scmp.lt.s32.totalorder %s23, 1
      %s7818 = scalar_select %p7817, %s23, 1
      %s7819 = smul.addr %s7818, 8
      %s7820 = scalar_lea.vmem %s8, %s7819
      // Predicated region
      $region57: #{refiner_pallas.4} parent=51 // pred_check
        %p7821 = pneg %p231
      $region58: #{refiner_pallas.4} parent=51 // pred_check_branch
        %7823 = sbr.rel (%p7821) target = $region60
      $region59: #{refiner_pallas.4} parent=51 // pred_region
        _
      $region60: #{refiner_pallas.4} parent=51 // pred_fallthru
        _
    $region52: #{refiner_pallas.4} parent=5 // pred_fallthru
      _
    %p7824 = scmp.le.s32.totalorder 2, %s14
    // Predicated region
    $region61: #{refiner_pallas.4} parent=5 // pred_check
      %p7825 = pneg %p7824
    $region62: #{refiner_pallas.4} parent=5 // pred_check_branch
      %7827 = sbr.rel (%p7825) target = $region64
    $region63: #{refiner_pallas.4} parent=5 // pred_region
      %s7828 = ssub.s32 %s14, 2
      // Predicated region
      $region65: #{refiner_pallas.4} parent=63 // pred_check
        %p7829 = pneg %p237
      $region66: #{refiner_pallas.4} parent=63 // pred_check_branch
        %7831 = sbr.rel (%p7829) target = $region68
      $region67: #{refiner_pallas.4} parent=63 // pred_region
        %p7832 = scmp.lt.s32.totalorder %s25, 1
        %s7833 = scalar_select %p7832, %s25, 1
        %s7834 = smul.addr %s7833, 8
        %s7835 = scalar_lea.vmem %s8, %s7834
      $region68: #{refiner_pallas.4} parent=63 // pred_fallthru
        _
    $region64: #{refiner_pallas.4} parent=5 // pred_fallthru
      _
  $region6: #{refiner_pallas.4} parent=0 // loop_footer
    %s18 = sadd.s32 1, %s14
  $region7: #{refiner_pallas.4} parent=0 // loop_footer_branch
    %13 = sbr.rel target = $region3
  $region8: #{refiner_pallas.4} parent=0 // loop_exit
    _

// kernel: refiner_pallas.5
$region0: #{refiner_pallas.5}
  #allocation0 [shape = 'u32[]', space=smem, size = 0x4, offset = 0x4, fixed_abs, tag = 'smem constant byte address 0x4 - core index']
  #allocation1 [shape = 'u32[144,128]{1,0:T(1,128)}', space=vmem, size = 0x12000, scoped, tag = 'internal scratch']
  %s0 = inlined_call_operand.vmem [shape: f32[2,1024], index: 0, kind: input, shape index: {}]
  %s1 = inlined_call_operand.vmem [shape: bf16[1024,512], index: 1, kind: input, shape index: {}]
  %s2 = inlined_call_operand.vmem [shape: f32[1,512], index: 2, kind: input, shape index: {}]
  %s3 = inlined_call_operand.vmem [shape: bf16[512,128], index: 3, kind: input, shape index: {}]
  %s4 = inlined_call_operand.vmem [shape: f32[1,128], index: 4, kind: input, shape index: {}]
  %s5 = inlined_call_operand.vmem [shape: bf16[128,9], index: 5, kind: input, shape index: {}]
  %s6 = inlined_call_operand.vmem [shape: f32[1,9], index: 6, kind: input, shape index: {}]
  %s7 = inlined_call_operand.vmem [shape: bf16[1024,512], index: 7, kind: input, shape index: {}]
  %s8 = inlined_call_operand.vmem [shape: f32[1,512], index: 8, kind: input, shape index: {}]
  %s9 = inlined_call_operand.vmem [shape: bf16[512,128], index: 9, kind: input, shape index: {}]
  %s10 = inlined_call_operand.vmem [shape: f32[1,128], index: 10, kind: input, shape index: {}]
  %s11 = inlined_call_operand.vmem [shape: bf16[128,3], index: 11, kind: input, shape index: {}]
  %s12 = inlined_call_operand.vmem [shape: f32[1,3], index: 12, kind: input, shape index: {}]
  %s13 = inlined_call_operand.hbm [shape: f32[2,9], index: 13, kind: output, shape index: {0}]
  %s14 = inlined_call_operand.hbm [shape: f32[2,3], index: 14, kind: output, shape index: {1}]
  %15 = xla_tuple %s13, %s14
  %s16 = sld [smem:[#allocation0]]
  $region70: #{refiner_pallas.5} parent=0
    _
  %s18 = ssub.s32 1, %s16
  %s19 = scalar_select 0, %s18, %s16
  $region1: #{refiner_pallas.5} parent=0
    #allocation2 [shape = 'u8[1024]{0}', space=vmem, size = 0x400, scoped, tag = 'output window, operand 0, single buffered']
    #allocation3 [shape = 's32[1]{0}', space=sflag, size = 0x4, scoped, tag = 'scoped memory for refiner_pallas.5']
    #allocation4 [shape = 'u8[1024]{0}', space=vmem, size = 0x400, scoped, tag = 'output window, operand 1, single buffered']
    #allocation5 [shape = 's32[1]{0}', space=sflag, size = 0x4, scoped, tag = 'scoped memory for refiner_pallas.5']
    %20 = vsyncpa [#allocation3], 0
    %21 = vsyncpa [#allocation5], 0
    // Predicated region
    $region2: #{refiner_pallas.5} parent=1 // pred_check
      _
    $region3: #{refiner_pallas.5} parent=1 // pred_check_branch
      %23 = sbr.rel (0) target = $region5
    $region4: #{refiner_pallas.5} parent=1 // pred_region
      _
    $region5: #{refiner_pallas.5} parent=1 // pred_fallthru
      _
    // Predicated region
    $region6: #{refiner_pallas.5} parent=1 // pred_check
      _
    $region7: #{refiner_pallas.5} parent=1 // pred_check_branch
      %25 = sbr.rel (0) target = $region9
    $region8: #{refiner_pallas.5} parent=1 // pred_region
      _
    $region9: #{refiner_pallas.5} parent=1 // pred_fallthru
      _
    // Predicated region
    $region10: #{refiner_pallas.5} parent=1 // pred_check
      _
    $region11: #{refiner_pallas.5} parent=1 // pred_check_branch
      %27 = sbr.rel (0) target = $region13
    $region12: #{refiner_pallas.5} parent=1 // pred_region
      _
    $region13: #{refiner_pallas.5} parent=1 // pred_fallthru
      _
    // Predicated region
    $region14: #{refiner_pallas.5} parent=1 // pred_check
      _
    $region15: #{refiner_pallas.5} parent=1 // pred_check_branch
      %29 = sbr.rel (0) target = $region17
    $region16: #{refiner_pallas.5} parent=1 // pred_region
      _
    $region17: #{refiner_pallas.5} parent=1 // pred_fallthru
      _
    // Predicated region
    $region18: #{refiner_pallas.5} parent=1 // pred_check
      _
    $region19: #{refiner_pallas.5} parent=1 // pred_check_branch
      %31 = sbr.rel (0) target = $region21
    $region20: #{refiner_pallas.5} parent=1 // pred_region
      _
    $region21: #{refiner_pallas.5} parent=1 // pred_fallthru
      _
    // Predicated region
    $region22: #{refiner_pallas.5} parent=1 // pred_check
      _
    $region23: #{refiner_pallas.5} parent=1 // pred_check_branch
      %33 = sbr.rel (0) target = $region25
    $region24: #{refiner_pallas.5} parent=1 // pred_region
      _
    $region25: #{refiner_pallas.5} parent=1 // pred_fallthru
      _
    // Predicated region
    $region26: #{refiner_pallas.5} parent=1 // pred_check
      _
    $region27: #{refiner_pallas.5} parent=1 // pred_check_branch
      %35 = sbr.rel (0) target = $region29
    $region28: #{refiner_pallas.5} parent=1 // pred_region
      _
    $region29: #{refiner_pallas.5} parent=1 // pred_fallthru
      _
    // Predicated region
    $region30: #{refiner_pallas.5} parent=1 // pred_check
      _
    $region31: #{refiner_pallas.5} parent=1 // pred_check_branch
      %37 = sbr.rel (0) target = $region33
    $region32: #{refiner_pallas.5} parent=1 // pred_region
      _
    $region33: #{refiner_pallas.5} parent=1 // pred_fallthru
      _
    // Predicated region
    $region34: #{refiner_pallas.5} parent=1 // pred_check
      _
    $region35: #{refiner_pallas.5} parent=1 // pred_check_branch
      %39 = sbr.rel (0) target = $region37
    $region36: #{refiner_pallas.5} parent=1 // pred_region
      _
    $region37: #{refiner_pallas.5} parent=1 // pred_fallthru
      _
    // Predicated region
    $region38: #{refiner_pallas.5} parent=1 // pred_check
      _
    $region39: #{refiner_pallas.5} parent=1 // pred_check_branch
      %41 = sbr.rel (0) target = $region41
    $region40: #{refiner_pallas.5} parent=1 // pred_region
      _
    $region41: #{refiner_pallas.5} parent=1 // pred_fallthru
      _
    // Predicated region
    $region42: #{refiner_pallas.5} parent=1 // pred_check
      _
    $region43: #{refiner_pallas.5} parent=1 // pred_check_branch
      %43 = sbr.rel (0) target = $region45
    $region44: #{refiner_pallas.5} parent=1 // pred_region
      _
    $region45: #{refiner_pallas.5} parent=1 // pred_fallthru
      _
    // Predicated region
    $region46: #{refiner_pallas.5} parent=1 // pred_check
      _
    $region47: #{refiner_pallas.5} parent=1 // pred_check_branch
      %45 = sbr.rel (0) target = $region49
    $region48: #{refiner_pallas.5} parent=1 // pred_region
      _
    $region49: #{refiner_pallas.5} parent=1 // pred_fallthru
      _
    // Predicated region
    $region50: #{refiner_pallas.5} parent=1 // pred_check
      _
    $region51: #{refiner_pallas.5} parent=1 // pred_check_branch
      %47 = sbr.rel (0) target = $region53
    $region52: #{refiner_pallas.5} parent=1 // pred_region
      _
    $region53: #{refiner_pallas.5} parent=1 // pred_fallthru
      _
    %v49 = vld [vmem:[%s0] sm:$0xff]
    %v50 = vld [vmem:[%s0 + $0x8] sm:$0xff]
    %v53 = vcombine.high %v49, %v49
    %v55 = vunpack.c.l.s4 1983009808
    %v56 = vunpack.c.0.s8 %v55
    %v57 = vlaneseq
    %v58 = vshrl.u32 %v57, 7
    %v59 = vsub.s32 %v56, %v58
    %v60 = vrot.slane %v49, %v59
    %v62 = vunpack.c.l.s4 1983009808
    %v63 = vunpack.c.0.s8 %v62
    %v64 = vlaneseq
    %v65 = vshrl.u32 %v64, 7
    %v66 = vsub.s32 %v63, %v65
    %v67 = vrot.slane %v53, %v66
    %v68 = vcombine.high %v60, %v60
    %v69 = vcombine.high %v67, %v67
    %v70 = vcombine.high %v50, %v50
    %v72 = vunpack.c.l.s4 1983009808
    %v73 = vunpack.c.0.s8 %v72
    %v74 = vlaneseq
    %v75 = vshrl.u32 %v74, 7
    %v76 = vsub.s32 %v73, %v75
    %v77 = vrot.slane %v50, %v76
    %v79 = vunpack.c.l.s4 1983009808
    %v80 = vunpack.c.0.s8 %v79
    %v81 = vlaneseq
    %v82 = vshrl.u32 %v81, 7
    %v83 = vsub.s32 %v80, %v82
    %v84 = vrot.slane %v70, %v83
    %v85 = vcombine.high %v77, %v77
    %v86 = vcombine.high %v84, %v84
    %v95 = vpack.c.bf16 %v60, %v60
    %v96 = vpack.c.bf16 %v68, %v68
    %v97 = vpack.c.bf16 %v67, %v67
    %v98 = vpack.c.bf16 %v69, %v69
    %v99 = vpack.c.bf16 %v77, %v77
    %v100 = vpack.c.bf16 %v85, %v85
    %v101 = vpack.c.bf16 %v84, %v84
    %v102 = vpack.c.bf16 %v86, %v86
    %v103 = vld [vmem:[%s1] sm:$0xff]
    %v104 = vld [vmem:[%s1 + $0x8] sm:$0xff]
    %v105 = vld [vmem:[%s1 + $0x10] sm:$0xff]
    %v106 = vld [vmem:[%s1 + $0x18] sm:$0xff]
    %v107 = vld [vmem:[%s1 + $0x20] sm:$0xff]
    %v108 = vld [vmem:[%s1 + $0x28] sm:$0xff]
    %v109 = vld [vmem:[%s1 + $0x30] sm:$0xff]
    %v110 = vld [vmem:[%s1 + $0x38] sm:$0xff]
    %v111 = vld [vmem:[%s1 + $0x40] sm:$0xff]
    %v112 = vld [vmem:[%s1 + $0x48] sm:$0xff]
    %v113 = vld [vmem:[%s1 + $0x50] sm:$0xff]
    %v114 = vld [vmem:[%s1 + $0x58] sm:$0xff]
    %v115 = vld [vmem:[%s1 + $0x60] sm:$0xff]
    %v116 = vld [vmem:[%s1 + $0x68] sm:$0xff]
    %v117 = vld [vmem:[%s1 + $0x70] sm:$0xff]
    %v118 = vld [vmem:[%s1 + $0x78] sm:$0xff]
    %v119 = vld [vmem:[%s1 + $0x80] sm:$0xff]
    %v120 = vld [vmem:[%s1 + $0x88] sm:$0xff]
    %v121 = vld [vmem:[%s1 + $0x90] sm:$0xff]
    %v122 = vld [vmem:[%s1 + $0x98] sm:$0xff]
    %v123 = vld [vmem:[%s1 + $0xa0] sm:$0xff]
    %v124 = vld [vmem:[%s1 + $0xa8] sm:$0xff]
    %v125 = vld [vmem:[%s1 + $0xb0] sm:$0xff]
    %v126 = vld [vmem:[%s1 + $0xb8] sm:$0xff]
    %v127 = vld [vmem:[%s1 + $0xc0] sm:$0xff]
    %v128 = vld [vmem:[%s1 + $0xc8] sm:$0xff]
    %v129 = vld [vmem:[%s1 + $0xd0] sm:$0xff]
    %v130 = vld [vmem:[%s1 + $0xd8] sm:$0xff]
    %v131 = vld [vmem:[%s1 + $0xe0] sm:$0xff]
    %v132 = vld [vmem:[%s1 + $0xe8] sm:$0xff]
    %v133 = vld [vmem:[%s1 + $0xf0] sm:$0xff]
    %v134 = vld [vmem:[%s1 + $0xf8] sm:$0xff]
    %v135 = vld [vmem:[%s1 + $0x100] sm:$0xff]
    %v136 = vld [vmem:[%s1 + $0x108] sm:$0xff]
    %v137 = vld [vmem:[%s1 + $0x110] sm:$0xff]
    %v138 = vld [vmem:[%s1 + $0x118] sm:$0xff]
    %v139 = vld [vmem:[%s1 + $0x120] sm:$0xff]
    %v140 = vld [vmem:[%s1 + $0x128] sm:$0xff]
    %v141 = vld [vmem:[%s1 + $0x130] sm:$0xff]
    %v142 = vld [vmem:[%s1 + $0x138] sm:$0xff]
    %v143 = vld [vmem:[%s1 + $0x140] sm:$0xff]
    %v144 = vld [vmem:[%s1 + $0x148] sm:$0xff]
    %v145 = vld [vmem:[%s1 + $0x150] sm:$0xff]
    %v146 = vld [vmem:[%s1 + $0x158] sm:$0xff]
    %v147 = vld [vmem:[%s1 + $0x160] sm:$0xff]
    %v148 = vld [vmem:[%s1 + $0x168] sm:$0xff]
    %v149 = vld [vmem:[%s1 + $0x170] sm:$0xff]
    %v150 = vld [vmem:[%s1 + $0x178] sm:$0xff]
    %v151 = vld [vmem:[%s1 + $0x180] sm:$0xff]
    %v152 = vld [vmem:[%s1 + $0x188] sm:$0xff]
    %v153 = vld [vmem:[%s1 + $0x190] sm:$0xff]
    %v154 = vld [vmem:[%s1 + $0x198] sm:$0xff]
    %v155 = vld [vmem:[%s1 + $0x1a0] sm:$0xff]
    %v156 = vld [vmem:[%s1 + $0x1a8] sm:$0xff]
    %v157 = vld [vmem:[%s1 + $0x1b0] sm:$0xff]
    %v158 = vld [vmem:[%s1 + $0x1b8] sm:$0xff]
    %v159 = vld [vmem:[%s1 + $0x1c0] sm:$0xff]
    %v160 = vld [vmem:[%s1 + $0x1c8] sm:$0xff]
    %v161 = vld [vmem:[%s1 + $0x1d0] sm:$0xff]
    %v162 = vld [vmem:[%s1 + $0x1d8] sm:$0xff]
    %v163 = vld [vmem:[%s1 + $0x1e0] sm:$0xff]
    %v164 = vld [vmem:[%s1 + $0x1e8] sm:$0xff]
    %v165 = vld [vmem:[%s1 + $0x1f0] sm:$0xff]
    %v166 = vld [vmem:[%s1 + $0x1f8] sm:$0xff]
    %v167 = vld [vmem:[%s1 + $0x200] sm:$0xff]
    %v168 = vld [vmem:[%s1 + $0x208] sm:$0xff]
    %v169 = vld [vmem:[%s1 + $0x210] sm:$0xff]
    %v170 = vld [vmem:[%s1 + $0x218] sm:$0xff]
    %v171 = vld [vmem:[%s1 + $0x220] sm:$0xff]
    %v172 = vld [vmem:[%s1 + $0x228] sm:$0xff]
    %v173 = vld [vmem:[%s1 + $0x230] sm:$0xff]
    %v174 = vld [vmem:[%s1 + $0x238] sm:$0xff]
    %v175 = vld [vmem:[%s1 + $0x240] sm:$0xff]
    %v176 = vld [vmem:[%s1 + $0x248] sm:$0xff]
    %v177 = vld [vmem:[%s1 + $0x250] sm:$0xff]
    %v178 = vld [vmem:[%s1 + $0x258] sm:$0xff]
    %v179 = vld [vmem:[%s1 + $0x260] sm:$0xff]
    %v180 = vld [vmem:[%s1 + $0x268] sm:$0xff]
    %v181 = vld [vmem:[%s1 + $0x270] sm:$0xff]
    %v182 = vld [vmem:[%s1 + $0x278] sm:$0xff]
    %v183 = vld [vmem:[%s1 + $0x280] sm:$0xff]
    %v184 = vld [vmem:[%s1 + $0x288] sm:$0xff]
    %v185 = vld [vmem:[%s1 + $0x290] sm:$0xff]
    %v186 = vld [vmem:[%s1 + $0x298] sm:$0xff]
    %v187 = vld [vmem:[%s1 + $0x2a0] sm:$0xff]
    %v188 = vld [vmem:[%s1 + $0x2a8] sm:$0xff]
    %v189 = vld [vmem:[%s1 + $0x2b0] sm:$0xff]
    %v190 = vld [vmem:[%s1 + $0x2b8] sm:$0xff]
    %v191 = vld [vmem:[%s1 + $0x2c0] sm:$0xff]
    %v192 = vld [vmem:[%s1 + $0x2c8] sm:$0xff]
    %v193 = vld [vmem:[%s1 + $0x2d0] sm:$0xff]
    %v194 = vld [vmem:[%s1 + $0x2d8] sm:$0xff]
    %v195 = vld [vmem:[%s1 + $0x2e0] sm:$0xff]
    %v196 = vld [vmem:[%s1 + $0x2e8] sm:$0xff]
    %v197 = vld [vmem:[%s1 + $0x2f0] sm:$0xff]
    %v198 = vld [vmem:[%s1 + $0x2f8] sm:$0xff]
    %v199 = vld [vmem:[%s1 + $0x300] sm:$0xff]
    %v200 = vld [vmem:[%s1 + $0x308] sm:$0xff]
    %v201 = vld [vmem:[%s1 + $0x310] sm:$0xff]
    %v202 = vld [vmem:[%s1 + $0x318] sm:$0xff]
    %v203 = vld [vmem:[%s1 + $0x320] sm:$0xff]
    %v204 = vld [vmem:[%s1 + $0x328] sm:$0xff]
    %v205 = vld [vmem:[%s1 + $0x330] sm:$0xff]
    %v206 = vld [vmem:[%s1 + $0x338] sm:$0xff]
    %v207 = vld [vmem:[%s1 + $0x340] sm:$0xff]
    %v208 = vld [vmem:[%s1 + $0x348] sm:$0xff]
    %v209 = vld [vmem:[%s1 + $0x350] sm:$0xff]
    %v210 = vld [vmem:[%s1 + $0x358] sm:$0xff]
    %v211 = vld [vmem:[%s1 + $0x360] sm:$0xff]
    %v212 = vld [vmem:[%s1 + $0x368] sm:$0xff]
    %v213 = vld [vmem:[%s1 + $0x370] sm:$0xff]
    %v214 = vld [vmem:[%s1 + $0x378] sm:$0xff]
    %v215 = vld [vmem:[%s1 + $0x380] sm:$0xff]
    %v216 = vld [vmem:[%s1 + $0x388] sm:$0xff]
    %v217 = vld [vmem:[%s1 + $0x390] sm:$0xff]
    %v218 = vld [vmem:[%s1 + $0x398] sm:$0xff]
    %v219 = vld [vmem:[%s1 + $0x3a0] sm:$0xff]
    %v220 = vld [vmem:[%s1 + $0x3a8] sm:$0xff]
    %v221 = vld [vmem:[%s1 + $0x3b0] sm:$0xff]
    %v222 = vld [vmem:[%s1 + $0x3b8] sm:$0xff]
    %v223 = vld [vmem:[%s1 + $0x3c0] sm:$0xff]
    %v224 = vld [vmem:[%s1 + $0x3c8] sm:$0xff]
    %v225 = vld [vmem:[%s1 + $0x3d0] sm:$0xff]
    %v226 = vld [vmem:[%s1 + $0x3d8] sm:$0xff]
    %v227 = vld [vmem:[%s1 + $0x3e0] sm:$0xff]
    %v228 = vld [vmem:[%s1 + $0x3e8] sm:$0xff]
    %v229 = vld [vmem:[%s1 + $0x3f0] sm:$0xff]
    %v230 = vld [vmem:[%s1 + $0x3f8] sm:$0xff]
    %v231 = vld [vmem:[%s1 + $0x400] sm:$0xff]
    %v232 = vld [vmem:[%s1 + $0x408] sm:$0xff]
    %v233 = vld [vmem:[%s1 + $0x410] sm:$0xff]
    %v234 = vld [vmem:[%s1 + $0x418] sm:$0xff]
    %v235 = vld [vmem:[%s1 + $0x420] sm:$0xff]
    %v236 = vld [vmem:[%s1 + $0x428] sm:$0xff]
    %v237 = vld [vmem:[%s1 + $0x430] sm:$0xff]
    %v238 = vld [vmem:[%s1 + $0x438] sm:$0xff]
    %v239 = vld [vmem:[%s1 + $0x440] sm:$0xff]
    %v240 = vld [vmem:[%s1 + $0x448] sm:$0xff]
    %v241 = vld [vmem:[%s1 + $0x450] sm:$0xff]
    %v242 = vld [vmem:[%s1 + $0x458] sm:$0xff]
    %v243 = vld [vmem:[%s1 + $0x460] sm:$0xff]
    %v244 = vld [vmem:[%s1 + $0x468] sm:$0xff]
    %v245 = vld [vmem:[%s1 + $0x470] sm:$0xff]
    %v246 = vld [vmem:[%s1 + $0x478] sm:$0xff]
    %v247 = vld [vmem:[%s1 + $0x480] sm:$0xff]
    %v248 = vld [vmem:[%s1 + $0x488] sm:$0xff]
    %v249 = vld [vmem:[%s1 + $0x490] sm:$0xff]
    %v250 = vld [vmem:[%s1 + $0x498] sm:$0xff]
    %v251 = vld [vmem:[%s1 + $0x4a0] sm:$0xff]
    %v252 = vld [vmem:[%s1 + $0x4a8] sm:$0xff]
    %v253 = vld [vmem:[%s1 + $0x4b0] sm:$0xff]
    %v254 = vld [vmem:[%s1 + $0x4b8] sm:$0xff]
    %v255 = vld [vmem:[%s1 + $0x4c0] sm:$0xff]
    %v256 = vld [vmem:[%s1 + $0x4c8] sm:$0xff]
    %v257 = vld [vmem:[%s1 + $0x4d0] sm:$0xff]
    %v258 = vld [vmem:[%s1 + $0x4d8] sm:$0xff]
    %v259 = vld [vmem:[%s1 + $0x4e0] sm:$0xff]
    %v260 = vld [vmem:[%s1 + $0x4e8] sm:$0xff]
    %v261 = vld [vmem:[%s1 + $0x4f0] sm:$0xff]
    %v262 = vld [vmem:[%s1 + $0x4f8] sm:$0xff]
    %v263 = vld [vmem:[%s1 + $0x500] sm:$0xff]
    %v264 = vld [vmem:[%s1 + $0x508] sm:$0xff]
    %v265 = vld [vmem:[%s1 + $0x510] sm:$0xff]
    %v266 = vld [vmem:[%s1 + $0x518] sm:$0xff]
    %v267 = vld [vmem:[%s1 + $0x520] sm:$0xff]
    %v268 = vld [vmem:[%s1 + $0x528] sm:$0xff]
    %v269 = vld [vmem:[%s1 + $0x530] sm:$0xff]
    %v270 = vld [vmem:[%s1 + $0x538] sm:$0xff]
    %v271 = vld [vmem:[%s1 + $0x540] sm:$0xff]
    %v272 = vld [vmem:[%s1 + $0x548] sm:$0xff]
    %v273 = vld [vmem:[%s1 + $0x550] sm:$0xff]
    %v274 = vld [vmem:[%s1 + $0x558] sm:$0xff]
    %v275 = vld [vmem:[%s1 + $0x560] sm:$0xff]
    %v276 = vld [vmem:[%s1 + $0x568] sm:$0xff]
    %v277 = vld [vmem:[%s1 + $0x570] sm:$0xff]
    %v278 = vld [vmem:[%s1 + $0x578] sm:$0xff]
    %v279 = vld [vmem:[%s1 + $0x580] sm:$0xff]
    %v280 = vld [vmem:[%s1 + $0x588] sm:$0xff]
    %v281 = vld [vmem:[%s1 + $0x590] sm:$0xff]
    %v282 = vld [vmem:[%s1 + $0x598] sm:$0xff]
    %v283 = vld [vmem:[%s1 + $0x5a0] sm:$0xff]
    %v284 = vld [vmem:[%s1 + $0x5a8] sm:$0xff]
    %v285 = vld [vmem:[%s1 + $0x5b0] sm:$0xff]
    %v286 = vld [vmem:[%s1 + $0x5b8] sm:$0xff]
    %v287 = vld [vmem:[%s1 + $0x5c0] sm:$0xff]
    %v288 = vld [vmem:[%s1 + $0x5c8] sm:$0xff]
    %v289 = vld [vmem:[%s1 + $0x5d0] sm:$0xff]
    %v290 = vld [vmem:[%s1 + $0x5d8] sm:$0xff]
    %v291 = vld [vmem:[%s1 + $0x5e0] sm:$0xff]
    %v292 = vld [vmem:[%s1 + $0x5e8] sm:$0xff]
    %v293 = vld [vmem:[%s1 + $0x5f0] sm:$0xff]
    %v294 = vld [vmem:[%s1 + $0x5f8] sm:$0xff]
    %v295 = vld [vmem:[%s1 + $0x600] sm:$0xff]
    %v296 = vld [vmem:[%s1 + $0x608] sm:$0xff]
    %v297 = vld [vmem:[%s1 + $0x610] sm:$0xff]
    %v298 = vld [vmem:[%s1 + $0x618] sm:$0xff]
    %v299 = vld [vmem:[%s1 + $0x620] sm:$0xff]
    %v300 = vld [vmem:[%s1 + $0x628] sm:$0xff]
    %v301 = vld [vmem:[%s1 + $0x630] sm:$0xff]
    %v302 = vld [vmem:[%s1 + $0x638] sm:$0xff]
    %v303 = vld [vmem:[%s1 + $0x640] sm:$0xff]
    %v304 = vld [vmem:[%s1 + $0x648] sm:$0xff]
    %v305 = vld [vmem:[%s1 + $0x650] sm:$0xff]
    %v306 = vld [vmem:[%s1 + $0x658] sm:$0xff]
    %v307 = vld [vmem:[%s1 + $0x660] sm:$0xff]
    %v308 = vld [vmem:[%s1 + $0x668] sm:$0xff]
    %v309 = vld [vmem:[%s1 + $0x670] sm:$0xff]
    %v310 = vld [vmem:[%s1 + $0x678] sm:$0xff]
    %v311 = vld [vmem:[%s1 + $0x680] sm:$0xff]
    %v312 = vld [vmem:[%s1 + $0x688] sm:$0xff]
    %v313 = vld [vmem:[%s1 + $0x690] sm:$0xff]
    %v314 = vld [vmem:[%s1 + $0x698] sm:$0xff]
    %v315 = vld [vmem:[%s1 + $0x6a0] sm:$0xff]
    %v316 = vld [vmem:[%s1 + $0x6a8] sm:$0xff]
    %v317 = vld [vmem:[%s1 + $0x6b0] sm:$0xff]
    %v318 = vld [vmem:[%s1 + $0x6b8] sm:$0xff]
    %v319 = vld [vmem:[%s1 + $0x6c0] sm:$0xff]
    %v320 = vld [vmem:[%s1 + $0x6c8] sm:$0xff]
    %v321 = vld [vmem:[%s1 + $0x6d0] sm:$0xff]
    %v322 = vld [vmem:[%s1 + $0x6d8] sm:$0xff]
    %v323 = vld [vmem:[%s1 + $0x6e0] sm:$0xff]
    %v324 = vld [vmem:[%s1 + $0x6e8] sm:$0xff]
    %v325 = vld [vmem:[%s1 + $0x6f0] sm:$0xff]
    %v326 = vld [vmem:[%s1 + $0x6f8] sm:$0xff]
    %v327 = vld [vmem:[%s1 + $0x700] sm:$0xff]
    %v328 = vld [vmem:[%s1 + $0x708] sm:$0xff]
    %v329 = vld [vmem:[%s1 + $0x710] sm:$0xff]
    %v330 = vld [vmem:[%s1 + $0x718] sm:$0xff]
    %v331 = vld [vmem:[%s1 + $0x720] sm:$0xff]
    %v332 = vld [vmem:[%s1 + $0x728] sm:$0xff]
    %v333 = vld [vmem:[%s1 + $0x730] sm:$0xff]
    %v334 = vld [vmem:[%s1 + $0x738] sm:$0xff]
    %v335 = vld [vmem:[%s1 + $0x740] sm:$0xff]
    %v336 = vld [vmem:[%s1 + $0x748] sm:$0xff]
    %v337 = vld [vmem:[%s1 + $0x750] sm:$0xff]
    %v338 = vld [vmem:[%s1 + $0x758] sm:$0xff]
    %v339 = vld [vmem:[%s1 + $0x760] sm:$0xff]
    %v340 = vld [vmem:[%s1 + $0x768] sm:$0xff]
    %v341 = vld [vmem:[%s1 + $0x770] sm:$0xff]
    %v342 = vld [vmem:[%s1 + $0x778] sm:$0xff]
    %v343 = vld [vmem:[%s1 + $0x780] sm:$0xff]
    %v344 = vld [vmem:[%s1 + $0x788] sm:$0xff]
    %v345 = vld [vmem:[%s1 + $0x790] sm:$0xff]
    %v346 = vld [vmem:[%s1 + $0x798] sm:$0xff]
    %v347 = vld [vmem:[%s1 + $0x7a0] sm:$0xff]
    %v348 = vld [vmem:[%s1 + $0x7a8] sm:$0xff]
    %v349 = vld [vmem:[%s1 + $0x7b0] sm:$0xff]
    %v350 = vld [vmem:[%s1 + $0x7b8] sm:$0xff]
    %v351 = vld [vmem:[%s1 + $0x7c0] sm:$0xff]
    %v352 = vld [vmem:[%s1 + $0x7c8] sm:$0xff]
    %v353 = vld [vmem:[%s1 + $0x7d0] sm:$0xff]
    %v354 = vld [vmem:[%s1 + $0x7d8] sm:$0xff]
    %v355 = vld [vmem:[%s1 + $0x7e0] sm:$0xff]
    %v356 = vld [vmem:[%s1 + $0x7e8] sm:$0xff]
    %v357 = vld [vmem:[%s1 + $0x7f0] sm:$0xff]
    %v358 = vld [vmem:[%s1 + $0x7f8] sm:$0xff]
    %v359 = vld [vmem:[%s2] sm:$0xf]
    %v361 = vlaneseq
    %v362 = vshrl.u32 %v361, 7
    %v363 = vsub.s32 0, %v362
    %v364 = vrot.slane %v359, %v363
    %v365 = vlaneseq
    %v366 = vshrl.u32 %v365, 7
    %v367 = vsub.s32 1, %v366
    %v368 = vrot.slane %v359, %v367
    %v369 = vlaneseq
    %v370 = vshrl.u32 %v369, 7
    %v371 = vsub.s32 2, %v370
    %v372 = vrot.slane %v359, %v371
    %v373 = vlaneseq
    %v374 = vshrl.u32 %v373, 7
    %v375 = vsub.s32 3, %v374
    %v376 = vrot.slane %v359, %v375
    %v637 = vunpack.c.l.b16 %v103
    %v638 = vunpack.c.h.b16 %v103
    %v639 = vunpack.c.l.b16 %v104
    %v640 = vunpack.c.h.b16 %v104
    %v641 = vunpack.c.l.b16 %v105
    %v642 = vunpack.c.h.b16 %v105
    %v643 = vunpack.c.l.b16 %v106
    %v644 = vunpack.c.h.b16 %v106
    %v645 = vunpack.c.l.b16 %v107
    %v646 = vunpack.c.h.b16 %v107
    %v647 = vunpack.c.l.b16 %v108
    %v648 = vunpack.c.h.b16 %v108
    %v649 = vunpack.c.l.b16 %v109
    %v650 = vunpack.c.h.b16 %v109
    %v651 = vunpack.c.l.b16 %v110
    %v652 = vunpack.c.h.b16 %v110
    %v653 = vunpack.c.l.b16 %v111
    %v654 = vunpack.c.h.b16 %v111
    %v655 = vunpack.c.l.b16 %v112
    %v656 = vunpack.c.h.b16 %v112
    %v657 = vunpack.c.l.b16 %v113
    %v658 = vunpack.c.h.b16 %v113
    %v659 = vunpack.c.l.b16 %v114
    %v660 = vunpack.c.h.b16 %v114
    %v661 = vunpack.c.l.b16 %v115
    %v662 = vunpack.c.h.b16 %v115
    %v663 = vunpack.c.l.b16 %v116
    %v664 = vunpack.c.h.b16 %v116
    %v665 = vunpack.c.l.b16 %v117
    %v666 = vunpack.c.h.b16 %v117
    %v667 = vunpack.c.l.b16 %v118
    %v668 = vunpack.c.h.b16 %v118
    %v669 = vunpack.c.l.b16 %v119
    %v670 = vunpack.c.h.b16 %v119
    %v671 = vunpack.c.l.b16 %v120
    %v672 = vunpack.c.h.b16 %v120
    %v673 = vunpack.c.l.b16 %v121
    %v674 = vunpack.c.h.b16 %v121
    %v675 = vunpack.c.l.b16 %v122
    %v676 = vunpack.c.h.b16 %v122
    %v677 = vunpack.c.l.b16 %v123
    %v678 = vunpack.c.h.b16 %v123
    %v679 = vunpack.c.l.b16 %v124
    %v680 = vunpack.c.h.b16 %v124
    %v681 = vunpack.c.l.b16 %v125
    %v682 = vunpack.c.h.b16 %v125
    %v683 = vunpack.c.l.b16 %v126
    %v684 = vunpack.c.h.b16 %v126
    %v685 = vunpack.c.l.b16 %v127
    %v686 = vunpack.c.h.b16 %v127
    %v687 = vunpack.c.l.b16 %v128
    %v688 = vunpack.c.h.b16 %v128
    %v689 = vunpack.c.l.b16 %v129
    %v690 = vunpack.c.h.b16 %v129
    %v691 = vunpack.c.l.b16 %v130
    %v692 = vunpack.c.h.b16 %v130
    %v693 = vunpack.c.l.b16 %v131
    %v694 = vunpack.c.h.b16 %v131
    %v695 = vunpack.c.l.b16 %v132
    %v696 = vunpack.c.h.b16 %v132
    %v697 = vunpack.c.l.b16 %v133
    %v698 = vunpack.c.h.b16 %v133
    %v699 = vunpack.c.l.b16 %v134
    %v700 = vunpack.c.h.b16 %v134
    %v701 = vunpack.c.l.b16 %v135
    %v702 = vunpack.c.h.b16 %v135
    %v703 = vunpack.c.l.b16 %v136
    %v704 = vunpack.c.h.b16 %v136
    %v705 = vunpack.c.l.b16 %v137
    %v706 = vunpack.c.h.b16 %v137
    %v707 = vunpack.c.l.b16 %v138
    %v708 = vunpack.c.h.b16 %v138
    %v709 = vunpack.c.l.b16 %v139
    %v710 = vunpack.c.h.b16 %v139
    %v711 = vunpack.c.l.b16 %v140
    %v712 = vunpack.c.h.b16 %v140
    %v713 = vunpack.c.l.b16 %v141
    %v714 = vunpack.c.h.b16 %v141
    %v715 = vunpack.c.l.b16 %v142
    %v716 = vunpack.c.h.b16 %v142
    %v717 = vunpack.c.l.b16 %v143
    %v718 = vunpack.c.h.b16 %v143
    %v719 = vunpack.c.l.b16 %v144
    %v720 = vunpack.c.h.b16 %v144
    %v721 = vunpack.c.l.b16 %v145
    %v722 = vunpack.c.h.b16 %v145
    %v723 = vunpack.c.l.b16 %v146
    %v724 = vunpack.c.h.b16 %v146
    %v725 = vunpack.c.l.b16 %v147
    %v726 = vunpack.c.h.b16 %v147
    %v727 = vunpack.c.l.b16 %v148
    %v728 = vunpack.c.h.b16 %v148
    %v729 = vunpack.c.l.b16 %v149
    %v730 = vunpack.c.h.b16 %v149
    %v731 = vunpack.c.l.b16 %v150
    %v732 = vunpack.c.h.b16 %v150
    %v733 = vunpack.c.l.b16 %v151
    %v734 = vunpack.c.h.b16 %v151
    %v735 = vunpack.c.l.b16 %v152
    %v736 = vunpack.c.h.b16 %v152
    %v737 = vunpack.c.l.b16 %v153
    %v738 = vunpack.c.h.b16 %v153
    %v739 = vunpack.c.l.b16 %v154
    %v740 = vunpack.c.h.b16 %v154
    %v741 = vunpack.c.l.b16 %v155
    %v742 = vunpack.c.h.b16 %v155
    %v743 = vunpack.c.l.b16 %v156
    %v744 = vunpack.c.h.b16 %v156
    %v745 = vunpack.c.l.b16 %v157
    %v746 = vunpack.c.h.b16 %v157
    %v747 = vunpack.c.l.b16 %v158
    %v748 = vunpack.c.h.b16 %v158
    %v749 = vunpack.c.l.b16 %v159
    %v750 = vunpack.c.h.b16 %v159
    %v751 = vunpack.c.l.b16 %v160
    %v752 = vunpack.c.h.b16 %v160
    %v753 = vunpack.c.l.b16 %v161
    %v754 = vunpack.c.h.b16 %v161
    %v755 = vunpack.c.l.b16 %v162
    %v756 = vunpack.c.h.b16 %v162
    %v757 = vunpack.c.l.b16 %v163
    %v758 = vunpack.c.h.b16 %v163
    %v759 = vunpack.c.l.b16 %v164
    %v760 = vunpack.c.h.b16 %v164
    %v761 = vunpack.c.l.b16 %v165
    %v762 = vunpack.c.h.b16 %v165
    %v763 = vunpack.c.l.b16 %v166
    %v764 = vunpack.c.h.b16 %v166
    %v765 = vunpack.c.l.b16 %v167
    %v766 = vunpack.c.h.b16 %v167
    %v767 = vunpack.c.l.b16 %v168
    %v768 = vunpack.c.h.b16 %v168
    %v769 = vunpack.c.l.b16 %v169
    %v770 = vunpack.c.h.b16 %v169
    %v771 = vunpack.c.l.b16 %v170
    %v772 = vunpack.c.h.b16 %v170
    %v773 = vunpack.c.l.b16 %v171
    %v774 = vunpack.c.h.b16 %v171
    %v775 = vunpack.c.l.b16 %v172
    %v776 = vunpack.c.h.b16 %v172
    %v777 = vunpack.c.l.b16 %v173
    %v778 = vunpack.c.h.b16 %v173
    %v779 = vunpack.c.l.b16 %v174
    %v780 = vunpack.c.h.b16 %v174
    %v781 = vunpack.c.l.b16 %v175
    %v782 = vunpack.c.h.b16 %v175
    %v783 = vunpack.c.l.b16 %v176
    %v784 = vunpack.c.h.b16 %v176
    %v785 = vunpack.c.l.b16 %v177
    %v786 = vunpack.c.h.b16 %v177
    %v787 = vunpack.c.l.b16 %v178
    %v788 = vunpack.c.h.b16 %v178
    %v789 = vunpack.c.l.b16 %v179
    %v790 = vunpack.c.h.b16 %v179
    %v791 = vunpack.c.l.b16 %v180
    %v792 = vunpack.c.h.b16 %v180
    %v793 = vunpack.c.l.b16 %v181
    %v794 = vunpack.c.h.b16 %v181
    %v795 = vunpack.c.l.b16 %v182
    %v796 = vunpack.c.h.b16 %v182
    %v797 = vunpack.c.l.b16 %v183
    %v798 = vunpack.c.h.b16 %v183
    %v799 = vunpack.c.l.b16 %v184
    %v800 = vunpack.c.h.b16 %v184
    %v801 = vunpack.c.l.b16 %v185
    %v802 = vunpack.c.h.b16 %v185
    %v803 = vunpack.c.l.b16 %v186
    %v804 = vunpack.c.h.b16 %v186
    %v805 = vunpack.c.l.b16 %v187
    %v806 = vunpack.c.h.b16 %v187
    %v807 = vunpack.c.l.b16 %v188
    %v808 = vunpack.c.h.b16 %v188
    %v809 = vunpack.c.l.b16 %v189
    %v810 = vunpack.c.h.b16 %v189
    %v811 = vunpack.c.l.b16 %v190
    %v812 = vunpack.c.h.b16 %v190
    %v813 = vunpack.c.l.b16 %v191
    %v814 = vunpack.c.h.b16 %v191
    %v815 = vunpack.c.l.b16 %v192
    %v816 = vunpack.c.h.b16 %v192
    %v817 = vunpack.c.l.b16 %v193
    %v818 = vunpack.c.h.b16 %v193
    %v819 = vunpack.c.l.b16 %v194
    %v820 = vunpack.c.h.b16 %v194
    %v821 = vunpack.c.l.b16 %v195
    %v822 = vunpack.c.h.b16 %v195
    %v823 = vunpack.c.l.b16 %v196
    %v824 = vunpack.c.h.b16 %v196
    %v825 = vunpack.c.l.b16 %v197
    %v826 = vunpack.c.h.b16 %v197
    %v827 = vunpack.c.l.b16 %v198
    %v828 = vunpack.c.h.b16 %v198
    %v829 = vunpack.c.l.b16 %v199
    %v830 = vunpack.c.h.b16 %v199
    %v831 = vunpack.c.l.b16 %v200
    %v832 = vunpack.c.h.b16 %v200
    %v833 = vunpack.c.l.b16 %v201
    %v834 = vunpack.c.h.b16 %v201
    %v835 = vunpack.c.l.b16 %v202
    %v836 = vunpack.c.h.b16 %v202
    %v837 = vunpack.c.l.b16 %v203
    %v838 = vunpack.c.h.b16 %v203
    %v839 = vunpack.c.l.b16 %v204
    %v840 = vunpack.c.h.b16 %v204
    %v841 = vunpack.c.l.b16 %v205
    %v842 = vunpack.c.h.b16 %v205
    %v843 = vunpack.c.l.b16 %v206
    %v844 = vunpack.c.h.b16 %v206
    %v845 = vunpack.c.l.b16 %v207
    %v846 = vunpack.c.h.b16 %v207
    %v847 = vunpack.c.l.b16 %v208
    %v848 = vunpack.c.h.b16 %v208
    %v849 = vunpack.c.l.b16 %v209
    %v850 = vunpack.c.h.b16 %v209
    %v851 = vunpack.c.l.b16 %v210
    %v852 = vunpack.c.h.b16 %v210
    %v853 = vunpack.c.l.b16 %v211
    %v854 = vunpack.c.h.b16 %v211
    %v855 = vunpack.c.l.b16 %v212
    %v856 = vunpack.c.h.b16 %v212
    %v857 = vunpack.c.l.b16 %v213
    %v858 = vunpack.c.h.b16 %v213
    %v859 = vunpack.c.l.b16 %v214
    %v860 = vunpack.c.h.b16 %v214
    %v861 = vunpack.c.l.b16 %v215
    %v862 = vunpack.c.h.b16 %v215
    %v863 = vunpack.c.l.b16 %v216
    %v864 = vunpack.c.h.b16 %v216
    %v865 = vunpack.c.l.b16 %v217
    %v866 = vunpack.c.h.b16 %v217
    %v867 = vunpack.c.l.b16 %v218
    %v868 = vunpack.c.h.b16 %v218
    %v869 = vunpack.c.l.b16 %v219
    %v870 = vunpack.c.h.b16 %v219
    %v871 = vunpack.c.l.b16 %v220
    %v872 = vunpack.c.h.b16 %v220
    %v873 = vunpack.c.l.b16 %v221
    %v874 = vunpack.c.h.b16 %v221
    %v875 = vunpack.c.l.b16 %v222
    %v876 = vunpack.c.h.b16 %v222
    %v877 = vunpack.c.l.b16 %v223
    %v878 = vunpack.c.h.b16 %v223
    %v879 = vunpack.c.l.b16 %v224
    %v880 = vunpack.c.h.b16 %v224
    %v881 = vunpack.c.l.b16 %v225
    %v882 = vunpack.c.h.b16 %v225
    %v883 = vunpack.c.l.b16 %v226
    %v884 = vunpack.c.h.b16 %v226
    %v885 = vunpack.c.l.b16 %v227
    %v886 = vunpack.c.h.b16 %v227
    %v887 = vunpack.c.l.b16 %v228
    %v888 = vunpack.c.h.b16 %v228
    %v889 = vunpack.c.l.b16 %v229
    %v890 = vunpack.c.h.b16 %v229
    %v891 = vunpack.c.l.b16 %v230
    %v892 = vunpack.c.h.b16 %v230
    %v893 = vunpack.c.l.b16 %v231
    %v894 = vunpack.c.h.b16 %v231
    %v895 = vunpack.c.l.b16 %v232
    %v896 = vunpack.c.h.b16 %v232
    %v897 = vunpack.c.l.b16 %v233
    %v898 = vunpack.c.h.b16 %v233
    %v899 = vunpack.c.l.b16 %v234
    %v900 = vunpack.c.h.b16 %v234
    %v901 = vunpack.c.l.b16 %v235
    %v902 = vunpack.c.h.b16 %v235
    %v903 = vunpack.c.l.b16 %v236
    %v904 = vunpack.c.h.b16 %v236
    %v905 = vunpack.c.l.b16 %v237
    %v906 = vunpack.c.h.b16 %v237
    %v907 = vunpack.c.l.b16 %v238
    %v908 = vunpack.c.h.b16 %v238
    %v909 = vunpack.c.l.b16 %v239
    %v910 = vunpack.c.h.b16 %v239
    %v911 = vunpack.c.l.b16 %v240
    %v912 = vunpack.c.h.b16 %v240
    %v913 = vunpack.c.l.b16 %v241
    %v914 = vunpack.c.h.b16 %v241
    %v915 = vunpack.c.l.b16 %v242
    %v916 = vunpack.c.h.b16 %v242
    %v917 = vunpack.c.l.b16 %v243
    %v918 = vunpack.c.h.b16 %v243
    %v919 = vunpack.c.l.b16 %v244
    %v920 = vunpack.c.h.b16 %v244
    %v921 = vunpack.c.l.b16 %v245
    %v922 = vunpack.c.h.b16 %v245
    %v923 = vunpack.c.l.b16 %v246
    %v924 = vunpack.c.h.b16 %v246
    %v925 = vunpack.c.l.b16 %v247
    %v926 = vunpack.c.h.b16 %v247
    %v927 = vunpack.c.l.b16 %v248
    %v928 = vunpack.c.h.b16 %v248
    %v929 = vunpack.c.l.b16 %v249
    %v930 = vunpack.c.h.b16 %v249
    %v931 = vunpack.c.l.b16 %v250
    %v932 = vunpack.c.h.b16 %v250
    %v933 = vunpack.c.l.b16 %v251
    %v934 = vunpack.c.h.b16 %v251
    %v935 = vunpack.c.l.b16 %v252
    %v936 = vunpack.c.h.b16 %v252
    %v937 = vunpack.c.l.b16 %v253
    %v938 = vunpack.c.h.b16 %v253
    %v939 = vunpack.c.l.b16 %v254
    %v940 = vunpack.c.h.b16 %v254
    %v941 = vunpack.c.l.b16 %v255
    %v942 = vunpack.c.h.b16 %v255
    %v943 = vunpack.c.l.b16 %v256
    %v944 = vunpack.c.h.b16 %v256
    %v945 = vunpack.c.l.b16 %v257
    %v946 = vunpack.c.h.b16 %v257
    %v947 = vunpack.c.l.b16 %v258
    %v948 = vunpack.c.h.b16 %v258
    %v949 = vunpack.c.l.b16 %v259
    %v950 = vunpack.c.h.b16 %v259
    %v951 = vunpack.c.l.b16 %v260
    %v952 = vunpack.c.h.b16 %v260
    %v953 = vunpack.c.l.b16 %v261
    %v954 = vunpack.c.h.b16 %v261
    %v955 = vunpack.c.l.b16 %v262
    %v956 = vunpack.c.h.b16 %v262
    %v957 = vunpack.c.l.b16 %v263
    %v958 = vunpack.c.h.b16 %v263
    %v959 = vunpack.c.l.b16 %v264
    %v960 = vunpack.c.h.b16 %v264
    %v961 = vunpack.c.l.b16 %v265
    %v962 = vunpack.c.h.b16 %v265
    %v963 = vunpack.c.l.b16 %v266
    %v964 = vunpack.c.h.b16 %v266
    %v965 = vunpack.c.l.b16 %v267
    %v966 = vunpack.c.h.b16 %v267
    %v967 = vunpack.c.l.b16 %v268
    %v968 = vunpack.c.h.b16 %v268
    %v969 = vunpack.c.l.b16 %v269
    %v970 = vunpack.c.h.b16 %v269
    %v971 = vunpack.c.l.b16 %v270
    %v972 = vunpack.c.h.b16 %v270
    %v973 = vunpack.c.l.b16 %v271
    %v974 = vunpack.c.h.b16 %v271
    %v975 = vunpack.c.l.b16 %v272
    %v976 = vunpack.c.h.b16 %v272
    %v977 = vunpack.c.l.b16 %v273
    %v978 = vunpack.c.h.b16 %v273
    %v979 = vunpack.c.l.b16 %v274
    %v980 = vunpack.c.h.b16 %v274
    %v981 = vunpack.c.l.b16 %v275
    %v982 = vunpack.c.h.b16 %v275
    %v983 = vunpack.c.l.b16 %v276
    %v984 = vunpack.c.h.b16 %v276
    %v985 = vunpack.c.l.b16 %v277
    %v986 = vunpack.c.h.b16 %v277
    %v987 = vunpack.c.l.b16 %v278
    %v988 = vunpack.c.h.b16 %v278
    %v989 = vunpack.c.l.b16 %v279
    %v990 = vunpack.c.h.b16 %v279
    %v991 = vunpack.c.l.b16 %v280
    %v992 = vunpack.c.h.b16 %v280
    %v993 = vunpack.c.l.b16 %v281
    %v994 = vunpack.c.h.b16 %v281
    %v995 = vunpack.c.l.b16 %v282
    %v996 = vunpack.c.h.b16 %v282
    %v997 = vunpack.c.l.b16 %v283
    %v998 = vunpack.c.h.b16 %v283
    %v999 = vunpack.c.l.b16 %v284
    %v1000 = vunpack.c.h.b16 %v284
    %v1001 = vunpack.c.l.b16 %v285
    %v1002 = vunpack.c.h.b16 %v285
    %v1003 = vunpack.c.l.b16 %v286
    %v1004 = vunpack.c.h.b16 %v286
    %v1005 = vunpack.c.l.b16 %v287
    %v1006 = vunpack.c.h.b16 %v287
    %v1007 = vunpack.c.l.b16 %v288
    %v1008 = vunpack.c.h.b16 %v288
    %v1009 = vunpack.c.l.b16 %v289
    %v1010 = vunpack.c.h.b16 %v289
    %v1011 = vunpack.c.l.b16 %v290
    %v1012 = vunpack.c.h.b16 %v290
    %v1013 = vunpack.c.l.b16 %v291
    %v1014 = vunpack.c.h.b16 %v291
    %v1015 = vunpack.c.l.b16 %v292
    %v1016 = vunpack.c.h.b16 %v292
    %v1017 = vunpack.c.l.b16 %v293
    %v1018 = vunpack.c.h.b16 %v293
    %v1019 = vunpack.c.l.b16 %v294
    %v1020 = vunpack.c.h.b16 %v294
    %v1021 = vunpack.c.l.b16 %v295
    %v1022 = vunpack.c.h.b16 %v295
    %v1023 = vunpack.c.l.b16 %v296
    %v1024 = vunpack.c.h.b16 %v296
    %v1025 = vunpack.c.l.b16 %v297
    %v1026 = vunpack.c.h.b16 %v297
    %v1027 = vunpack.c.l.b16 %v298
    %v1028 = vunpack.c.h.b16 %v298
    %v1029 = vunpack.c.l.b16 %v299
    %v1030 = vunpack.c.h.b16 %v299
    %v1031 = vunpack.c.l.b16 %v300
    %v1032 = vunpack.c.h.b16 %v300
    %v1033 = vunpack.c.l.b16 %v301
    %v1034 = vunpack.c.h.b16 %v301
    %v1035 = vunpack.c.l.b16 %v302
    %v1036 = vunpack.c.h.b16 %v302
    %v1037 = vunpack.c.l.b16 %v303
    %v1038 = vunpack.c.h.b16 %v303
    %v1039 = vunpack.c.l.b16 %v304
    %v1040 = vunpack.c.h.b16 %v304
    %v1041 = vunpack.c.l.b16 %v305
    %v1042 = vunpack.c.h.b16 %v305
    %v1043 = vunpack.c.l.b16 %v306
    %v1044 = vunpack.c.h.b16 %v306
    %v1045 = vunpack.c.l.b16 %v307
    %v1046 = vunpack.c.h.b16 %v307
    %v1047 = vunpack.c.l.b16 %v308
    %v1048 = vunpack.c.h.b16 %v308
    %v1049 = vunpack.c.l.b16 %v309
    %v1050 = vunpack.c.h.b16 %v309
    %v1051 = vunpack.c.l.b16 %v310
    %v1052 = vunpack.c.h.b16 %v310
    %v1053 = vunpack.c.l.b16 %v311
    %v1054 = vunpack.c.h.b16 %v311
    %v1055 = vunpack.c.l.b16 %v312
    %v1056 = vunpack.c.h.b16 %v312
    %v1057 = vunpack.c.l.b16 %v313
    %v1058 = vunpack.c.h.b16 %v313
    %v1059 = vunpack.c.l.b16 %v314
    %v1060 = vunpack.c.h.b16 %v314
    %v1061 = vunpack.c.l.b16 %v315
    %v1062 = vunpack.c.h.b16 %v315
    %v1063 = vunpack.c.l.b16 %v316
    %v1064 = vunpack.c.h.b16 %v316
    %v1065 = vunpack.c.l.b16 %v317
    %v1066 = vunpack.c.h.b16 %v317
    %v1067 = vunpack.c.l.b16 %v318
    %v1068 = vunpack.c.h.b16 %v318
    %v1069 = vunpack.c.l.b16 %v319
    %v1070 = vunpack.c.h.b16 %v319
    %v1071 = vunpack.c.l.b16 %v320
    %v1072 = vunpack.c.h.b16 %v320
    %v1073 = vunpack.c.l.b16 %v321
    %v1074 = vunpack.c.h.b16 %v321
    %v1075 = vunpack.c.l.b16 %v322
    %v1076 = vunpack.c.h.b16 %v322
    %v1077 = vunpack.c.l.b16 %v323
    %v1078 = vunpack.c.h.b16 %v323
    %v1079 = vunpack.c.l.b16 %v324
    %v1080 = vunpack.c.h.b16 %v324
    %v1081 = vunpack.c.l.b16 %v325
    %v1082 = vunpack.c.h.b16 %v325
    %v1083 = vunpack.c.l.b16 %v326
    %v1084 = vunpack.c.h.b16 %v326
    %v1085 = vunpack.c.l.b16 %v327
    %v1086 = vunpack.c.h.b16 %v327
    %v1087 = vunpack.c.l.b16 %v328
    %v1088 = vunpack.c.h.b16 %v328
    %v1089 = vunpack.c.l.b16 %v329
    %v1090 = vunpack.c.h.b16 %v329
    %v1091 = vunpack.c.l.b16 %v330
    %v1092 = vunpack.c.h.b16 %v330
    %v1093 = vunpack.c.l.b16 %v331
    %v1094 = vunpack.c.h.b16 %v331
    %v1095 = vunpack.c.l.b16 %v332
    %v1096 = vunpack.c.h.b16 %v332
    %v1097 = vunpack.c.l.b16 %v333
    %v1098 = vunpack.c.h.b16 %v333
    %v1099 = vunpack.c.l.b16 %v334
    %v1100 = vunpack.c.h.b16 %v334
    %v1101 = vunpack.c.l.b16 %v335
    %v1102 = vunpack.c.h.b16 %v335
    %v1103 = vunpack.c.l.b16 %v336
    %v1104 = vunpack.c.h.b16 %v336
    %v1105 = vunpack.c.l.b16 %v337
    %v1106 = vunpack.c.h.b16 %v337
    %v1107 = vunpack.c.l.b16 %v338
    %v1108 = vunpack.c.h.b16 %v338
    %v1109 = vunpack.c.l.b16 %v339
    %v1110 = vunpack.c.h.b16 %v339
    %v1111 = vunpack.c.l.b16 %v340
    %v1112 = vunpack.c.h.b16 %v340
    %v1113 = vunpack.c.l.b16 %v341
    %v1114 = vunpack.c.h.b16 %v341
    %v1115 = vunpack.c.l.b16 %v342
    %v1116 = vunpack.c.h.b16 %v342
    %v1117 = vunpack.c.l.b16 %v343
    %v1118 = vunpack.c.h.b16 %v343
    %v1119 = vunpack.c.l.b16 %v344
    %v1120 = vunpack.c.h.b16 %v344
    %v1121 = vunpack.c.l.b16 %v345
    %v1122 = vunpack.c.h.b16 %v345
    %v1123 = vunpack.c.l.b16 %v346
    %v1124 = vunpack.c.h.b16 %v346
    %v1125 = vunpack.c.l.b16 %v347
    %v1126 = vunpack.c.h.b16 %v347
    %v1127 = vunpack.c.l.b16 %v348
    %v1128 = vunpack.c.h.b16 %v348
    %v1129 = vunpack.c.l.b16 %v349
    %v1130 = vunpack.c.h.b16 %v349
    %v1131 = vunpack.c.l.b16 %v350
    %v1132 = vunpack.c.h.b16 %v350
    %v1133 = vunpack.c.l.b16 %v351
    %v1134 = vunpack.c.h.b16 %v351
    %v1135 = vunpack.c.l.b16 %v352
    %v1136 = vunpack.c.h.b16 %v352
    %v1137 = vunpack.c.l.b16 %v353
    %v1138 = vunpack.c.h.b16 %v353
    %v1139 = vunpack.c.l.b16 %v354
    %v1140 = vunpack.c.h.b16 %v354
    %v1141 = vunpack.c.l.b16 %v355
    %v1142 = vunpack.c.h.b16 %v355
    %v1143 = vunpack.c.l.b16 %v356
    %v1144 = vunpack.c.h.b16 %v356
    %v1145 = vunpack.c.l.b16 %v357
    %v1146 = vunpack.c.h.b16 %v357
    %v1147 = vunpack.c.l.b16 %v358
    %v1148 = vunpack.c.h.b16 %v358
    %v1149 = vpack.c.b16 %v641, %v637
    %v1150 = vpack.c.b16 %v642, %v638
    %v1151 = vpack.c.b16 %v643, %v639
    %v1152 = vpack.c.b16 %v644, %v640
    %v1153 = vpack.c.b16 %v649, %v645
    %v1154 = vpack.c.b16 %v650, %v646
    %v1155 = vpack.c.b16 %v651, %v647
    %v1156 = vpack.c.b16 %v652, %v648
    %v1157 = vpack.c.b16 %v657, %v653
    %v1158 = vpack.c.b16 %v658, %v654
    %v1159 = vpack.c.b16 %v659, %v655
    %v1160 = vpack.c.b16 %v660, %v656
    %v1161 = vpack.c.b16 %v665, %v661
    %v1162 = vpack.c.b16 %v666, %v662
    %v1163 = vpack.c.b16 %v667, %v663
    %v1164 = vpack.c.b16 %v668, %v664
    %v1165 = vpack.c.b16 %v673, %v669
    %v1166 = vpack.c.b16 %v674, %v670
    %v1167 = vpack.c.b16 %v675, %v671
    %v1168 = vpack.c.b16 %v676, %v672
    %v1169 = vpack.c.b16 %v681, %v677
    %v1170 = vpack.c.b16 %v682, %v678
    %v1171 = vpack.c.b16 %v683, %v679
    %v1172 = vpack.c.b16 %v684, %v680
    %v1173 = vpack.c.b16 %v689, %v685
    %v1174 = vpack.c.b16 %v690, %v686
    %v1175 = vpack.c.b16 %v691, %v687
    %v1176 = vpack.c.b16 %v692, %v688
    %v1177 = vpack.c.b16 %v697, %v693
    %v1178 = vpack.c.b16 %v698, %v694
    %v1179 = vpack.c.b16 %v699, %v695
    %v1180 = vpack.c.b16 %v700, %v696
    %v1181 = vpack.c.b16 %v705, %v701
    %v1182 = vpack.c.b16 %v706, %v702
    %v1183 = vpack.c.b16 %v707, %v703
    %v1184 = vpack.c.b16 %v708, %v704
    %v1185 = vpack.c.b16 %v713, %v709
    %v1186 = vpack.c.b16 %v714, %v710
    %v1187 = vpack.c.b16 %v715, %v711
    %v1188 = vpack.c.b16 %v716, %v712
    %v1189 = vpack.c.b16 %v721, %v717
    %v1190 = vpack.c.b16 %v722, %v718
    %v1191 = vpack.c.b16 %v723, %v719
    %v1192 = vpack.c.b16 %v724, %v720
    %v1193 = vpack.c.b16 %v729, %v725
    %v1194 = vpack.c.b16 %v730, %v726
    %v1195 = vpack.c.b16 %v731, %v727
    %v1196 = vpack.c.b16 %v732, %v728
    %v1197 = vpack.c.b16 %v737, %v733
    %v1198 = vpack.c.b16 %v738, %v734
    %v1199 = vpack.c.b16 %v739, %v735
    %v1200 = vpack.c.b16 %v740, %v736
    %v1201 = vpack.c.b16 %v745, %v741
    %v1202 = vpack.c.b16 %v746, %v742
    %v1203 = vpack.c.b16 %v747, %v743
    %v1204 = vpack.c.b16 %v748, %v744
    %v1205 = vpack.c.b16 %v753, %v749
    %v1206 = vpack.c.b16 %v754, %v750
    %v1207 = vpack.c.b16 %v755, %v751
    %v1208 = vpack.c.b16 %v756, %v752
    %v1209 = vpack.c.b16 %v761, %v757
    %v1210 = vpack.c.b16 %v762, %v758
    %v1211 = vpack.c.b16 %v763, %v759
    %v1212 = vpack.c.b16 %v764, %v760
    %v1213 = vpack.c.b16 %v769, %v765
    %v1214 = vpack.c.b16 %v770, %v766
    %v1215 = vpack.c.b16 %v771, %v767
    %v1216 = vpack.c.b16 %v772, %v768
    %v1217 = vpack.c.b16 %v777, %v773
    %v1218 = vpack.c.b16 %v778, %v774
    %v1219 = vpack.c.b16 %v779, %v775
    %v1220 = vpack.c.b16 %v780, %v776
    %v1221 = vpack.c.b16 %v785, %v781
    %v1222 = vpack.c.b16 %v786, %v782
    %v1223 = vpack.c.b16 %v787, %v783
    %v1224 = vpack.c.b16 %v788, %v784
    %v1225 = vpack.c.b16 %v793, %v789
    %v1226 = vpack.c.b16 %v794, %v790
    %v1227 = vpack.c.b16 %v795, %v791
    %v1228 = vpack.c.b16 %v796, %v792
    %v1229 = vpack.c.b16 %v801, %v797
    %v1230 = vpack.c.b16 %v802, %v798
    %v1231 = vpack.c.b16 %v803, %v799
    %v1232 = vpack.c.b16 %v804, %v800
    %v1233 = vpack.c.b16 %v809, %v805
    %v1234 = vpack.c.b16 %v810, %v806
    %v1235 = vpack.c.b16 %v811, %v807
    %v1236 = vpack.c.b16 %v812, %v808
    %v1237 = vpack.c.b16 %v817, %v813
    %v1238 = vpack.c.b16 %v818, %v814
    %v1239 = vpack.c.b16 %v819, %v815
    %v1240 = vpack.c.b16 %v820, %v816
    %v1241 = vpack.c.b16 %v825, %v821
    %v1242 = vpack.c.b16 %v826, %v822
    %v1243 = vpack.c.b16 %v827, %v823
    %v1244 = vpack.c.b16 %v828, %v824
    %v1245 = vpack.c.b16 %v833, %v829
    %v1246 = vpack.c.b16 %v834, %v830
    %v1247 = vpack.c.b16 %v835, %v831
    %v1248 = vpack.c.b16 %v836, %v832
    %v1249 = vpack.c.b16 %v841, %v837
    %v1250 = vpack.c.b16 %v842, %v838
    %v1251 = vpack.c.b16 %v843, %v839
    %v1252 = vpack.c.b16 %v844, %v840
    %v1253 = vpack.c.b16 %v849, %v845
    %v1254 = vpack.c.b16 %v850, %v846
    %v1255 = vpack.c.b16 %v851, %v847
    %v1256 = vpack.c.b16 %v852, %v848
    %v1257 = vpack.c.b16 %v857, %v853
    %v1258 = vpack.c.b16 %v858, %v854
    %v1259 = vpack.c.b16 %v859, %v855
    %v1260 = vpack.c.b16 %v860, %v856
    %v1261 = vpack.c.b16 %v865, %v861
    %v1262 = vpack.c.b16 %v866, %v862
    %v1263 = vpack.c.b16 %v867, %v863
    %v1264 = vpack.c.b16 %v868, %v864
    %v1265 = vpack.c.b16 %v873, %v869
    %v1266 = vpack.c.b16 %v874, %v870
    %v1267 = vpack.c.b16 %v875, %v871
    %v1268 = vpack.c.b16 %v876, %v872
    %v1269 = vpack.c.b16 %v881, %v877
    %v1270 = vpack.c.b16 %v882, %v878
    %v1271 = vpack.c.b16 %v883, %v879
    %v1272 = vpack.c.b16 %v884, %v880
    %v1273 = vpack.c.b16 %v889, %v885
    %v1274 = vpack.c.b16 %v890, %v886
    %v1275 = vpack.c.b16 %v891, %v887
    %v1276 = vpack.c.b16 %v892, %v888
    %v1277 = vpack.c.b16 %v897, %v893
    %v1278 = vpack.c.b16 %v898, %v894
    %v1279 = vpack.c.b16 %v899, %v895
    %v1280 = vpack.c.b16 %v900, %v896
    %v1281 = vpack.c.b16 %v905, %v901
    %v1282 = vpack.c.b16 %v906, %v902
    %v1283 = vpack.c.b16 %v907, %v903
    %v1284 = vpack.c.b16 %v908, %v904
    %v1285 = vpack.c.b16 %v913, %v909
    %v1286 = vpack.c.b16 %v914, %v910
    %v1287 = vpack.c.b16 %v915, %v911
    %v1288 = vpack.c.b16 %v916, %v912
    %v1289 = vpack.c.b16 %v921, %v917
    %v1290 = vpack.c.b16 %v922, %v918
    %v1291 = vpack.c.b16 %v923, %v919
    %v1292 = vpack.c.b16 %v924, %v920
    %v1293 = vpack.c.b16 %v929, %v925
    %v1294 = vpack.c.b16 %v930, %v926
    %v1295 = vpack.c.b16 %v931, %v927
    %v1296 = vpack.c.b16 %v932, %v928
    %v1297 = vpack.c.b16 %v937, %v933
    %v1298 = vpack.c.b16 %v938, %v934
    %v1299 = vpack.c.b16 %v939, %v935
    %v1300 = vpack.c.b16 %v940, %v936
    %v1301 = vpack.c.b16 %v945, %v941
    %v1302 = vpack.c.b16 %v946, %v942
    %v1303 = vpack.c.b16 %v947, %v943
    %v1304 = vpack.c.b16 %v948, %v944
    %v1305 = vpack.c.b16 %v953, %v949
    %v1306 = vpack.c.b16 %v954, %v950
    %v1307 = vpack.c.b16 %v955, %v951
    %v1308 = vpack.c.b16 %v956, %v952
    %v1309 = vpack.c.b16 %v961, %v957
    %v1310 = vpack.c.b16 %v962, %v958
    %v1311 = vpack.c.b16 %v963, %v959
    %v1312 = vpack.c.b16 %v964, %v960
    %v1313 = vpack.c.b16 %v969, %v965
    %v1314 = vpack.c.b16 %v970, %v966
    %v1315 = vpack.c.b16 %v971, %v967
    %v1316 = vpack.c.b16 %v972, %v968
    %v1317 = vpack.c.b16 %v977, %v973
    %v1318 = vpack.c.b16 %v978, %v974
    %v1319 = vpack.c.b16 %v979, %v975
    %v1320 = vpack.c.b16 %v980, %v976
    %v1321 = vpack.c.b16 %v985, %v981
    %v1322 = vpack.c.b16 %v986, %v982
    %v1323 = vpack.c.b16 %v987, %v983
    %v1324 = vpack.c.b16 %v988, %v984
    %v1325 = vpack.c.b16 %v993, %v989
    %v1326 = vpack.c.b16 %v994, %v990
    %v1327 = vpack.c.b16 %v995, %v991
    %v1328 = vpack.c.b16 %v996, %v992
    %v1329 = vpack.c.b16 %v1001, %v997
    %v1330 = vpack.c.b16 %v1002, %v998
    %v1331 = vpack.c.b16 %v1003, %v999
    %v1332 = vpack.c.b16 %v1004, %v1000
    %v1333 = vpack.c.b16 %v1009, %v1005
    %v1334 = vpack.c.b16 %v1010, %v1006
    %v1335 = vpack.c.b16 %v1011, %v1007
    %v1336 = vpack.c.b16 %v1012, %v1008
    %v1337 = vpack.c.b16 %v1017, %v1013
    %v1338 = vpack.c.b16 %v1018, %v1014
    %v1339 = vpack.c.b16 %v1019, %v1015
    %v1340 = vpack.c.b16 %v1020, %v1016
    %v1341 = vpack.c.b16 %v1025, %v1021
    %v1342 = vpack.c.b16 %v1026, %v1022
    %v1343 = vpack.c.b16 %v1027, %v1023
    %v1344 = vpack.c.b16 %v1028, %v1024
    %v1345 = vpack.c.b16 %v1033, %v1029
    %v1346 = vpack.c.b16 %v1034, %v1030
    %v1347 = vpack.c.b16 %v1035, %v1031
    %v1348 = vpack.c.b16 %v1036, %v1032
    %v1349 = vpack.c.b16 %v1041, %v1037
    %v1350 = vpack.c.b16 %v1042, %v1038
    %v1351 = vpack.c.b16 %v1043, %v1039
    %v1352 = vpack.c.b16 %v1044, %v1040
    %v1353 = vpack.c.b16 %v1049, %v1045
    %v1354 = vpack.c.b16 %v1050, %v1046
    %v1355 = vpack.c.b16 %v1051, %v1047
    %v1356 = vpack.c.b16 %v1052, %v1048
    %v1357 = vpack.c.b16 %v1057, %v1053
    %v1358 = vpack.c.b16 %v1058, %v1054
    %v1359 = vpack.c.b16 %v1059, %v1055
    %v1360 = vpack.c.b16 %v1060, %v1056
    %v1361 = vpack.c.b16 %v1065, %v1061
    %v1362 = vpack.c.b16 %v1066, %v1062
    %v1363 = vpack.c.b16 %v1067, %v1063
    %v1364 = vpack.c.b16 %v1068, %v1064
    %v1365 = vpack.c.b16 %v1073, %v1069
    %v1366 = vpack.c.b16 %v1074, %v1070
    %v1367 = vpack.c.b16 %v1075, %v1071
    %v1368 = vpack.c.b16 %v1076, %v1072
    %v1369 = vpack.c.b16 %v1081, %v1077
    %v1370 = vpack.c.b16 %v1082, %v1078
    %v1371 = vpack.c.b16 %v1083, %v1079
    %v1372 = vpack.c.b16 %v1084, %v1080
    %v1373 = vpack.c.b16 %v1089, %v1085
    %v1374 = vpack.c.b16 %v1090, %v1086
    %v1375 = vpack.c.b16 %v1091, %v1087
    %v1376 = vpack.c.b16 %v1092, %v1088
    %v1377 = vpack.c.b16 %v1097, %v1093
    %v1378 = vpack.c.b16 %v1098, %v1094
    %v1379 = vpack.c.b16 %v1099, %v1095
    %v1380 = vpack.c.b16 %v1100, %v1096
    %v1381 = vpack.c.b16 %v1105, %v1101
    %v1382 = vpack.c.b16 %v1106, %v1102
    %v1383 = vpack.c.b16 %v1107, %v1103
    %v1384 = vpack.c.b16 %v1108, %v1104
    %v1385 = vpack.c.b16 %v1113, %v1109
    %v1386 = vpack.c.b16 %v1114, %v1110
    %v1387 = vpack.c.b16 %v1115, %v1111
    %v1388 = vpack.c.b16 %v1116, %v1112
    %v1389 = vpack.c.b16 %v1121, %v1117
    %v1390 = vpack.c.b16 %v1122, %v1118
    %v1391 = vpack.c.b16 %v1123, %v1119
    %v1392 = vpack.c.b16 %v1124, %v1120
    %v1393 = vpack.c.b16 %v1129, %v1125
    %v1394 = vpack.c.b16 %v1130, %v1126
    %v1395 = vpack.c.b16 %v1131, %v1127
    %v1396 = vpack.c.b16 %v1132, %v1128
    %v1397 = vpack.c.b16 %v1137, %v1133
    %v1398 = vpack.c.b16 %v1138, %v1134
    %v1399 = vpack.c.b16 %v1139, %v1135
    %v1400 = vpack.c.b16 %v1140, %v1136
    %v1401 = vpack.c.b16 %v1145, %v1141
    %v1402 = vpack.c.b16 %v1146, %v1142
    %v1403 = vpack.c.b16 %v1147, %v1143
    %v1404 = vpack.c.b16 %v1148, %v1144
    %1661 = vmatprep.subr.bf16.mxu0 %v1150
    %1662 = vmatpush1.bf16.msra.mxu0 %v1149
    %1663 = vmatprep.subr.bf16.mxu0 %v1154
    %1664 = vmatpush1.bf16.msra.mxu0 %v1153
    %1665 = vmatprep.subr.bf16.mxu0 %v1158
    %1666 = vmatpush1.bf16.msra.mxu0 %v1157
    %1667 = vmatprep.subr.bf16.mxu0 %v1162
    %1668 = vmatpush1.bf16.msra.mxu0 %v1161
    %1669 = vmatprep.subr.bf16.mxu0 %v1166
    %1670 = vmatpush1.bf16.msra.mxu0 %v1165
    %1671 = vmatprep.subr.bf16.mxu0 %v1170
    %1672 = vmatpush1.bf16.msra.mxu0 %v1169
    %1673 = vmatprep.subr.bf16.mxu0 %v1174
    %1674 = vmatpush1.bf16.msra.mxu0 %v1173
    %1675 = vmatprep.subr.bf16.mxu0 %v1178
    %1676 = vmatpush1.bf16.msra.mxu0 %v1177
    %1677 = vmatprep.subr.bf16.mxu0 %v1182
    %1678 = vmatpush1.bf16.msra.mxu0 %v1181
    %1679 = vmatprep.subr.bf16.mxu0 %v1186
    %1680 = vmatpush1.bf16.msra.mxu0 %v1185
    %1681 = vmatprep.subr.bf16.mxu0 %v1190
    %1682 = vmatpush1.bf16.msra.mxu0 %v1189
    %1683 = vmatprep.subr.bf16.mxu0 %v1194
    %1684 = vmatpush1.bf16.msra.mxu0 %v1193
    %1685 = vmatprep.subr.bf16.mxu0 %v1198
    %1686 = vmatpush1.bf16.msra.mxu0 %v1197
    %1687 = vmatprep.subr.bf16.mxu0 %v1202
    %1688 = vmatpush1.bf16.msra.mxu0 %v1201
    %1689 = vmatprep.subr.bf16.mxu0 %v1206
    %1690 = vmatpush1.bf16.msra.mxu0 %v1205
    %1691 = vmatprep.subr.bf16.mxu0 %v1210
    %1692 = vmatpush1.bf16.msra.mxu0 %v1209
    %1693 = vmatprep.mubr.bf16.mxu0 %v96
    %1694 = vmatmul.mubr.bf16.gmra.mrb[0].mxu0 %v95
    %v1695 = vpop.f32.mrb[0].mxu0
    %v1696 = vadd.f32 %v364, %v1695
    %v1697 = vpop.f32.mrb[0].mxu0
    %v1698 = vadd.f32 %v368, %v1697
    %v1699 = vpop.f32.mrb[0].mxu0
    %v1700 = vpop.f32.mrb[0].mxu0
    %1701 = vdwg.mxu0
    %1702 = vmatprep.subr.bf16.mxu0 %v1214
    %1703 = vmatpush1.bf16.msra.mxu0 %v1213
    %1704 = vmatprep.subr.bf16.mxu0 %v1218
    %1705 = vmatpush1.bf16.msra.mxu0 %v1217
    %1706 = vmatprep.subr.bf16.mxu0 %v1222
    %1707 = vmatpush1.bf16.msra.mxu0 %v1221
    %1708 = vmatprep.subr.bf16.mxu0 %v1226
    %1709 = vmatpush1.bf16.msra.mxu0 %v1225
    %1710 = vmatprep.subr.bf16.mxu0 %v1230
    %1711 = vmatpush1.bf16.msra.mxu0 %v1229
    %1712 = vmatprep.subr.bf16.mxu0 %v1234
    %1713 = vmatpush1.bf16.msra.mxu0 %v1233
    %1714 = vmatprep.subr.bf16.mxu0 %v1238
    %1715 = vmatpush1.bf16.msra.mxu0 %v1237
    %1716 = vmatprep.subr.bf16.mxu0 %v1242
    %1717 = vmatpush1.bf16.msra.mxu0 %v1241
    %1718 = vmatprep.subr.bf16.mxu0 %v1246
    %1719 = vmatpush1.bf16.msra.mxu0 %v1245
    %1720 = vmatprep.subr.bf16.mxu0 %v1250
    %1721 = vmatpush1.bf16.msra.mxu0 %v1249
    %1722 = vmatprep.subr.bf16.mxu0 %v1254
    %1723 = vmatpush1.bf16.msra.mxu0 %v1253
    %1724 = vmatprep.subr.bf16.mxu0 %v1258
    %1725 = vmatpush1.bf16.msra.mxu0 %v1257
    %1726 = vmatprep.subr.bf16.mxu0 %v1262
    %1727 = vmatpush1.bf16.msra.mxu0 %v1261
    %1728 = vmatprep.subr.bf16.mxu0 %v1266
    %1729 = vmatpush1.bf16.msra.mxu0 %v1265
    %1730 = vmatprep.subr.bf16.mxu0 %v1270
    %1731 = vmatpush1.bf16.msra.mxu0 %v1269
    %1732 = vmatprep.subr.bf16.mxu0 %v1274
    %1733 = vmatpush1.bf16.msra.mxu0 %v1273
    %1734 = vmatprep.mubr.bf16.mxu0 %v98
    %1735 = vmatmul.mubr.bf16.gmra.mrb[0].mxu0 %v97
    %v1736 = vpop.f32.mrb[0].mxu0
    %v1737 = vadd.f32 %v1696, %v1736
    %v1738 = vpop.f32.mrb[0].mxu0
    %v1739 = vadd.f32 %v1698, %v1738
    %v1740 = vpop.f32.mrb[0].mxu0
    %v1741 = vpop.f32.mrb[0].mxu0
    %1742 = vdwg.mxu0
    %1743 = vmatprep.subr.bf16.mxu0 %v1278
    %1744 = vmatpush1.bf16.msra.mxu0 %v1277
    %1745 = vmatprep.subr.bf16.mxu0 %v1282
    %1746 = vmatpush1.bf16.msra.mxu0 %v1281
    %1747 = vmatprep.subr.bf16.mxu0 %v1286
    %1748 = vmatpush1.bf16.msra.mxu0 %v1285
    %1749 = vmatprep.subr.bf16.mxu0 %v1290
    %1750 = vmatpush1.bf16.msra.mxu0 %v1289
    %1751 = vmatprep.subr.bf16.mxu0 %v1294
    %1752 = vmatpush1.bf16.msra.mxu0 %v1293
    %1753 = vmatprep.subr.bf16.mxu0 %v1298
    %1754 = vmatpush1.bf16.msra.mxu0 %v1297
    %1755 = vmatprep.subr.bf16.mxu0 %v1302
    %1756 = vmatpush1.bf16.msra.mxu0 %v1301
    %1757 = vmatprep.subr.bf16.mxu0 %v1306
    %1758 = vmatpush1.bf16.msra.mxu0 %v1305
    %1759 = vmatprep.subr.bf16.mxu0 %v1310
    %1760 = vmatpush1.bf16.msra.mxu0 %v1309
    %1761 = vmatprep.subr.bf16.mxu0 %v1314
    %1762 = vmatpush1.bf16.msra.mxu0 %v1313
    %1763 = vmatprep.subr.bf16.mxu0 %v1318
    %1764 = vmatpush1.bf16.msra.mxu0 %v1317
    %1765 = vmatprep.subr.bf16.mxu0 %v1322
    %1766 = vmatpush1.bf16.msra.mxu0 %v1321
    %1767 = vmatprep.subr.bf16.mxu0 %v1326
    %1768 = vmatpush1.bf16.msra.mxu0 %v1325
    %1769 = vmatprep.subr.bf16.mxu0 %v1330
    %1770 = vmatpush1.bf16.msra.mxu0 %v1329
    %1771 = vmatprep.subr.bf16.mxu0 %v1334
    %1772 = vmatpush1.bf16.msra.mxu0 %v1333
    %1773 = vmatprep.subr.bf16.mxu0 %v1338
    %1774 = vmatpush1.bf16.msra.mxu0 %v1337
    %1775 = vmatprep.mubr.bf16.mxu0 %v100
    %1776 = vmatmul.mubr.bf16.gmra.mrb[0].mxu0 %v99
    %v1777 = vpop.f32.mrb[0].mxu0
    %v1778 = vadd.f32 %v1737, %v1777
    %v1779 = vpop.f32.mrb[0].mxu0
    %v1780 = vadd.f32 %v1739, %v1779
    %v1781 = vpop.f32.mrb[0].mxu0
    %v1782 = vpop.f32.mrb[0].mxu0
    %1783 = vdwg.mxu0
    %1784 = vmatprep.subr.bf16.mxu0 %v1342
    %1785 = vmatpush1.bf16.msra.mxu0 %v1341
    %1786 = vmatprep.subr.bf16.mxu0 %v1346
    %1787 = vmatpush1.bf16.msra.mxu0 %v1345
    %1788 = vmatprep.subr.bf16.mxu0 %v1350
    %1789 = vmatpush1.bf16.msra.mxu0 %v1349
    %1790 = vmatprep.subr.bf16.mxu0 %v1354
    %1791 = vmatpush1.bf16.msra.mxu0 %v1353
    %1792 = vmatprep.subr.bf16.mxu0 %v1358
    %1793 = vmatpush1.bf16.msra.mxu0 %v1357
    %1794 = vmatprep.subr.bf16.mxu0 %v1362
    %1795 = vmatpush1.bf16.msra.mxu0 %v1361
    %1796 = vmatprep.subr.bf16.mxu0 %v1366
    %1797 = vmatpush1.bf16.msra.mxu0 %v1365
    %1798 = vmatprep.subr.bf16.mxu0 %v1370
    %1799 = vmatpush1.bf16.msra.mxu0 %v1369
    %1800 = vmatprep.subr.bf16.mxu0 %v1374
    %1801 = vmatpush1.bf16.msra.mxu0 %v1373
    %1802 = vmatprep.subr.bf16.mxu0 %v1378
    %1803 = vmatpush1.bf16.msra.mxu0 %v1377
    %1804 = vmatprep.subr.bf16.mxu0 %v1382
    %1805 = vmatpush1.bf16.msra.mxu0 %v1381
    %1806 = vmatprep.subr.bf16.mxu0 %v1386
    %1807 = vmatpush1.bf16.msra.mxu0 %v1385
    %1808 = vmatprep.subr.bf16.mxu0 %v1390
    %1809 = vmatpush1.bf16.msra.mxu0 %v1389
    %1810 = vmatprep.subr.bf16.mxu0 %v1394
    %1811 = vmatpush1.bf16.msra.mxu0 %v1393
    %1812 = vmatprep.subr.bf16.mxu0 %v1398
    %1813 = vmatpush1.bf16.msra.mxu0 %v1397
    %1814 = vmatprep.subr.bf16.mxu0 %v1402
    %1815 = vmatpush1.bf16.msra.mxu0 %v1401
    %1816 = vmatprep.mubr.bf16.mxu0 %v102
    %1817 = vmatmul.mubr.bf16.gmra.mrb[0].mxu0 %v101
    %v1818 = vpop.f32.mrb[0].mxu0
    %v1819 = vadd.f32 %v1778, %v1818
    %v1820 = vpop.f32.mrb[0].mxu0
    %v1821 = vadd.f32 %v1780, %v1820
    %v1822 = vpop.f32.mrb[0].mxu0
    %v1823 = vpop.f32.mrb[0].mxu0
    %1824 = vdwg.mxu0
    %1825 = vmatprep.subr.bf16.mxu0 %v1152
    %1826 = vmatpush1.bf16.msra.mxu0 %v1151
    %1827 = vmatprep.subr.bf16.mxu0 %v1156
    %1828 = vmatpush1.bf16.msra.mxu0 %v1155
    %1829 = vmatprep.subr.bf16.mxu0 %v1160
    %1830 = vmatpush1.bf16.msra.mxu0 %v1159
    %1831 = vmatprep.subr.bf16.mxu0 %v1164
    %1832 = vmatpush1.bf16.msra.mxu0 %v1163
    %1833 = vmatprep.subr.bf16.mxu0 %v1168
    %1834 = vmatpush1.bf16.msra.mxu0 %v1167
    %1835 = vmatprep.subr.bf16.mxu0 %v1172
    %1836 = vmatpush1.bf16.msra.mxu0 %v1171
    %1837 = vmatprep.subr.bf16.mxu0 %v1176
    %1838 = vmatpush1.bf16.msra.mxu0 %v1175
    %1839 = vmatprep.subr.bf16.mxu0 %v1180
    %1840 = vmatpush1.bf16.msra.mxu0 %v1179
    %1841 = vmatprep.subr.bf16.mxu0 %v1184
    %1842 = vmatpush1.bf16.msra.mxu0 %v1183
    %1843 = vmatprep.subr.bf16.mxu0 %v1188
    %1844 = vmatpush1.bf16.msra.mxu0 %v1187
    %1845 = vmatprep.subr.bf16.mxu0 %v1192
    %1846 = vmatpush1.bf16.msra.mxu0 %v1191
    %1847 = vmatprep.subr.bf16.mxu0 %v1196
    %1848 = vmatpush1.bf16.msra.mxu0 %v1195
    %1849 = vmatprep.subr.bf16.mxu0 %v1200
    %1850 = vmatpush1.bf16.msra.mxu0 %v1199
    %1851 = vmatprep.subr.bf16.mxu0 %v1204
    %1852 = vmatpush1.bf16.msra.mxu0 %v1203
    %1853 = vmatprep.subr.bf16.mxu0 %v1208
    %1854 = vmatpush1.bf16.msra.mxu0 %v1207
    %1855 = vmatprep.subr.bf16.mxu0 %v1212
    %1856 = vmatpush1.bf16.msra.mxu0 %v1211
    %1857 = vmatprep.mubr.bf16.mxu0 %v96
    %1858 = vmatmul.mubr.bf16.gmra.mrb[0].mxu0 %v95
    %v1859 = vpop.f32.mrb[0].mxu0
    %v1860 = vadd.f32 %v372, %v1859
    %v1861 = vpop.f32.mrb[0].mxu0
    %v1862 = vadd.f32 %v376, %v1861
    %v1863 = vpop.f32.mrb[0].mxu0
    %v1864 = vpop.f32.mrb[0].mxu0
    %1865 = vdwg.mxu0
    %1866 = vmatprep.subr.bf16.mxu0 %v1216
    %1867 = vmatpush1.bf16.msra.mxu0 %v1215
    %1868 = vmatprep.subr.bf16.mxu0 %v1220
    %1869 = vmatpush1.bf16.msra.mxu0 %v1219
    %1870 = vmatprep.subr.bf16.mxu0 %v1224
    %1871 = vmatpush1.bf16.msra.mxu0 %v1223
    %1872 = vmatprep.subr.bf16.mxu0 %v1228
    %1873 = vmatpush1.bf16.msra.mxu0 %v1227
    %1874 = vmatprep.subr.bf16.mxu0 %v1232
    %1875 = vmatpush1.bf16.msra.mxu0 %v1231
    %1876 = vmatprep.subr.bf16.mxu0 %v1236
    %1877 = vmatpush1.bf16.msra.mxu0 %v1235
    %1878 = vmatprep.subr.bf16.mxu0 %v1240
    %1879 = vmatpush1.bf16.msra.mxu0 %v1239
    %1880 = vmatprep.subr.bf16.mxu0 %v1244
    %1881 = vmatpush1.bf16.msra.mxu0 %v1243
    %1882 = vmatprep.subr.bf16.mxu0 %v1248
    %1883 = vmatpush1.bf16.msra.mxu0 %v1247
    %1884 = vmatprep.subr.bf16.mxu0 %v1252
    %1885 = vmatpush1.bf16.msra.mxu0 %v1251
    %1886 = vmatprep.subr.bf16.mxu0 %v1256
    %1887 = vmatpush1.bf16.msra.mxu0 %v1255
    %1888 = vmatprep.subr.bf16.mxu0 %v1260
    %1889 = vmatpush1.bf16.msra.mxu0 %v1259
    %1890 = vmatprep.subr.bf16.mxu0 %v1264
    %1891 = vmatpush1.bf16.msra.mxu0 %v1263
    %1892 = vmatprep.subr.bf16.mxu0 %v1268
    %1893 = vmatpush1.bf16.msra.mxu0 %v1267
    %1894 = vmatprep.subr.bf16.mxu0 %v1272
    %1895 = vmatpush1.bf16.msra.mxu0 %v1271
    %1896 = vmatprep.subr.bf16.mxu0 %v1276
    %1897 = vmatpush1.bf16.msra.mxu0 %v1275
    %1898 = vmatprep.mubr.bf16.mxu0 %v98
    %1899 = vmatmul.mubr.bf16.gmra.mrb[0].mxu0 %v97
    %v1900 = vpop.f32.mrb[0].mxu0
    %v1901 = vadd.f32 %v1860, %v1900
    %v1902 = vpop.f32.mrb[0].mxu0
    %v1903 = vadd.f32 %v1862, %v1902
    %v1904 = vpop.f32.mrb[0].mxu0
    %v1905 = vpop.f32.mrb[0].mxu0
    %1906 = vdwg.mxu0
    %1907 = vmatprep.subr.bf16.mxu0 %v1280
    %1908 = vmatpush1.bf16.msra.mxu0 %v1279
    %1909 = vmatprep.subr.bf16.mxu0 %v1284
    %1910 = vmatpush1.bf16.msra.mxu0 %v1283
    %1911 = vmatprep.subr.bf16.mxu0 %v1288
    %1912 = vmatpush1.bf16.msra.mxu0 %v1287
    %1913 = vmatprep.subr.bf16.mxu0 %v1292
    %1914 = vmatpush1.bf16.msra.mxu0 %v1291
    %1915 = vmatprep.subr.bf16.mxu0 %v1296
    %1916 = vmatpush1.bf16.msra.mxu0 %v1295
    %1917 = vmatprep.subr.bf16.mxu0 %v1300
    %1918 = vmatpush1.bf16.msra.mxu0 %v1299
    %1919 = vmatprep.subr.bf16.mxu0 %v1304
    %1920 = vmatpush1.bf16.msra.mxu0 %v1303
    %1921 = vmatprep.subr.bf16.mxu0 %v1308
    %1922 = vmatpush1.bf16.msra.mxu0 %v1307
    %1923 = vmatprep.subr.bf16.mxu0 %v1312
    %1924 = vmatpush1.bf16.msra.mxu0 %v1311
    %1925 = vmatprep.subr.bf16.mxu0 %v1316
    %1926 = vmatpush1.bf16.msra.mxu0 %v1315
    %1927 = vmatprep.subr.bf16.mxu0 %v1320
    %1928 = vmatpush1.bf16.msra.mxu0 %v1319
    %1929 = vmatprep.subr.bf16.mxu0 %v1324
    %1930 = vmatpush1.bf16.msra.mxu0 %v1323
    %1931 = vmatprep.subr.bf16.mxu0 %v1328
    %1932 = vmatpush1.bf16.msra.mxu0 %v1327
    %1933 = vmatprep.subr.bf16.mxu0 %v1332
    %1934 = vmatpush1.bf16.msra.mxu0 %v1331
    %1935 = vmatprep.subr.bf16.mxu0 %v1336
    %1936 = vmatpush1.bf16.msra.mxu0 %v1335
    %1937 = vmatprep.subr.bf16.mxu0 %v1340
    %1938 = vmatpush1.bf16.msra.mxu0 %v1339
    %1939 = vmatprep.mubr.bf16.mxu0 %v100
    %1940 = vmatmul.mubr.bf16.gmra.mrb[0].mxu0 %v99
    %v1941 = vpop.f32.mrb[0].mxu0
    %v1942 = vadd.f32 %v1901, %v1941
    %v1943 = vpop.f32.mrb[0].mxu0
    %v1944 = vadd.f32 %v1903, %v1943
    %v1945 = vpop.f32.mrb[0].mxu0
    %v1946 = vpop.f32.mrb[0].mxu0
    %1947 = vdwg.mxu0
    %1948 = vmatprep.subr.bf16.mxu0 %v1344
    %1949 = vmatpush1.bf16.msra.mxu0 %v1343
    %1950 = vmatprep.subr.bf16.mxu0 %v1348
    %1951 = vmatpush1.bf16.msra.mxu0 %v1347
    %1952 = vmatprep.subr.bf16.mxu0 %v1352
    %1953 = vmatpush1.bf16.msra.mxu0 %v1351
    %1954 = vmatprep.subr.bf16.mxu0 %v1356
    %1955 = vmatpush1.bf16.msra.mxu0 %v1355
    %1956 = vmatprep.subr.bf16.mxu0 %v1360
    %1957 = vmatpush1.bf16.msra.mxu0 %v1359
    %1958 = vmatprep.subr.bf16.mxu0 %v1364
    %1959 = vmatpush1.bf16.msra.mxu0 %v1363
    %1960 = vmatprep.subr.bf16.mxu0 %v1368
    %1961 = vmatpush1.bf16.msra.mxu0 %v1367
    %1962 = vmatprep.subr.bf16.mxu0 %v1372
    %1963 = vmatpush1.bf16.msra.mxu0 %v1371
    %1964 = vmatprep.subr.bf16.mxu0 %v1376
    %1965 = vmatpush1.bf16.msra.mxu0 %v1375
    %1966 = vmatprep.subr.bf16.mxu0 %v1380
    %1967 = vmatpush1.bf16.msra.mxu0 %v1379
    %1968 = vmatprep.subr.bf16.mxu0 %v1384
    %1969 = vmatpush1.bf16.msra.mxu0 %v1383
    %1970 = vmatprep.subr.bf16.mxu0 %v1388
    %1971 = vmatpush1.bf16.msra.mxu0 %v1387
    %1972 = vmatprep.subr.bf16.mxu0 %v1392
    %1973 = vmatpush1.bf16.msra.mxu0 %v1391
    %1974 = vmatprep.subr.bf16.mxu0 %v1396
    %1975 = vmatpush1.bf16.msra.mxu0 %v1395
    %1976 = vmatprep.subr.bf16.mxu0 %v1400
    %1977 = vmatpush1.bf16.msra.mxu0 %v1399
    %1978 = vmatprep.subr.bf16.mxu0 %v1404
    %1979 = vmatpush1.bf16.msra.mxu0 %v1403
    %1980 = vmatprep.mubr.bf16.mxu0 %v102
    %1981 = vmatmul.mubr.bf16.gmra.mrb[0].mxu0 %v101
    %v1982 = vpop.f32.mrb[0].mxu0
    %v1983 = vadd.f32 %v1942, %v1982
    %v1984 = vpop.f32.mrb[0].mxu0
    %v1985 = vadd.f32 %v1944, %v1984
    %v1986 = vpop.f32.mrb[0].mxu0
    %v1987 = vpop.f32.mrb[0].mxu0
    %1988 = vdwg.mxu0
    %v1989 = vmax.f32 %v1819, 0.0
    %v1990 = vmax.f32 %v1821, 0.0
    %v1991 = vmax.f32 %v1983, 0.0
    %v1992 = vmax.f32 %v1985, 0.0
    %v1993 = vpack.c.bf16 %v1989, %v1989
    %v1994 = vpack.c.bf16 %v1990, %v1990
    %v1995 = vpack.c.bf16 %v1991, %v1991
    %v1996 = vpack.c.bf16 %v1992, %v1992
    %v1997 = vld [vmem:[%s3] sm:$0xf]
    %v1998 = vld [vmem:[%s3 + $0x4] sm:$0xf]
    %v1999 = vld [vmem:[%s3 + $0x8] sm:$0xf]
    %v2000 = vld [vmem:[%s3 + $0xc] sm:$0xf]
    %v2001 = vld [vmem:[%s3 + $0x10] sm:$0xf]
    %v2002 = vld [vmem:[%s3 + $0x14] sm:$0xf]
    %v2003 = vld [vmem:[%s3 + $0x18] sm:$0xf]
    %v2004 = vld [vmem:[%s3 + $0x1c] sm:$0xf]
    %v2005 = vld [vmem:[%s3 + $0x20] sm:$0xf]
    %v2006 = vld [vmem:[%s3 + $0x24] sm:$0xf]
    %v2007 = vld [vmem:[%s3 + $0x28] sm:$0xf]
    %v2008 = vld [vmem:[%s3 + $0x2c] sm:$0xf]
    %v2009 = vld [vmem:[%s3 + $0x30] sm:$0xf]
    %v2010 = vld [vmem:[%s3 + $0x34] sm:$0xf]
    %v2011 = vld [vmem:[%s3 + $0x38] sm:$0xf]
    %v2012 = vld [vmem:[%s3 + $0x3c] sm:$0xf]
    %v2013 = vld [vmem:[%s3 + $0x40] sm:$0xf]
    %v2014 = vld [vmem:[%s3 + $0x44] sm:$0xf]
    %v2015 = vld [vmem:[%s3 + $0x48] sm:$0xf]
    %v2016 = vld [vmem:[%s3 + $0x4c] sm:$0xf]
    %v2017 = vld [vmem:[%s3 + $0x50] sm:$0xf]
    %v2018 = vld [vmem:[%s3 + $0x54] sm:$0xf]
    %v2019 = vld [vmem:[%s3 + $0x58] sm:$0xf]
    %v2020 = vld [vmem:[%s3 + $0x5c] sm:$0xf]
    %v2021 = vld [vmem:[%s3 + $0x60] sm:$0xf]
    %v2022 = vld [vmem:[%s3 + $0x64] sm:$0xf]
    %v2023 = vld [vmem:[%s3 + $0x68] sm:$0xf]
    %v2024 = vld [vmem:[%s3 + $0x6c] sm:$0xf]
    %v2025 = vld [vmem:[%s3 + $0x70] sm:$0xf]
    %v2026 = vld [vmem:[%s3 + $0x74] sm:$0xf]
    %v2027 = vld [vmem:[%s3 + $0x78] sm:$0xf]
    %v2028 = vld [vmem:[%s3 + $0x7c] sm:$0xf]
    %v2029 = vld [vmem:[%s3 + $0x80] sm:$0xf]
    %v2030 = vld [vmem:[%s3 + $0x84] sm:$0xf]
    %v2031 = vld [vmem:[%s3 + $0x88] sm:$0xf]
    %v2032 = vld [vmem:[%s3 + $0x8c] sm:$0xf]
    %v2033 = vld [vmem:[%s3 + $0x90] sm:$0xf]
    %v2034 = vld [vmem:[%s3 + $0x94] sm:$0xf]
    %v2035 = vld [vmem:[%s3 + $0x98] sm:$0xf]
    %v2036 = vld [vmem:[%s3 + $0x9c] sm:$0xf]
    %v2037 = vld [vmem:[%s3 + $0xa0] sm:$0xf]
    %v2038 = vld [vmem:[%s3 + $0xa4] sm:$0xf]
    %v2039 = vld [vmem:[%s3 + $0xa8] sm:$0xf]
    %v2040 = vld [vmem:[%s3 + $0xac] sm:$0xf]
    %v2041 = vld [vmem:[%s3 + $0xb0] sm:$0xf]
    %v2042 = vld [vmem:[%s3 + $0xb4] sm:$0xf]
    %v2043 = vld [vmem:[%s3 + $0xb8] sm:$0xf]
    %v2044 = vld [vmem:[%s3 + $0xbc] sm:$0xf]
    %v2045 = vld [vmem:[%s3 + $0xc0] sm:$0xf]
    %v2046 = vld [vmem:[%s3 + $0xc4] sm:$0xf]
    %v2047 = vld [vmem:[%s3 + $0xc8] sm:$0xf]
    %v2048 = vld [vmem:[%s3 + $0xcc] sm:$0xf]
    %v2049 = vld [vmem:[%s3 + $0xd0] sm:$0xf]
    %v2050 = vld [vmem:[%s3 + $0xd4] sm:$0xf]
    %v2051 = vld [vmem:[%s3 + $0xd8] sm:$0xf]
    %v2052 = vld [vmem:[%s3 + $0xdc] sm:$0xf]
    %v2053 = vld [vmem:[%s3 + $0xe0] sm:$0xf]
    %v2054 = vld [vmem:[%s3 + $0xe4] sm:$0xf]
    %v2055 = vld [vmem:[%s3 + $0xe8] sm:$0xf]
    %v2056 = vld [vmem:[%s3 + $0xec] sm:$0xf]
    %v2057 = vld [vmem:[%s3 + $0xf0] sm:$0xf]
    %v2058 = vld [vmem:[%s3 + $0xf4] sm:$0xf]
    %v2059 = vld [vmem:[%s3 + $0xf8] sm:$0xf]
    %v2060 = vld [vmem:[%s3 + $0xfc] sm:$0xf]
    %v2061 = vld [vmem:[%s4] sm:$0x1]
    %v2063 = vlaneseq
    %v2064 = vshrl.u32 %v2063, 7
    %v2065 = vsub.s32 0, %v2064
    %v2066 = vrot.slane %v2061, %v2065
    %v2132 = vunpack.c.l.b16 %v1997
    %v2133 = vunpack.c.l.b16 %v1998
    %v2134 = vunpack.c.l.b16 %v1999
    %v2135 = vunpack.c.l.b16 %v2000
    %v2136 = vunpack.c.l.b16 %v2001
    %v2137 = vunpack.c.l.b16 %v2002
    %v2138 = vunpack.c.l.b16 %v2003
    %v2139 = vunpack.c.l.b16 %v2004
    %v2140 = vunpack.c.l.b16 %v2005
    %v2141 = vunpack.c.l.b16 %v2006
    %v2142 = vunpack.c.l.b16 %v2007
    %v2143 = vunpack.c.l.b16 %v2008
    %v2144 = vunpack.c.l.b16 %v2009
    %v2145 = vunpack.c.l.b16 %v2010
    %v2146 = vunpack.c.l.b16 %v2011
    %v2147 = vunpack.c.l.b16 %v2012
    %v2148 = vunpack.c.l.b16 %v2013
    %v2149 = vunpack.c.l.b16 %v2014
    %v2150 = vunpack.c.l.b16 %v2015
    %v2151 = vunpack.c.l.b16 %v2016
    %v2152 = vunpack.c.l.b16 %v2017
    %v2153 = vunpack.c.l.b16 %v2018
    %v2154 = vunpack.c.l.b16 %v2019
    %v2155 = vunpack.c.l.b16 %v2020
    %v2156 = vunpack.c.l.b16 %v2021
    %v2157 = vunpack.c.l.b16 %v2022
    %v2158 = vunpack.c.l.b16 %v2023
    %v2159 = vunpack.c.l.b16 %v2024
    %v2160 = vunpack.c.l.b16 %v2025
    %v2161 = vunpack.c.l.b16 %v2026
    %v2162 = vunpack.c.l.b16 %v2027
    %v2163 = vunpack.c.l.b16 %v2028
    %v2164 = vunpack.c.l.b16 %v2029
    %v2165 = vunpack.c.l.b16 %v2030
    %v2166 = vunpack.c.l.b16 %v2031
    %v2167 = vunpack.c.l.b16 %v2032
    %v2168 = vunpack.c.l.b16 %v2033
    %v2169 = vunpack.c.l.b16 %v2034
    %v2170 = vunpack.c.l.b16 %v2035
    %v2171 = vunpack.c.l.b16 %v2036
    %v2172 = vunpack.c.l.b16 %v2037
    %v2173 = vunpack.c.l.b16 %v2038
    %v2174 = vunpack.c.l.b16 %v2039
    %v2175 = vunpack.c.l.b16 %v2040
    %v2176 = vunpack.c.l.b16 %v2041
    %v2177 = vunpack.c.l.b16 %v2042
    %v2178 = vunpack.c.l.b16 %v2043
    %v2179 = vunpack.c.l.b16 %v2044
    %v2180 = vunpack.c.l.b16 %v2045
    %v2181 = vunpack.c.l.b16 %v2046
    %v2182 = vunpack.c.l.b16 %v2047
    %v2183 = vunpack.c.l.b16 %v2048
    %v2184 = vunpack.c.l.b16 %v2049
    %v2185 = vunpack.c.l.b16 %v2050
    %v2186 = vunpack.c.l.b16 %v2051
    %v2187 = vunpack.c.l.b16 %v2052
    %v2188 = vunpack.c.l.b16 %v2053
    %v2189 = vunpack.c.l.b16 %v2054
    %v2190 = vunpack.c.l.b16 %v2055
    %v2191 = vunpack.c.l.b16 %v2056
    %v2192 = vunpack.c.l.b16 %v2057
    %v2193 = vunpack.c.l.b16 %v2058
    %v2194 = vunpack.c.l.b16 %v2059
    %v2195 = vunpack.c.l.b16 %v2060
    %v2196 = vpack.c.b16 %v2133, %v2132
    %v2197 = vpack.c.b16 %v2135, %v2134
    %v2198 = vpack.c.b16 %v2137, %v2136
    %v2199 = vpack.c.b16 %v2139, %v2138
    %v2200 = vpack.c.b16 %v2141, %v2140
    %v2201 = vpack.c.b16 %v2143, %v2142
    %v2202 = vpack.c.b16 %v2145, %v2144
    %v2203 = vpack.c.b16 %v2147, %v2146
    %v2204 = vpack.c.b16 %v2149, %v2148
    %v2205 = vpack.c.b16 %v2151, %v2150
    %v2206 = vpack.c.b16 %v2153, %v2152
    %v2207 = vpack.c.b16 %v2155, %v2154
    %v2208 = vpack.c.b16 %v2157, %v2156
    %v2209 = vpack.c.b16 %v2159, %v2158
    %v2210 = vpack.c.b16 %v2161, %v2160
    %v2211 = vpack.c.b16 %v2163, %v2162
    %v2212 = vpack.c.b16 %v2165, %v2164
    %v2213 = vpack.c.b16 %v2167, %v2166
    %v2214 = vpack.c.b16 %v2169, %v2168
    %v2215 = vpack.c.b16 %v2171, %v2170
    %v2216 = vpack.c.b16 %v2173, %v2172
    %v2217 = vpack.c.b16 %v2175, %v2174
    %v2218 = vpack.c.b16 %v2177, %v2176
    %v2219 = vpack.c.b16 %v2179, %v2178
    %v2220 = vpack.c.b16 %v2181, %v2180
    %v2221 = vpack.c.b16 %v2183, %v2182
    %v2222 = vpack.c.b16 %v2185, %v2184
    %v2223 = vpack.c.b16 %v2187, %v2186
    %v2224 = vpack.c.b16 %v2189, %v2188
    %v2225 = vpack.c.b16 %v2191, %v2190
    %v2226 = vpack.c.b16 %v2193, %v2192
    %v2227 = vpack.c.b16 %v2195, %v2194
    %2260 = vmatprep.subr.bf16.mxu0 0
    %2261 = vmatpush1.bf16.msra.mxu0 %v2196
    %2262 = vmatprep.subr.bf16.mxu0 0
    %2263 = vmatpush1.bf16.msra.mxu0 %v2197
    %2264 = vmatprep.subr.bf16.mxu0 0
    %2265 = vmatpush1.bf16.msra.mxu0 %v2198
    %2266 = vmatprep.subr.bf16.mxu0 0
    %2267 = vmatpush1.bf16.msra.mxu0 %v2199
    %2268 = vmatprep.subr.bf16.mxu0 0
    %2269 = vmatpush1.bf16.msra.mxu0 %v2200
    %2270 = vmatprep.subr.bf16.mxu0 0
    %2271 = vmatpush1.bf16.msra.mxu0 %v2201
    %2272 = vmatprep.subr.bf16.mxu0 0
    %2273 = vmatpush1.bf16.msra.mxu0 %v2202
    %2274 = vmatprep.subr.bf16.mxu0 0
    %2275 = vmatpush1.bf16.msra.mxu0 %v2203
    %2276 = vmatprep.subr.bf16.mxu0 0
    %2277 = vmatpush1.bf16.msra.mxu0 %v2204
    %2278 = vmatprep.subr.bf16.mxu0 0
    %2279 = vmatpush1.bf16.msra.mxu0 %v2205
    %2280 = vmatprep.subr.bf16.mxu0 0
    %2281 = vmatpush1.bf16.msra.mxu0 %v2206
    %2282 = vmatprep.subr.bf16.mxu0 0
    %2283 = vmatpush1.bf16.msra.mxu0 %v2207
    %2284 = vmatprep.subr.bf16.mxu0 0
    %2285 = vmatpush1.bf16.msra.mxu0 %v2208
    %2286 = vmatprep.subr.bf16.mxu0 0
    %2287 = vmatpush1.bf16.msra.mxu0 %v2209
    %2288 = vmatprep.subr.bf16.mxu0 0
    %2289 = vmatpush1.bf16.msra.mxu0 %v2210
    %2290 = vmatprep.subr.bf16.mxu0 0
    %2291 = vmatpush1.bf16.msra.mxu0 %v2211
    %2292 = vmatprep.mubr.bf16.mxu0 %v1994
    %2293 = vmatmul.mubr.bf16.gmra.mrb[0].mxu0 %v1993
    %v2294 = vpop.f32.mrb[0].mxu0
    %v2295 = vadd.f32 %v2066, %v2294
    %v2296 = vpop.f32.mrb[0].mxu0
    %v2297 = vpop.f32.mrb[0].mxu0
    %v2298 = vpop.f32.mrb[0].mxu0
    %2299 = vdwg.mxu0
    %2300 = vmatprep.subr.bf16.mxu0 0
    %2301 = vmatpush1.bf16.msra.mxu0 %v2212
    %2302 = vmatprep.subr.bf16.mxu0 0
    %2303 = vmatpush1.bf16.msra.mxu0 %v2213
    %2304 = vmatprep.subr.bf16.mxu0 0
    %2305 = vmatpush1.bf16.msra.mxu0 %v2214
    %2306 = vmatprep.subr.bf16.mxu0 0
    %2307 = vmatpush1.bf16.msra.mxu0 %v2215
    %2308 = vmatprep.subr.bf16.mxu0 0
    %2309 = vmatpush1.bf16.msra.mxu0 %v2216
    %2310 = vmatprep.subr.bf16.mxu0 0
    %2311 = vmatpush1.bf16.msra.mxu0 %v2217
    %2312 = vmatprep.subr.bf16.mxu0 0
    %2313 = vmatpush1.bf16.msra.mxu0 %v2218
    %2314 = vmatprep.subr.bf16.mxu0 0
    %2315 = vmatpush1.bf16.msra.mxu0 %v2219
    %2316 = vmatprep.subr.bf16.mxu0 0
    %2317 = vmatpush1.bf16.msra.mxu0 %v2220
    %2318 = vmatprep.subr.bf16.mxu0 0
    %2319 = vmatpush1.bf16.msra.mxu0 %v2221
    %2320 = vmatprep.subr.bf16.mxu0 0
    %2321 = vmatpush1.bf16.msra.mxu0 %v2222
    %2322 = vmatprep.subr.bf16.mxu0 0
    %2323 = vmatpush1.bf16.msra.mxu0 %v2223
    %2324 = vmatprep.subr.bf16.mxu0 0
    %2325 = vmatpush1.bf16.msra.mxu0 %v2224
    %2326 = vmatprep.subr.bf16.mxu0 0
    %2327 = vmatpush1.bf16.msra.mxu0 %v2225
    %2328 = vmatprep.subr.bf16.mxu0 0
    %2329 = vmatpush1.bf16.msra.mxu0 %v2226
    %2330 = vmatprep.subr.bf16.mxu0 0
    %2331 = vmatpush1.bf16.msra.mxu0 %v2227
    %2332 = vmatprep.mubr.bf16.mxu0 %v1996
    %2333 = vmatmul.mubr.bf16.gmra.mrb[0].mxu0 %v1995
    %v2334 = vpop.f32.mrb[0].mxu0
    %v2335 = vadd.f32 %v2295, %v2334
    %v2336 = vpop.f32.mrb[0].mxu0
    %v2337 = vpop.f32.mrb[0].mxu0
    %v2338 = vpop.f32.mrb[0].mxu0
    %2339 = vdwg.mxu0
    %v2340 = vmax.f32 %v2335, 0.0
    %v2341 = vpack.c.bf16 %v2340, %v2340
    %v2342 = vld [vmem:[%s5] sm:$0xf]
    %v2343 = vld [vmem:[%s5 + $0x4] sm:$0xf]
    %v2344 = vld [vmem:[%s5 + $0x8] sm:$0xf]
    %v2345 = vld [vmem:[%s5 + $0xc] sm:$0xf]
    %v2346 = vld [vmem:[%s5 + $0x10] sm:$0xf]
    %v2347 = vld [vmem:[%s5 + $0x14] sm:$0xf]
    %v2348 = vld [vmem:[%s5 + $0x18] sm:$0xf]
    %v2349 = vld [vmem:[%s5 + $0x1c] sm:$0xf]
    %v2350 = vld [vmem:[%s5 + $0x20] sm:$0xf]
    %v2351 = vld [vmem:[%s5 + $0x24] sm:$0xf]
    %v2352 = vld [vmem:[%s5 + $0x28] sm:$0xf]
    %v2353 = vld [vmem:[%s5 + $0x2c] sm:$0xf]
    %v2354 = vld [vmem:[%s5 + $0x30] sm:$0xf]
    %v2355 = vld [vmem:[%s5 + $0x34] sm:$0xf]
    %v2356 = vld [vmem:[%s5 + $0x38] sm:$0xf]
    %v2357 = vld [vmem:[%s5 + $0x3c] sm:$0xf]
    %v2358 = vld [vmem:[%s6] sm:$0x1]
    %v2360 = vlaneseq
    %v2361 = vshrl.u32 %v2360, 7
    %v2362 = vsub.s32 0, %v2361
    %v2363 = vrot.slane %v2358, %v2362
    %v2381 = vunpack.c.l.b16 %v2342
    %v2382 = vunpack.c.l.b16 %v2343
    %v2383 = vunpack.c.l.b16 %v2344
    %v2384 = vunpack.c.l.b16 %v2345
    %v2385 = vunpack.c.l.b16 %v2346
    %v2386 = vunpack.c.l.b16 %v2347
    %v2387 = vunpack.c.l.b16 %v2348
    %v2388 = vunpack.c.l.b16 %v2349
    %v2389 = vunpack.c.l.b16 %v2350
    %v2390 = vunpack.c.l.b16 %v2351
    %v2391 = vunpack.c.l.b16 %v2352
    %v2392 = vunpack.c.l.b16 %v2353
    %v2393 = vunpack.c.l.b16 %v2354
    %v2394 = vunpack.c.l.b16 %v2355
    %v2395 = vunpack.c.l.b16 %v2356
    %v2396 = vunpack.c.l.b16 %v2357
    %v2397 = vpack.c.b16 %v2382, %v2381
    %v2398 = vpack.c.b16 %v2384, %v2383
    %v2399 = vpack.c.b16 %v2386, %v2385
    %v2400 = vpack.c.b16 %v2388, %v2387
    %v2401 = vpack.c.b16 %v2390, %v2389
    %v2402 = vpack.c.b16 %v2392, %v2391
    %v2403 = vpack.c.b16 %v2394, %v2393
    %v2404 = vpack.c.b16 %v2396, %v2395
    %2413 = vmatprep.subr.bf16.mxu0 0
    %2414 = vmatpush1.bf16.msra.mxu0 %v2397
    %2415 = vmatprep.subr.bf16.mxu0 0
    %2416 = vmatpush1.bf16.msra.mxu0 %v2398
    %2417 = vmatprep.subr.bf16.mxu0 0
    %2418 = vmatpush1.bf16.msra.mxu0 %v2399
    %2419 = vmatprep.subr.bf16.mxu0 0
    %2420 = vmatpush1.bf16.msra.mxu0 %v2400
    %2421 = vmatprep.subr.bf16.mxu0 0
    %2422 = vmatpush1.bf16.msra.mxu0 %v2401
    %2423 = vmatprep.subr.bf16.mxu0 0
    %2424 = vmatpush1.bf16.msra.mxu0 %v2402
    %2425 = vmatprep.subr.bf16.mxu0 0
    %2426 = vmatpush1.bf16.msra.mxu0 %v2403
    %2427 = vmatprep.subr.bf16.mxu0 0
    %2428 = vmatpush1.bf16.msra.mxu0 %v2404
    %2429 = vmatprep.subr.bf16.mxu0 0
    %2430 = vmatpush1.bf16.msra.mxu0 0
    %2431 = vmatprep.subr.bf16.mxu0 0
    %2432 = vmatpush1.bf16.msra.mxu0 0
    %2433 = vmatprep.subr.bf16.mxu0 0
    %2434 = vmatpush1.bf16.msra.mxu0 0
    %2435 = vmatprep.subr.bf16.mxu0 0
    %2436 = vmatpush1.bf16.msra.mxu0 0
    %2437 = vmatprep.subr.bf16.mxu0 0
    %2438 = vmatpush1.bf16.msra.mxu0 0
    %2439 = vmatprep.subr.bf16.mxu0 0
    %2440 = vmatpush1.bf16.msra.mxu0 0
    %2441 = vmatprep.subr.bf16.mxu0 0
    %2442 = vmatpush1.bf16.msra.mxu0 0
    %2443 = vmatprep.subr.bf16.mxu0 0
    %2444 = vmatpush1.bf16.msra.mxu0 0
    %2445 = vmatprep.mubr.bf16.mxu0 0
    %2446 = vmatmul.mubr.bf16.gmra.mrb[0].mxu0 %v2341
    %v2447 = vpop.f32.mrb[0].mxu0
    %v2448 = vadd.f32 %v2363, %v2447
    %v2449 = vpop.f32.mrb[0].mxu0
    %v2450 = vpop.f32.mrb[0].mxu0
    %v2451 = vpop.f32.mrb[0].mxu0
    %2452 = vdwg.mxu0
    %vm2453 = vcmask 66560
    %2454 = vst.msk [vmem:[#allocation2] sm:$0x3] %vm2453, %v2448
    %v2455 = vld [vmem:[%s7] sm:$0xff]
    %v2456 = vld [vmem:[%s7 + $0x8] sm:$0xff]
    %v2457 = vld [vmem:[%s7 + $0x10] sm:$0xff]
    %v2458 = vld [vmem:[%s7 + $0x18] sm:$0xff]
    %v2459 = vld [vmem:[%s7 + $0x20] sm:$0xff]
    %v2460 = vld [vmem:[%s7 + $0x28] sm:$0xff]
    %v2461 = vld [vmem:[%s7 + $0x30] sm:$0xff]
    %v2462 = vld [vmem:[%s7 + $0x38] sm:$0xff]
    %v2463 = vld [vmem:[%s7 + $0x40] sm:$0xff]
    %v2464 = vld [vmem:[%s7 + $0x48] sm:$0xff]
    %v2465 = vld [vmem:[%s7 + $0x50] sm:$0xff]
    %v2466 = vld [vmem:[%s7 + $0x58] sm:$0xff]
    %v2467 = vld [vmem:[%s7 + $0x60] sm:$0xff]
    %v2468 = vld [vmem:[%s7 + $0x68] sm:$0xff]
    %v2469 = vld [vmem:[%s7 + $0x70] sm:$0xff]
    %v2470 = vld [vmem:[%s7 + $0x78] sm:$0xff]
    %v2471 = vld [vmem:[%s7 + $0x80] sm:$0xff]
    %v2472 = vld [vmem:[%s7 + $0x88] sm:$0xff]
    %v2473 = vld [vmem:[%s7 + $0x90] sm:$0xff]
    %v2474 = vld [vmem:[%s7 + $0x98] sm:$0xff]
    %v2475 = vld [vmem:[%s7 + $0xa0] sm:$0xff]
    %v2476 = vld [vmem:[%s7 + $0xa8] sm:$0xff]
    %v2477 = vld [vmem:[%s7 + $0xb0] sm:$0xff]
    %v2478 = vld [vmem:[%s7 + $0xb8] sm:$0xff]
    %v2479 = vld [vmem:[%s7 + $0xc0] sm:$0xff]
    %v2480 = vld [vmem:[%s7 + $0xc8] sm:$0xff]
    %v2481 = vld [vmem:[%s7 + $0xd0] sm:$0xff]
    %v2482 = vld [vmem:[%s7 + $0xd8] sm:$0xff]
    %v2483 = vld [vmem:[%s7 + $0xe0] sm:$0xff]
    %v2484 = vld [vmem:[%s7 + $0xe8] sm:$0xff]
    %v2485 = vld [vmem:[%s7 + $0xf0] sm:$0xff]
    %v2486 = vld [vmem:[%s7 + $0xf8] sm:$0xff]
    %v2487 = vld [vmem:[%s7 + $0x100] sm:$0xff]
    %v2488 = vld [vmem:[%s7 + $0x108] sm:$0xff]
    %v2489 = vld [vmem:[%s7 + $0x110] sm:$0xff]
    %v2490 = vld [vmem:[%s7 + $0x118] sm:$0xff]
    %v2491 = vld [vmem:[%s7 + $0x120] sm:$0xff]
    %v2492 = vld [vmem:[%s7 + $0x128] sm:$0xff]
    %v2493 = vld [vmem:[%s7 + $0x130] sm:$0xff]
    %v2494 = vld [vmem:[%s7 + $0x138] sm:$0xff]
    %v2495 = vld [vmem:[%s7 + $0x140] sm:$0xff]
    %v2496 = vld [vmem:[%s7 + $0x148] sm:$0xff]
    %v2497 = vld [vmem:[%s7 + $0x150] sm:$0xff]
    %v2498 = vld [vmem:[%s7 + $0x158] sm:$0xff]
    %v2499 = vld [vmem:[%s7 + $0x160] sm:$0xff]
    %v2500 = vld [vmem:[%s7 + $0x168] sm:$0xff]
    %v2501 = vld [vmem:[%s7 + $0x170] sm:$0xff]
    %v2502 = vld [vmem:[%s7 + $0x178] sm:$0xff]
    %v2503 = vld [vmem:[%s7 + $0x180] sm:$0xff]
    %v2504 = vld [vmem:[%s7 + $0x188] sm:$0xff]
    %v2505 = vld [vmem:[%s7 + $0x190] sm:$0xff]
    %v2506 = vld [vmem:[%s7 + $0x198] sm:$0xff]
    %v2507 = vld [vmem:[%s7 + $0x1a0] sm:$0xff]
    %v2508 = vld [vmem:[%s7 + $0x1a8] sm:$0xff]
    %v2509 = vld [vmem:[%s7 + $0x1b0] sm:$0xff]
    %v2510 = vld [vmem:[%s7 + $0x1b8] sm:$0xff]
    %v2511 = vld [vmem:[%s7 + $0x1c0] sm:$0xff]
    %v2512 = vld [vmem:[%s7 + $0x1c8] sm:$0xff]
    %v2513 = vld [vmem:[%s7 + $0x1d0] sm:$0xff]
    %v2514 = vld [vmem:[%s7 + $0x1d8] sm:$0xff]
    %v2515 = vld [vmem:[%s7 + $0x1e0] sm:$0xff]
    %v2516 = vld [vmem:[%s7 + $0x1e8] sm:$0xff]
    %v2517 = vld [vmem:[%s7 + $0x1f0] sm:$0xff]
    %v2518 = vld [vmem:[%s7 + $0x1f8] sm:$0xff]
    %v2519 = vld [vmem:[%s7 + $0x200] sm:$0xff]
    %v2520 = vld [vmem:[%s7 + $0x208] sm:$0xff]
    %v2521 = vld [vmem:[%s7 + $0x210] sm:$0xff]
    %v2522 = vld [vmem:[%s7 + $0x218] sm:$0xff]
    %v2523 = vld [vmem:[%s7 + $0x220] sm:$0xff]
    %v2524 = vld [vmem:[%s7 + $0x228] sm:$0xff]
    %v2525 = vld [vmem:[%s7 + $0x230] sm:$0xff]
    %v2526 = vld [vmem:[%s7 + $0x238] sm:$0xff]
    %v2527 = vld [vmem:[%s7 + $0x240] sm:$0xff]
    %v2528 = vld [vmem:[%s7 + $0x248] sm:$0xff]
    %v2529 = vld [vmem:[%s7 + $0x250] sm:$0xff]
    %v2530 = vld [vmem:[%s7 + $0x258] sm:$0xff]
    %v2531 = vld [vmem:[%s7 + $0x260] sm:$0xff]
    %v2532 = vld [vmem:[%s7 + $0x268] sm:$0xff]
    %v2533 = vld [vmem:[%s7 + $0x270] sm:$0xff]
    %v2534 = vld [vmem:[%s7 + $0x278] sm:$0xff]
    %v2535 = vld [vmem:[%s7 + $0x280] sm:$0xff]
    %v2536 = vld [vmem:[%s7 + $0x288] sm:$0xff]
    %v2537 = vld [vmem:[%s7 + $0x290] sm:$0xff]
    %v2538 = vld [vmem:[%s7 + $0x298] sm:$0xff]
    %v2539 = vld [vmem:[%s7 + $0x2a0] sm:$0xff]
    %v2540 = vld [vmem:[%s7 + $0x2a8] sm:$0xff]
    %v2541 = vld [vmem:[%s7 + $0x2b0] sm:$0xff]
    %v2542 = vld [vmem:[%s7 + $0x2b8] sm:$0xff]
    %v2543 = vld [vmem:[%s7 + $0x2c0] sm:$0xff]
    %v2544 = vld [vmem:[%s7 + $0x2c8] sm:$0xff]
    %v2545 = vld [vmem:[%s7 + $0x2d0] sm:$0xff]
    %v2546 = vld [vmem:[%s7 + $0x2d8] sm:$0xff]
    %v2547 = vld [vmem:[%s7 + $0x2e0] sm:$0xff]
    %v2548 = vld [vmem:[%s7 + $0x2e8] sm:$0xff]
    %v2549 = vld [vmem:[%s7 + $0x2f0] sm:$0xff]
    %v2550 = vld [vmem:[%s7 + $0x2f8] sm:$0xff]
    %v2551 = vld [vmem:[%s7 + $0x300] sm:$0xff]
    %v2552 = vld [vmem:[%s7 + $0x308] sm:$0xff]
    %v2553 = vld [vmem:[%s7 + $0x310] sm:$0xff]
    %v2554 = vld [vmem:[%s7 + $0x318] sm:$0xff]
    %v2555 = vld [vmem:[%s7 + $0x320] sm:$0xff]
    %v2556 = vld [vmem:[%s7 + $0x328] sm:$0xff]
    %v2557 = vld [vmem:[%s7 + $0x330] sm:$0xff]
    %v2558 = vld [vmem:[%s7 + $0x338] sm:$0xff]
    %v2559 = vld [vmem:[%s7 + $0x340] sm:$0xff]
    %v2560 = vld [vmem:[%s7 + $0x348] sm:$0xff]
    %v2561 = vld [vmem:[%s7 + $0x350] sm:$0xff]
    %v2562 = vld [vmem:[%s7 + $0x358] sm:$0xff]
    %v2563 = vld [vmem:[%s7 + $0x360] sm:$0xff]
    %v2564 = vld [vmem:[%s7 + $0x368] sm:$0xff]
    %v2565 = vld [vmem:[%s7 + $0x370] sm:$0xff]
    %v2566 = vld [vmem:[%s7 + $0x378] sm:$0xff]
    %v2567 = vld [vmem:[%s7 + $0x380] sm:$0xff]
    %v2568 = vld [vmem:[%s7 + $0x388] sm:$0xff]
    %v2569 = vld [vmem:[%s7 + $0x390] sm:$0xff]
    %v2570 = vld [vmem:[%s7 + $0x398] sm:$0xff]
    %v2571 = vld [vmem:[%s7 + $0x3a0] sm:$0xff]
    %v2572 = vld [vmem:[%s7 + $0x3a8] sm:$0xff]
    %v2573 = vld [vmem:[%s7 + $0x3b0] sm:$0xff]
    %v2574 = vld [vmem:[%s7 + $0x3b8] sm:$0xff]
    %v2575 = vld [vmem:[%s7 + $0x3c0] sm:$0xff]
    %v2576 = vld [vmem:[%s7 + $0x3c8] sm:$0xff]
    %v2577 = vld [vmem:[%s7 + $0x3d0] sm:$0xff]
    %v2578 = vld [vmem:[%s7 + $0x3d8] sm:$0xff]
    %v2579 = vld [vmem:[%s7 + $0x3e0] sm:$0xff]
    %v2580 = vld [vmem:[%s7 + $0x3e8] sm:$0xff]
    %v2581 = vld [vmem:[%s7 + $0x3f0] sm:$0xff]
    %v2582 = vld [vmem:[%s7 + $0x3f8] sm:$0xff]
    %v2583 = vld [vmem:[%s7 + $0x400] sm:$0xff]
    %v2584 = vld [vmem:[%s7 + $0x408] sm:$0xff]
    %v2585 = vld [vmem:[%s7 + $0x410] sm:$0xff]
    %v2586 = vld [vmem:[%s7 + $0x418] sm:$0xff]
    %v2587 = vld [vmem:[%s7 + $0x420] sm:$0xff]
    %v2588 = vld [vmem:[%s7 + $0x428] sm:$0xff]
    %v2589 = vld [vmem:[%s7 + $0x430] sm:$0xff]
    %v2590 = vld [vmem:[%s7 + $0x438] sm:$0xff]
    %v2591 = vld [vmem:[%s7 + $0x440] sm:$0xff]
    %v2592 = vld [vmem:[%s7 + $0x448] sm:$0xff]
    %v2593 = vld [vmem:[%s7 + $0x450] sm:$0xff]
    %v2594 = vld [vmem:[%s7 + $0x458] sm:$0xff]
    %v2595 = vld [vmem:[%s7 + $0x460] sm:$0xff]
    %v2596 = vld [vmem:[%s7 + $0x468] sm:$0xff]
    %v2597 = vld [vmem:[%s7 + $0x470] sm:$0xff]
    %v2598 = vld [vmem:[%s7 + $0x478] sm:$0xff]
    %v2599 = vld [vmem:[%s7 + $0x480] sm:$0xff]
    %v2600 = vld [vmem:[%s7 + $0x488] sm:$0xff]
    %v2601 = vld [vmem:[%s7 + $0x490] sm:$0xff]
    %v2602 = vld [vmem:[%s7 + $0x498] sm:$0xff]
    %v2603 = vld [vmem:[%s7 + $0x4a0] sm:$0xff]
    %v2604 = vld [vmem:[%s7 + $0x4a8] sm:$0xff]
    %v2605 = vld [vmem:[%s7 + $0x4b0] sm:$0xff]
    %v2606 = vld [vmem:[%s7 + $0x4b8] sm:$0xff]
    %v2607 = vld [vmem:[%s7 + $0x4c0] sm:$0xff]
    %v2608 = vld [vmem:[%s7 + $0x4c8] sm:$0xff]
    %v2609 = vld [vmem:[%s7 + $0x4d0] sm:$0xff]
    %v2610 = vld [vmem:[%s7 + $0x4d8] sm:$0xff]
    %v2611 = vld [vmem:[%s7 + $0x4e0] sm:$0xff]
    %v2612 = vld [vmem:[%s7 + $0x4e8] sm:$0xff]
    %v2613 = vld [vmem:[%s7 + $0x4f0] sm:$0xff]
    %v2614 = vld [vmem:[%s7 + $0x4f8] sm:$0xff]
    %v2615 = vld [vmem:[%s7 + $0x500] sm:$0xff]
    %v2616 = vld [vmem:[%s7 + $0x508] sm:$0xff]
    %v2617 = vld [vmem:[%s7 + $0x510] sm:$0xff]
    %v2618 = vld [vmem:[%s7 + $0x518] sm:$0xff]
    %v2619 = vld [vmem:[%s7 + $0x520] sm:$0xff]
    %v2620 = vld [vmem:[%s7 + $0x528] sm:$0xff]
    %v2621 = vld [vmem:[%s7 + $0x530] sm:$0xff]
    %v2622 = vld [vmem:[%s7 + $0x538] sm:$0xff]
    %v2623 = vld [vmem:[%s7 + $0x540] sm:$0xff]
    %v2624 = vld [vmem:[%s7 + $0x548] sm:$0xff]
    %v2625 = vld [vmem:[%s7 + $0x550] sm:$0xff]
    %v2626 = vld [vmem:[%s7 + $0x558] sm:$0xff]
    %v2627 = vld [vmem:[%s7 + $0x560] sm:$0xff]
    %v2628 = vld [vmem:[%s7 + $0x568] sm:$0xff]
    %v2629 = vld [vmem:[%s7 + $0x570] sm:$0xff]
    %v2630 = vld [vmem:[%s7 + $0x578] sm:$0xff]
    %v2631 = vld [vmem:[%s7 + $0x580] sm:$0xff]
    %v2632 = vld [vmem:[%s7 + $0x588] sm:$0xff]
    %v2633 = vld [vmem:[%s7 + $0x590] sm:$0xff]
    %v2634 = vld [vmem:[%s7 + $0x598] sm:$0xff]
    %v2635 = vld [vmem:[%s7 + $0x5a0] sm:$0xff]
    %v2636 = vld [vmem:[%s7 + $0x5a8] sm:$0xff]
    %v2637 = vld [vmem:[%s7 + $0x5b0] sm:$0xff]
    %v2638 = vld [vmem:[%s7 + $0x5b8] sm:$0xff]
    %v2639 = vld [vmem:[%s7 + $0x5c0] sm:$0xff]
    %v2640 = vld [vmem:[%s7 + $0x5c8] sm:$0xff]
    %v2641 = vld [vmem:[%s7 + $0x5d0] sm:$0xff]
    %v2642 = vld [vmem:[%s7 + $0x5d8] sm:$0xff]
    %v2643 = vld [vmem:[%s7 + $0x5e0] sm:$0xff]
    %v2644 = vld [vmem:[%s7 + $0x5e8] sm:$0xff]
    %v2645 = vld [vmem:[%s7 + $0x5f0] sm:$0xff]
    %v2646 = vld [vmem:[%s7 + $0x5f8] sm:$0xff]
    %v2647 = vld [vmem:[%s7 + $0x600] sm:$0xff]
    %v2648 = vld [vmem:[%s7 + $0x608] sm:$0xff]
    %v2649 = vld [vmem:[%s7 + $0x610] sm:$0xff]
    %v2650 = vld [vmem:[%s7 + $0x618] sm:$0xff]
    %v2651 = vld [vmem:[%s7 + $0x620] sm:$0xff]
    %v2652 = vld [vmem:[%s7 + $0x628] sm:$0xff]
    %v2653 = vld [vmem:[%s7 + $0x630] sm:$0xff]
    %v2654 = vld [vmem:[%s7 + $0x638] sm:$0xff]
    %v2655 = vld [vmem:[%s7 + $0x640] sm:$0xff]
    %v2656 = vld [vmem:[%s7 + $0x648] sm:$0xff]
    %v2657 = vld [vmem:[%s7 + $0x650] sm:$0xff]
    %v2658 = vld [vmem:[%s7 + $0x658] sm:$0xff]
    %v2659 = vld [vmem:[%s7 + $0x660] sm:$0xff]
    %v2660 = vld [vmem:[%s7 + $0x668] sm:$0xff]
    %v2661 = vld [vmem:[%s7 + $0x670] sm:$0xff]
    %v2662 = vld [vmem:[%s7 + $0x678] sm:$0xff]
    %v2663 = vld [vmem:[%s7 + $0x680] sm:$0xff]
    %v2664 = vld [vmem:[%s7 + $0x688] sm:$0xff]
    %v2665 = vld [vmem:[%s7 + $0x690] sm:$0xff]
    %v2666 = vld [vmem:[%s7 + $0x698] sm:$0xff]
    %v2667 = vld [vmem:[%s7 + $0x6a0] sm:$0xff]
    %v2668 = vld [vmem:[%s7 + $0x6a8] sm:$0xff]
    %v2669 = vld [vmem:[%s7 + $0x6b0] sm:$0xff]
    %v2670 = vld [vmem:[%s7 + $0x6b8] sm:$0xff]
    %v2671 = vld [vmem:[%s7 + $0x6c0] sm:$0xff]
    %v2672 = vld [vmem:[%s7 + $0x6c8] sm:$0xff]
    %v2673 = vld [vmem:[%s7 + $0x6d0] sm:$0xff]
    %v2674 = vld [vmem:[%s7 + $0x6d8] sm:$0xff]
    %v2675 = vld [vmem:[%s7 + $0x6e0] sm:$0xff]
    %v2676 = vld [vmem:[%s7 + $0x6e8] sm:$0xff]
    %v2677 = vld [vmem:[%s7 + $0x6f0] sm:$0xff]
    %v2678 = vld [vmem:[%s7 + $0x6f8] sm:$0xff]
    %v2679 = vld [vmem:[%s7 + $0x700] sm:$0xff]
    %v2680 = vld [vmem:[%s7 + $0x708] sm:$0xff]
    %v2681 = vld [vmem:[%s7 + $0x710] sm:$0xff]
    %v2682 = vld [vmem:[%s7 + $0x718] sm:$0xff]
    %v2683 = vld [vmem:[%s7 + $0x720] sm:$0xff]
    %v2684 = vld [vmem:[%s7 + $0x728] sm:$0xff]
    %v2685 = vld [vmem:[%s7 + $0x730] sm:$0xff]
    %v2686 = vld [vmem:[%s7 + $0x738] sm:$0xff]
    %v2687 = vld [vmem:[%s7 + $0x740] sm:$0xff]
    %v2688 = vld [vmem:[%s7 + $0x748] sm:$0xff]
    %v2689 = vld [vmem:[%s7 + $0x750] sm:$0xff]
    %v2690 = vld [vmem:[%s7 + $0x758] sm:$0xff]
    %v2691 = vld [vmem:[%s7 + $0x760] sm:$0xff]
    %v2692 = vld [vmem:[%s7 + $0x768] sm:$0xff]
    %v2693 = vld [vmem:[%s7 + $0x770] sm:$0xff]
    %v2694 = vld [vmem:[%s7 + $0x778] sm:$0xff]
    %v2695 = vld [vmem:[%s7 + $0x780] sm:$0xff]
    %v2696 = vld [vmem:[%s7 + $0x788] sm:$0xff]
    %v2697 = vld [vmem:[%s7 + $0x790] sm:$0xff]
    %v2698 = vld [vmem:[%s7 + $0x798] sm:$0xff]
    %v2699 = vld [vmem:[%s7 + $0x7a0] sm:$0xff]
    %v2700 = vld [vmem:[%s7 + $0x7a8] sm:$0xff]
    %v2701 = vld [vmem:[%s7 + $0x7b0] sm:$0xff]
    %v2702 = vld [vmem:[%s7 + $0x7b8] sm:$0xff]
    %v2703 = vld [vmem:[%s7 + $0x7c0] sm:$0xff]
    %v2704 = vld [vmem:[%s7 + $0x7c8] sm:$0xff]
    %v2705 = vld [vmem:[%s7 + $0x7d0] sm:$0xff]
    %v2706 = vld [vmem:[%s7 + $0x7d8] sm:$0xff]
    %v2707 = vld [vmem:[%s7 + $0x7e0] sm:$0xff]
    %v2708 = vld [vmem:[%s7 + $0x7e8] sm:$0xff]
    %v2709 = vld [vmem:[%s7 + $0x7f0] sm:$0xff]
    %v2710 = vld [vmem:[%s7 + $0x7f8] sm:$0xff]
    %v2711 = vld [vmem:[%s8] sm:$0xf]
    %v2713 = vlaneseq
    %v2714 = vshrl.u32 %v2713, 7
    %v2715 = vsub.s32 0, %v2714
    %v2716 = vrot.slane %v2711, %v2715
    %v2717 = vlaneseq
    %v2718 = vshrl.u32 %v2717, 7
    %v2719 = vsub.s32 1, %v2718
    %v2720 = vrot.slane %v2711, %v2719
    %v2721 = vlaneseq
    %v2722 = vshrl.u32 %v2721, 7
    %v2723 = vsub.s32 2, %v2722
    %v2724 = vrot.slane %v2711, %v2723
    %v2725 = vlaneseq
    %v2726 = vshrl.u32 %v2725, 7
    %v2727 = vsub.s32 3, %v2726
    %v2728 = vrot.slane %v2711, %v2727
    %v2989 = vunpack.c.l.b16 %v2455
    %v2990 = vunpack.c.h.b16 %v2455
    %v2991 = vunpack.c.l.b16 %v2456
    %v2992 = vunpack.c.h.b16 %v2456
    %v2993 = vunpack.c.l.b16 %v2457
    %v2994 = vunpack.c.h.b16 %v2457
    %v2995 = vunpack.c.l.b16 %v2458
    %v2996 = vunpack.c.h.b16 %v2458
    %v2997 = vunpack.c.l.b16 %v2459
    %v2998 = vunpack.c.h.b16 %v2459
    %v2999 = vunpack.c.l.b16 %v2460
    %v3000 = vunpack.c.h.b16 %v2460
    %v3001 = vunpack.c.l.b16 %v2461
    %v3002 = vunpack.c.h.b16 %v2461
    %v3003 = vunpack.c.l.b16 %v2462
    %v3004 = vunpack.c.h.b16 %v2462
    %v3005 = vunpack.c.l.b16 %v2463
    %v3006 = vunpack.c.h.b16 %v2463
    %v3007 = vunpack.c.l.b16 %v2464
    %v3008 = vunpack.c.h.b16 %v2464
    %v3009 = vunpack.c.l.b16 %v2465
    %v3010 = vunpack.c.h.b16 %v2465
    %v3011 = vunpack.c.l.b16 %v2466
    %v3012 = vunpack.c.h.b16 %v2466
    %v3013 = vunpack.c.l.b16 %v2467
    %v3014 = vunpack.c.h.b16 %v2467
    %v3015 = vunpack.c.l.b16 %v2468
    %v3016 = vunpack.c.h.b16 %v2468
    %v3017 = vunpack.c.l.b16 %v2469
    %v3018 = vunpack.c.h.b16 %v2469
    %v3019 = vunpack.c.l.b16 %v2470
    %v3020 = vunpack.c.h.b16 %v2470
    %v3021 = vunpack.c.l.b16 %v2471
    %v3022 = vunpack.c.h.b16 %v2471
    %v3023 = vunpack.c.l.b16 %v2472
    %v3024 = vunpack.c.h.b16 %v2472
    %v3025 = vunpack.c.l.b16 %v2473
    %v3026 = vunpack.c.h.b16 %v2473
    %v3027 = vunpack.c.l.b16 %v2474
    %v3028 = vunpack.c.h.b16 %v2474
    %v3029 = vunpack.c.l.b16 %v2475
    %v3030 = vunpack.c.h.b16 %v2475
    %v3031 = vunpack.c.l.b16 %v2476
    %v3032 = vunpack.c.h.b16 %v2476
    %v3033 = vunpack.c.l.b16 %v2477
    %v3034 = vunpack.c.h.b16 %v2477
    %v3035 = vunpack.c.l.b16 %v2478
    %v3036 = vunpack.c.h.b16 %v2478
    %v3037 = vunpack.c.l.b16 %v2479
    %v3038 = vunpack.c.h.b16 %v2479
    %v3039 = vunpack.c.l.b16 %v2480
    %v3040 = vunpack.c.h.b16 %v2480
    %v3041 = vunpack.c.l.b16 %v2481
    %v3042 = vunpack.c.h.b16 %v2481
    %v3043 = vunpack.c.l.b16 %v2482
    %v3044 = vunpack.c.h.b16 %v2482
    %v3045 = vunpack.c.l.b16 %v2483
    %v3046 = vunpack.c.h.b16 %v2483
    %v3047 = vunpack.c.l.b16 %v2484
    %v3048 = vunpack.c.h.b16 %v2484
    %v3049 = vunpack.c.l.b16 %v2485
    %v3050 = vunpack.c.h.b16 %v2485
    %v3051 = vunpack.c.l.b16 %v2486
    %v3052 = vunpack.c.h.b16 %v2486
    %v3053 = vunpack.c.l.b16 %v2487
    %v3054 = vunpack.c.h.b16 %v2487
    %v3055 = vunpack.c.l.b16 %v2488
    %v3056 = vunpack.c.h.b16 %v2488
    %v3057 = vunpack.c.l.b16 %v2489
    %v3058 = vunpack.c.h.b16 %v2489
    %v3059 = vunpack.c.l.b16 %v2490
    %v3060 = vunpack.c.h.b16 %v2490
    %v3061 = vunpack.c.l.b16 %v2491
    %v3062 = vunpack.c.h.b16 %v2491
    %v3063 = vunpack.c.l.b16 %v2492
    %v3064 = vunpack.c.h.b16 %v2492
    %v3065 = vunpack.c.l.b16 %v2493
    %v3066 = vunpack.c.h.b16 %v2493
    %v3067 = vunpack.c.l.b16 %v2494
    %v3068 = vunpack.c.h.b16 %v2494
    %v3069 = vunpack.c.l.b16 %v2495
    %v3070 = vunpack.c.h.b16 %v2495
    %v3071 = vunpack.c.l.b16 %v2496
    %v3072 = vunpack.c.h.b16 %v2496
    %v3073 = vunpack.c.l.b16 %v2497
    %v3074 = vunpack.c.h.b16 %v2497
    %v3075 = vunpack.c.l.b16 %v2498
    %v3076 = vunpack.c.h.b16 %v2498
    %v3077 = vunpack.c.l.b16 %v2499
    %v3078 = vunpack.c.h.b16 %v2499
    %v3079 = vunpack.c.l.b16 %v2500
    %v3080 = vunpack.c.h.b16 %v2500
    %v3081 = vunpack.c.l.b16 %v2501
    %v3082 = vunpack.c.h.b16 %v2501
    %v3083 = vunpack.c.l.b16 %v2502
    %v3084 = vunpack.c.h.b16 %v2502
    %v3085 = vunpack.c.l.b16 %v2503
    %v3086 = vunpack.c.h.b16 %v2503
    %v3087 = vunpack.c.l.b16 %v2504
    %v3088 = vunpack.c.h.b16 %v2504
    %v3089 = vunpack.c.l.b16 %v2505
    %v3090 = vunpack.c.h.b16 %v2505
    %v3091 = vunpack.c.l.b16 %v2506
    %v3092 = vunpack.c.h.b16 %v2506
    %v3093 = vunpack.c.l.b16 %v2507
    %v3094 = vunpack.c.h.b16 %v2507
    %v3095 = vunpack.c.l.b16 %v2508
    %v3096 = vunpack.c.h.b16 %v2508
    %v3097 = vunpack.c.l.b16 %v2509
    %v3098 = vunpack.c.h.b16 %v2509
    %v3099 = vunpack.c.l.b16 %v2510
    %v3100 = vunpack.c.h.b16 %v2510
    %v3101 = vunpack.c.l.b16 %v2511
    %v3102 = vunpack.c.h.b16 %v2511
    %v3103 = vunpack.c.l.b16 %v2512
    %v3104 = vunpack.c.h.b16 %v2512
    %v3105 = vunpack.c.l.b16 %v2513
    %v3106 = vunpack.c.h.b16 %v2513
    %v3107 = vunpack.c.l.b16 %v2514
    %v3108 = vunpack.c.h.b16 %v2514
    %v3109 = vunpack.c.l.b16 %v2515
    %v3110 = vunpack.c.h.b16 %v2515
    %v3111 = vunpack.c.l.b16 %v2516
    %v3112 = vunpack.c.h.b16 %v2516
    %v3113 = vunpack.c.l.b16 %v2517
    %v3114 = vunpack.c.h.b16 %v2517
    %v3115 = vunpack.c.l.b16 %v2518
    %v3116 = vunpack.c.h.b16 %v2518
    %v3117 = vunpack.c.l.b16 %v2519
    %v3118 = vunpack.c.h.b16 %v2519
    %v3119 = vunpack.c.l.b16 %v2520
    %v3120 = vunpack.c.h.b16 %v2520
    %v3121 = vunpack.c.l.b16 %v2521
    %v3122 = vunpack.c.h.b16 %v2521
    %v3123 = vunpack.c.l.b16 %v2522
    %v3124 = vunpack.c.h.b16 %v2522
    %v3125 = vunpack.c.l.b16 %v2523
    %v3126 = vunpack.c.h.b16 %v2523
    %v3127 = vunpack.c.l.b16 %v2524
    %v3128 = vunpack.c.h.b16 %v2524
    %v3129 = vunpack.c.l.b16 %v2525
    %v3130 = vunpack.c.h.b16 %v2525
    %v3131 = vunpack.c.l.b16 %v2526
    %v3132 = vunpack.c.h.b16 %v2526
    %v3133 = vunpack.c.l.b16 %v2527
    %v3134 = vunpack.c.h.b16 %v2527
    %v3135 = vunpack.c.l.b16 %v2528
    %v3136 = vunpack.c.h.b16 %v2528
    %v3137 = vunpack.c.l.b16 %v2529
    %v3138 = vunpack.c.h.b16 %v2529
    %v3139 = vunpack.c.l.b16 %v2530
    %v3140 = vunpack.c.h.b16 %v2530
    %v3141 = vunpack.c.l.b16 %v2531
    %v3142 = vunpack.c.h.b16 %v2531
    %v3143 = vunpack.c.l.b16 %v2532
    %v3144 = vunpack.c.h.b16 %v2532
    %v3145 = vunpack.c.l.b16 %v2533
    %v3146 = vunpack.c.h.b16 %v2533
    %v3147 = vunpack.c.l.b16 %v2534
    %v3148 = vunpack.c.h.b16 %v2534
    %v3149 = vunpack.c.l.b16 %v2535
    %v3150 = vunpack.c.h.b16 %v2535
    %v3151 = vunpack.c.l.b16 %v2536
    %v3152 = vunpack.c.h.b16 %v2536
    %v3153 = vunpack.c.l.b16 %v2537
    %v3154 = vunpack.c.h.b16 %v2537
    %v3155 = vunpack.c.l.b16 %v2538
    %v3156 = vunpack.c.h.b16 %v2538
    %v3157 = vunpack.c.l.b16 %v2539
    %v3158 = vunpack.c.h.b16 %v2539
    %v3159 = vunpack.c.l.b16 %v2540
    %v3160 = vunpack.c.h.b16 %v2540
    %v3161 = vunpack.c.l.b16 %v2541
    %v3162 = vunpack.c.h.b16 %v2541
    %v3163 = vunpack.c.l.b16 %v2542
    %v3164 = vunpack.c.h.b16 %v2542
    %v3165 = vunpack.c.l.b16 %v2543
    %v3166 = vunpack.c.h.b16 %v2543
    %v3167 = vunpack.c.l.b16 %v2544
    %v3168 = vunpack.c.h.b16 %v2544
    %v3169 = vunpack.c.l.b16 %v2545
    %v3170 = vunpack.c.h.b16 %v2545
    %v3171 = vunpack.c.l.b16 %v2546
    %v3172 = vunpack.c.h.b16 %v2546
    %v3173 = vunpack.c.l.b16 %v2547
    %v3174 = vunpack.c.h.b16 %v2547
    %v3175 = vunpack.c.l.b16 %v2548
    %v3176 = vunpack.c.h.b16 %v2548
    %v3177 = vunpack.c.l.b16 %v2549
    %v3178 = vunpack.c.h.b16 %v2549
    %v3179 = vunpack.c.l.b16 %v2550
    %v3180 = vunpack.c.h.b16 %v2550
    %v3181 = vunpack.c.l.b16 %v2551
    %v3182 = vunpack.c.h.b16 %v2551
    %v3183 = vunpack.c.l.b16 %v2552
    %v3184 = vunpack.c.h.b16 %v2552
    %v3185 = vunpack.c.l.b16 %v2553
    %v3186 = vunpack.c.h.b16 %v2553
    %v3187 = vunpack.c.l.b16 %v2554
    %v3188 = vunpack.c.h.b16 %v2554
    %v3189 = vunpack.c.l.b16 %v2555
    %v3190 = vunpack.c.h.b16 %v2555
    %v3191 = vunpack.c.l.b16 %v2556
    %v3192 = vunpack.c.h.b16 %v2556
    %v3193 = vunpack.c.l.b16 %v2557
    %v3194 = vunpack.c.h.b16 %v2557
    %v3195 = vunpack.c.l.b16 %v2558
    %v3196 = vunpack.c.h.b16 %v2558
    %v3197 = vunpack.c.l.b16 %v2559
    %v3198 = vunpack.c.h.b16 %v2559
    %v3199 = vunpack.c.l.b16 %v2560
    %v3200 = vunpack.c.h.b16 %v2560
    %v3201 = vunpack.c.l.b16 %v2561
    %v3202 = vunpack.c.h.b16 %v2561
    %v3203 = vunpack.c.l.b16 %v2562
    %v3204 = vunpack.c.h.b16 %v2562
    %v3205 = vunpack.c.l.b16 %v2563
    %v3206 = vunpack.c.h.b16 %v2563
    %v3207 = vunpack.c.l.b16 %v2564
    %v3208 = vunpack.c.h.b16 %v2564
    %v3209 = vunpack.c.l.b16 %v2565
    %v3210 = vunpack.c.h.b16 %v2565
    %v3211 = vunpack.c.l.b16 %v2566
    %v3212 = vunpack.c.h.b16 %v2566
    %v3213 = vunpack.c.l.b16 %v2567
    %v3214 = vunpack.c.h.b16 %v2567
    %v3215 = vunpack.c.l.b16 %v2568
    %v3216 = vunpack.c.h.b16 %v2568
    %v3217 = vunpack.c.l.b16 %v2569
    %v3218 = vunpack.c.h.b16 %v2569
    %v3219 = vunpack.c.l.b16 %v2570
    %v3220 = vunpack.c.h.b16 %v2570
    %v3221 = vunpack.c.l.b16 %v2571
    %v3222 = vunpack.c.h.b16 %v2571
    %v3223 = vunpack.c.l.b16 %v2572
    %v3224 = vunpack.c.h.b16 %v2572
    %v3225 = vunpack.c.l.b16 %v2573
    %v3226 = vunpack.c.h.b16 %v2573
    %v3227 = vunpack.c.l.b16 %v2574
    %v3228 = vunpack.c.h.b16 %v2574
    %v3229 = vunpack.c.l.b16 %v2575
    %v3230 = vunpack.c.h.b16 %v2575
    %v3231 = vunpack.c.l.b16 %v2576
    %v3232 = vunpack.c.h.b16 %v2576
    %v3233 = vunpack.c.l.b16 %v2577
    %v3234 = vunpack.c.h.b16 %v2577
    %v3235 = vunpack.c.l.b16 %v2578
    %v3236 = vunpack.c.h.b16 %v2578
    %v3237 = vunpack.c.l.b16 %v2579
    %v3238 = vunpack.c.h.b16 %v2579
    %v3239 = vunpack.c.l.b16 %v2580
    %v3240 = vunpack.c.h.b16 %v2580
    %v3241 = vunpack.c.l.b16 %v2581
    %v3242 = vunpack.c.h.b16 %v2581
    %v3243 = vunpack.c.l.b16 %v2582
    %v3244 = vunpack.c.h.b16 %v2582
    %v3245 = vunpack.c.l.b16 %v2583
    %v3246 = vunpack.c.h.b16 %v2583
    %v3247 = vunpack.c.l.b16 %v2584
    %v3248 = vunpack.c.h.b16 %v2584
    %v3249 = vunpack.c.l.b16 %v2585
    %v3250 = vunpack.c.h.b16 %v2585
    %v3251 = vunpack.c.l.b16 %v2586
    %v3252 = vunpack.c.h.b16 %v2586
    %v3253 = vunpack.c.l.b16 %v2587
    %v3254 = vunpack.c.h.b16 %v2587
    %v3255 = vunpack.c.l.b16 %v2588
    %v3256 = vunpack.c.h.b16 %v2588
    %v3257 = vunpack.c.l.b16 %v2589
    %v3258 = vunpack.c.h.b16 %v2589
    %v3259 = vunpack.c.l.b16 %v2590
    %v3260 = vunpack.c.h.b16 %v2590
    %v3261 = vunpack.c.l.b16 %v2591
    %v3262 = vunpack.c.h.b16 %v2591
    %v3263 = vunpack.c.l.b16 %v2592
    %v3264 = vunpack.c.h.b16 %v2592
    %v3265 = vunpack.c.l.b16 %v2593
    %v3266 = vunpack.c.h.b16 %v2593
    %v3267 = vunpack.c.l.b16 %v2594
    %v3268 = vunpack.c.h.b16 %v2594
    %v3269 = vunpack.c.l.b16 %v2595
    %v3270 = vunpack.c.h.b16 %v2595
    %v3271 = vunpack.c.l.b16 %v2596
    %v3272 = vunpack.c.h.b16 %v2596
    %v3273 = vunpack.c.l.b16 %v2597
    %v3274 = vunpack.c.h.b16 %v2597
    %v3275 = vunpack.c.l.b16 %v2598
    %v3276 = vunpack.c.h.b16 %v2598
    %v3277 = vunpack.c.l.b16 %v2599
    %v3278 = vunpack.c.h.b16 %v2599
    %v3279 = vunpack.c.l.b16 %v2600
    %v3280 = vunpack.c.h.b16 %v2600
    %v3281 = vunpack.c.l.b16 %v2601
    %v3282 = vunpack.c.h.b16 %v2601
    %v3283 = vunpack.c.l.b16 %v2602
    %v3284 = vunpack.c.h.b16 %v2602
    %v3285 = vunpack.c.l.b16 %v2603
    %v3286 = vunpack.c.h.b16 %v2603
    %v3287 = vunpack.c.l.b16 %v2604
    %v3288 = vunpack.c.h.b16 %v2604
    %v3289 = vunpack.c.l.b16 %v2605
    %v3290 = vunpack.c.h.b16 %v2605
    %v3291 = vunpack.c.l.b16 %v2606
    %v3292 = vunpack.c.h.b16 %v2606
    %v3293 = vunpack.c.l.b16 %v2607
    %v3294 = vunpack.c.h.b16 %v2607
    %v3295 = vunpack.c.l.b16 %v2608
    %v3296 = vunpack.c.h.b16 %v2608
    %v3297 = vunpack.c.l.b16 %v2609
    %v3298 = vunpack.c.h.b16 %v2609
    %v3299 = vunpack.c.l.b16 %v2610
    %v3300 = vunpack.c.h.b16 %v2610
    %v3301 = vunpack.c.l.b16 %v2611
    %v3302 = vunpack.c.h.b16 %v2611
    %v3303 = vunpack.c.l.b16 %v2612
    %v3304 = vunpack.c.h.b16 %v2612
    %v3305 = vunpack.c.l.b16 %v2613
    %v3306 = vunpack.c.h.b16 %v2613
    %v3307 = vunpack.c.l.b16 %v2614
    %v3308 = vunpack.c.h.b16 %v2614
    %v3309 = vunpack.c.l.b16 %v2615
    %v3310 = vunpack.c.h.b16 %v2615
    %v3311 = vunpack.c.l.b16 %v2616
    %v3312 = vunpack.c.h.b16 %v2616
    %v3313 = vunpack.c.l.b16 %v2617
    %v3314 = vunpack.c.h.b16 %v2617
    %v3315 = vunpack.c.l.b16 %v2618
    %v3316 = vunpack.c.h.b16 %v2618
    %v3317 = vunpack.c.l.b16 %v2619
    %v3318 = vunpack.c.h.b16 %v2619
    %v3319 = vunpack.c.l.b16 %v2620
    %v3320 = vunpack.c.h.b16 %v2620
    %v3321 = vunpack.c.l.b16 %v2621
    %v3322 = vunpack.c.h.b16 %v2621
    %v3323 = vunpack.c.l.b16 %v2622
    %v3324 = vunpack.c.h.b16 %v2622
    %v3325 = vunpack.c.l.b16 %v2623
    %v3326 = vunpack.c.h.b16 %v2623
    %v3327 = vunpack.c.l.b16 %v2624
    %v3328 = vunpack.c.h.b16 %v2624
    %v3329 = vunpack.c.l.b16 %v2625
    %v3330 = vunpack.c.h.b16 %v2625
    %v3331 = vunpack.c.l.b16 %v2626
    %v3332 = vunpack.c.h.b16 %v2626
    %v3333 = vunpack.c.l.b16 %v2627
    %v3334 = vunpack.c.h.b16 %v2627
    %v3335 = vunpack.c.l.b16 %v2628
    %v3336 = vunpack.c.h.b16 %v2628
    %v3337 = vunpack.c.l.b16 %v2629
    %v3338 = vunpack.c.h.b16 %v2629
    %v3339 = vunpack.c.l.b16 %v2630
    %v3340 = vunpack.c.h.b16 %v2630
    %v3341 = vunpack.c.l.b16 %v2631
    %v3342 = vunpack.c.h.b16 %v2631
    %v3343 = vunpack.c.l.b16 %v2632
    %v3344 = vunpack.c.h.b16 %v2632
    %v3345 = vunpack.c.l.b16 %v2633
    %v3346 = vunpack.c.h.b16 %v2633
    %v3347 = vunpack.c.l.b16 %v2634
    %v3348 = vunpack.c.h.b16 %v2634
    %v3349 = vunpack.c.l.b16 %v2635
    %v3350 = vunpack.c.h.b16 %v2635
    %v3351 = vunpack.c.l.b16 %v2636
    %v3352 = vunpack.c.h.b16 %v2636
    %v3353 = vunpack.c.l.b16 %v2637
    %v3354 = vunpack.c.h.b16 %v2637
    %v3355 = vunpack.c.l.b16 %v2638
    %v3356 = vunpack.c.h.b16 %v2638
    %v3357 = vunpack.c.l.b16 %v2639
    %v3358 = vunpack.c.h.b16 %v2639
    %v3359 = vunpack.c.l.b16 %v2640
    %v3360 = vunpack.c.h.b16 %v2640
    %v3361 = vunpack.c.l.b16 %v2641
    %v3362 = vunpack.c.h.b16 %v2641
    %v3363 = vunpack.c.l.b16 %v2642
    %v3364 = vunpack.c.h.b16 %v2642
    %v3365 = vunpack.c.l.b16 %v2643
    %v3366 = vunpack.c.h.b16 %v2643
    %v3367 = vunpack.c.l.b16 %v2644
    %v3368 = vunpack.c.h.b16 %v2644
    %v3369 = vunpack.c.l.b16 %v2645
    %v3370 = vunpack.c.h.b16 %v2645
    %v3371 = vunpack.c.l.b16 %v2646
    %v3372 = vunpack.c.h.b16 %v2646
    %v3373 = vunpack.c.l.b16 %v2647
    %v3374 = vunpack.c.h.b16 %v2647
    %v3375 = vunpack.c.l.b16 %v2648
    %v3376 = vunpack.c.h.b16 %v2648
    %v3377 = vunpack.c.l.b16 %v2649
    %v3378 = vunpack.c.h.b16 %v2649
    %v3379 = vunpack.c.l.b16 %v2650
    %v3380 = vunpack.c.h.b16 %v2650
    %v3381 = vunpack.c.l.b16 %v2651
    %v3382 = vunpack.c.h.b16 %v2651
    %v3383 = vunpack.c.l.b16 %v2652
    %v3384 = vunpack.c.h.b16 %v2652
    %v3385 = vunpack.c.l.b16 %v2653
    %v3386 = vunpack.c.h.b16 %v2653
    %v3387 = vunpack.c.l.b16 %v2654
    %v3388 = vunpack.c.h.b16 %v2654
    %v3389 = vunpack.c.l.b16 %v2655
    %v3390 = vunpack.c.h.b16 %v2655
    %v3391 = vunpack.c.l.b16 %v2656
    %v3392 = vunpack.c.h.b16 %v2656
    %v3393 = vunpack.c.l.b16 %v2657
    %v3394 = vunpack.c.h.b16 %v2657
    %v3395 = vunpack.c.l.b16 %v2658
    %v3396 = vunpack.c.h.b16 %v2658
    %v3397 = vunpack.c.l.b16 %v2659
    %v3398 = vunpack.c.h.b16 %v2659
    %v3399 = vunpack.c.l.b16 %v2660
    %v3400 = vunpack.c.h.b16 %v2660
    %v3401 = vunpack.c.l.b16 %v2661
    %v3402 = vunpack.c.h.b16 %v2661
    %v3403 = vunpack.c.l.b16 %v2662
    %v3404 = vunpack.c.h.b16 %v2662
    %v3405 = vunpack.c.l.b16 %v2663
    %v3406 = vunpack.c.h.b16 %v2663
    %v3407 = vunpack.c.l.b16 %v2664
    %v3408 = vunpack.c.h.b16 %v2664
    %v3409 = vunpack.c.l.b16 %v2665
    %v3410 = vunpack.c.h.b16 %v2665
    %v3411 = vunpack.c.l.b16 %v2666
    %v3412 = vunpack.c.h.b16 %v2666
    %v3413 = vunpack.c.l.b16 %v2667
    %v3414 = vunpack.c.h.b16 %v2667
    %v3415 = vunpack.c.l.b16 %v2668
    %v3416 = vunpack.c.h.b16 %v2668
    %v3417 = vunpack.c.l.b16 %v2669
    %v3418 = vunpack.c.h.b16 %v2669
    %v3419 = vunpack.c.l.b16 %v2670
    %v3420 = vunpack.c.h.b16 %v2670
    %v3421 = vunpack.c.l.b16 %v2671
    %v3422 = vunpack.c.h.b16 %v2671
    %v3423 = vunpack.c.l.b16 %v2672
    %v3424 = vunpack.c.h.b16 %v2672
    %v3425 = vunpack.c.l.b16 %v2673
    %v3426 = vunpack.c.h.b16 %v2673
    %v3427 = vunpack.c.l.b16 %v2674
    %v3428 = vunpack.c.h.b16 %v2674
    %v3429 = vunpack.c.l.b16 %v2675
    %v3430 = vunpack.c.h.b16 %v2675
    %v3431 = vunpack.c.l.b16 %v2676
    %v3432 = vunpack.c.h.b16 %v2676
    %v3433 = vunpack.c.l.b16 %v2677
    %v3434 = vunpack.c.h.b16 %v2677
    %v3435 = vunpack.c.l.b16 %v2678
    %v3436 = vunpack.c.h.b16 %v2678
    %v3437 = vunpack.c.l.b16 %v2679
    %v3438 = vunpack.c.h.b16 %v2679
    %v3439 = vunpack.c.l.b16 %v2680
    %v3440 = vunpack.c.h.b16 %v2680
    %v3441 = vunpack.c.l.b16 %v2681
    %v3442 = vunpack.c.h.b16 %v2681
    %v3443 = vunpack.c.l.b16 %v2682
    %v3444 = vunpack.c.h.b16 %v2682
    %v3445 = vunpack.c.l.b16 %v2683
    %v3446 = vunpack.c.h.b16 %v2683
    %v3447 = vunpack.c.l.b16 %v2684
    %v3448 = vunpack.c.h.b16 %v2684
    %v3449 = vunpack.c.l.b16 %v2685
    %v3450 = vunpack.c.h.b16 %v2685
    %v3451 = vunpack.c.l.b16 %v2686
    %v3452 = vunpack.c.h.b16 %v2686
    %v3453 = vunpack.c.l.b16 %v2687
    %v3454 = vunpack.c.h.b16 %v2687
    %v3455 = vunpack.c.l.b16 %v2688
    %v3456 = vunpack.c.h.b16 %v2688
    %v3457 = vunpack.c.l.b16 %v2689
    %v3458 = vunpack.c.h.b16 %v2689
    %v3459 = vunpack.c.l.b16 %v2690
    %v3460 = vunpack.c.h.b16 %v2690
    %v3461 = vunpack.c.l.b16 %v2691
    %v3462 = vunpack.c.h.b16 %v2691
    %v3463 = vunpack.c.l.b16 %v2692
    %v3464 = vunpack.c.h.b16 %v2692
    %v3465 = vunpack.c.l.b16 %v2693
    %v3466 = vunpack.c.h.b16 %v2693
    %v3467 = vunpack.c.l.b16 %v2694
    %v3468 = vunpack.c.h.b16 %v2694
    %v3469 = vunpack.c.l.b16 %v2695
    %v3470 = vunpack.c.h.b16 %v2695
    %v3471 = vunpack.c.l.b16 %v2696
    %v3472 = vunpack.c.h.b16 %v2696
    %v3473 = vunpack.c.l.b16 %v2697
    %v3474 = vunpack.c.h.b16 %v2697
    %v3475 = vunpack.c.l.b16 %v2698
    %v3476 = vunpack.c.h.b16 %v2698
    %v3477 = vunpack.c.l.b16 %v2699
    %v3478 = vunpack.c.h.b16 %v2699
    %v3479 = vunpack.c.l.b16 %v2700
    %v3480 = vunpack.c.h.b16 %v2700
    %v3481 = vunpack.c.l.b16 %v2701
    %v3482 = vunpack.c.h.b16 %v2701
    %v3483 = vunpack.c.l.b16 %v2702
    %v3484 = vunpack.c.h.b16 %v2702
    %v3485 = vunpack.c.l.b16 %v2703
    %v3486 = vunpack.c.h.b16 %v2703
    %v3487 = vunpack.c.l.b16 %v2704
    %v3488 = vunpack.c.h.b16 %v2704
    %v3489 = vunpack.c.l.b16 %v2705
    %v3490 = vunpack.c.h.b16 %v2705
    %v3491 = vunpack.c.l.b16 %v2706
    %v3492 = vunpack.c.h.b16 %v2706
    %v3493 = vunpack.c.l.b16 %v2707
    %v3494 = vunpack.c.h.b16 %v2707
    %v3495 = vunpack.c.l.b16 %v2708
    %v3496 = vunpack.c.h.b16 %v2708
    %v3497 = vunpack.c.l.b16 %v2709
    %v3498 = vunpack.c.h.b16 %v2709
    %v3499 = vunpack.c.l.b16 %v2710
    %v3500 = vunpack.c.h.b16 %v2710
    %v3501 = vpack.c.b16 %v2993, %v2989
    %v3502 = vpack.c.b16 %v2994, %v2990
    %v3503 = vpack.c.b16 %v2995, %v2991
    %v3504 = vpack.c.b16 %v2996, %v2992
    %v3505 = vpack.c.b16 %v3001, %v2997
    %v3506 = vpack.c.b16 %v3002, %v2998
    %v3507 = vpack.c.b16 %v3003, %v2999
    %v3508 = vpack.c.b16 %v3004, %v3000
    %v3509 = vpack.c.b16 %v3009, %v3005
    %v3510 = vpack.c.b16 %v3010, %v3006
    %v3511 = vpack.c.b16 %v3011, %v3007
    %v3512 = vpack.c.b16 %v3012, %v3008
    %v3513 = vpack.c.b16 %v3017, %v3013
    %v3514 = vpack.c.b16 %v3018, %v3014
    %v3515 = vpack.c.b16 %v3019, %v3015
    %v3516 = vpack.c.b16 %v3020, %v3016
    %v3517 = vpack.c.b16 %v3025, %v3021
    %v3518 = vpack.c.b16 %v3026, %v3022
    %v3519 = vpack.c.b16 %v3027, %v3023
    %v3520 = vpack.c.b16 %v3028, %v3024
    %v3521 = vpack.c.b16 %v3033, %v3029
    %v3522 = vpack.c.b16 %v3034, %v3030
    %v3523 = vpack.c.b16 %v3035, %v3031
    %v3524 = vpack.c.b16 %v3036, %v3032
    %v3525 = vpack.c.b16 %v3041, %v3037
    %v3526 = vpack.c.b16 %v3042, %v3038
    %v3527 = vpack.c.b16 %v3043, %v3039
    %v3528 = vpack.c.b16 %v3044, %v3040
    %v3529 = vpack.c.b16 %v3049, %v3045
    %v3530 = vpack.c.b16 %v3050, %v3046
    %v3531 = vpack.c.b16 %v3051, %v3047
    %v3532 = vpack.c.b16 %v3052, %v3048
    %v3533 = vpack.c.b16 %v3057, %v3053
    %v3534 = vpack.c.b16 %v3058, %v3054
    %v3535 = vpack.c.b16 %v3059, %v3055
    %v3536 = vpack.c.b16 %v3060, %v3056
    %v3537 = vpack.c.b16 %v3065, %v3061
    %v3538 = vpack.c.b16 %v3066, %v3062
    %v3539 = vpack.c.b16 %v3067, %v3063
    %v3540 = vpack.c.b16 %v3068, %v3064
    %v3541 = vpack.c.b16 %v3073, %v3069
    %v3542 = vpack.c.b16 %v3074, %v3070
    %v3543 = vpack.c.b16 %v3075, %v3071
    %v3544 = vpack.c.b16 %v3076, %v3072
    %v3545 = vpack.c.b16 %v3081, %v3077
    %v3546 = vpack.c.b16 %v3082, %v3078
    %v3547 = vpack.c.b16 %v3083, %v3079
    %v3548 = vpack.c.b16 %v3084, %v3080
    %v3549 = vpack.c.b16 %v3089, %v3085
    %v3550 = vpack.c.b16 %v3090, %v3086
    %v3551 = vpack.c.b16 %v3091, %v3087
    %v3552 = vpack.c.b16 %v3092, %v3088
    %v3553 = vpack.c.b16 %v3097, %v3093
    %v3554 = vpack.c.b16 %v3098, %v3094
    %v3555 = vpack.c.b16 %v3099, %v3095
    %v3556 = vpack.c.b16 %v3100, %v3096
    %v3557 = vpack.c.b16 %v3105, %v3101
    %v3558 = vpack.c.b16 %v3106, %v3102
    %v3559 = vpack.c.b16 %v3107, %v3103
    %v3560 = vpack.c.b16 %v3108, %v3104
    %v3561 = vpack.c.b16 %v3113, %v3109
    %v3562 = vpack.c.b16 %v3114, %v3110
    %v3563 = vpack.c.b16 %v3115, %v3111
    %v3564 = vpack.c.b16 %v3116, %v3112
    %v3565 = vpack.c.b16 %v3121, %v3117
    %v3566 = vpack.c.b16 %v3122, %v3118
    %v3567 = vpack.c.b16 %v3123, %v3119
    %v3568 = vpack.c.b16 %v3124, %v3120
    %v3569 = vpack.c.b16 %v3129, %v3125
    %v3570 = vpack.c.b16 %v3130, %v3126
    %v3571 = vpack.c.b16 %v3131, %v3127
    %v3572 = vpack.c.b16 %v3132, %v3128
    %v3573 = vpack.c.b16 %v3137, %v3133
    %v3574 = vpack.c.b16 %v3138, %v3134
    %v3575 = vpack.c.b16 %v3139, %v3135
    %v3576 = vpack.c.b16 %v3140, %v3136
    %v3577 = vpack.c.b16 %v3145, %v3141
    %v3578 = vpack.c.b16 %v3146, %v3142
    %v3579 = vpack.c.b16 %v3147, %v3143
    %v3580 = vpack.c.b16 %v3148, %v3144
    %v3581 = vpack.c.b16 %v3153, %v3149
    %v3582 = vpack.c.b16 %v3154, %v3150
    %v3583 = vpack.c.b16 %v3155, %v3151
    %v3584 = vpack.c.b16 %v3156, %v3152
    %v3585 = vpack.c.b16 %v3161, %v3157
    %v3586 = vpack.c.b16 %v3162, %v3158
    %v3587 = vpack.c.b16 %v3163, %v3159
    %v3588 = vpack.c.b16 %v3164, %v3160
    %v3589 = vpack.c.b16 %v3169, %v3165
    %v3590 = vpack.c.b16 %v3170, %v3166
    %v3591 = vpack.c.b16 %v3171, %v3167
    %v3592 = vpack.c.b16 %v3172, %v3168
    %v3593 = vpack.c.b16 %v3177, %v3173
    %v3594 = vpack.c.b16 %v3178, %v3174
    %v3595 = vpack.c.b16 %v3179, %v3175
    %v3596 = vpack.c.b16 %v3180, %v3176
    %v3597 = vpack.c.b16 %v3185, %v3181
    %v3598 = vpack.c.b16 %v3186, %v3182
    %v3599 = vpack.c.b16 %v3187, %v3183
    %v3600 = vpack.c.b16 %v3188, %v3184
    %v3601 = vpack.c.b16 %v3193, %v3189
    %v3602 = vpack.c.b16 %v3194, %v3190
    %v3603 = vpack.c.b16 %v3195, %v3191
    %v3604 = vpack.c.b16 %v3196, %v3192
    %v3605 = vpack.c.b16 %v3201, %v3197
    %v3606 = vpack.c.b16 %v3202, %v3198
    %v3607 = vpack.c.b16 %v3203, %v3199
    %v3608 = vpack.c.b16 %v3204, %v3200
    %v3609 = vpack.c.b16 %v3209, %v3205
    %v3610 = vpack.c.b16 %v3210, %v3206
    %v3611 = vpack.c.b16 %v3211, %v3207
    %v3612 = vpack.c.b16 %v3212, %v3208
    %v3613 = vpack.c.b16 %v3217, %v3213
    %v3614 = vpack.c.b16 %v3218, %v3214
    %v3615 = vpack.c.b16 %v3219, %v3215
    %v3616 = vpack.c.b16 %v3220, %v3216
    %v3617 = vpack.c.b16 %v3225, %v3221
    %v3618 = vpack.c.b16 %v3226, %v3222
    %v3619 = vpack.c.b16 %v3227, %v3223
    %v3620 = vpack.c.b16 %v3228, %v3224
    %v3621 = vpack.c.b16 %v3233, %v3229
    %v3622 = vpack.c.b16 %v3234, %v3230
    %v3623 = vpack.c.b16 %v3235, %v3231
    %v3624 = vpack.c.b16 %v3236, %v3232
    %v3625 = vpack.c.b16 %v3241, %v3237
    %v3626 = vpack.c.b16 %v3242, %v3238
    %v3627 = vpack.c.b16 %v3243, %v3239
    %v3628 = vpack.c.b16 %v3244, %v3240
    %v3629 = vpack.c.b16 %v3249, %v3245
    %v3630 = vpack.c.b16 %v3250, %v3246
    %v3631 = vpack.c.b16 %v3251, %v3247
    %v3632 = vpack.c.b16 %v3252, %v3248
    %v3633 = vpack.c.b16 %v3257, %v3253
    %v3634 = vpack.c.b16 %v3258, %v3254
    %v3635 = vpack.c.b16 %v3259, %v3255
    %v3636 = vpack.c.b16 %v3260, %v3256
    %v3637 = vpack.c.b16 %v3265, %v3261
    %v3638 = vpack.c.b16 %v3266, %v3262
    %v3639 = vpack.c.b16 %v3267, %v3263
    %v3640 = vpack.c.b16 %v3268, %v3264
    %v3641 = vpack.c.b16 %v3273, %v3269
    %v3642 = vpack.c.b16 %v3274, %v3270
    %v3643 = vpack.c.b16 %v3275, %v3271
    %v3644 = vpack.c.b16 %v3276, %v3272
    %v3645 = vpack.c.b16 %v3281, %v3277
    %v3646 = vpack.c.b16 %v3282, %v3278
    %v3647 = vpack.c.b16 %v3283, %v3279
    %v3648 = vpack.c.b16 %v3284, %v3280
    %v3649 = vpack.c.b16 %v3289, %v3285
    %v3650 = vpack.c.b16 %v3290, %v3286
    %v3651 = vpack.c.b16 %v3291, %v3287
    %v3652 = vpack.c.b16 %v3292, %v3288
    %v3653 = vpack.c.b16 %v3297, %v3293
    %v3654 = vpack.c.b16 %v3298, %v3294
    %v3655 = vpack.c.b16 %v3299, %v3295
    %v3656 = vpack.c.b16 %v3300, %v3296
    %v3657 = vpack.c.b16 %v3305, %v3301
    %v3658 = vpack.c.b16 %v3306, %v3302
    %v3659 = vpack.c.b16 %v3307, %v3303
    %v3660 = vpack.c.b16 %v3308, %v3304
    %v3661 = vpack.c.b16 %v3313, %v3309
    %v3662 = vpack.c.b16 %v3314, %v3310
    %v3663 = vpack.c.b16 %v3315, %v3311
    %v3664 = vpack.c.b16 %v3316, %v3312
    %v3665 = vpack.c.b16 %v3321, %v3317
    %v3666 = vpack.c.b16 %v3322, %v3318
    %v3667 = vpack.c.b16 %v3323, %v3319
    %v3668 = vpack.c.b16 %v3324, %v3320
    %v3669 = vpack.c.b16 %v3329, %v3325
    %v3670 = vpack.c.b16 %v3330, %v3326
    %v3671 = vpack.c.b16 %v3331, %v3327
    %v3672 = vpack.c.b16 %v3332, %v3328
    %v3673 = vpack.c.b16 %v3337, %v3333
    %v3674 = vpack.c.b16 %v3338, %v3334
    %v3675 = vpack.c.b16 %v3339, %v3335
    %v3676 = vpack.c.b16 %v3340, %v3336
    %v3677 = vpack.c.b16 %v3345, %v3341
    %v3678 = vpack.c.b16 %v3346, %v3342
    %v3679 = vpack.c.b16 %v3347, %v3343
    %v3680 = vpack.c.b16 %v3348, %v3344
    %v3681 = vpack.c.b16 %v3353, %v3349
    %v3682 = vpack.c.b16 %v3354, %v3350
    %v3683 = vpack.c.b16 %v3355, %v3351
    %v3684 = vpack.c.b16 %v3356, %v3352
    %v3685 = vpack.c.b16 %v3361, %v3357
    %v3686 = vpack.c.b16 %v3362, %v3358
    %v3687 = vpack.c.b16 %v3363, %v3359
    %v3688 = vpack.c.b16 %v3364, %v3360
    %v3689 = vpack.c.b16 %v3369, %v3365
    %v3690 = vpack.c.b16 %v3370, %v3366
    %v3691 = vpack.c.b16 %v3371, %v3367
    %v3692 = vpack.c.b16 %v3372, %v3368
    %v3693 = vpack.c.b16 %v3377, %v3373
    %v3694 = vpack.c.b16 %v3378, %v3374
    %v3695 = vpack.c.b16 %v3379, %v3375
    %v3696 = vpack.c.b16 %v3380, %v3376
    %v3697 = vpack.c.b16 %v3385, %v3381
    %v3698 = vpack.c.b16 %v3386, %v3382
    %v3699 = vpack.c.b16 %v3387, %v3383
    %v3700 = vpack.c.b16 %v3388, %v3384
    %v3701 = vpack.c.b16 %v3393, %v3389
    %v3702 = vpack.c.b16 %v3394, %v3390
    %v3703 = vpack.c.b16 %v3395, %v3391
    %v3704 = vpack.c.b16 %v3396, %v3392
    %v3705 = vpack.c.b16 %v3401, %v3397
    %v3706 = vpack.c.b16 %v3402, %v3398
    %v3707 = vpack.c.b16 %v3403, %v3399
    %v3708 = vpack.c.b16 %v3404, %v3400
    %v3709 = vpack.c.b16 %v3409, %v3405
    %v3710 = vpack.c.b16 %v3410, %v3406
    %v3711 = vpack.c.b16 %v3411, %v3407
    %v3712 = vpack.c.b16 %v3412, %v3408
    %v3713 = vpack.c.b16 %v3417, %v3413
    %v3714 = vpack.c.b16 %v3418, %v3414
    %v3715 = vpack.c.b16 %v3419, %v3415
    %v3716 = vpack.c.b16 %v3420, %v3416
    %v3717 = vpack.c.b16 %v3425, %v3421
    %v3718 = vpack.c.b16 %v3426, %v3422
    %v3719 = vpack.c.b16 %v3427, %v3423
    %v3720 = vpack.c.b16 %v3428, %v3424
    %v3721 = vpack.c.b16 %v3433, %v3429
    %v3722 = vpack.c.b16 %v3434, %v3430
    %v3723 = vpack.c.b16 %v3435, %v3431
    %v3724 = vpack.c.b16 %v3436, %v3432
    %v3725 = vpack.c.b16 %v3441, %v3437
    %v3726 = vpack.c.b16 %v3442, %v3438
    %v3727 = vpack.c.b16 %v3443, %v3439
    %v3728 = vpack.c.b16 %v3444, %v3440
    %v3729 = vpack.c.b16 %v3449, %v3445
    %v3730 = vpack.c.b16 %v3450, %v3446
    %v3731 = vpack.c.b16 %v3451, %v3447
    %v3732 = vpack.c.b16 %v3452, %v3448
    %v3733 = vpack.c.b16 %v3457, %v3453
    %v3734 = vpack.c.b16 %v3458, %v3454
    %v3735 = vpack.c.b16 %v3459, %v3455
    %v3736 = vpack.c.b16 %v3460, %v3456
    %v3737 = vpack.c.b16 %v3465, %v3461
    %v3738 = vpack.c.b16 %v3466, %v3462
    %v3739 = vpack.c.b16 %v3467, %v3463
    %v3740 = vpack.c.b16 %v3468, %v3464
    %v3741 = vpack.c.b16 %v3473, %v3469
    %v3742 = vpack.c.b16 %v3474, %v3470
    %v3743 = vpack.c.b16 %v3475, %v3471
    %v3744 = vpack.c.b16 %v3476, %v3472
    %v3745 = vpack.c.b16 %v3481, %v3477
    %v3746 = vpack.c.b16 %v3482, %v3478
    %v3747 = vpack.c.b16 %v3483, %v3479
    %v3748 = vpack.c.b16 %v3484, %v3480
    %v3749 = vpack.c.b16 %v3489, %v3485
    %v3750 = vpack.c.b16 %v3490, %v3486
    %v3751 = vpack.c.b16 %v3491, %v3487
    %v3752 = vpack.c.b16 %v3492, %v3488
    %v3753 = vpack.c.b16 %v3497, %v3493
    %v3754 = vpack.c.b16 %v3498, %v3494
    %v3755 = vpack.c.b16 %v3499, %v3495
    %v3756 = vpack.c.b16 %v3500, %v3496
    %4013 = vmatprep.subr.bf16.mxu0 %v3502
    %4014 = vmatpush1.bf16.msra.mxu0 %v3501
    %4015 = vmatprep.subr.bf16.mxu0 %v3506
    %4016 = vmatpush1.bf16.msra.mxu0 %v3505
    %4017 = vmatprep.subr.bf16.mxu0 %v3510
    %4018 = vmatpush1.bf16.msra.mxu0 %v3509
    %4019 = vmatprep.subr.bf16.mxu0 %v3514
    %4020 = vmatpush1.bf16.msra.mxu0 %v3513
    %4021 = vmatprep.subr.bf16.mxu0 %v3518
    %4022 = vmatpush1.bf16.msra.mxu0 %v3517
    %4023 = vmatprep.subr.bf16.mxu0 %v3522
    %4024 = vmatpush1.bf16.msra.mxu0 %v3521
    %4025 = vmatprep.subr.bf16.mxu0 %v3526
    %4026 = vmatpush1.bf16.msra.mxu0 %v3525
    %4027 = vmatprep.subr.bf16.mxu0 %v3530
    %4028 = vmatpush1.bf16.msra.mxu0 %v3529
    %4029 = vmatprep.subr.bf16.mxu0 %v3534
    %4030 = vmatpush1.bf16.msra.mxu0 %v3533
    %4031 = vmatprep.subr.bf16.mxu0 %v3538
    %4032 = vmatpush1.bf16.msra.mxu0 %v3537
    %4033 = vmatprep.subr.bf16.mxu0 %v3542
    %4034 = vmatpush1.bf16.msra.mxu0 %v3541
    %4035 = vmatprep.subr.bf16.mxu0 %v3546
    %4036 = vmatpush1.bf16.msra.mxu0 %v3545
    %4037 = vmatprep.subr.bf16.mxu0 %v3550
    %4038 = vmatpush1.bf16.msra.mxu0 %v3549
    %4039 = vmatprep.subr.bf16.mxu0 %v3554
    %4040 = vmatpush1.bf16.msra.mxu0 %v3553
    %4041 = vmatprep.subr.bf16.mxu0 %v3558
    %4042 = vmatpush1.bf16.msra.mxu0 %v3557
    %4043 = vmatprep.subr.bf16.mxu0 %v3562
    %4044 = vmatpush1.bf16.msra.mxu0 %v3561
    %4045 = vmatprep.mubr.bf16.mxu0 %v96
    %4046 = vmatmul.mubr.bf16.gmra.mrb[0].mxu0 %v95
    %v4047 = vpop.f32.mrb[0].mxu0
    %v4048 = vadd.f32 %v2716, %v4047
    %v4049 = vpop.f32.mrb[0].mxu0
    %v4050 = vadd.f32 %v2720, %v4049
    %v4051 = vpop.f32.mrb[0].mxu0
    %v4052 = vpop.f32.mrb[0].mxu0
    %4053 = vdwg.mxu0
    %4054 = vmatprep.subr.bf16.mxu0 %v3566
    %4055 = vmatpush1.bf16.msra.mxu0 %v3565
    %4056 = vmatprep.subr.bf16.mxu0 %v3570
    %4057 = vmatpush1.bf16.msra.mxu0 %v3569
    %4058 = vmatprep.subr.bf16.mxu0 %v3574
    %4059 = vmatpush1.bf16.msra.mxu0 %v3573
    %4060 = vmatprep.subr.bf16.mxu0 %v3578
    %4061 = vmatpush1.bf16.msra.mxu0 %v3577
    %4062 = vmatprep.subr.bf16.mxu0 %v3582
    %4063 = vmatpush1.bf16.msra.mxu0 %v3581
    %4064 = vmatprep.subr.bf16.mxu0 %v3586
    %4065 = vmatpush1.bf16.msra.mxu0 %v3585
    %4066 = vmatprep.subr.bf16.mxu0 %v3590
    %4067 = vmatpush1.bf16.msra.mxu0 %v3589
    %4068 = vmatprep.subr.bf16.mxu0 %v3594
    %4069 = vmatpush1.bf16.msra.mxu0 %v3593
    %4070 = vmatprep.subr.bf16.mxu0 %v3598
    %4071 = vmatpush1.bf16.msra.mxu0 %v3597
    %4072 = vmatprep.subr.bf16.mxu0 %v3602
    %4073 = vmatpush1.bf16.msra.mxu0 %v3601
    %4074 = vmatprep.subr.bf16.mxu0 %v3606
    %4075 = vmatpush1.bf16.msra.mxu0 %v3605
    %4076 = vmatprep.subr.bf16.mxu0 %v3610
    %4077 = vmatpush1.bf16.msra.mxu0 %v3609
    %4078 = vmatprep.subr.bf16.mxu0 %v3614
    %4079 = vmatpush1.bf16.msra.mxu0 %v3613
    %4080 = vmatprep.subr.bf16.mxu0 %v3618
    %4081 = vmatpush1.bf16.msra.mxu0 %v3617
    %4082 = vmatprep.subr.bf16.mxu0 %v3622
    %4083 = vmatpush1.bf16.msra.mxu0 %v3621
    %4084 = vmatprep.subr.bf16.mxu0 %v3626
    %4085 = vmatpush1.bf16.msra.mxu0 %v3625
    %4086 = vmatprep.mubr.bf16.mxu0 %v98
    %4087 = vmatmul.mubr.bf16.gmra.mrb[0].mxu0 %v97
    %v4088 = vpop.f32.mrb[0].mxu0
    %v4089 = vadd.f32 %v4048, %v4088
    %v4090 = vpop.f32.mrb[0].mxu0
    %v4091 = vadd.f32 %v4050, %v4090
    %v4092 = vpop.f32.mrb[0].mxu0
    %v4093 = vpop.f32.mrb[0].mxu0
    %4094 = vdwg.mxu0
    %4095 = vmatprep.subr.bf16.mxu0 %v3630
    %4096 = vmatpush1.bf16.msra.mxu0 %v3629
    %4097 = vmatprep.subr.bf16.mxu0 %v3634
    %4098 = vmatpush1.bf16.msra.mxu0 %v3633
    %4099 = vmatprep.subr.bf16.mxu0 %v3638
    %4100 = vmatpush1.bf16.msra.mxu0 %v3637
    %4101 = vmatprep.subr.bf16.mxu0 %v3642
    %4102 = vmatpush1.bf16.msra.mxu0 %v3641
    %4103 = vmatprep.subr.bf16.mxu0 %v3646
    %4104 = vmatpush1.bf16.msra.mxu0 %v3645
    %4105 = vmatprep.subr.bf16.mxu0 %v3650
    %4106 = vmatpush1.bf16.msra.mxu0 %v3649
    %4107 = vmatprep.subr.bf16.mxu0 %v3654
    %4108 = vmatpush1.bf16.msra.mxu0 %v3653
    %4109 = vmatprep.subr.bf16.mxu0 %v3658
    %4110 = vmatpush1.bf16.msra.mxu0 %v3657
    %4111 = vmatprep.subr.bf16.mxu0 %v3662
    %4112 = vmatpush1.bf16.msra.mxu0 %v3661
    %4113 = vmatprep.subr.bf16.mxu0 %v3666
    %4114 = vmatpush1.bf16.msra.mxu0 %v3665
    %4115 = vmatprep.subr.bf16.mxu0 %v3670
    %4116 = vmatpush1.bf16.msra.mxu0 %v3669
    %4117 = vmatprep.subr.bf16.mxu0 %v3674
    %4118 = vmatpush1.bf16.msra.mxu0 %v3673
    %4119 = vmatprep.subr.bf16.mxu0 %v3678
    %4120 = vmatpush1.bf16.msra.mxu0 %v3677
    %4121 = vmatprep.subr.bf16.mxu0 %v3682
    %4122 = vmatpush1.bf16.msra.mxu0 %v3681
    %4123 = vmatprep.subr.bf16.mxu0 %v3686
    %4124 = vmatpush1.bf16.msra.mxu0 %v3685
    %4125 = vmatprep.subr.bf16.mxu0 %v3690
    %4126 = vmatpush1.bf16.msra.mxu0 %v3689
    %4127 = vmatprep.mubr.bf16.mxu0 %v100
    %4128 = vmatmul.mubr.bf16.gmra.mrb[0].mxu0 %v99
    %v4129 = vpop.f32.mrb[0].mxu0
    %v4130 = vadd.f32 %v4089, %v4129
    %v4131 = vpop.f32.mrb[0].mxu0
    %v4132 = vadd.f32 %v4091, %v4131
    %v4133 = vpop.f32.mrb[0].mxu0
    %v4134 = vpop.f32.mrb[0].mxu0
    %4135 = vdwg.mxu0
    %4136 = vmatprep.subr.bf16.mxu0 %v3694
    %4137 = vmatpush1.bf16.msra.mxu0 %v3693
    %4138 = vmatprep.subr.bf16.mxu0 %v3698
    %4139 = vmatpush1.bf16.msra.mxu0 %v3697
    %4140 = vmatprep.subr.bf16.mxu0 %v3702
    %4141 = vmatpush1.bf16.msra.mxu0 %v3701
    %4142 = vmatprep.subr.bf16.mxu0 %v3706
    %4143 = vmatpush1.bf16.msra.mxu0 %v3705
    %4144 = vmatprep.subr.bf16.mxu0 %v3710
    %4145 = vmatpush1.bf16.msra.mxu0 %v3709
    %4146 = vmatprep.subr.bf16.mxu0 %v3714
    %4147 = vmatpush1.bf16.msra.mxu0 %v3713
    %4148 = vmatprep.subr.bf16.mxu0 %v3718
    %4149 = vmatpush1.bf16.msra.mxu0 %v3717
    %4150 = vmatprep.subr.bf16.mxu0 %v3722
    %4151 = vmatpush1.bf16.msra.mxu0 %v3721
    %4152 = vmatprep.subr.bf16.mxu0 %v3726
    %4153 = vmatpush1.bf16.msra.mxu0 %v3725
    %4154 = vmatprep.subr.bf16.mxu0 %v3730
    %4155 = vmatpush1.bf16.msra.mxu0 %v3729
    %4156 = vmatprep.subr.bf16.mxu0 %v3734
    %4157 = vmatpush1.bf16.msra.mxu0 %v3733
    %4158 = vmatprep.subr.bf16.mxu0 %v3738
    %4159 = vmatpush1.bf16.msra.mxu0 %v3737
    %4160 = vmatprep.subr.bf16.mxu0 %v3742
    %4161 = vmatpush1.bf16.msra.mxu0 %v3741
    %4162 = vmatprep.subr.bf16.mxu0 %v3746
    %4163 = vmatpush1.bf16.msra.mxu0 %v3745
    %4164 = vmatprep.subr.bf16.mxu0 %v3750
    %4165 = vmatpush1.bf16.msra.mxu0 %v3749
    %4166 = vmatprep.subr.bf16.mxu0 %v3754
    %4167 = vmatpush1.bf16.msra.mxu0 %v3753
    %4168 = vmatprep.mubr.bf16.mxu0 %v102
    %4169 = vmatmul.mubr.bf16.gmra.mrb[0].mxu0 %v101
    %v4170 = vpop.f32.mrb[0].mxu0
    %v4171 = vadd.f32 %v4130, %v4170
    %v4172 = vpop.f32.mrb[0].mxu0
    %v4173 = vadd.f32 %v4132, %v4172
    %v4174 = vpop.f32.mrb[0].mxu0
    %v4175 = vpop.f32.mrb[0].mxu0
    %4176 = vdwg.mxu0
    %4177 = vmatprep.subr.bf16.mxu0 %v3504
    %4178 = vmatpush1.bf16.msra.mxu0 %v3503
    %4179 = vmatprep.subr.bf16.mxu0 %v3508
    %4180 = vmatpush1.bf16.msra.mxu0 %v3507
    %4181 = vmatprep.subr.bf16.mxu0 %v3512
    %4182 = vmatpush1.bf16.msra.mxu0 %v3511
    %4183 = vmatprep.subr.bf16.mxu0 %v3516
    %4184 = vmatpush1.bf16.msra.mxu0 %v3515
    %4185 = vmatprep.subr.bf16.mxu0 %v3520
    %4186 = vmatpush1.bf16.msra.mxu0 %v3519
    %4187 = vmatprep.subr.bf16.mxu0 %v3524
    %4188 = vmatpush1.bf16.msra.mxu0 %v3523
    %4189 = vmatprep.subr.bf16.mxu0 %v3528
    %4190 = vmatpush1.bf16.msra.mxu0 %v3527
    %4191 = vmatprep.subr.bf16.mxu0 %v3532
    %4192 = vmatpush1.bf16.msra.mxu0 %v3531
    %4193 = vmatprep.subr.bf16.mxu0 %v3536
    %4194 = vmatpush1.bf16.msra.mxu0 %v3535
    %4195 = vmatprep.subr.bf16.mxu0 %v3540
    %4196 = vmatpush1.bf16.msra.mxu0 %v3539
    %4197 = vmatprep.subr.bf16.mxu0 %v3544
    %4198 = vmatpush1.bf16.msra.mxu0 %v3543
    %4199 = vmatprep.subr.bf16.mxu0 %v3548
    %4200 = vmatpush1.bf16.msra.mxu0 %v3547
    %4201 = vmatprep.subr.bf16.mxu0 %v3552
    %4202 = vmatpush1.bf16.msra.mxu0 %v3551
    %4203 = vmatprep.subr.bf16.mxu0 %v3556
    %4204 = vmatpush1.bf16.msra.mxu0 %v3555
    %4205 = vmatprep.subr.bf16.mxu0 %v3560
    %4206 = vmatpush1.bf16.msra.mxu0 %v3559
    %4207 = vmatprep.subr.bf16.mxu0 %v3564
    %4208 = vmatpush1.bf16.msra.mxu0 %v3563
    %4209 = vmatprep.mubr.bf16.mxu0 %v96
    %4210 = vmatmul.mubr.bf16.gmra.mrb[0].mxu0 %v95
    %v4211 = vpop.f32.mrb[0].mxu0
    %v4212 = vadd.f32 %v2724, %v4211
    %v4213 = vpop.f32.mrb[0].mxu0
    %v4214 = vadd.f32 %v2728, %v4213
    %v4215 = vpop.f32.mrb[0].mxu0
    %v4216 = vpop.f32.mrb[0].mxu0
    %4217 = vdwg.mxu0
    %4218 = vmatprep.subr.bf16.mxu0 %v3568
    %4219 = vmatpush1.bf16.msra.mxu0 %v3567
    %4220 = vmatprep.subr.bf16.mxu0 %v3572
    %4221 = vmatpush1.bf16.msra.mxu0 %v3571
    %4222 = vmatprep.subr.bf16.mxu0 %v3576
    %4223 = vmatpush1.bf16.msra.mxu0 %v3575
    %4224 = vmatprep.subr.bf16.mxu0 %v3580
    %4225 = vmatpush1.bf16.msra.mxu0 %v3579
    %4226 = vmatprep.subr.bf16.mxu0 %v3584
    %4227 = vmatpush1.bf16.msra.mxu0 %v3583
    %4228 = vmatprep.subr.bf16.mxu0 %v3588
    %4229 = vmatpush1.bf16.msra.mxu0 %v3587
    %4230 = vmatprep.subr.bf16.mxu0 %v3592
    %4231 = vmatpush1.bf16.msra.mxu0 %v3591
    %4232 = vmatprep.subr.bf16.mxu0 %v3596
    %4233 = vmatpush1.bf16.msra.mxu0 %v3595
    %4234 = vmatprep.subr.bf16.mxu0 %v3600
    %4235 = vmatpush1.bf16.msra.mxu0 %v3599
    %4236 = vmatprep.subr.bf16.mxu0 %v3604
    %4237 = vmatpush1.bf16.msra.mxu0 %v3603
    %4238 = vmatprep.subr.bf16.mxu0 %v3608
    %4239 = vmatpush1.bf16.msra.mxu0 %v3607
    %4240 = vmatprep.subr.bf16.mxu0 %v3612
    %4241 = vmatpush1.bf16.msra.mxu0 %v3611
    %4242 = vmatprep.subr.bf16.mxu0 %v3616
    %4243 = vmatpush1.bf16.msra.mxu0 %v3615
    %4244 = vmatprep.subr.bf16.mxu0 %v3620
    %4245 = vmatpush1.bf16.msra.mxu0 %v3619
    %4246 = vmatprep.subr.bf16.mxu0 %v3624
    %4247 = vmatpush1.bf16.msra.mxu0 %v3623
    %4248 = vmatprep.subr.bf16.mxu0 %v3628
    %4249 = vmatpush1.bf16.msra.mxu0 %v3627
    %4250 = vmatprep.mubr.bf16.mxu0 %v98
    %4251 = vmatmul.mubr.bf16.gmra.mrb[0].mxu0 %v97
    %v4252 = vpop.f32.mrb[0].mxu0
    %v4253 = vadd.f32 %v4212, %v4252
    %v4254 = vpop.f32.mrb[0].mxu0
    %v4255 = vadd.f32 %v4214, %v4254
    %v4256 = vpop.f32.mrb[0].mxu0
    %v4257 = vpop.f32.mrb[0].mxu0
    %4258 = vdwg.mxu0
    %4259 = vmatprep.subr.bf16.mxu0 %v3632
    %4260 = vmatpush1.bf16.msra.mxu0 %v3631
    %4261 = vmatprep.subr.bf16.mxu0 %v3636
    %4262 = vmatpush1.bf16.msra.mxu0 %v3635
    %4263 = vmatprep.subr.bf16.mxu0 %v3640
    %4264 = vmatpush1.bf16.msra.mxu0 %v3639
    %4265 = vmatprep.subr.bf16.mxu0 %v3644
    %4266 = vmatpush1.bf16.msra.mxu0 %v3643
    %4267 = vmatprep.subr.bf16.mxu0 %v3648
    %4268 = vmatpush1.bf16.msra.mxu0 %v3647
    %4269 = vmatprep.subr.bf16.mxu0 %v3652
    %4270 = vmatpush1.bf16.msra.mxu0 %v3651
    %4271 = vmatprep.subr.bf16.mxu0 %v3656
    %4272 = vmatpush1.bf16.msra.mxu0 %v3655
    %4273 = vmatprep.subr.bf16.mxu0 %v3660
    %4274 = vmatpush1.bf16.msra.mxu0 %v3659
    %4275 = vmatprep.subr.bf16.mxu0 %v3664
    %4276 = vmatpush1.bf16.msra.mxu0 %v3663
    %4277 = vmatprep.subr.bf16.mxu0 %v3668
    %4278 = vmatpush1.bf16.msra.mxu0 %v3667
    %4279 = vmatprep.subr.bf16.mxu0 %v3672
    %4280 = vmatpush1.bf16.msra.mxu0 %v3671
    %4281 = vmatprep.subr.bf16.mxu0 %v3676
    %4282 = vmatpush1.bf16.msra.mxu0 %v3675
    %4283 = vmatprep.subr.bf16.mxu0 %v3680
    %4284 = vmatpush1.bf16.msra.mxu0 %v3679
    %4285 = vmatprep.subr.bf16.mxu0 %v3684
    %4286 = vmatpush1.bf16.msra.mxu0 %v3683
    %4287 = vmatprep.subr.bf16.mxu0 %v3688
    %4288 = vmatpush1.bf16.msra.mxu0 %v3687
    %4289 = vmatprep.subr.bf16.mxu0 %v3692
    %4290 = vmatpush1.bf16.msra.mxu0 %v3691
    %4291 = vmatprep.mubr.bf16.mxu0 %v100
    %4292 = vmatmul.mubr.bf16.gmra.mrb[0].mxu0 %v99
    %v4293 = vpop.f32.mrb[0].mxu0
    %v4294 = vadd.f32 %v4253, %v4293
    %v4295 = vpop.f32.mrb[0].mxu0
    %v4296 = vadd.f32 %v4255, %v4295
    %v4297 = vpop.f32.mrb[0].mxu0
    %v4298 = vpop.f32.mrb[0].mxu0
    %4299 = vdwg.mxu0
    %4300 = vmatprep.subr.bf16.mxu0 %v3696
    %4301 = vmatpush1.bf16.msra.mxu0 %v3695
    %4302 = vmatprep.subr.bf16.mxu0 %v3700
    %4303 = vmatpush1.bf16.msra.mxu0 %v3699
    %4304 = vmatprep.subr.bf16.mxu0 %v3704
    %4305 = vmatpush1.bf16.msra.mxu0 %v3703
    %4306 = vmatprep.subr.bf16.mxu0 %v3708
    %4307 = vmatpush1.bf16.msra.mxu0 %v3707
    %4308 = vmatprep.subr.bf16.mxu0 %v3712
    %4309 = vmatpush1.bf16.msra.mxu0 %v3711
    %4310 = vmatprep.subr.bf16.mxu0 %v3716
    %4311 = vmatpush1.bf16.msra.mxu0 %v3715
    %4312 = vmatprep.subr.bf16.mxu0 %v3720
    %4313 = vmatpush1.bf16.msra.mxu0 %v3719
    %4314 = vmatprep.subr.bf16.mxu0 %v3724
    %4315 = vmatpush1.bf16.msra.mxu0 %v3723
    %4316 = vmatprep.subr.bf16.mxu0 %v3728
    %4317 = vmatpush1.bf16.msra.mxu0 %v3727
    %4318 = vmatprep.subr.bf16.mxu0 %v3732
    %4319 = vmatpush1.bf16.msra.mxu0 %v3731
    %4320 = vmatprep.subr.bf16.mxu0 %v3736
    %4321 = vmatpush1.bf16.msra.mxu0 %v3735
    %4322 = vmatprep.subr.bf16.mxu0 %v3740
    %4323 = vmatpush1.bf16.msra.mxu0 %v3739
    %4324 = vmatprep.subr.bf16.mxu0 %v3744
    %4325 = vmatpush1.bf16.msra.mxu0 %v3743
    %4326 = vmatprep.subr.bf16.mxu0 %v3748
    %4327 = vmatpush1.bf16.msra.mxu0 %v3747
    %4328 = vmatprep.subr.bf16.mxu0 %v3752
    %4329 = vmatpush1.bf16.msra.mxu0 %v3751
    %4330 = vmatprep.subr.bf16.mxu0 %v3756
    %4331 = vmatpush1.bf16.msra.mxu0 %v3755
    %4332 = vmatprep.mubr.bf16.mxu0 %v102
    %4333 = vmatmul.mubr.bf16.gmra.mrb[0].mxu0 %v101
    %v4334 = vpop.f32.mrb[0].mxu0
    %v4335 = vadd.f32 %v4294, %v4334
    %v4336 = vpop.f32.mrb[0].mxu0
    %v4337 = vadd.f32 %v4296, %v4336
    %v4338 = vpop.f32.mrb[0].mxu0
    %v4339 = vpop.f32.mrb[0].mxu0
    %4340 = vdwg.mxu0
    %v4341 = vmax.f32 %v4171, 0.0
    %v4342 = vmax.f32 %v4173, 0.0
    %v4343 = vmax.f32 %v4335, 0.0
    %v4344 = vmax.f32 %v4337, 0.0
    %v4345 = vpack.c.bf16 %v4341, %v4341
    %v4346 = vpack.c.bf16 %v4342, %v4342
    %v4347 = vpack.c.bf16 %v4343, %v4343
    %v4348 = vpack.c.bf16 %v4344, %v4344
    %v4349 = vld [vmem:[%s9] sm:$0xf]
    %v4350 = vld [vmem:[%s9 + $0x4] sm:$0xf]
    %v4351 = vld [vmem:[%s9 + $0x8] sm:$0xf]
    %v4352 = vld [vmem:[%s9 + $0xc] sm:$0xf]
    %v4353 = vld [vmem:[%s9 + $0x10] sm:$0xf]
    %v4354 = vld [vmem:[%s9 + $0x14] sm:$0xf]
    %v4355 = vld [vmem:[%s9 + $0x18] sm:$0xf]
    %v4356 = vld [vmem:[%s9 + $0x1c] sm:$0xf]
    %v4357 = vld [vmem:[%s9 + $0x20] sm:$0xf]
    %v4358 = vld [vmem:[%s9 + $0x24] sm:$0xf]
    %v4359 = vld [vmem:[%s9 + $0x28] sm:$0xf]
    %v4360 = vld [vmem:[%s9 + $0x2c] sm:$0xf]
    %v4361 = vld [vmem:[%s9 + $0x30] sm:$0xf]
    %v4362 = vld [vmem:[%s9 + $0x34] sm:$0xf]
    %v4363 = vld [vmem:[%s9 + $0x38] sm:$0xf]
    %v4364 = vld [vmem:[%s9 + $0x3c] sm:$0xf]
    %v4365 = vld [vmem:[%s9 + $0x40] sm:$0xf]
    %v4366 = vld [vmem:[%s9 + $0x44] sm:$0xf]
    %v4367 = vld [vmem:[%s9 + $0x48] sm:$0xf]
    %v4368 = vld [vmem:[%s9 + $0x4c] sm:$0xf]
    %v4369 = vld [vmem:[%s9 + $0x50] sm:$0xf]
    %v4370 = vld [vmem:[%s9 + $0x54] sm:$0xf]
    %v4371 = vld [vmem:[%s9 + $0x58] sm:$0xf]
    %v4372 = vld [vmem:[%s9 + $0x5c] sm:$0xf]
    %v4373 = vld [vmem:[%s9 + $0x60] sm:$0xf]
    %v4374 = vld [vmem:[%s9 + $0x64] sm:$0xf]
    %v4375 = vld [vmem:[%s9 + $0x68] sm:$0xf]
    %v4376 = vld [vmem:[%s9 + $0x6c] sm:$0xf]
    %v4377 = vld [vmem:[%s9 + $0x70] sm:$0xf]
    %v4378 = vld [vmem:[%s9 + $0x74] sm:$0xf]
    %v4379 = vld [vmem:[%s9 + $0x78] sm:$0xf]
    %v4380 = vld [vmem:[%s9 + $0x7c] sm:$0xf]
    %v4381 = vld [vmem:[%s9 + $0x80] sm:$0xf]
    %v4382 = vld [vmem:[%s9 + $0x84] sm:$0xf]
    %v4383 = vld [vmem:[%s9 + $0x88] sm:$0xf]
    %v4384 = vld [vmem:[%s9 + $0x8c] sm:$0xf]
    %v4385 = vld [vmem:[%s9 + $0x90] sm:$0xf]
    %v4386 = vld [vmem:[%s9 + $0x94] sm:$0xf]
    %v4387 = vld [vmem:[%s9 + $0x98] sm:$0xf]
    %v4388 = vld [vmem:[%s9 + $0x9c] sm:$0xf]
    %v4389 = vld [vmem:[%s9 + $0xa0] sm:$0xf]
    %v4390 = vld [vmem:[%s9 + $0xa4] sm:$0xf]
    %v4391 = vld [vmem:[%s9 + $0xa8] sm:$0xf]
    %v4392 = vld [vmem:[%s9 + $0xac] sm:$0xf]
    %v4393 = vld [vmem:[%s9 + $0xb0] sm:$0xf]
    %v4394 = vld [vmem:[%s9 + $0xb4] sm:$0xf]
    %v4395 = vld [vmem:[%s9 + $0xb8] sm:$0xf]
    %v4396 = vld [vmem:[%s9 + $0xbc] sm:$0xf]
    %v4397 = vld [vmem:[%s9 + $0xc0] sm:$0xf]
    %v4398 = vld [vmem:[%s9 + $0xc4] sm:$0xf]
    %v4399 = vld [vmem:[%s9 + $0xc8] sm:$0xf]
    %v4400 = vld [vmem:[%s9 + $0xcc] sm:$0xf]
    %v4401 = vld [vmem:[%s9 + $0xd0] sm:$0xf]
    %v4402 = vld [vmem:[%s9 + $0xd4] sm:$0xf]
    %v4403 = vld [vmem:[%s9 + $0xd8] sm:$0xf]
    %v4404 = vld [vmem:[%s9 + $0xdc] sm:$0xf]
    %v4405 = vld [vmem:[%s9 + $0xe0] sm:$0xf]
    %v4406 = vld [vmem:[%s9 + $0xe4] sm:$0xf]
    %v4407 = vld [vmem:[%s9 + $0xe8] sm:$0xf]
    %v4408 = vld [vmem:[%s9 + $0xec] sm:$0xf]
    %v4409 = vld [vmem:[%s9 + $0xf0] sm:$0xf]
    %v4410 = vld [vmem:[%s9 + $0xf4] sm:$0xf]
    %v4411 = vld [vmem:[%s9 + $0xf8] sm:$0xf]
    %v4412 = vld [vmem:[%s9 + $0xfc] sm:$0xf]
    %v4413 = vld [vmem:[%s10] sm:$0x1]
    %v4415 = vlaneseq
    %v4416 = vshrl.u32 %v4415, 7
    %v4417 = vsub.s32 0, %v4416
    %v4418 = vrot.slane %v4413, %v4417
    %v4484 = vunpack.c.l.b16 %v4349
    %v4485 = vunpack.c.l.b16 %v4350
    %v4486 = vunpack.c.l.b16 %v4351
    %v4487 = vunpack.c.l.b16 %v4352
    %v4488 = vunpack.c.l.b16 %v4353
    %v4489 = vunpack.c.l.b16 %v4354
    %v4490 = vunpack.c.l.b16 %v4355
    %v4491 = vunpack.c.l.b16 %v4356
    %v4492 = vunpack.c.l.b16 %v4357
    %v4493 = vunpack.c.l.b16 %v4358
    %v4494 = vunpack.c.l.b16 %v4359
    %v4495 = vunpack.c.l.b16 %v4360
    %v4496 = vunpack.c.l.b16 %v4361
    %v4497 = vunpack.c.l.b16 %v4362
    %v4498 = vunpack.c.l.b16 %v4363
    %v4499 = vunpack.c.l.b16 %v4364
    %v4500 = vunpack.c.l.b16 %v4365
    %v4501 = vunpack.c.l.b16 %v4366
    %v4502 = vunpack.c.l.b16 %v4367
    %v4503 = vunpack.c.l.b16 %v4368
    %v4504 = vunpack.c.l.b16 %v4369
    %v4505 = vunpack.c.l.b16 %v4370
    %v4506 = vunpack.c.l.b16 %v4371
    %v4507 = vunpack.c.l.b16 %v4372
    %v4508 = vunpack.c.l.b16 %v4373
    %v4509 = vunpack.c.l.b16 %v4374
    %v4510 = vunpack.c.l.b16 %v4375
    %v4511 = vunpack.c.l.b16 %v4376
    %v4512 = vunpack.c.l.b16 %v4377
    %v4513 = vunpack.c.l.b16 %v4378
    %v4514 = vunpack.c.l.b16 %v4379
    %v4515 = vunpack.c.l.b16 %v4380
    %v4516 = vunpack.c.l.b16 %v4381
    %v4517 = vunpack.c.l.b16 %v4382
    %v4518 = vunpack.c.l.b16 %v4383
    %v4519 = vunpack.c.l.b16 %v4384
    %v4520 = vunpack.c.l.b16 %v4385
    %v4521 = vunpack.c.l.b16 %v4386
    %v4522 = vunpack.c.l.b16 %v4387
    %v4523 = vunpack.c.l.b16 %v4388
    %v4524 = vunpack.c.l.b16 %v4389
    %v4525 = vunpack.c.l.b16 %v4390
    %v4526 = vunpack.c.l.b16 %v4391
    %v4527 = vunpack.c.l.b16 %v4392
    %v4528 = vunpack.c.l.b16 %v4393
    %v4529 = vunpack.c.l.b16 %v4394
    %v4530 = vunpack.c.l.b16 %v4395
    %v4531 = vunpack.c.l.b16 %v4396
    %v4532 = vunpack.c.l.b16 %v4397
    %v4533 = vunpack.c.l.b16 %v4398
    %v4534 = vunpack.c.l.b16 %v4399
    %v4535 = vunpack.c.l.b16 %v4400
    %v4536 = vunpack.c.l.b16 %v4401
    %v4537 = vunpack.c.l.b16 %v4402
    %v4538 = vunpack.c.l.b16 %v4403
    %v4539 = vunpack.c.l.b16 %v4404
    %v4540 = vunpack.c.l.b16 %v4405
    %v4541 = vunpack.c.l.b16 %v4406
    %v4542 = vunpack.c.l.b16 %v4407
    %v4543 = vunpack.c.l.b16 %v4408
    %v4544 = vunpack.c.l.b16 %v4409
    %v4545 = vunpack.c.l.b16 %v4410
    %v4546 = vunpack.c.l.b16 %v4411
    %v4547 = vunpack.c.l.b16 %v4412
    %v4548 = vpack.c.b16 %v4485, %v4484
    %v4549 = vpack.c.b16 %v4487, %v4486
    %v4550 = vpack.c.b16 %v4489, %v4488
    %v4551 = vpack.c.b16 %v4491, %v4490
    %v4552 = vpack.c.b16 %v4493, %v4492
    %v4553 = vpack.c.b16 %v4495, %v4494
    %v4554 = vpack.c.b16 %v4497, %v4496
    %v4555 = vpack.c.b16 %v4499, %v4498
    %v4556 = vpack.c.b16 %v4501, %v4500
    %v4557 = vpack.c.b16 %v4503, %v4502
    %v4558 = vpack.c.b16 %v4505, %v4504
    %v4559 = vpack.c.b16 %v4507, %v4506
    %v4560 = vpack.c.b16 %v4509, %v4508
    %v4561 = vpack.c.b16 %v4511, %v4510
    %v4562 = vpack.c.b16 %v4513, %v4512
    %v4563 = vpack.c.b16 %v4515, %v4514
    %v4564 = vpack.c.b16 %v4517, %v4516
    %v4565 = vpack.c.b16 %v4519, %v4518
    %v4566 = vpack.c.b16 %v4521, %v4520
    %v4567 = vpack.c.b16 %v4523, %v4522
    %v4568 = vpack.c.b16 %v4525, %v4524
    %v4569 = vpack.c.b16 %v4527, %v4526
    %v4570 = vpack.c.b16 %v4529, %v4528
    %v4571 = vpack.c.b16 %v4531, %v4530
    %v4572 = vpack.c.b16 %v4533, %v4532
    %v4573 = vpack.c.b16 %v4535, %v4534
    %v4574 = vpack.c.b16 %v4537, %v4536
    %v4575 = vpack.c.b16 %v4539, %v4538
    %v4576 = vpack.c.b16 %v4541, %v4540
    %v4577 = vpack.c.b16 %v4543, %v4542
    %v4578 = vpack.c.b16 %v4545, %v4544
    %v4579 = vpack.c.b16 %v4547, %v4546
    %4612 = vmatprep.subr.bf16.mxu0 0
    %4613 = vmatpush1.bf16.msra.mxu0 %v4548
    %4614 = vmatprep.subr.bf16.mxu0 0
    %4615 = vmatpush1.bf16.msra.mxu0 %v4549
    %4616 = vmatprep.subr.bf16.mxu0 0
    %4617 = vmatpush1.bf16.msra.mxu0 %v4550
    %4618 = vmatprep.subr.bf16.mxu0 0
    %4619 = vmatpush1.bf16.msra.mxu0 %v4551
    %4620 = vmatprep.subr.bf16.mxu0 0
    %4621 = vmatpush1.bf16.msra.mxu0 %v4552
    %4622 = vmatprep.subr.bf16.mxu0 0
    %4623 = vmatpush1.bf16.msra.mxu0 %v4553
    %4624 = vmatprep.subr.bf16.mxu0 0
    %4625 = vmatpush1.bf16.msra.mxu0 %v4554
    %4626 = vmatprep.subr.bf16.mxu0 0
    %4627 = vmatpush1.bf16.msra.mxu0 %v4555
    %4628 = vmatprep.subr.bf16.mxu0 0
    %4629 = vmatpush1.bf16.msra.mxu0 %v4556
    %4630 = vmatprep.subr.bf16.mxu0 0
    %4631 = vmatpush1.bf16.msra.mxu0 %v4557
    %4632 = vmatprep.subr.bf16.mxu0 0
    %4633 = vmatpush1.bf16.msra.mxu0 %v4558
    %4634 = vmatprep.subr.bf16.mxu0 0
    %4635 = vmatpush1.bf16.msra.mxu0 %v4559
    %4636 = vmatprep.subr.bf16.mxu0 0
    %4637 = vmatpush1.bf16.msra.mxu0 %v4560
    %4638 = vmatprep.subr.bf16.mxu0 0
    %4639 = vmatpush1.bf16.msra.mxu0 %v4561
    %4640 = vmatprep.subr.bf16.mxu0 0
    %4641 = vmatpush1.bf16.msra.mxu0 %v4562
    %4642 = vmatprep.subr.bf16.mxu0 0
    %4643 = vmatpush1.bf16.msra.mxu0 %v4563
    %4644 = vmatprep.mubr.bf16.mxu0 %v4346
    %4645 = vmatmul.mubr.bf16.gmra.mrb[0].mxu0 %v4345
    %v4646 = vpop.f32.mrb[0].mxu0
    %v4647 = vadd.f32 %v4418, %v4646
    %v4648 = vpop.f32.mrb[0].mxu0
    %v4649 = vpop.f32.mrb[0].mxu0
    %v4650 = vpop.f32.mrb[0].mxu0
    %4651 = vdwg.mxu0
    %4652 = vmatprep.subr.bf16.mxu0 0
    %4653 = vmatpush1.bf16.msra.mxu0 %v4564
    %4654 = vmatprep.subr.bf16.mxu0 0
    %4655 = vmatpush1.bf16.msra.mxu0 %v4565
    %4656 = vmatprep.subr.bf16.mxu0 0
    %4657 = vmatpush1.bf16.msra.mxu0 %v4566
    %4658 = vmatprep.subr.bf16.mxu0 0
    %4659 = vmatpush1.bf16.msra.mxu0 %v4567
    %4660 = vmatprep.subr.bf16.mxu0 0
    %4661 = vmatpush1.bf16.msra.mxu0 %v4568
    %4662 = vmatprep.subr.bf16.mxu0 0
    %4663 = vmatpush1.bf16.msra.mxu0 %v4569
    %4664 = vmatprep.subr.bf16.mxu0 0
    %4665 = vmatpush1.bf16.msra.mxu0 %v4570
    %4666 = vmatprep.subr.bf16.mxu0 0
    %4667 = vmatpush1.bf16.msra.mxu0 %v4571
    %4668 = vmatprep.subr.bf16.mxu0 0
    %4669 = vmatpush1.bf16.msra.mxu0 %v4572
    %4670 = vmatprep.subr.bf16.mxu0 0
    %4671 = vmatpush1.bf16.msra.mxu0 %v4573
    %4672 = vmatprep.subr.bf16.mxu0 0
    %4673 = vmatpush1.bf16.msra.mxu0 %v4574
    %4674 = vmatprep.subr.bf16.mxu0 0
    %4675 = vmatpush1.bf16.msra.mxu0 %v4575
    %4676 = vmatprep.subr.bf16.mxu0 0
    %4677 = vmatpush1.bf16.msra.mxu0 %v4576
    %4678 = vmatprep.subr.bf16.mxu0 0
    %4679 = vmatpush1.bf16.msra.mxu0 %v4577
    %4680 = vmatprep.subr.bf16.mxu0 0
    %4681 = vmatpush1.bf16.msra.mxu0 %v4578
    %4682 = vmatprep.subr.bf16.mxu0 0
    %4683 = vmatpush1.bf16.msra.mxu0 %v4579
    %4684 = vmatprep.mubr.bf16.mxu0 %v4348
    %4685 = vmatmul.mubr.bf16.gmra.mrb[0].mxu0 %v4347
    %v4686 = vpop.f32.mrb[0].mxu0
    %v4687 = vadd.f32 %v4647, %v4686
    %v4688 = vpop.f32.mrb[0].mxu0
    %v4689 = vpop.f32.mrb[0].mxu0
    %v4690 = vpop.f32.mrb[0].mxu0
    %4691 = vdwg.mxu0
    %v4692 = vmax.f32 %v4687, 0.0
    %v4693 = vpack.c.bf16 %v4692, %v4692
    %v4694 = vld [vmem:[%s11] sm:$0xf]
    %v4695 = vld [vmem:[%s11 + $0x4] sm:$0xf]
    %v4696 = vld [vmem:[%s11 + $0x8] sm:$0xf]
    %v4697 = vld [vmem:[%s11 + $0xc] sm:$0xf]
    %v4698 = vld [vmem:[%s11 + $0x10] sm:$0xf]
    %v4699 = vld [vmem:[%s11 + $0x14] sm:$0xf]
    %v4700 = vld [vmem:[%s11 + $0x18] sm:$0xf]
    %v4701 = vld [vmem:[%s11 + $0x1c] sm:$0xf]
    %v4702 = vld [vmem:[%s11 + $0x20] sm:$0xf]
    %v4703 = vld [vmem:[%s11 + $0x24] sm:$0xf]
    %v4704 = vld [vmem:[%s11 + $0x28] sm:$0xf]
    %v4705 = vld [vmem:[%s11 + $0x2c] sm:$0xf]
    %v4706 = vld [vmem:[%s11 + $0x30] sm:$0xf]
    %v4707 = vld [vmem:[%s11 + $0x34] sm:$0xf]
    %v4708 = vld [vmem:[%s11 + $0x38] sm:$0xf]
    %v4709 = vld [vmem:[%s11 + $0x3c] sm:$0xf]
    %v4710 = vld [vmem:[%s12] sm:$0x1]
    %v4712 = vlaneseq
    %v4713 = vshrl.u32 %v4712, 7
    %v4714 = vsub.s32 0, %v4713
    %v4715 = vrot.slane %v4710, %v4714
    %v4733 = vunpack.c.l.b16 %v4694
    %v4734 = vunpack.c.l.b16 %v4695
    %v4735 = vunpack.c.l.b16 %v4696
    %v4736 = vunpack.c.l.b16 %v4697
    %v4737 = vunpack.c.l.b16 %v4698
    %v4738 = vunpack.c.l.b16 %v4699
    %v4739 = vunpack.c.l.b16 %v4700
    %v4740 = vunpack.c.l.b16 %v4701
    %v4741 = vunpack.c.l.b16 %v4702
    %v4742 = vunpack.c.l.b16 %v4703
    %v4743 = vunpack.c.l.b16 %v4704
    %v4744 = vunpack.c.l.b16 %v4705
    %v4745 = vunpack.c.l.b16 %v4706
    %v4746 = vunpack.c.l.b16 %v4707
    %v4747 = vunpack.c.l.b16 %v4708
    %v4748 = vunpack.c.l.b16 %v4709
    %v4749 = vpack.c.b16 %v4734, %v4733
    %v4750 = vpack.c.b16 %v4736, %v4735
    %v4751 = vpack.c.b16 %v4738, %v4737
    %v4752 = vpack.c.b16 %v4740, %v4739
    %v4753 = vpack.c.b16 %v4742, %v4741
    %v4754 = vpack.c.b16 %v4744, %v4743
    %v4755 = vpack.c.b16 %v4746, %v4745
    %v4756 = vpack.c.b16 %v4748, %v4747
    %4765 = vmatprep.subr.bf16.mxu0 0
    %4766 = vmatpush1.bf16.msra.mxu0 %v4749
    %4767 = vmatprep.subr.bf16.mxu0 0
    %4768 = vmatpush1.bf16.msra.mxu0 %v4750
    %4769 = vmatprep.subr.bf16.mxu0 0
    %4770 = vmatpush1.bf16.msra.mxu0 %v4751
    %4771 = vmatprep.subr.bf16.mxu0 0
    %4772 = vmatpush1.bf16.msra.mxu0 %v4752
    %4773 = vmatprep.subr.bf16.mxu0 0
    %4774 = vmatpush1.bf16.msra.mxu0 %v4753
    %4775 = vmatprep.subr.bf16.mxu0 0
    %4776 = vmatpush1.bf16.msra.mxu0 %v4754
    %4777 = vmatprep.subr.bf16.mxu0 0
    %4778 = vmatpush1.bf16.msra.mxu0 %v4755
    %4779 = vmatprep.subr.bf16.mxu0 0
    %4780 = vmatpush1.bf16.msra.mxu0 %v4756
    %4781 = vmatprep.subr.bf16.mxu0 0
    %4782 = vmatpush1.bf16.msra.mxu0 0
    %4783 = vmatprep.subr.bf16.mxu0 0
    %4784 = vmatpush1.bf16.msra.mxu0 0
    %4785 = vmatprep.subr.bf16.mxu0 0
    %4786 = vmatpush1.bf16.msra.mxu0 0
    %4787 = vmatprep.subr.bf16.mxu0 0
    %4788 = vmatpush1.bf16.msra.mxu0 0
    %4789 = vmatprep.subr.bf16.mxu0 0
    %4790 = vmatpush1.bf16.msra.mxu0 0
    %4791 = vmatprep.subr.bf16.mxu0 0
    %4792 = vmatpush1.bf16.msra.mxu0 0
    %4793 = vmatprep.subr.bf16.mxu0 0
    %4794 = vmatpush1.bf16.msra.mxu0 0
    %4795 = vmatprep.subr.bf16.mxu0 0
    %4796 = vmatpush1.bf16.msra.mxu0 0
    %4797 = vmatprep.mubr.bf16.mxu0 0
    %4798 = vmatmul.mubr.bf16.gmra.mrb[0].mxu0 %v4693
    %v4799 = vpop.f32.mrb[0].mxu0
    %v4800 = vadd.f32 %v4715, %v4799
    %v4801 = vpop.f32.mrb[0].mxu0
    %v4802 = vpop.f32.mrb[0].mxu0
    %v4803 = vpop.f32.mrb[0].mxu0
    %4804 = vdwg.mxu0
    %vm4805 = vcmask 17408
    %4806 = vst.msk [vmem:[#allocation4] sm:$0x3] %vm4805, %v4800
    // Predicated region
    $region54: #{refiner_pallas.5} parent=1 // pred_check
      _
    $region55: #{refiner_pallas.5} parent=1 // pred_check_branch
      %4808 = sbr.rel (0) target = $region57
    $region56: #{refiner_pallas.5} parent=1 // pred_region
      %s4810 = ssub.s32 32, 32
      %4811 = vsyncadd [#allocation3], %s4810
      %s4813 = sshll.u32 [#allocation2], 4
      %s4814 = int_to_ptr.vmem [resolvable:$true] %s4813
      %4816 = dma.vmem_to_hbm [thread:$0]  %s4814, 32, %s13, [#allocation3]
    $region57: #{refiner_pallas.5} parent=1 // pred_fallthru
      _
    // Predicated region
    $region58: #{refiner_pallas.5} parent=1 // pred_check
      _
    $region59: #{refiner_pallas.5} parent=1 // pred_check_branch
      %4818 = sbr.rel (0) target = $region61
    $region60: #{refiner_pallas.5} parent=1 // pred_region
      %s4820 = ssub.s32 32, 32
      %4821 = vsyncadd [#allocation5], %s4820
      %s4823 = sshll.u32 [#allocation4], 4
      %s4824 = int_to_ptr.vmem [resolvable:$true] %s4823
      %4826 = dma.vmem_to_hbm [thread:$0]  %s4824, 32, %s14, [#allocation5]
    $region61: #{refiner_pallas.5} parent=1 // pred_fallthru
      _
    // Predicated region
    $region62: #{refiner_pallas.5} parent=1 // pred_check
      _
    $region63: #{refiner_pallas.5} parent=1 // pred_check_branch
      %4828 = sbr.rel (0) target = $region65
    $region64: #{refiner_pallas.5} parent=1 // pred_region
      %4829 = dma.done [#allocation3], 32
    $region65: #{refiner_pallas.5} parent=1 // pred_fallthru
      _
    // Predicated region
    $region66: #{refiner_pallas.5} parent=1 // pred_check
      _
    $region67: #{refiner_pallas.5} parent=1 // pred_check_branch
      %4831 = sbr.rel (0) target = $region69
    $region68: #{refiner_pallas.5} parent=1 // pred_region
      %4832 = dma.done [#allocation5], 32
    $region69: #{refiner_pallas.5} parent=1 // pred_fallthru
      _
    %4833 = vsyncpa [#allocation3], 1
    %4834 = vsyncpa [#allocation5], 1

</llo_original>
